<compile_context>
chip_gen: v7x
topology: tpu7x:2x2x1
jax: 0.10.0
libtpu: 0.0.40
codegen_flags: <defaults>
</compile_context>

<pallas_src>
import functools

import jax
import jax.numpy as jnp
from jax import lax
from jax.experimental import pallas as pl
from jax.experimental.pallas import tpu as pltpu


def _deconv2d_kernel(x_ref, w_ref, b_ref, o_ref, xup_ref, *,
                     KH, KW, TH, OW, H, W, C, ROWS, WP,
                     stride, padding, dilation):
    """One (batch image, output-row tile) grid step.

    x_ref   : (1, C, H*W)          original image, lane-dense flattened NCHW
    w_ref   : (Cout, KH*KW*C)      packed weight slab, columns ordered (kh, kw, ci)
    b_ref   : (Cout, 1)            bias
    o_ref   : (1, Cout, TH*OW)     lane-dense flattened-NCHW output tile
    xup_ref : (ROWS, WP, C) VMEM   2x-upsampled + zero-padded image (built at t == 0)
    """
    t = pl.program_id(1)
    dt = xup_ref.dtype

    # ---- build the upsampled + padded image once per batch image (tile 0) ----
    @pl.when(t == 0)
    def _build():
        # Zero only the border strips; the interior is fully overwritten below.
        if padding > 0:
            xup_ref[:padding, :, :] = jnp.zeros((padding, WP, C), dt)
            xup_ref[:, :padding, :] = jnp.zeros((ROWS, padding, C), dt)
        if ROWS > padding + 2 * H:
            xup_ref[padding + 2 * H:, :, :] = jnp.zeros(
                (ROWS - padding - 2 * H, WP, C), dt)
        if WP > padding + 2 * W:
            xup_ref[:, padding + 2 * W:, :] = jnp.zeros(
                (ROWS, WP - padding - 2 * W, C), dt)
        # Nearest 2x upsample using only lane-preserving reshapes.
        x2 = jnp.transpose(x_ref[0].astype(dt))                          # (H*W, C)
        xd = jnp.broadcast_to(x2[:, None, :], (H * W, 2, C)).reshape(2 * H * W, C)
        xcol = xd.reshape(H, 2 * W, C)                                   # cols duplicated
        xup = jnp.broadcast_to(xcol[:, None], (H, 2, 2 * W, C)).reshape(
            2 * H, 2 * W, C)                                             # rows duplicated
        xup_ref[padding:padding + 2 * H, padding:padding + 2 * W, :] = xup

    # ---- im2col for this tile of TH output rows, packed (K, TH*OW) ----
    row0 = t * (TH * stride)
    if (TH * stride) % 8 == 0:
        row0 = pl.multiple_of(row0, 8)
    taps = []
    for kh in range(KH):
        for kw in range(KW):
            r0 = row0 + kh * dilation
            c0 = kw * dilation
            if stride == 1:
                rows = pl.ds(r0, TH)
                cols = pl.ds(c0, OW)
            else:
                rows = pl.ds(r0, TH, stride)
                cols = pl.ds(c0, OW, stride)
            patch = xup_ref[rows, cols, :]                               # (TH, OW, C)
            taps.append(jnp.transpose(patch.reshape(TH * OW, C)))        # (C, TH*OW)
    p = jnp.concatenate(taps, axis=0)                                    # (KH*KW*C, TH*OW)

    # ---- single MXU contraction, result lane dim = TH*OW (no output transpose) ----
    acc = jnp.dot(w_ref[...], p, preferred_element_type=jnp.float32)     # (Cout, TH*OW)
    acc = acc + b_ref[...]
    o_ref[0] = acc.astype(o_ref.dtype)


def _round_up(v, m):
    return -(-v // m) * m


def _pick_tile_rows(OH, OW, cap=2048):
    """Pick TH so the (TH*OW)-lane output tile is lane-dense and as large as possible."""
    best = None
    for th in range(1, OH + 1):
        if th * OW > cap:
            break
        if OH % th == 0 and (th * OW) % 128 == 0:
            best = th
    if best is not None:
        return best
    # Remainder path: largest lane-dense TH under the cap (cdiv grid, partial last tile).
    for th in range(min(OH, max(1, cap // OW)), 0, -1):
        if (th * OW) % 128 == 0:
            return th
    # Last resort: one full-extent tile (legal block; stores are masked).
    return OH


def deconv2d_forward(x_nchw, weight, bias, *, stride, padding, dilation):
    """x_nchw: (N, Cin, H, W); weight: (Cout, Cin, KH, KW); bias: (Cout,)."""
    N, Cin, H, W = x_nchw.shape
    Cout, _, KH, KW = weight.shape

    HU, WU = 2 * H, 2 * W
    HP, WP = HU + 2 * padding, WU + 2 * padding
    OH = (HU + 2 * padding - dilation * (KH - 1) - 1) // stride + 1
    OW = (WU + 2 * padding - dilation * (KW - 1) - 1) // stride + 1
    K = KH * KW * Cin

    TH = _pick_tile_rows(OH, OW)
    T = -(-OH // TH)
    # Scratch rows must cover the reads of the (possibly partial) last tile.
    ROWS = max(HP, (T * TH - 1) * stride + dilation * (KH - 1) + 1)

    # Lane-dense flattened input (pure reshape, no wrapper transpose).
    x_flat = x_nchw.reshape(N, Cin, H * W)
    # Packed weight slab (Cout, K); columns ordered (kh, kw, ci) to match the im2col rows.
    w2d = jnp.transpose(weight, (0, 2, 3, 1)).reshape(Cout, K)
    b2d = bias.reshape(Cout, 1)

    kernel = functools.partial(
        _deconv2d_kernel,
        KH=KH, KW=KW, TH=TH, OW=OW, H=H, W=W, C=Cin, ROWS=ROWS, WP=WP,
        stride=stride, padding=padding, dilation=dilation)

    # Rough lane-padded VMEM footprint; raise the scoped limit only when needed.
    est = (ROWS * _round_up(WP, 8) * _round_up(Cin, 128) * 4           # xup scratch
           + 2 * _round_up(Cin, 8) * _round_up(H * W, 128) * 4         # input block x2
           + 2 * _round_up(Cout, 8) * _round_up(K, 128) * 4            # weight block x2
           + 2 * _round_up(Cout, 8) * _round_up(TH * OW, 128) * 4      # output block x2
           + _round_up(K, 8) * _round_up(TH * OW, 128) * 4             # im2col value/spill
           + (2 << 20))
    vmem_limit = est if est > (12 << 20) else None

    out_flat = pl.pallas_call(
        kernel,
        out_shape=jax.ShapeDtypeStruct((N, Cout, OH * OW), x_nchw.dtype),
        grid_spec=pltpu.PrefetchScalarGridSpec(
            num_scalar_prefetch=0,
            grid=(N, T),
            in_specs=[
                pl.BlockSpec((1, Cin, H * W), lambda n, t: (n, 0, 0)),
                pl.BlockSpec((Cout, K), lambda n, t: (0, 0)),
                pl.BlockSpec((Cout, 1), lambda n, t: (0, 0)),
            ],
            out_specs=pl.BlockSpec((1, Cout, TH * OW), lambda n, t: (n, 0, t)),
            scratch_shapes=[
                pltpu.VMEM((ROWS, WP, Cin), jnp.float32),   # upsampled + padded image
            ]),
        compiler_params=pltpu.CompilerParams(
            dimension_semantics=("parallel", "arbitrary"),
            vmem_limit_bytes=vmem_limit),
    )(x_flat, w2d, b2d)

    # Flattened NCHW -> NCHW (free reshape, no transpose).
    return out_flat.reshape(N, Cout, OH, OW)


def init_params(key, in_channel, out_channel, kernel_size):
    # Deterministic init mimicking nn.Conv2d default (uniform +/- 1/sqrt(fan_in)).
    kw, kb = jax.random.split(key)
    fan_in = in_channel * kernel_size * kernel_size
    bound = 1.0 / jnp.sqrt(fan_in)
    weight = jax.random.uniform(
        kw, (out_channel, in_channel, kernel_size, kernel_size),
        minval=-bound, maxval=bound, dtype=jnp.float32)
    bias = jax.random.uniform(
        kb, (out_channel,), minval=-bound, maxval=bound, dtype=jnp.float32)
    return weight, bias


if __name__ == "__main__":
    # DeConv2d(in_channel=4, out_channel=8, kernel_size=3, stride=1, padding=1, dilation=1)
    in_channel, out_channel = 4, 8
    kernel_size, stride, padding, dilation = 3, 1, 1, 1

    key = jax.random.PRNGKey(0)
    kx, kp = jax.random.split(key)
    x = jax.random.normal(kx, (2, in_channel, 16, 16), dtype=jnp.float32)  # NCHW
    weight, bias = init_params(kp, in_channel, out_channel, kernel_size)

    out = deconv2d_forward(x, weight, bias,
                           stride=stride, padding=padding, dilation=dilation)
    out = jax.block_until_ready(out)

    # Reference: XLA conv on the explicitly upsampled input.
    x_up = jnp.repeat(jnp.repeat(x, 2, axis=2), 2, axis=3)
    ref = lax.conv_general_dilated(
        x_up, weight, window_strides=(stride, stride),
        padding=((padding, padding), (padding, padding)),
        rhs_dilation=(dilation, dilation),
        dimension_numbers=("NCHW", "OIHW", "NCHW")) + bias[None, :, None, None]

    assert out.shape == (2, out_channel, 32, 32), out.shape
    err = float(jnp.max(jnp.abs(out - ref)))
    assert err < 1e-3, err

    print("KERNEL_OK")
</pallas_src>

<mosaic_0001>
module attributes {stable_mosaic.version = 11 : i64} {
  func.func @_deconv2d_kernel(%arg0: i32, %arg1: i32, %arg2: memref<1x4x256xf32, #tpu.memory_space<vmem>>, %arg3: memref<8x36xf32, #tpu.memory_space<vmem>>, %arg4: memref<8x1xf32, #tpu.memory_space<vmem>>, %arg5: memref<1x8x1024xf32, #tpu.memory_space<vmem>>, %arg6: memref<34x34x4xf32, #tpu.memory_space<vmem>>) attributes {dimension_semantics = [#tpu.dimension_semantics<parallel>, #tpu.dimension_semantics<arbitrary>], iteration_bounds = array<i64: 2, 1>, scalar_prefetch = 0 : i64, scratch_operands = 1 : i64, tpu.core_type = #tpu.core_type<tc>, window_params = [{transform_indices = @transform_0, window_bounds = array<i64: 1, 4, 256>}, {pipeline_mode = #tpu.pipeline_mode<synchronous>, transform_indices = @transform_1, window_bounds = array<i64: 8, 36>}, {pipeline_mode = #tpu.pipeline_mode<synchronous>, transform_indices = @transform_2, window_bounds = array<i64: 8, 1>}, {transform_indices = @transform_3, window_bounds = array<i64: 1, 8, 1024>}]} {
    %c0_i32 = arith.constant 0 : i32
    %0 = arith.cmpi eq, %arg1, %c0_i32 : i32
    %1 = arith.extui %0 : i1 to i32
    %c0_i32_0 = arith.constant 0 : i32
    %2 = arith.cmpi ne, %1, %c0_i32_0 : i32
    scf.if %2 {
      %cst_30 = arith.constant 0.000000e+00 : f32
      %59 = vector.broadcast %cst_30 : f32 to vector<1x34x4xf32>
      %c0_31 = arith.constant 0 : index
      %c0_32 = arith.constant 0 : index
      %c0_33 = arith.constant 0 : index
      %60 = vector.load %arg6[%c0_31, %c0_32, %c0_33] : memref<34x34x4xf32, #tpu.memory_space<vmem>>, vector<1x34x4xf32>
      tpu.vector_store %arg6[%c0_31, %c0_32, %c0_33], %59 {strides = array<i32>} : memref<34x34x4xf32, #tpu.memory_space<vmem>>, vector<1x34x4xf32>,
      %cst_34 = arith.constant 0.000000e+00 : f32
      %61 = vector.broadcast %cst_34 : f32 to vector<34x1x4xf32>
      %c0_35 = arith.constant 0 : index
      %c0_36 = arith.constant 0 : index
      %c0_37 = arith.constant 0 : index
      %62 = vector.load %arg6[%c0_35, %c0_36, %c0_37] : memref<34x34x4xf32, #tpu.memory_space<vmem>>, vector<34x1x4xf32>
      tpu.vector_store %arg6[%c0_35, %c0_36, %c0_37], %61 {strides = array<i32>} : memref<34x34x4xf32, #tpu.memory_space<vmem>>, vector<34x1x4xf32>,
      %cst_38 = arith.constant 0.000000e+00 : f32
      %63 = vector.broadcast %cst_38 : f32 to vector<1x34x4xf32>
      %c33 = arith.constant 33 : index
      %c0_39 = arith.constant 0 : index
      %c0_40 = arith.constant 0 : index
      %64 = vector.load %arg6[%c33, %c0_39, %c0_40] : memref<34x34x4xf32, #tpu.memory_space<vmem>>, vector<1x34x4xf32>
      tpu.vector_store %arg6[%c33, %c0_39, %c0_40], %63 {strides = array<i32>} : memref<34x34x4xf32, #tpu.memory_space<vmem>>, vector<1x34x4xf32>,
      %cst_41 = arith.constant 0.000000e+00 : f32
      %65 = vector.broadcast %cst_41 : f32 to vector<34x1x4xf32>
      %c0_42 = arith.constant 0 : index
      %c33_43 = arith.constant 33 : index
      %c0_44 = arith.constant 0 : index
      %66 = vector.load %arg6[%c0_42, %c33_43, %c0_44] : memref<34x34x4xf32, #tpu.memory_space<vmem>>, vector<34x1x4xf32>
      tpu.vector_store %arg6[%c0_42, %c33_43, %c0_44], %65 {strides = array<i32>} : memref<34x34x4xf32, #tpu.memory_space<vmem>>, vector<34x1x4xf32>,
      %c0_45 = arith.constant 0 : index
      %c0_46 = arith.constant 0 : index
      %c0_47 = arith.constant 0 : index
      %67 = vector.load %arg2[%c0_45, %c0_46, %c0_47] : memref<1x4x256xf32, #tpu.memory_space<vmem>>, vector<1x4x256xf32>
      %68 = vector.shape_cast %67 : vector<1x4x256xf32> to vector<4x256xf32>
      %69 = tpu.transpose %68, [1, 0] : vector<4x256xf32> -> vector<256x4xf32>
      %70 = vector.shape_cast %69 : vector<256x4xf32> to vector<256x1x4xf32>
      %71 = vector.shape_cast %70 : vector<256x1x4xf32> to vector<256x1x4xf32>
      %72 = vector.broadcast %71 : vector<256x1x4xf32> to vector<256x2x4xf32>
      %73 = vector.shape_cast %72 : vector<256x2x4xf32> to vector<512x4xf32>
      %74 = vector.shape_cast %73 : vector<512x4xf32> to vector<16x32x4xf32>
      %75 = vector.shape_cast %74 : vector<16x32x4xf32> to vector<16x1x32x4xf32>
      %76 = vector.shape_cast %75 : vector<16x1x32x4xf32> to vector<16x1x32x4xf32>
      %77 = vector.broadcast %76 : vector<16x1x32x4xf32> to vector<16x2x32x4xf32>
      %78 = vector.shape_cast %77 : vector<16x2x32x4xf32> to vector<32x32x4xf32>
      %c1_48 = arith.constant 1 : index
      %c1_49 = arith.constant 1 : index
      %c0_50 = arith.constant 0 : index
      %79 = vector.load %arg6[%c1_48, %c1_49, %c0_50] : memref<34x34x4xf32, #tpu.memory_space<vmem>>, vector<32x32x4xf32>
      tpu.vector_store %arg6[%c1_48, %c1_49, %c0_50], %78 {strides = array<i32>} : memref<34x34x4xf32, #tpu.memory_space<vmem>>, vector<32x32x4xf32>,
    } else {
    }
    %c32_i32 = arith.constant 32 : i32
    %3 = arith.muli %arg1, %c32_i32 : i32
    %4 = tpu.assume_multiple %3, 8 : i32
    %c0_i32_1 = arith.constant 0 : i32
    %5 = arith.addi %4, %c0_i32_1 : i32
    %6 = arith.index_cast %5 : i32 to index
    %c0 = arith.constant 0 : index
    %c0_2 = arith.constant 0 : index
    %7 = vector.load %arg6[%6, %c0, %c0_2] : memref<34x34x4xf32, #tpu.memory_space<vmem>>, vector<32x32x4xf32>
    %8 = vector.shape_cast %7 : vector<32x32x4xf32> to vector<1024x4xf32>
    %9 = tpu.transpose %8, [1, 0] : vector<1024x4xf32> -> vector<4x1024xf32>
    %c0_i32_3 = arith.constant 0 : i32
    %10 = arith.addi %4, %c0_i32_3 : i32
    %11 = arith.index_cast %10 : i32 to index
    %c1 = arith.constant 1 : index
    %c0_4 = arith.constant 0 : index
    %12 = vector.load %arg6[%11, %c1, %c0_4] : memref<34x34x4xf32, #tpu.memory_space<vmem>>, vector<32x32x4xf32>
    %13 = vector.shape_cast %12 : vector<32x32x4xf32> to vector<1024x4xf32>
    %14 = tpu.transpose %13, [1, 0] : vector<1024x4xf32> -> vector<4x1024xf32>
    %c0_i32_5 = arith.constant 0 : i32
    %15 = arith.addi %4, %c0_i32_5 : i32
    %16 = arith.index_cast %15 : i32 to index
    %c2 = arith.constant 2 : index
    %c0_6 = arith.constant 0 : index
    %17 = vector.load %arg6[%16, %c2, %c0_6] : memref<34x34x4xf32, #tpu.memory_space<vmem>>, vector<32x32x4xf32>
    %18 = vector.shape_cast %17 : vector<32x32x4xf32> to vector<1024x4xf32>
    %19 = tpu.transpose %18, [1, 0] : vector<1024x4xf32> -> vector<4x1024xf32>
    %c1_i32 = arith.constant 1 : i32
    %20 = arith.addi %4, %c1_i32 : i32
    %21 = arith.index_cast %20 : i32 to index
    %c0_7 = arith.constant 0 : index
    %c0_8 = arith.constant 0 : index
    %22 = vector.load %arg6[%21, %c0_7, %c0_8] : memref<34x34x4xf32, #tpu.memory_space<vmem>>, vector<32x32x4xf32>
    %23 = vector.shape_cast %22 : vector<32x32x4xf32> to vector<1024x4xf32>
    %24 = tpu.transpose %23, [1, 0] : vector<1024x4xf32> -> vector<4x1024xf32>
    %c1_i32_9 = arith.constant 1 : i32
    %25 = arith.addi %4, %c1_i32_9 : i32
    %26 = arith.index_cast %25 : i32 to index
    %c1_10 = arith.constant 1 : index
    %c0_11 = arith.constant 0 : index
    %27 = vector.load %arg6[%26, %c1_10, %c0_11] : memref<34x34x4xf32, #tpu.memory_space<vmem>>, vector<32x32x4xf32>
    %28 = vector.shape_cast %27 : vector<32x32x4xf32> to vector<1024x4xf32>
    %29 = tpu.transpose %28, [1, 0] : vector<1024x4xf32> -> vector<4x1024xf32>
    %c1_i32_12 = arith.constant 1 : i32
    %30 = arith.addi %4, %c1_i32_12 : i32
    %31 = arith.index_cast %30 : i32 to index
    %c2_13 = arith.constant 2 : index
    %c0_14 = arith.constant 0 : index
    %32 = vector.load %arg6[%31, %c2_13, %c0_14] : memref<34x34x4xf32, #tpu.memory_space<vmem>>, vector<32x32x4xf32>
    %33 = vector.shape_cast %32 : vector<32x32x4xf32> to vector<1024x4xf32>
    %34 = tpu.transpose %33, [1, 0] : vector<1024x4xf32> -> vector<4x1024xf32>
    %c2_i32 = arith.constant 2 : i32
    %35 = arith.addi %4, %c2_i32 : i32
    %36 = arith.index_cast %35 : i32 to index
    %c0_15 = arith.constant 0 : index
    %c0_16 = arith.constant 0 : index
    %37 = vector.load %arg6[%36, %c0_15, %c0_16] : memref<34x34x4xf32, #tpu.memory_space<vmem>>, vector<32x32x4xf32>
    %38 = vector.shape_cast %37 : vector<32x32x4xf32> to vector<1024x4xf32>
    %39 = tpu.transpose %38, [1, 0] : vector<1024x4xf32> -> vector<4x1024xf32>
    %c2_i32_17 = arith.constant 2 : i32
    %40 = arith.addi %4, %c2_i32_17 : i32
    %41 = arith.index_cast %40 : i32 to index
    %c1_18 = arith.constant 1 : index
    %c0_19 = arith.constant 0 : index
    %42 = vector.load %arg6[%41, %c1_18, %c0_19] : memref<34x34x4xf32, #tpu.memory_space<vmem>>, vector<32x32x4xf32>
    %43 = vector.shape_cast %42 : vector<32x32x4xf32> to vector<1024x4xf32>
    %44 = tpu.transpose %43, [1, 0] : vector<1024x4xf32> -> vector<4x1024xf32>
    %c2_i32_20 = arith.constant 2 : i32
    %45 = arith.addi %4, %c2_i32_20 : i32
    %46 = arith.index_cast %45 : i32 to index
    %c2_21 = arith.constant 2 : index
    %c0_22 = arith.constant 0 : index
    %47 = vector.load %arg6[%46, %c2_21, %c0_22] : memref<34x34x4xf32, #tpu.memory_space<vmem>>, vector<32x32x4xf32>
    %48 = vector.shape_cast %47 : vector<32x32x4xf32> to vector<1024x4xf32>
    %49 = tpu.transpose %48, [1, 0] : vector<1024x4xf32> -> vector<4x1024xf32>
    %50 = tpu.concatenate %9, %14, %19, %24, %29, %34, %39, %44, %49 in 0 : vector<4x1024xf32>, vector<4x1024xf32>, vector<4x1024xf32>, vector<4x1024xf32>, vector<4x1024xf32>, vector<4x1024xf32>, vector<4x1024xf32>, vector<4x1024xf32>, vector<4x1024xf32> -> vector<36x1024xf32>
    %c0_23 = arith.constant 0 : index
    %c0_24 = arith.constant 0 : index
    %51 = vector.load %arg3[%c0_23, %c0_24] : memref<8x36xf32, #tpu.memory_space<vmem>>, vector<8x36xf32>
    %cst = arith.constant dense<0.000000e+00> : vector<8x1024xf32>
    %52 = tpu.matmul %51, %50, %cst {dimension_numbers = #tpu.dot_dimension_numbers<[1], [0], [0], [1], [0, 0, 1, 1], [], []>} : vector<8x36xf32>, vector<36x1024xf32>, vector<8x1024xf32> -> vector<8x1024xf32>
    %c0_25 = arith.constant 0 : index
    %c0_26 = arith.constant 0 : index
    %53 = vector.load %arg4[%c0_25, %c0_26] : memref<8x1xf32, #tpu.memory_space<vmem>>, vector<8x1xf32>
    %54 = vector.broadcast %53 : vector<8x1xf32> to vector<8x1024xf32>
    %55 = arith.addf %52, %54 : vector<8x1024xf32>
    %c0_27 = arith.constant 0 : index
    %c0_28 = arith.constant 0 : index
    %c0_29 = arith.constant 0 : index
    %56 = vector.load %arg5[%c0_27, %c0_28, %c0_29] : memref<1x8x1024xf32, #tpu.memory_space<vmem>>, vector<1x8x1024xf32>
    %57 = vector.shape_cast %56 : vector<1x8x1024xf32> to vector<8x1024xf32>
    %58 = vector.shape_cast %55 : vector<8x1024xf32> to vector<1x8x1024xf32>
    tpu.vector_store %arg5[%c0_27, %c0_28, %c0_29], %58 {strides = array<i32>} : memref<1x8x1024xf32, #tpu.memory_space<vmem>>, vector<1x8x1024xf32>,
    return
  }
  func.func @transform_0(%arg0: i32, %arg1: i32) -> (i32, i32, i32) {
    %c0_i32 = arith.constant 0 : i32
    %c0_i32_0 = arith.constant 0 : i32
    %c0_i32_1 = arith.constant 0 : i32
    return %arg0, %c0_i32, %c0_i32_0 : i32, i32, i32
  }
  func.func @transform_1(%arg0: i32, %arg1: i32) -> (i32, i32) {
    %c0_i32 = arith.constant 0 : i32
    %c0_i32_0 = arith.constant 0 : i32
    %c0_i32_1 = arith.constant 0 : i32
    return %c0_i32, %c0_i32_0 : i32, i32
  }
  func.func @transform_2(%arg0: i32, %arg1: i32) -> (i32, i32) {
    %c0_i32 = arith.constant 0 : i32
    %c0_i32_0 = arith.constant 0 : i32
    %c0_i32_1 = arith.constant 0 : i32
    return %c0_i32, %c0_i32_0 : i32, i32
  }
  func.func @transform_3(%arg0: i32, %arg1: i32) -> (i32, i32, i32) {
    %c0_i32 = arith.constant 0 : i32
    %c0_i32_0 = arith.constant 0 : i32
    return %arg0, %c0_i32, %arg1 : i32, i32, i32
  }
}

</mosaic_0001>

<llo_original>
// kernel: tpu_custom_call.1
$region0: #{tpu_custom_call.1}
  #allocation0 [shape = 'u32[]', space=smem, size = 0x4, offset = 0x4, fixed_abs, tag = 'smem constant byte address 0x4 - core index']
  #allocation1 [shape = 'u32[144,128]{1,0:T(1,128)}', space=vmem, size = 0x12000, scoped, tag = 'internal scratch']
  #allocation2 [shape = 'f32[34,34,4]{2,1,0:T(8,128)}', space=vmem, size = 0xaa000, scoped, tag = 'scratch operand']
  %s0 = inlined_call_operand.hbm [shape: f32[2,4,256], index: 0, kind: input, shape index: {}]
  %s1 = inlined_call_operand.vmem [shape: f32[8,36], index: 1, kind: input, shape index: {}]
  %s2 = inlined_call_operand.vmem [shape: f32[8,1], index: 2, kind: input, shape index: {}]
  %s3 = inlined_call_operand.hbm [shape: f32[2,8,1024], index: 3, kind: output, shape index: {}]
  %s4 = sld [smem:[#allocation0]]
  $region53: #{tpu_custom_call.1} parent=0
    _
  %s6 = ssub.s32 1, %s4
  %s7 = scalar_select 0, %s6, %s4
  $region1: #{tpu_custom_call.1} parent=0
    #allocation3 [shape = 'u8[8192]{0}', space=vmem, size = 0x2000, scoped, tag = 'input window, operand 0']
    #allocation4 [shape = 's32[2]{0}', space=sflag, size = 0x8, scoped, tag = 'scoped memory for tpu_custom_call.1']
    #allocation5 [shape = 's32[2]{0}', space=sflag, size = 0x8, scoped, tag = 'scoped memory for tpu_custom_call.1']
    #allocation6 [shape = 'u8[65536]{0}', space=vmem, size = 0x10000, scoped, tag = 'output window, operand 0']
    %8 = vsyncpa [#allocation4], 0
    %s9 = scalar_lea.sflag [#allocation4], 1
    %10 = vsyncpa %s9, 0
    %11 = vsyncpa [#allocation5], 0
    %s12 = scalar_lea.sflag [#allocation5], 1
    %13 = vsyncpa %s12, 0
    loop: start=0, step=1, limit=4
    $region2: #{tpu_custom_call.1} parent=1 // loop_pre_header
      _
    $region3: #{tpu_custom_call.1} parent=1 // loop_header
      %s15 = sphi 0, %s19
      %p16 = scmp.ge.s32.totalorder %s15, 4
      %s22 = sphi 0, %s34
      %s23 = sphi 0, %s30
      %s24 = sphi 0, %s22
      %s25 = sphi 0, %s23
      %s26 = sphi 0, %s24
      %s27 = sphi 0, %s25
      %s37 = sphi 0, %s39
      %s40 = sphi 0, %s37
      %s41 = sphi 0, %s40
      %s57 = sphi 0, %s41
      %s61 = sphi 0, %s61
      %s63 = sphi 0, %s61
      %s64 = sphi 0, %s63
      %s78 = sphi 0, %s64
      %s82 = sphi 0, %s82
      %s84 = sphi 0, %s82
      %s85 = sphi 0, %s84
      %s99 = sphi 0, %s85
      %s107 = sphi 0, %s109
      %s110 = sphi 0, %s107
      %s111 = sphi 0, %s110
      %s127 = sphi 0, %s111
    $region4: #{tpu_custom_call.1} parent=1 // loop_header_branch
      %18 = sbr.rel (%p16) target = $region8
    $region5: #{tpu_custom_call.1} parent=1 // loop_body
      %s20 = ssub.s32 %s15, 1
      %s21 = ssub.s32 %s15, 2
      %s28 = sadd.s32 1, %s23
      %p29 = scmp.ge.s32.totalorder %s28, 1
      %s30 = scalar_select %p29, 0, %s28
      %s31 = sadd.s32 1, %s22
      %s32 = scalar_select %p29, %s31, %s22
      %p33 = scmp.ge.s32.totalorder %s32, 2
      %s34 = scalar_select %p33, 0, %s32
      %s35 = ssub.s32 %s22, %s34
      %p36 = scmp.eq.s32.totalorder %s35, 0
      %s38 = sadd.s32 %s37, 1
      %s39 = scalar_select %p36, %s37, %s38
      %p42 = pneg %p36
      %p43 = scmp.eq.s32.totalorder %s15, 1
      %p44 = por %p42, %p43
      %p45 = scmp.ne.s32.totalorder %s37, %s40
      %p46 = scmp.eq.s32.totalorder %s15, 0
      %p47 = por %p45, %p46
      %p48 = scmp.ne.s32.totalorder %s37, %s40
      %p49 = scmp.eq.s32.totalorder %s20, 1
      %p50 = por %p48, %p49
      %p51 = scmp.ne.s32.totalorder %s40, %s41
      %p52 = scmp.eq.s32.totalorder %s20, 0
      %p53 = por %p51, %p52
      %p54 = scmp.ne.s32.totalorder %s40, %s41
      %p55 = scmp.eq.s32.totalorder %s21, 1
      %p56 = por %p54, %p55
      %p58 = scmp.ne.s32.totalorder %s41, %s57
      %p59 = scmp.eq.s32.totalorder %s21, 0
      %p60 = por %p58, %p59
      %s62 = sadd.s32 %s61, 1
      %p65 = scmp.eq.s32.totalorder %s15, 1
      %p66 = scmp.ne.s32.totalorder %s61, %s63
      %p67 = scmp.eq.s32.totalorder %s15, 0
      %p68 = por %p66, %p67
      %p69 = scmp.ne.s32.totalorder %s61, %s63
      %p70 = scmp.eq.s32.totalorder %s20, 1
      %p71 = por %p69, %p70
      %p72 = scmp.ne.s32.totalorder %s63, %s64
      %p73 = scmp.eq.s32.totalorder %s20, 0
      %p74 = por %p72, %p73
      %p75 = scmp.ne.s32.totalorder %s63, %s64
      %p76 = scmp.eq.s32.totalorder %s21, 1
      %p77 = por %p75, %p76
      %p79 = scmp.ne.s32.totalorder %s64, %s78
      %p80 = scmp.eq.s32.totalorder %s21, 0
      %p81 = por %p79, %p80
      %s83 = sadd.s32 %s82, 1
      %p86 = scmp.eq.s32.totalorder %s15, 1
      %p87 = scmp.ne.s32.totalorder %s82, %s84
      %p88 = scmp.eq.s32.totalorder %s15, 0
      %p89 = por %p87, %p88
      %p90 = scmp.ne.s32.totalorder %s82, %s84
      %p91 = scmp.eq.s32.totalorder %s20, 1
      %p92 = por %p90, %p91
      %p93 = scmp.ne.s32.totalorder %s84, %s85
      %p94 = scmp.eq.s32.totalorder %s20, 0
      %p95 = por %p93, %p94
      %p96 = scmp.ne.s32.totalorder %s84, %s85
      %p97 = scmp.eq.s32.totalorder %s21, 1
      %p98 = por %p96, %p97
      %p100 = scmp.ne.s32.totalorder %s85, %s99
      %p101 = scmp.eq.s32.totalorder %s21, 0
      %p102 = por %p100, %p101
      %s103 = ssub.s32 %s22, %s34
      %s104 = ssub.s32 %s23, %s30
      %s105 = sor.u32 %s103, %s104
      %p106 = scmp.eq.s32.totalorder %s105, 0
      %s108 = sadd.s32 %s107, 1
      %s109 = scalar_select %p106, %s107, %s108
      %p112 = pneg %p106
      %p113 = scmp.eq.s32.totalorder %s15, 1
      %p114 = por %p112, %p113
      %p115 = scmp.ne.s32.totalorder %s107, %s110
      %p116 = scmp.eq.s32.totalorder %s15, 0
      %p117 = por %p115, %p116
      %p118 = scmp.ne.s32.totalorder %s107, %s110
      %p119 = scmp.eq.s32.totalorder %s20, 1
      %p120 = por %p118, %p119
      %p121 = scmp.ne.s32.totalorder %s110, %s111
      %p122 = scmp.eq.s32.totalorder %s20, 0
      %p123 = por %p121, %p122
      %p124 = scmp.ne.s32.totalorder %s110, %s111
      %p125 = scmp.eq.s32.totalorder %s21, 1
      %p126 = por %p124, %p125
      %p128 = scmp.ne.s32.totalorder %s111, %s127
      %p129 = scmp.eq.s32.totalorder %s21, 0
      %p130 = por %p128, %p129
      %p131 = scmp.le.s32.totalorder 1, %s15
      %p132 = scmp.lt.s32.totalorder %s15, 3
      %p133 = pnand %p131, %p132
      %p134 = pneg %p133
      // Predicated region
      $region9: #{tpu_custom_call.1} parent=5 // pred_check
        _
      $region10: #{tpu_custom_call.1} parent=5 // pred_check_branch
        %136 = sbr.rel (%p133) target = $region12
      $region11: #{tpu_custom_call.1} parent=5 // pred_region
        %s137 = ssub.s32 %s15, 1
        // Predicated region
        $region13: #{tpu_custom_call.1} parent=11 // pred_check
          %p138 = pneg %p74
        $region14: #{tpu_custom_call.1} parent=11 // pred_check_branch
          %140 = sbr.rel (%p138) target = $region16
        $region15: #{tpu_custom_call.1} parent=11 // pred_region
          _
        $region16: #{tpu_custom_call.1} parent=11 // pred_fallthru
          _
        // Predicated region
        $region17: #{tpu_custom_call.1} parent=11 // pred_check
          %p141 = pneg %p95
        $region18: #{tpu_custom_call.1} parent=11 // pred_check_branch
          %143 = sbr.rel (%p141) target = $region20
        $region19: #{tpu_custom_call.1} parent=11 // pred_region
          _
        $region20: #{tpu_custom_call.1} parent=11 // pred_fallthru
          _
      $region12: #{tpu_custom_call.1} parent=5 // pred_fallthru
        _
      %p144 = scmp.lt.s32.totalorder %s15, 2
      // Predicated region
      $region21: #{tpu_custom_call.1} parent=5 // pred_check
        %p145 = pneg %p144
      $region22: #{tpu_custom_call.1} parent=5 // pred_check_branch
        %147 = sbr.rel (%p145) target = $region24
      $region23: #{tpu_custom_call.1} parent=5 // pred_region
        // Predicated region
        $region25: #{tpu_custom_call.1} parent=23 // pred_check
          %p148 = pneg %p47
        $region26: #{tpu_custom_call.1} parent=23 // pred_check_branch
          %150 = sbr.rel (%p148) target = $region28
        $region27: #{tpu_custom_call.1} parent=23 // pred_region
          %s151 = sand.u32 %s37, 1
          %s152 = scalar_lea.sflag [#allocation4], %s151
          %s153 = sand.u32 %s37, 1
          %s154 = smul.addr %s153, 8
          %s155 = scalar_lea.vmem [#allocation3], %s154
          %s157 = ssub.s32 128, 128
          %158 = vsyncadd %s152, %s157
          %s159 = smul.addr %s22, 2
          %s160 = smul.addr %s159, 64
          %s161 = scalar_lea.hbm %s0, %s160
          %s163 = sshll.u32 %s155, 4
          %s164 = int_to_ptr.vmem [resolvable:$true] %s163
          %166 = dma.hbm_to_vmem [thread:$0]  %s161, 128, %s164, %s152
        $region28: #{tpu_custom_call.1} parent=23 // pred_fallthru
          _
      $region24: #{tpu_custom_call.1} parent=5 // pred_fallthru
        _
      %p167 = scmp.le.s32.totalorder 1, %s15
      %p168 = scmp.lt.s32.totalorder %s15, 3
      %p169 = pnand %p167, %p168
      %p170 = pneg %p169
      // Predicated region
      $region29: #{tpu_custom_call.1} parent=5 // pred_check
        _
      $region30: #{tpu_custom_call.1} parent=5 // pred_check_branch
        %172 = sbr.rel (%p169) target = $region32
      $region31: #{tpu_custom_call.1} parent=5 // pred_region
        %s173 = ssub.s32 %s15, 1
        %s174 = sand.u32 %s40, 1
        %s175 = scalar_lea.sflag [#allocation4], %s174
        %s176 = sand.u32 %s40, 1
        %s177 = smul.addr %s176, 8
        %s178 = scalar_lea.vmem [#allocation3], %s177
        // Predicated region
        $region33: #{tpu_custom_call.1} parent=31 // pred_check
          %p179 = pneg %p53
        $region34: #{tpu_custom_call.1} parent=31 // pred_check_branch
          %181 = sbr.rel (%p179) target = $region36
        $region35: #{tpu_custom_call.1} parent=31 // pred_region
          %182 = dma.done %s175, 128
        $region36: #{tpu_custom_call.1} parent=31 // pred_fallthru
          _
        %s183 = sand.u32 %s40, 1
        %s184 = scalar_lea.sflag [#allocation4], %s183
        %s185 = sand.u32 %s40, 1
        %s186 = smul.addr %s185, 8
        %s187 = scalar_lea.vmem [#allocation3], %s186
        %p188 = pneg %p53
        %p189 = pneg %p50
        %p190 = pneg %p74
        %p191 = pneg %p71
        %p192 = pneg %p95
        %p193 = pneg %p92
        %p194 = pneg %p123
        %p195 = pneg %p120
        %s196 = sand.u32 %s110, 1
        %s197 = scalar_lea.sflag [#allocation5], %s196
        %s198 = sand.u32 %s110, 1
        %s199 = smul.addr %s198, 64
        %s200 = scalar_lea.vmem [#allocation6], %s199
        %s201 = smul.u32 8, %s25
        %p202 = scmp.eq.s32.totalorder %s25, 0
        // Predicated region
        $region37: #{tpu_custom_call.1} parent=31 // pred_check
          %p203 = pneg %p202
        $region38: #{tpu_custom_call.1} parent=31 // pred_check_branch
          %205 = sbr.rel (%p203) target = $region40
        $region39: #{tpu_custom_call.1} parent=31 // pred_region
          %vm206 = vcmask 31744
          %207 = vst.msk [vmem:[#allocation2] sm:$0xff] %vm206, 0.0
          %208 = vst.msk [vmem:[#allocation2 + $0x8] sm:$0xff] %vm206, 0.0
          %209 = vst.msk [vmem:[#allocation2 + $0x10] sm:$0xff] %vm206, 0.0
          %210 = vst.msk [vmem:[#allocation2 + $0x18] sm:$0xff] %vm206, 0.0
          %vm211 = vcmask 25600
          %212 = vst.msk [vmem:[#allocation2 + $0x20] sm:$0x3] %vm211, 0.0
          %vm213 = vcmask 24576
          %214 = vst.msk [vmem:[#allocation2] sm:$0x1] %vm213, 0.0
          %215 = vst.msk [vmem:[#allocation2 + $0x28] sm:$0x1] %vm213, 0.0
          %216 = vst.msk [vmem:[#allocation2 + $0x50] sm:$0x1] %vm213, 0.0
          %217 = vst.msk [vmem:[#allocation2 + $0x78] sm:$0x1] %vm213, 0.0
          %218 = vst.msk [vmem:[#allocation2 + $0xa0] sm:$0x1] %vm213, 0.0
          %219 = vst.msk [vmem:[#allocation2 + $0xc8] sm:$0x1] %vm213, 0.0
          %220 = vst.msk [vmem:[#allocation2 + $0xf0] sm:$0x1] %vm213, 0.0
          %221 = vst.msk [vmem:[#allocation2 + $0x118] sm:$0x1] %vm213, 0.0
          %222 = vst.msk [vmem:[#allocation2 + $0x140] sm:$0x1] %vm213, 0.0
          %223 = vst.msk [vmem:[#allocation2 + $0x168] sm:$0x1] %vm213, 0.0
          %224 = vst.msk [vmem:[#allocation2 + $0x190] sm:$0x1] %vm213, 0.0
          %225 = vst.msk [vmem:[#allocation2 + $0x1b8] sm:$0x1] %vm213, 0.0
          %226 = vst.msk [vmem:[#allocation2 + $0x1e0] sm:$0x1] %vm213, 0.0
          %227 = vst.msk [vmem:[#allocation2 + $0x208] sm:$0x1] %vm213, 0.0
          %228 = vst.msk [vmem:[#allocation2 + $0x230] sm:$0x1] %vm213, 0.0
          %229 = vst.msk [vmem:[#allocation2 + $0x258] sm:$0x1] %vm213, 0.0
          %230 = vst.msk [vmem:[#allocation2 + $0x280] sm:$0x1] %vm213, 0.0
          %231 = vst.msk [vmem:[#allocation2 + $0x2a8] sm:$0x1] %vm213, 0.0
          %232 = vst.msk [vmem:[#allocation2 + $0x2d0] sm:$0x1] %vm213, 0.0
          %233 = vst.msk [vmem:[#allocation2 + $0x2f8] sm:$0x1] %vm213, 0.0
          %234 = vst.msk [vmem:[#allocation2 + $0x320] sm:$0x1] %vm213, 0.0
          %235 = vst.msk [vmem:[#allocation2 + $0x348] sm:$0x1] %vm213, 0.0
          %236 = vst.msk [vmem:[#allocation2 + $0x370] sm:$0x1] %vm213, 0.0
          %237 = vst.msk [vmem:[#allocation2 + $0x398] sm:$0x1] %vm213, 0.0
          %238 = vst.msk [vmem:[#allocation2 + $0x3c0] sm:$0x1] %vm213, 0.0
          %239 = vst.msk [vmem:[#allocation2 + $0x3e8] sm:$0x1] %vm213, 0.0
          %240 = vst.msk [vmem:[#allocation2 + $0x410] sm:$0x1] %vm213, 0.0
          %241 = vst.msk [vmem:[#allocation2 + $0x438] sm:$0x1] %vm213, 0.0
          %242 = vst.msk [vmem:[#allocation2 + $0x460] sm:$0x1] %vm213, 0.0
          %243 = vst.msk [vmem:[#allocation2 + $0x488] sm:$0x1] %vm213, 0.0
          %244 = vst.msk [vmem:[#allocation2 + $0x4b0] sm:$0x1] %vm213, 0.0
          %245 = vst.msk [vmem:[#allocation2 + $0x4d8] sm:$0x1] %vm213, 0.0
          %246 = vst.msk [vmem:[#allocation2 + $0x500] sm:$0x1] %vm213, 0.0
          %247 = vst.msk [vmem:[#allocation2 + $0x528] sm:$0x1] %vm213, 0.0
          %s248 = scalar_lea.vmem [#allocation2], 1320
          %249 = vst.msk [vmem:[%s248] sm:$0xff] %vm206, 0.0
          %250 = vst.msk [vmem:[%s248 + $0x8] sm:$0xff] %vm206, 0.0
          %251 = vst.msk [vmem:[%s248 + $0x10] sm:$0xff] %vm206, 0.0
          %252 = vst.msk [vmem:[%s248 + $0x18] sm:$0xff] %vm206, 0.0
          %253 = vst.msk [vmem:[%s248 + $0x20] sm:$0x3] %vm211, 0.0
          %254 = vst.msk [vmem:[#allocation2 + $0x21] sm:$0x1] %vm213, 0.0
          %255 = vst.msk [vmem:[#allocation2 + $0x49] sm:$0x1] %vm213, 0.0
          %256 = vst.msk [vmem:[#allocation2 + $0x71] sm:$0x1] %vm213, 0.0
          %257 = vst.msk [vmem:[#allocation2 + $0x99] sm:$0x1] %vm213, 0.0
          %258 = vst.msk [vmem:[#allocation2 + $0xc1] sm:$0x1] %vm213, 0.0
          %259 = vst.msk [vmem:[#allocation2 + $0xe9] sm:$0x1] %vm213, 0.0
          %260 = vst.msk [vmem:[#allocation2 + $0x111] sm:$0x1] %vm213, 0.0
          %261 = vst.msk [vmem:[#allocation2 + $0x139] sm:$0x1] %vm213, 0.0
          %262 = vst.msk [vmem:[#allocation2 + $0x161] sm:$0x1] %vm213, 0.0
          %263 = vst.msk [vmem:[#allocation2 + $0x189] sm:$0x1] %vm213, 0.0
          %264 = vst.msk [vmem:[#allocation2 + $0x1b1] sm:$0x1] %vm213, 0.0
          %265 = vst.msk [vmem:[#allocation2 + $0x1d9] sm:$0x1] %vm213, 0.0
          %266 = vst.msk [vmem:[#allocation2 + $0x201] sm:$0x1] %vm213, 0.0
          %267 = vst.msk [vmem:[#allocation2 + $0x229] sm:$0x1] %vm213, 0.0
          %268 = vst.msk [vmem:[#allocation2 + $0x251] sm:$0x1] %vm213, 0.0
          %269 = vst.msk [vmem:[#allocation2 + $0x279] sm:$0x1] %vm213, 0.0
          %270 = vst.msk [vmem:[#allocation2 + $0x2a1] sm:$0x1] %vm213, 0.0
          %271 = vst.msk [vmem:[#allocation2 + $0x2c9] sm:$0x1] %vm213, 0.0
          %272 = vst.msk [vmem:[#allocation2 + $0x2f1] sm:$0x1] %vm213, 0.0
          %273 = vst.msk [vmem:[#allocation2 + $0x319] sm:$0x1] %vm213, 0.0
          %274 = vst.msk [vmem:[#allocation2 + $0x341] sm:$0x1] %vm213, 0.0
          %275 = vst.msk [vmem:[#allocation2 + $0x369] sm:$0x1] %vm213, 0.0
          %276 = vst.msk [vmem:[#allocation2 + $0x391] sm:$0x1] %vm213, 0.0
          %277 = vst.msk [vmem:[#allocation2 + $0x3b9] sm:$0x1] %vm213, 0.0
          %278 = vst.msk [vmem:[#allocation2 + $0x3e1] sm:$0x1] %vm213, 0.0
          %279 = vst.msk [vmem:[#allocation2 + $0x409] sm:$0x1] %vm213, 0.0
          %280 = vst.msk [vmem:[#allocation2 + $0x431] sm:$0x1] %vm213, 0.0
          %281 = vst.msk [vmem:[#allocation2 + $0x459] sm:$0x1] %vm213, 0.0
          %282 = vst.msk [vmem:[#allocation2 + $0x481] sm:$0x1] %vm213, 0.0
          %283 = vst.msk [vmem:[#allocation2 + $0x4a9] sm:$0x1] %vm213, 0.0
          %284 = vst.msk [vmem:[#allocation2 + $0x4d1] sm:$0x1] %vm213, 0.0
          %285 = vst.msk [vmem:[#allocation2 + $0x4f9] sm:$0x1] %vm213, 0.0
          %286 = vst.msk [vmem:[#allocation2 + $0x521] sm:$0x1] %vm213, 0.0
          %287 = vst.msk [vmem:[#allocation2 + $0x549] sm:$0x1] %vm213, 0.0
          %v288 = vld [vmem:[%s178] sm:$0xff]
          %v290 = vcombine.high %v288, %v288
          %292 = vxpose.xlu0.b32.start [1/16] %v288, 128
          %293 = vxpose.xlu0.b32.cont [2/16] 0.0, 128
          %294 = vxpose.xlu0.b32.cont [3/16] 0.0, 128
          %295 = vxpose.xlu0.b32.cont [4/16] 0.0, 128
          %296 = vxpose.xlu0.b32.cont [5/16] 0.0, 128
          %297 = vxpose.xlu0.b32.cont [6/16] 0.0, 128
          %298 = vxpose.xlu0.b32.cont [7/16] 0.0, 128
          %299 = vxpose.xlu0.b32.cont [8/16] 0.0, 128
          %300 = vxpose.xlu0.b32.cont [9/16] 0.0, 128
          %301 = vxpose.xlu0.b32.cont [10/16] 0.0, 128
          %302 = vxpose.xlu0.b32.cont [11/16] 0.0, 128
          %303 = vxpose.xlu0.b32.cont [12/16] 0.0, 128
          %304 = vxpose.xlu0.b32.cont [13/16] 0.0, 128
          %305 = vxpose.xlu0.b32.cont [14/16] 0.0, 128
          %306 = vxpose.xlu0.b32.cont [15/16] 0.0, 128
          %307 = vxpose.xlu0.b32.end [16/16] 0.0, 128
          %v308 = vpop.trf.xlu0
          %v309 = vpop.trf.xlu0
          %v310 = vpop.trf.xlu0
          %v311 = vpop.trf.xlu0
          %v312 = vpop.trf.xlu0
          %v313 = vpop.trf.xlu0
          %v314 = vpop.trf.xlu0
          %v315 = vpop.trf.xlu0
          %v316 = vpop.trf.xlu0
          %v317 = vpop.trf.xlu0
          %v318 = vpop.trf.xlu0
          %v319 = vpop.trf.xlu0
          %v320 = vpop.trf.xlu0
          %v321 = vpop.trf.xlu0
          %v322 = vpop.trf.xlu0
          %v323 = vpop.trf.xlu0
          %324 = vxpose.xlu0.b32.start [1/16] %v290, 128
          %325 = vxpose.xlu0.b32.cont [2/16] 0.0, 128
          %326 = vxpose.xlu0.b32.cont [3/16] 0.0, 128
          %327 = vxpose.xlu0.b32.cont [4/16] 0.0, 128
          %328 = vxpose.xlu0.b32.cont [5/16] 0.0, 128
          %329 = vxpose.xlu0.b32.cont [6/16] 0.0, 128
          %330 = vxpose.xlu0.b32.cont [7/16] 0.0, 128
          %331 = vxpose.xlu0.b32.cont [8/16] 0.0, 128
          %332 = vxpose.xlu0.b32.cont [9/16] 0.0, 128
          %333 = vxpose.xlu0.b32.cont [10/16] 0.0, 128
          %334 = vxpose.xlu0.b32.cont [11/16] 0.0, 128
          %335 = vxpose.xlu0.b32.cont [12/16] 0.0, 128
          %336 = vxpose.xlu0.b32.cont [13/16] 0.0, 128
          %337 = vxpose.xlu0.b32.cont [14/16] 0.0, 128
          %338 = vxpose.xlu0.b32.cont [15/16] 0.0, 128
          %339 = vxpose.xlu0.b32.end [16/16] 0.0, 128
          %v340 = vpop.trf.xlu0
          %v341 = vpop.trf.xlu0
          %v342 = vpop.trf.xlu0
          %v343 = vpop.trf.xlu0
          %v344 = vpop.trf.xlu0
          %v345 = vpop.trf.xlu0
          %v346 = vpop.trf.xlu0
          %v347 = vpop.trf.xlu0
          %v348 = vpop.trf.xlu0
          %v349 = vpop.trf.xlu0
          %v350 = vpop.trf.xlu0
          %v351 = vpop.trf.xlu0
          %v352 = vpop.trf.xlu0
          %v353 = vpop.trf.xlu0
          %v354 = vpop.trf.xlu0
          %v355 = vpop.trf.xlu0
          %v388 = vcombine.high %v308, %v308
          %v390 = vunpack.c.l.s4 1966171168
          %v391 = vunpack.c.0.s8 %v390
          %v392 = vlaneseq
          %v393 = vshrl.u32 %v392, 7
          %v394 = vsub.s32 %v391, %v393
          %v395 = vrot.slane %v308, %v394
          %v397 = vunpack.c.l.s4 1966171168
          %v398 = vunpack.c.0.s8 %v397
          %v399 = vlaneseq
          %v400 = vshrl.u32 %v399, 7
          %v401 = vsub.s32 %v398, %v400
          %v402 = vrot.slane %v388, %v401
          %v403 = vcombine.high %v395, %v395
          %v404 = vcombine.high %v402, %v402
          %v406 = vunpack.c.l.s4 1966171168
          %v407 = vunpack.c.0.s8 %v406
          %v408 = vlaneseq
          %v409 = vshrl.u32 %v408, 7
          %v410 = vsub.s32 %v407, %v409
          %v411 = vrot.slane %v395, %v410
          %v413 = vunpack.c.l.s4 1966171168
          %v414 = vunpack.c.0.s8 %v413
          %v415 = vlaneseq
          %v416 = vshrl.u32 %v415, 7
          %v417 = vsub.s32 %v414, %v416
          %v418 = vrot.slane %v402, %v417
          %v420 = vunpack.c.l.s4 1966171168
          %v421 = vunpack.c.0.s8 %v420
          %v422 = vlaneseq
          %v423 = vshrl.u32 %v422, 7
          %v424 = vsub.s32 %v421, %v423
          %v425 = vrot.slane %v403, %v424
          %v427 = vunpack.c.l.s4 1966171168
          %v428 = vunpack.c.0.s8 %v427
          %v429 = vlaneseq
          %v430 = vshrl.u32 %v429, 7
          %v431 = vsub.s32 %v428, %v430
          %v432 = vrot.slane %v404, %v431
          %v433 = vcombine.high %v411, %v411
          %v434 = vcombine.high %v418, %v418
          %v435 = vcombine.high %v425, %v425
          %v436 = vcombine.high %v432, %v432
          %v437 = vcombine.high %v309, %v309
          %v439 = vunpack.c.l.s4 1966171168
          %v440 = vunpack.c.0.s8 %v439
          %v441 = vlaneseq
          %v442 = vshrl.u32 %v441, 7
          %v443 = vsub.s32 %v440, %v442
          %v444 = vrot.slane %v309, %v443
          %v446 = vunpack.c.l.s4 1966171168
          %v447 = vunpack.c.0.s8 %v446
          %v448 = vlaneseq
          %v449 = vshrl.u32 %v448, 7
          %v450 = vsub.s32 %v447, %v449
          %v451 = vrot.slane %v437, %v450
          %v452 = vcombine.high %v444, %v444
          %v453 = vcombine.high %v451, %v451
          %v455 = vunpack.c.l.s4 1966171168
          %v456 = vunpack.c.0.s8 %v455
          %v457 = vlaneseq
          %v458 = vshrl.u32 %v457, 7
          %v459 = vsub.s32 %v456, %v458
          %v460 = vrot.slane %v444, %v459
          %v462 = vunpack.c.l.s4 1966171168
          %v463 = vunpack.c.0.s8 %v462
          %v464 = vlaneseq
          %v465 = vshrl.u32 %v464, 7
          %v466 = vsub.s32 %v463, %v465
          %v467 = vrot.slane %v451, %v466
          %v469 = vunpack.c.l.s4 1966171168
          %v470 = vunpack.c.0.s8 %v469
          %v471 = vlaneseq
          %v472 = vshrl.u32 %v471, 7
          %v473 = vsub.s32 %v470, %v472
          %v474 = vrot.slane %v452, %v473
          %v476 = vunpack.c.l.s4 1966171168
          %v477 = vunpack.c.0.s8 %v476
          %v478 = vlaneseq
          %v479 = vshrl.u32 %v478, 7
          %v480 = vsub.s32 %v477, %v479
          %v481 = vrot.slane %v453, %v480
          %v482 = vcombine.high %v460, %v460
          %v483 = vcombine.high %v467, %v467
          %v484 = vcombine.high %v474, %v474
          %v485 = vcombine.high %v481, %v481
          %v486 = vcombine.high %v310, %v310
          %v488 = vunpack.c.l.s4 1966171168
          %v489 = vunpack.c.0.s8 %v488
          %v490 = vlaneseq
          %v491 = vshrl.u32 %v490, 7
          %v492 = vsub.s32 %v489, %v491
          %v493 = vrot.slane %v310, %v492
          %v495 = vunpack.c.l.s4 1966171168
          %v496 = vunpack.c.0.s8 %v495
          %v497 = vlaneseq
          %v498 = vshrl.u32 %v497, 7
          %v499 = vsub.s32 %v496, %v498
          %v500 = vrot.slane %v486, %v499
          %v501 = vcombine.high %v493, %v493
          %v502 = vcombine.high %v500, %v500
          %v504 = vunpack.c.l.s4 1966171168
          %v505 = vunpack.c.0.s8 %v504
          %v506 = vlaneseq
          %v507 = vshrl.u32 %v506, 7
          %v508 = vsub.s32 %v505, %v507
          %v509 = vrot.slane %v493, %v508
          %v511 = vunpack.c.l.s4 1966171168
          %v512 = vunpack.c.0.s8 %v511
          %v513 = vlaneseq
          %v514 = vshrl.u32 %v513, 7
          %v515 = vsub.s32 %v512, %v514
          %v516 = vrot.slane %v500, %v515
          %v518 = vunpack.c.l.s4 1966171168
          %v519 = vunpack.c.0.s8 %v518
          %v520 = vlaneseq
          %v521 = vshrl.u32 %v520, 7
          %v522 = vsub.s32 %v519, %v521
          %v523 = vrot.slane %v501, %v522
          %v525 = vunpack.c.l.s4 1966171168
          %v526 = vunpack.c.0.s8 %v525
          %v527 = vlaneseq
          %v528 = vshrl.u32 %v527, 7
          %v529 = vsub.s32 %v526, %v528
          %v530 = vrot.slane %v502, %v529
          %v531 = vcombine.high %v509, %v509
          %v532 = vcombine.high %v516, %v516
          %v533 = vcombine.high %v523, %v523
          %v534 = vcombine.high %v530, %v530
          %v535 = vcombine.high %v311, %v311
          %v537 = vunpack.c.l.s4 1966171168
          %v538 = vunpack.c.0.s8 %v537
          %v539 = vlaneseq
          %v540 = vshrl.u32 %v539, 7
          %v541 = vsub.s32 %v538, %v540
          %v542 = vrot.slane %v311, %v541
          %v544 = vunpack.c.l.s4 1966171168
          %v545 = vunpack.c.0.s8 %v544
          %v546 = vlaneseq
          %v547 = vshrl.u32 %v546, 7
          %v548 = vsub.s32 %v545, %v547
          %v549 = vrot.slane %v535, %v548
          %v550 = vcombine.high %v542, %v542
          %v551 = vcombine.high %v549, %v549
          %v553 = vunpack.c.l.s4 1966171168
          %v554 = vunpack.c.0.s8 %v553
          %v555 = vlaneseq
          %v556 = vshrl.u32 %v555, 7
          %v557 = vsub.s32 %v554, %v556
          %v558 = vrot.slane %v542, %v557
          %v560 = vunpack.c.l.s4 1966171168
          %v561 = vunpack.c.0.s8 %v560
          %v562 = vlaneseq
          %v563 = vshrl.u32 %v562, 7
          %v564 = vsub.s32 %v561, %v563
          %v565 = vrot.slane %v549, %v564
          %v567 = vunpack.c.l.s4 1966171168
          %v568 = vunpack.c.0.s8 %v567
          %v569 = vlaneseq
          %v570 = vshrl.u32 %v569, 7
          %v571 = vsub.s32 %v568, %v570
          %v572 = vrot.slane %v550, %v571
          %v574 = vunpack.c.l.s4 1966171168
          %v575 = vunpack.c.0.s8 %v574
          %v576 = vlaneseq
          %v577 = vshrl.u32 %v576, 7
          %v578 = vsub.s32 %v575, %v577
          %v579 = vrot.slane %v551, %v578
          %v580 = vcombine.high %v558, %v558
          %v581 = vcombine.high %v565, %v565
          %v582 = vcombine.high %v572, %v572
          %v583 = vcombine.high %v579, %v579
          %v584 = vcombine.high %v312, %v312
          %v586 = vunpack.c.l.s4 1966171168
          %v587 = vunpack.c.0.s8 %v586
          %v588 = vlaneseq
          %v589 = vshrl.u32 %v588, 7
          %v590 = vsub.s32 %v587, %v589
          %v591 = vrot.slane %v312, %v590
          %v593 = vunpack.c.l.s4 1966171168
          %v594 = vunpack.c.0.s8 %v593
          %v595 = vlaneseq
          %v596 = vshrl.u32 %v595, 7
          %v597 = vsub.s32 %v594, %v596
          %v598 = vrot.slane %v584, %v597
          %v599 = vcombine.high %v591, %v591
          %v600 = vcombine.high %v598, %v598
          %v602 = vunpack.c.l.s4 1966171168
          %v603 = vunpack.c.0.s8 %v602
          %v604 = vlaneseq
          %v605 = vshrl.u32 %v604, 7
          %v606 = vsub.s32 %v603, %v605
          %v607 = vrot.slane %v591, %v606
          %v609 = vunpack.c.l.s4 1966171168
          %v610 = vunpack.c.0.s8 %v609
          %v611 = vlaneseq
          %v612 = vshrl.u32 %v611, 7
          %v613 = vsub.s32 %v610, %v612
          %v614 = vrot.slane %v598, %v613
          %v616 = vunpack.c.l.s4 1966171168
          %v617 = vunpack.c.0.s8 %v616
          %v618 = vlaneseq
          %v619 = vshrl.u32 %v618, 7
          %v620 = vsub.s32 %v617, %v619
          %v621 = vrot.slane %v599, %v620
          %v623 = vunpack.c.l.s4 1966171168
          %v624 = vunpack.c.0.s8 %v623
          %v625 = vlaneseq
          %v626 = vshrl.u32 %v625, 7
          %v627 = vsub.s32 %v624, %v626
          %v628 = vrot.slane %v600, %v627
          %v629 = vcombine.high %v607, %v607
          %v630 = vcombine.high %v614, %v614
          %v631 = vcombine.high %v621, %v621
          %v632 = vcombine.high %v628, %v628
          %v633 = vcombine.high %v313, %v313
          %v635 = vunpack.c.l.s4 1966171168
          %v636 = vunpack.c.0.s8 %v635
          %v637 = vlaneseq
          %v638 = vshrl.u32 %v637, 7
          %v639 = vsub.s32 %v636, %v638
          %v640 = vrot.slane %v313, %v639
          %v642 = vunpack.c.l.s4 1966171168
          %v643 = vunpack.c.0.s8 %v642
          %v644 = vlaneseq
          %v645 = vshrl.u32 %v644, 7
          %v646 = vsub.s32 %v643, %v645
          %v647 = vrot.slane %v633, %v646
          %v648 = vcombine.high %v640, %v640
          %v649 = vcombine.high %v647, %v647
          %v651 = vunpack.c.l.s4 1966171168
          %v652 = vunpack.c.0.s8 %v651
          %v653 = vlaneseq
          %v654 = vshrl.u32 %v653, 7
          %v655 = vsub.s32 %v652, %v654
          %v656 = vrot.slane %v640, %v655
          %v658 = vunpack.c.l.s4 1966171168
          %v659 = vunpack.c.0.s8 %v658
          %v660 = vlaneseq
          %v661 = vshrl.u32 %v660, 7
          %v662 = vsub.s32 %v659, %v661
          %v663 = vrot.slane %v647, %v662
          %v665 = vunpack.c.l.s4 1966171168
          %v666 = vunpack.c.0.s8 %v665
          %v667 = vlaneseq
          %v668 = vshrl.u32 %v667, 7
          %v669 = vsub.s32 %v666, %v668
          %v670 = vrot.slane %v648, %v669
          %v672 = vunpack.c.l.s4 1966171168
          %v673 = vunpack.c.0.s8 %v672
          %v674 = vlaneseq
          %v675 = vshrl.u32 %v674, 7
          %v676 = vsub.s32 %v673, %v675
          %v677 = vrot.slane %v649, %v676
          %v678 = vcombine.high %v656, %v656
          %v679 = vcombine.high %v663, %v663
          %v680 = vcombine.high %v670, %v670
          %v681 = vcombine.high %v677, %v677
          %v682 = vcombine.high %v314, %v314
          %v684 = vunpack.c.l.s4 1966171168
          %v685 = vunpack.c.0.s8 %v684
          %v686 = vlaneseq
          %v687 = vshrl.u32 %v686, 7
          %v688 = vsub.s32 %v685, %v687
          %v689 = vrot.slane %v314, %v688
          %v691 = vunpack.c.l.s4 1966171168
          %v692 = vunpack.c.0.s8 %v691
          %v693 = vlaneseq
          %v694 = vshrl.u32 %v693, 7
          %v695 = vsub.s32 %v692, %v694
          %v696 = vrot.slane %v682, %v695
          %v697 = vcombine.high %v689, %v689
          %v698 = vcombine.high %v696, %v696
          %v700 = vunpack.c.l.s4 1966171168
          %v701 = vunpack.c.0.s8 %v700
          %v702 = vlaneseq
          %v703 = vshrl.u32 %v702, 7
          %v704 = vsub.s32 %v701, %v703
          %v705 = vrot.slane %v689, %v704
          %v707 = vunpack.c.l.s4 1966171168
          %v708 = vunpack.c.0.s8 %v707
          %v709 = vlaneseq
          %v710 = vshrl.u32 %v709, 7
          %v711 = vsub.s32 %v708, %v710
          %v712 = vrot.slane %v696, %v711
          %v714 = vunpack.c.l.s4 1966171168
          %v715 = vunpack.c.0.s8 %v714
          %v716 = vlaneseq
          %v717 = vshrl.u32 %v716, 7
          %v718 = vsub.s32 %v715, %v717
          %v719 = vrot.slane %v697, %v718
          %v721 = vunpack.c.l.s4 1966171168
          %v722 = vunpack.c.0.s8 %v721
          %v723 = vlaneseq
          %v724 = vshrl.u32 %v723, 7
          %v725 = vsub.s32 %v722, %v724
          %v726 = vrot.slane %v698, %v725
          %v727 = vcombine.high %v705, %v705
          %v728 = vcombine.high %v712, %v712
          %v729 = vcombine.high %v719, %v719
          %v730 = vcombine.high %v726, %v726
          %v731 = vcombine.high %v315, %v315
          %v733 = vunpack.c.l.s4 1966171168
          %v734 = vunpack.c.0.s8 %v733
          %v735 = vlaneseq
          %v736 = vshrl.u32 %v735, 7
          %v737 = vsub.s32 %v734, %v736
          %v738 = vrot.slane %v315, %v737
          %v740 = vunpack.c.l.s4 1966171168
          %v741 = vunpack.c.0.s8 %v740
          %v742 = vlaneseq
          %v743 = vshrl.u32 %v742, 7
          %v744 = vsub.s32 %v741, %v743
          %v745 = vrot.slane %v731, %v744
          %v746 = vcombine.high %v738, %v738
          %v747 = vcombine.high %v745, %v745
          %v749 = vunpack.c.l.s4 1966171168
          %v750 = vunpack.c.0.s8 %v749
          %v751 = vlaneseq
          %v752 = vshrl.u32 %v751, 7
          %v753 = vsub.s32 %v750, %v752
          %v754 = vrot.slane %v738, %v753
          %v756 = vunpack.c.l.s4 1966171168
          %v757 = vunpack.c.0.s8 %v756
          %v758 = vlaneseq
          %v759 = vshrl.u32 %v758, 7
          %v760 = vsub.s32 %v757, %v759
          %v761 = vrot.slane %v745, %v760
          %v763 = vunpack.c.l.s4 1966171168
          %v764 = vunpack.c.0.s8 %v763
          %v765 = vlaneseq
          %v766 = vshrl.u32 %v765, 7
          %v767 = vsub.s32 %v764, %v766
          %v768 = vrot.slane %v746, %v767
          %v770 = vunpack.c.l.s4 1966171168
          %v771 = vunpack.c.0.s8 %v770
          %v772 = vlaneseq
          %v773 = vshrl.u32 %v772, 7
          %v774 = vsub.s32 %v771, %v773
          %v775 = vrot.slane %v747, %v774
          %v776 = vcombine.high %v754, %v754
          %v777 = vcombine.high %v761, %v761
          %v778 = vcombine.high %v768, %v768
          %v779 = vcombine.high %v775, %v775
          %v780 = vcombine.high %v316, %v316
          %v782 = vunpack.c.l.s4 1966171168
          %v783 = vunpack.c.0.s8 %v782
          %v784 = vlaneseq
          %v785 = vshrl.u32 %v784, 7
          %v786 = vsub.s32 %v783, %v785
          %v787 = vrot.slane %v316, %v786
          %v789 = vunpack.c.l.s4 1966171168
          %v790 = vunpack.c.0.s8 %v789
          %v791 = vlaneseq
          %v792 = vshrl.u32 %v791, 7
          %v793 = vsub.s32 %v790, %v792
          %v794 = vrot.slane %v780, %v793
          %v795 = vcombine.high %v787, %v787
          %v796 = vcombine.high %v794, %v794
          %v798 = vunpack.c.l.s4 1966171168
          %v799 = vunpack.c.0.s8 %v798
          %v800 = vlaneseq
          %v801 = vshrl.u32 %v800, 7
          %v802 = vsub.s32 %v799, %v801
          %v803 = vrot.slane %v787, %v802
          %v805 = vunpack.c.l.s4 1966171168
          %v806 = vunpack.c.0.s8 %v805
          %v807 = vlaneseq
          %v808 = vshrl.u32 %v807, 7
          %v809 = vsub.s32 %v806, %v808
          %v810 = vrot.slane %v794, %v809
          %v812 = vunpack.c.l.s4 1966171168
          %v813 = vunpack.c.0.s8 %v812
          %v814 = vlaneseq
          %v815 = vshrl.u32 %v814, 7
          %v816 = vsub.s32 %v813, %v815
          %v817 = vrot.slane %v795, %v816
          %v819 = vunpack.c.l.s4 1966171168
          %v820 = vunpack.c.0.s8 %v819
          %v821 = vlaneseq
          %v822 = vshrl.u32 %v821, 7
          %v823 = vsub.s32 %v820, %v822
          %v824 = vrot.slane %v796, %v823
          %v825 = vcombine.high %v803, %v803
          %v826 = vcombine.high %v810, %v810
          %v827 = vcombine.high %v817, %v817
          %v828 = vcombine.high %v824, %v824
          %v829 = vcombine.high %v317, %v317
          %v831 = vunpack.c.l.s4 1966171168
          %v832 = vunpack.c.0.s8 %v831
          %v833 = vlaneseq
          %v834 = vshrl.u32 %v833, 7
          %v835 = vsub.s32 %v832, %v834
          %v836 = vrot.slane %v317, %v835
          %v838 = vunpack.c.l.s4 1966171168
          %v839 = vunpack.c.0.s8 %v838
          %v840 = vlaneseq
          %v841 = vshrl.u32 %v840, 7
          %v842 = vsub.s32 %v839, %v841
          %v843 = vrot.slane %v829, %v842
          %v844 = vcombine.high %v836, %v836
          %v845 = vcombine.high %v843, %v843
          %v847 = vunpack.c.l.s4 1966171168
          %v848 = vunpack.c.0.s8 %v847
          %v849 = vlaneseq
          %v850 = vshrl.u32 %v849, 7
          %v851 = vsub.s32 %v848, %v850
          %v852 = vrot.slane %v836, %v851
          %v854 = vunpack.c.l.s4 1966171168
          %v855 = vunpack.c.0.s8 %v854
          %v856 = vlaneseq
          %v857 = vshrl.u32 %v856, 7
          %v858 = vsub.s32 %v855, %v857
          %v859 = vrot.slane %v843, %v858
          %v861 = vunpack.c.l.s4 1966171168
          %v862 = vunpack.c.0.s8 %v861
          %v863 = vlaneseq
          %v864 = vshrl.u32 %v863, 7
          %v865 = vsub.s32 %v862, %v864
          %v866 = vrot.slane %v844, %v865
          %v868 = vunpack.c.l.s4 1966171168
          %v869 = vunpack.c.0.s8 %v868
          %v870 = vlaneseq
          %v871 = vshrl.u32 %v870, 7
          %v872 = vsub.s32 %v869, %v871
          %v873 = vrot.slane %v845, %v872
          %v874 = vcombine.high %v852, %v852
          %v875 = vcombine.high %v859, %v859
          %v876 = vcombine.high %v866, %v866
          %v877 = vcombine.high %v873, %v873
          %v878 = vcombine.high %v318, %v318
          %v880 = vunpack.c.l.s4 1966171168
          %v881 = vunpack.c.0.s8 %v880
          %v882 = vlaneseq
          %v883 = vshrl.u32 %v882, 7
          %v884 = vsub.s32 %v881, %v883
          %v885 = vrot.slane %v318, %v884
          %v887 = vunpack.c.l.s4 1966171168
          %v888 = vunpack.c.0.s8 %v887
          %v889 = vlaneseq
          %v890 = vshrl.u32 %v889, 7
          %v891 = vsub.s32 %v888, %v890
          %v892 = vrot.slane %v878, %v891
          %v893 = vcombine.high %v885, %v885
          %v894 = vcombine.high %v892, %v892
          %v896 = vunpack.c.l.s4 1966171168
          %v897 = vunpack.c.0.s8 %v896
          %v898 = vlaneseq
          %v899 = vshrl.u32 %v898, 7
          %v900 = vsub.s32 %v897, %v899
          %v901 = vrot.slane %v885, %v900
          %v903 = vunpack.c.l.s4 1966171168
          %v904 = vunpack.c.0.s8 %v903
          %v905 = vlaneseq
          %v906 = vshrl.u32 %v905, 7
          %v907 = vsub.s32 %v904, %v906
          %v908 = vrot.slane %v892, %v907
          %v910 = vunpack.c.l.s4 1966171168
          %v911 = vunpack.c.0.s8 %v910
          %v912 = vlaneseq
          %v913 = vshrl.u32 %v912, 7
          %v914 = vsub.s32 %v911, %v913
          %v915 = vrot.slane %v893, %v914
          %v917 = vunpack.c.l.s4 1966171168
          %v918 = vunpack.c.0.s8 %v917
          %v919 = vlaneseq
          %v920 = vshrl.u32 %v919, 7
          %v921 = vsub.s32 %v918, %v920
          %v922 = vrot.slane %v894, %v921
          %v923 = vcombine.high %v901, %v901
          %v924 = vcombine.high %v908, %v908
          %v925 = vcombine.high %v915, %v915
          %v926 = vcombine.high %v922, %v922
          %v927 = vcombine.high %v319, %v319
          %v929 = vunpack.c.l.s4 1966171168
          %v930 = vunpack.c.0.s8 %v929
          %v931 = vlaneseq
          %v932 = vshrl.u32 %v931, 7
          %v933 = vsub.s32 %v930, %v932
          %v934 = vrot.slane %v319, %v933
          %v936 = vunpack.c.l.s4 1966171168
          %v937 = vunpack.c.0.s8 %v936
          %v938 = vlaneseq
          %v939 = vshrl.u32 %v938, 7
          %v940 = vsub.s32 %v937, %v939
          %v941 = vrot.slane %v927, %v940
          %v942 = vcombine.high %v934, %v934
          %v943 = vcombine.high %v941, %v941
          %v945 = vunpack.c.l.s4 1966171168
          %v946 = vunpack.c.0.s8 %v945
          %v947 = vlaneseq
          %v948 = vshrl.u32 %v947, 7
          %v949 = vsub.s32 %v946, %v948
          %v950 = vrot.slane %v934, %v949
          %v952 = vunpack.c.l.s4 1966171168
          %v953 = vunpack.c.0.s8 %v952
          %v954 = vlaneseq
          %v955 = vshrl.u32 %v954, 7
          %v956 = vsub.s32 %v953, %v955
          %v957 = vrot.slane %v941, %v956
          %v959 = vunpack.c.l.s4 1966171168
          %v960 = vunpack.c.0.s8 %v959
          %v961 = vlaneseq
          %v962 = vshrl.u32 %v961, 7
          %v963 = vsub.s32 %v960, %v962
          %v964 = vrot.slane %v942, %v963
          %v966 = vunpack.c.l.s4 1966171168
          %v967 = vunpack.c.0.s8 %v966
          %v968 = vlaneseq
          %v969 = vshrl.u32 %v968, 7
          %v970 = vsub.s32 %v967, %v969
          %v971 = vrot.slane %v943, %v970
          %v972 = vcombine.high %v950, %v950
          %v973 = vcombine.high %v957, %v957
          %v974 = vcombine.high %v964, %v964
          %v975 = vcombine.high %v971, %v971
          %v976 = vcombine.high %v320, %v320
          %v978 = vunpack.c.l.s4 1966171168
          %v979 = vunpack.c.0.s8 %v978
          %v980 = vlaneseq
          %v981 = vshrl.u32 %v980, 7
          %v982 = vsub.s32 %v979, %v981
          %v983 = vrot.slane %v320, %v982
          %v985 = vunpack.c.l.s4 1966171168
          %v986 = vunpack.c.0.s8 %v985
          %v987 = vlaneseq
          %v988 = vshrl.u32 %v987, 7
          %v989 = vsub.s32 %v986, %v988
          %v990 = vrot.slane %v976, %v989
          %v991 = vcombine.high %v983, %v983
          %v992 = vcombine.high %v990, %v990
          %v994 = vunpack.c.l.s4 1966171168
          %v995 = vunpack.c.0.s8 %v994
          %v996 = vlaneseq
          %v997 = vshrl.u32 %v996, 7
          %v998 = vsub.s32 %v995, %v997
          %v999 = vrot.slane %v983, %v998
          %v1001 = vunpack.c.l.s4 1966171168
          %v1002 = vunpack.c.0.s8 %v1001
          %v1003 = vlaneseq
          %v1004 = vshrl.u32 %v1003, 7
          %v1005 = vsub.s32 %v1002, %v1004
          %v1006 = vrot.slane %v990, %v1005
          %v1008 = vunpack.c.l.s4 1966171168
          %v1009 = vunpack.c.0.s8 %v1008
          %v1010 = vlaneseq
          %v1011 = vshrl.u32 %v1010, 7
          %v1012 = vsub.s32 %v1009, %v1011
          %v1013 = vrot.slane %v991, %v1012
          %v1015 = vunpack.c.l.s4 1966171168
          %v1016 = vunpack.c.0.s8 %v1015
          %v1017 = vlaneseq
          %v1018 = vshrl.u32 %v1017, 7
          %v1019 = vsub.s32 %v1016, %v1018
          %v1020 = vrot.slane %v992, %v1019
          %v1021 = vcombine.high %v999, %v999
          %v1022 = vcombine.high %v1006, %v1006
          %v1023 = vcombine.high %v1013, %v1013
          %v1024 = vcombine.high %v1020, %v1020
          %v1025 = vcombine.high %v321, %v321
          %v1027 = vunpack.c.l.s4 1966171168
          %v1028 = vunpack.c.0.s8 %v1027
          %v1029 = vlaneseq
          %v1030 = vshrl.u32 %v1029, 7
          %v1031 = vsub.s32 %v1028, %v1030
          %v1032 = vrot.slane %v321, %v1031
          %v1034 = vunpack.c.l.s4 1966171168
          %v1035 = vunpack.c.0.s8 %v1034
          %v1036 = vlaneseq
          %v1037 = vshrl.u32 %v1036, 7
          %v1038 = vsub.s32 %v1035, %v1037
          %v1039 = vrot.slane %v1025, %v1038
          %v1040 = vcombine.high %v1032, %v1032
          %v1041 = vcombine.high %v1039, %v1039
          %v1043 = vunpack.c.l.s4 1966171168
          %v1044 = vunpack.c.0.s8 %v1043
          %v1045 = vlaneseq
          %v1046 = vshrl.u32 %v1045, 7
          %v1047 = vsub.s32 %v1044, %v1046
          %v1048 = vrot.slane %v1032, %v1047
          %v1050 = vunpack.c.l.s4 1966171168
          %v1051 = vunpack.c.0.s8 %v1050
          %v1052 = vlaneseq
          %v1053 = vshrl.u32 %v1052, 7
          %v1054 = vsub.s32 %v1051, %v1053
          %v1055 = vrot.slane %v1039, %v1054
          %v1057 = vunpack.c.l.s4 1966171168
          %v1058 = vunpack.c.0.s8 %v1057
          %v1059 = vlaneseq
          %v1060 = vshrl.u32 %v1059, 7
          %v1061 = vsub.s32 %v1058, %v1060
          %v1062 = vrot.slane %v1040, %v1061
          %v1064 = vunpack.c.l.s4 1966171168
          %v1065 = vunpack.c.0.s8 %v1064
          %v1066 = vlaneseq
          %v1067 = vshrl.u32 %v1066, 7
          %v1068 = vsub.s32 %v1065, %v1067
          %v1069 = vrot.slane %v1041, %v1068
          %v1070 = vcombine.high %v1048, %v1048
          %v1071 = vcombine.high %v1055, %v1055
          %v1072 = vcombine.high %v1062, %v1062
          %v1073 = vcombine.high %v1069, %v1069
          %v1074 = vcombine.high %v322, %v322
          %v1076 = vunpack.c.l.s4 1966171168
          %v1077 = vunpack.c.0.s8 %v1076
          %v1078 = vlaneseq
          %v1079 = vshrl.u32 %v1078, 7
          %v1080 = vsub.s32 %v1077, %v1079
          %v1081 = vrot.slane %v322, %v1080
          %v1083 = vunpack.c.l.s4 1966171168
          %v1084 = vunpack.c.0.s8 %v1083
          %v1085 = vlaneseq
          %v1086 = vshrl.u32 %v1085, 7
          %v1087 = vsub.s32 %v1084, %v1086
          %v1088 = vrot.slane %v1074, %v1087
          %v1089 = vcombine.high %v1081, %v1081
          %v1090 = vcombine.high %v1088, %v1088
          %v1092 = vunpack.c.l.s4 1966171168
          %v1093 = vunpack.c.0.s8 %v1092
          %v1094 = vlaneseq
          %v1095 = vshrl.u32 %v1094, 7
          %v1096 = vsub.s32 %v1093, %v1095
          %v1097 = vrot.slane %v1081, %v1096
          %v1099 = vunpack.c.l.s4 1966171168
          %v1100 = vunpack.c.0.s8 %v1099
          %v1101 = vlaneseq
          %v1102 = vshrl.u32 %v1101, 7
          %v1103 = vsub.s32 %v1100, %v1102
          %v1104 = vrot.slane %v1088, %v1103
          %v1106 = vunpack.c.l.s4 1966171168
          %v1107 = vunpack.c.0.s8 %v1106
          %v1108 = vlaneseq
          %v1109 = vshrl.u32 %v1108, 7
          %v1110 = vsub.s32 %v1107, %v1109
          %v1111 = vrot.slane %v1089, %v1110
          %v1113 = vunpack.c.l.s4 1966171168
          %v1114 = vunpack.c.0.s8 %v1113
          %v1115 = vlaneseq
          %v1116 = vshrl.u32 %v1115, 7
          %v1117 = vsub.s32 %v1114, %v1116
          %v1118 = vrot.slane %v1090, %v1117
          %v1119 = vcombine.high %v1097, %v1097
          %v1120 = vcombine.high %v1104, %v1104
          %v1121 = vcombine.high %v1111, %v1111
          %v1122 = vcombine.high %v1118, %v1118
          %v1123 = vcombine.high %v323, %v323
          %v1125 = vunpack.c.l.s4 1966171168
          %v1126 = vunpack.c.0.s8 %v1125
          %v1127 = vlaneseq
          %v1128 = vshrl.u32 %v1127, 7
          %v1129 = vsub.s32 %v1126, %v1128
          %v1130 = vrot.slane %v323, %v1129
          %v1132 = vunpack.c.l.s4 1966171168
          %v1133 = vunpack.c.0.s8 %v1132
          %v1134 = vlaneseq
          %v1135 = vshrl.u32 %v1134, 7
          %v1136 = vsub.s32 %v1133, %v1135
          %v1137 = vrot.slane %v1123, %v1136
          %v1138 = vcombine.high %v1130, %v1130
          %v1139 = vcombine.high %v1137, %v1137
          %v1141 = vunpack.c.l.s4 1966171168
          %v1142 = vunpack.c.0.s8 %v1141
          %v1143 = vlaneseq
          %v1144 = vshrl.u32 %v1143, 7
          %v1145 = vsub.s32 %v1142, %v1144
          %v1146 = vrot.slane %v1130, %v1145
          %v1148 = vunpack.c.l.s4 1966171168
          %v1149 = vunpack.c.0.s8 %v1148
          %v1150 = vlaneseq
          %v1151 = vshrl.u32 %v1150, 7
          %v1152 = vsub.s32 %v1149, %v1151
          %v1153 = vrot.slane %v1137, %v1152
          %v1155 = vunpack.c.l.s4 1966171168
          %v1156 = vunpack.c.0.s8 %v1155
          %v1157 = vlaneseq
          %v1158 = vshrl.u32 %v1157, 7
          %v1159 = vsub.s32 %v1156, %v1158
          %v1160 = vrot.slane %v1138, %v1159
          %v1162 = vunpack.c.l.s4 1966171168
          %v1163 = vunpack.c.0.s8 %v1162
          %v1164 = vlaneseq
          %v1165 = vshrl.u32 %v1164, 7
          %v1166 = vsub.s32 %v1163, %v1165
          %v1167 = vrot.slane %v1139, %v1166
          %v1168 = vcombine.high %v1146, %v1146
          %v1169 = vcombine.high %v1153, %v1153
          %v1170 = vcombine.high %v1160, %v1160
          %v1171 = vcombine.high %v1167, %v1167
          %v1172 = vcombine.high %v340, %v340
          %v1174 = vunpack.c.l.s4 1966171168
          %v1175 = vunpack.c.0.s8 %v1174
          %v1176 = vlaneseq
          %v1177 = vshrl.u32 %v1176, 7
          %v1178 = vsub.s32 %v1175, %v1177
          %v1179 = vrot.slane %v340, %v1178
          %v1181 = vunpack.c.l.s4 1966171168
          %v1182 = vunpack.c.0.s8 %v1181
          %v1183 = vlaneseq
          %v1184 = vshrl.u32 %v1183, 7
          %v1185 = vsub.s32 %v1182, %v1184
          %v1186 = vrot.slane %v1172, %v1185
          %v1187 = vcombine.high %v1179, %v1179
          %v1188 = vcombine.high %v1186, %v1186
          %v1190 = vunpack.c.l.s4 1966171168
          %v1191 = vunpack.c.0.s8 %v1190
          %v1192 = vlaneseq
          %v1193 = vshrl.u32 %v1192, 7
          %v1194 = vsub.s32 %v1191, %v1193
          %v1195 = vrot.slane %v1179, %v1194
          %v1197 = vunpack.c.l.s4 1966171168
          %v1198 = vunpack.c.0.s8 %v1197
          %v1199 = vlaneseq
          %v1200 = vshrl.u32 %v1199, 7
          %v1201 = vsub.s32 %v1198, %v1200
          %v1202 = vrot.slane %v1186, %v1201
          %v1204 = vunpack.c.l.s4 1966171168
          %v1205 = vunpack.c.0.s8 %v1204
          %v1206 = vlaneseq
          %v1207 = vshrl.u32 %v1206, 7
          %v1208 = vsub.s32 %v1205, %v1207
          %v1209 = vrot.slane %v1187, %v1208
          %v1211 = vunpack.c.l.s4 1966171168
          %v1212 = vunpack.c.0.s8 %v1211
          %v1213 = vlaneseq
          %v1214 = vshrl.u32 %v1213, 7
          %v1215 = vsub.s32 %v1212, %v1214
          %v1216 = vrot.slane %v1188, %v1215
          %v1217 = vcombine.high %v1195, %v1195
          %v1218 = vcombine.high %v1202, %v1202
          %v1219 = vcombine.high %v1209, %v1209
          %v1220 = vcombine.high %v1216, %v1216
          %v1221 = vcombine.high %v341, %v341
          %v1223 = vunpack.c.l.s4 1966171168
          %v1224 = vunpack.c.0.s8 %v1223
          %v1225 = vlaneseq
          %v1226 = vshrl.u32 %v1225, 7
          %v1227 = vsub.s32 %v1224, %v1226
          %v1228 = vrot.slane %v341, %v1227
          %v1230 = vunpack.c.l.s4 1966171168
          %v1231 = vunpack.c.0.s8 %v1230
          %v1232 = vlaneseq
          %v1233 = vshrl.u32 %v1232, 7
          %v1234 = vsub.s32 %v1231, %v1233
          %v1235 = vrot.slane %v1221, %v1234
          %v1236 = vcombine.high %v1228, %v1228
          %v1237 = vcombine.high %v1235, %v1235
          %v1239 = vunpack.c.l.s4 1966171168
          %v1240 = vunpack.c.0.s8 %v1239
          %v1241 = vlaneseq
          %v1242 = vshrl.u32 %v1241, 7
          %v1243 = vsub.s32 %v1240, %v1242
          %v1244 = vrot.slane %v1228, %v1243
          %v1246 = vunpack.c.l.s4 1966171168
          %v1247 = vunpack.c.0.s8 %v1246
          %v1248 = vlaneseq
          %v1249 = vshrl.u32 %v1248, 7
          %v1250 = vsub.s32 %v1247, %v1249
          %v1251 = vrot.slane %v1235, %v1250
          %v1253 = vunpack.c.l.s4 1966171168
          %v1254 = vunpack.c.0.s8 %v1253
          %v1255 = vlaneseq
          %v1256 = vshrl.u32 %v1255, 7
          %v1257 = vsub.s32 %v1254, %v1256
          %v1258 = vrot.slane %v1236, %v1257
          %v1260 = vunpack.c.l.s4 1966171168
          %v1261 = vunpack.c.0.s8 %v1260
          %v1262 = vlaneseq
          %v1263 = vshrl.u32 %v1262, 7
          %v1264 = vsub.s32 %v1261, %v1263
          %v1265 = vrot.slane %v1237, %v1264
          %v1266 = vcombine.high %v1244, %v1244
          %v1267 = vcombine.high %v1251, %v1251
          %v1268 = vcombine.high %v1258, %v1258
          %v1269 = vcombine.high %v1265, %v1265
          %v1270 = vcombine.high %v342, %v342
          %v1272 = vunpack.c.l.s4 1966171168
          %v1273 = vunpack.c.0.s8 %v1272
          %v1274 = vlaneseq
          %v1275 = vshrl.u32 %v1274, 7
          %v1276 = vsub.s32 %v1273, %v1275
          %v1277 = vrot.slane %v342, %v1276
          %v1279 = vunpack.c.l.s4 1966171168
          %v1280 = vunpack.c.0.s8 %v1279
          %v1281 = vlaneseq
          %v1282 = vshrl.u32 %v1281, 7
          %v1283 = vsub.s32 %v1280, %v1282
          %v1284 = vrot.slane %v1270, %v1283
          %v1285 = vcombine.high %v1277, %v1277
          %v1286 = vcombine.high %v1284, %v1284
          %v1288 = vunpack.c.l.s4 1966171168
          %v1289 = vunpack.c.0.s8 %v1288
          %v1290 = vlaneseq
          %v1291 = vshrl.u32 %v1290, 7
          %v1292 = vsub.s32 %v1289, %v1291
          %v1293 = vrot.slane %v1277, %v1292
          %v1295 = vunpack.c.l.s4 1966171168
          %v1296 = vunpack.c.0.s8 %v1295
          %v1297 = vlaneseq
          %v1298 = vshrl.u32 %v1297, 7
          %v1299 = vsub.s32 %v1296, %v1298
          %v1300 = vrot.slane %v1284, %v1299
          %v1302 = vunpack.c.l.s4 1966171168
          %v1303 = vunpack.c.0.s8 %v1302
          %v1304 = vlaneseq
          %v1305 = vshrl.u32 %v1304, 7
          %v1306 = vsub.s32 %v1303, %v1305
          %v1307 = vrot.slane %v1285, %v1306
          %v1309 = vunpack.c.l.s4 1966171168
          %v1310 = vunpack.c.0.s8 %v1309
          %v1311 = vlaneseq
          %v1312 = vshrl.u32 %v1311, 7
          %v1313 = vsub.s32 %v1310, %v1312
          %v1314 = vrot.slane %v1286, %v1313
          %v1315 = vcombine.high %v1293, %v1293
          %v1316 = vcombine.high %v1300, %v1300
          %v1317 = vcombine.high %v1307, %v1307
          %v1318 = vcombine.high %v1314, %v1314
          %v1319 = vcombine.high %v343, %v343
          %v1321 = vunpack.c.l.s4 1966171168
          %v1322 = vunpack.c.0.s8 %v1321
          %v1323 = vlaneseq
          %v1324 = vshrl.u32 %v1323, 7
          %v1325 = vsub.s32 %v1322, %v1324
          %v1326 = vrot.slane %v343, %v1325
          %v1328 = vunpack.c.l.s4 1966171168
          %v1329 = vunpack.c.0.s8 %v1328
          %v1330 = vlaneseq
          %v1331 = vshrl.u32 %v1330, 7
          %v1332 = vsub.s32 %v1329, %v1331
          %v1333 = vrot.slane %v1319, %v1332
          %v1334 = vcombine.high %v1326, %v1326
          %v1335 = vcombine.high %v1333, %v1333
          %v1337 = vunpack.c.l.s4 1966171168
          %v1338 = vunpack.c.0.s8 %v1337
          %v1339 = vlaneseq
          %v1340 = vshrl.u32 %v1339, 7
          %v1341 = vsub.s32 %v1338, %v1340
          %v1342 = vrot.slane %v1326, %v1341
          %v1344 = vunpack.c.l.s4 1966171168
          %v1345 = vunpack.c.0.s8 %v1344
          %v1346 = vlaneseq
          %v1347 = vshrl.u32 %v1346, 7
          %v1348 = vsub.s32 %v1345, %v1347
          %v1349 = vrot.slane %v1333, %v1348
          %v1351 = vunpack.c.l.s4 1966171168
          %v1352 = vunpack.c.0.s8 %v1351
          %v1353 = vlaneseq
          %v1354 = vshrl.u32 %v1353, 7
          %v1355 = vsub.s32 %v1352, %v1354
          %v1356 = vrot.slane %v1334, %v1355
          %v1358 = vunpack.c.l.s4 1966171168
          %v1359 = vunpack.c.0.s8 %v1358
          %v1360 = vlaneseq
          %v1361 = vshrl.u32 %v1360, 7
          %v1362 = vsub.s32 %v1359, %v1361
          %v1363 = vrot.slane %v1335, %v1362
          %v1364 = vcombine.high %v1342, %v1342
          %v1365 = vcombine.high %v1349, %v1349
          %v1366 = vcombine.high %v1356, %v1356
          %v1367 = vcombine.high %v1363, %v1363
          %v1368 = vcombine.high %v344, %v344
          %v1370 = vunpack.c.l.s4 1966171168
          %v1371 = vunpack.c.0.s8 %v1370
          %v1372 = vlaneseq
          %v1373 = vshrl.u32 %v1372, 7
          %v1374 = vsub.s32 %v1371, %v1373
          %v1375 = vrot.slane %v344, %v1374
          %v1377 = vunpack.c.l.s4 1966171168
          %v1378 = vunpack.c.0.s8 %v1377
          %v1379 = vlaneseq
          %v1380 = vshrl.u32 %v1379, 7
          %v1381 = vsub.s32 %v1378, %v1380
          %v1382 = vrot.slane %v1368, %v1381
          %v1383 = vcombine.high %v1375, %v1375
          %v1384 = vcombine.high %v1382, %v1382
          %v1386 = vunpack.c.l.s4 1966171168
          %v1387 = vunpack.c.0.s8 %v1386
          %v1388 = vlaneseq
          %v1389 = vshrl.u32 %v1388, 7
          %v1390 = vsub.s32 %v1387, %v1389
          %v1391 = vrot.slane %v1375, %v1390
          %v1393 = vunpack.c.l.s4 1966171168
          %v1394 = vunpack.c.0.s8 %v1393
          %v1395 = vlaneseq
          %v1396 = vshrl.u32 %v1395, 7
          %v1397 = vsub.s32 %v1394, %v1396
          %v1398 = vrot.slane %v1382, %v1397
          %v1400 = vunpack.c.l.s4 1966171168
          %v1401 = vunpack.c.0.s8 %v1400
          %v1402 = vlaneseq
          %v1403 = vshrl.u32 %v1402, 7
          %v1404 = vsub.s32 %v1401, %v1403
          %v1405 = vrot.slane %v1383, %v1404
          %v1407 = vunpack.c.l.s4 1966171168
          %v1408 = vunpack.c.0.s8 %v1407
          %v1409 = vlaneseq
          %v1410 = vshrl.u32 %v1409, 7
          %v1411 = vsub.s32 %v1408, %v1410
          %v1412 = vrot.slane %v1384, %v1411
          %v1413 = vcombine.high %v1391, %v1391
          %v1414 = vcombine.high %v1398, %v1398
          %v1415 = vcombine.high %v1405, %v1405
          %v1416 = vcombine.high %v1412, %v1412
          %v1417 = vcombine.high %v345, %v345
          %v1419 = vunpack.c.l.s4 1966171168
          %v1420 = vunpack.c.0.s8 %v1419
          %v1421 = vlaneseq
          %v1422 = vshrl.u32 %v1421, 7
          %v1423 = vsub.s32 %v1420, %v1422
          %v1424 = vrot.slane %v345, %v1423
          %v1426 = vunpack.c.l.s4 1966171168
          %v1427 = vunpack.c.0.s8 %v1426
          %v1428 = vlaneseq
          %v1429 = vshrl.u32 %v1428, 7
          %v1430 = vsub.s32 %v1427, %v1429
          %v1431 = vrot.slane %v1417, %v1430
          %v1432 = vcombine.high %v1424, %v1424
          %v1433 = vcombine.high %v1431, %v1431
          %v1435 = vunpack.c.l.s4 1966171168
          %v1436 = vunpack.c.0.s8 %v1435
          %v1437 = vlaneseq
          %v1438 = vshrl.u32 %v1437, 7
          %v1439 = vsub.s32 %v1436, %v1438
          %v1440 = vrot.slane %v1424, %v1439
          %v1442 = vunpack.c.l.s4 1966171168
          %v1443 = vunpack.c.0.s8 %v1442
          %v1444 = vlaneseq
          %v1445 = vshrl.u32 %v1444, 7
          %v1446 = vsub.s32 %v1443, %v1445
          %v1447 = vrot.slane %v1431, %v1446
          %v1449 = vunpack.c.l.s4 1966171168
          %v1450 = vunpack.c.0.s8 %v1449
          %v1451 = vlaneseq
          %v1452 = vshrl.u32 %v1451, 7
          %v1453 = vsub.s32 %v1450, %v1452
          %v1454 = vrot.slane %v1432, %v1453
          %v1456 = vunpack.c.l.s4 1966171168
          %v1457 = vunpack.c.0.s8 %v1456
          %v1458 = vlaneseq
          %v1459 = vshrl.u32 %v1458, 7
          %v1460 = vsub.s32 %v1457, %v1459
          %v1461 = vrot.slane %v1433, %v1460
          %v1462 = vcombine.high %v1440, %v1440
          %v1463 = vcombine.high %v1447, %v1447
          %v1464 = vcombine.high %v1454, %v1454
          %v1465 = vcombine.high %v1461, %v1461
          %v1466 = vcombine.high %v346, %v346
          %v1468 = vunpack.c.l.s4 1966171168
          %v1469 = vunpack.c.0.s8 %v1468
          %v1470 = vlaneseq
          %v1471 = vshrl.u32 %v1470, 7
          %v1472 = vsub.s32 %v1469, %v1471
          %v1473 = vrot.slane %v346, %v1472
          %v1475 = vunpack.c.l.s4 1966171168
          %v1476 = vunpack.c.0.s8 %v1475
          %v1477 = vlaneseq
          %v1478 = vshrl.u32 %v1477, 7
          %v1479 = vsub.s32 %v1476, %v1478
          %v1480 = vrot.slane %v1466, %v1479
          %v1481 = vcombine.high %v1473, %v1473
          %v1482 = vcombine.high %v1480, %v1480
          %v1484 = vunpack.c.l.s4 1966171168
          %v1485 = vunpack.c.0.s8 %v1484
          %v1486 = vlaneseq
          %v1487 = vshrl.u32 %v1486, 7
          %v1488 = vsub.s32 %v1485, %v1487
          %v1489 = vrot.slane %v1473, %v1488
          %v1491 = vunpack.c.l.s4 1966171168
          %v1492 = vunpack.c.0.s8 %v1491
          %v1493 = vlaneseq
          %v1494 = vshrl.u32 %v1493, 7
          %v1495 = vsub.s32 %v1492, %v1494
          %v1496 = vrot.slane %v1480, %v1495
          %v1498 = vunpack.c.l.s4 1966171168
          %v1499 = vunpack.c.0.s8 %v1498
          %v1500 = vlaneseq
          %v1501 = vshrl.u32 %v1500, 7
          %v1502 = vsub.s32 %v1499, %v1501
          %v1503 = vrot.slane %v1481, %v1502
          %v1505 = vunpack.c.l.s4 1966171168
          %v1506 = vunpack.c.0.s8 %v1505
          %v1507 = vlaneseq
          %v1508 = vshrl.u32 %v1507, 7
          %v1509 = vsub.s32 %v1506, %v1508
          %v1510 = vrot.slane %v1482, %v1509
          %v1511 = vcombine.high %v1489, %v1489
          %v1512 = vcombine.high %v1496, %v1496
          %v1513 = vcombine.high %v1503, %v1503
          %v1514 = vcombine.high %v1510, %v1510
          %v1515 = vcombine.high %v347, %v347
          %v1517 = vunpack.c.l.s4 1966171168
          %v1518 = vunpack.c.0.s8 %v1517
          %v1519 = vlaneseq
          %v1520 = vshrl.u32 %v1519, 7
          %v1521 = vsub.s32 %v1518, %v1520
          %v1522 = vrot.slane %v347, %v1521
          %v1524 = vunpack.c.l.s4 1966171168
          %v1525 = vunpack.c.0.s8 %v1524
          %v1526 = vlaneseq
          %v1527 = vshrl.u32 %v1526, 7
          %v1528 = vsub.s32 %v1525, %v1527
          %v1529 = vrot.slane %v1515, %v1528
          %v1530 = vcombine.high %v1522, %v1522
          %v1531 = vcombine.high %v1529, %v1529
          %v1533 = vunpack.c.l.s4 1966171168
          %v1534 = vunpack.c.0.s8 %v1533
          %v1535 = vlaneseq
          %v1536 = vshrl.u32 %v1535, 7
          %v1537 = vsub.s32 %v1534, %v1536
          %v1538 = vrot.slane %v1522, %v1537
          %v1540 = vunpack.c.l.s4 1966171168
          %v1541 = vunpack.c.0.s8 %v1540
          %v1542 = vlaneseq
          %v1543 = vshrl.u32 %v1542, 7
          %v1544 = vsub.s32 %v1541, %v1543
          %v1545 = vrot.slane %v1529, %v1544
          %v1547 = vunpack.c.l.s4 1966171168
          %v1548 = vunpack.c.0.s8 %v1547
          %v1549 = vlaneseq
          %v1550 = vshrl.u32 %v1549, 7
          %v1551 = vsub.s32 %v1548, %v1550
          %v1552 = vrot.slane %v1530, %v1551
          %v1554 = vunpack.c.l.s4 1966171168
          %v1555 = vunpack.c.0.s8 %v1554
          %v1556 = vlaneseq
          %v1557 = vshrl.u32 %v1556, 7
          %v1558 = vsub.s32 %v1555, %v1557
          %v1559 = vrot.slane %v1531, %v1558
          %v1560 = vcombine.high %v1538, %v1538
          %v1561 = vcombine.high %v1545, %v1545
          %v1562 = vcombine.high %v1552, %v1552
          %v1563 = vcombine.high %v1559, %v1559
          %v1564 = vcombine.high %v348, %v348
          %v1566 = vunpack.c.l.s4 1966171168
          %v1567 = vunpack.c.0.s8 %v1566
          %v1568 = vlaneseq
          %v1569 = vshrl.u32 %v1568, 7
          %v1570 = vsub.s32 %v1567, %v1569
          %v1571 = vrot.slane %v348, %v1570
          %v1573 = vunpack.c.l.s4 1966171168
          %v1574 = vunpack.c.0.s8 %v1573
          %v1575 = vlaneseq
          %v1576 = vshrl.u32 %v1575, 7
          %v1577 = vsub.s32 %v1574, %v1576
          %v1578 = vrot.slane %v1564, %v1577
          %v1579 = vcombine.high %v1571, %v1571
          %v1580 = vcombine.high %v1578, %v1578
          %v1582 = vunpack.c.l.s4 1966171168
          %v1583 = vunpack.c.0.s8 %v1582
          %v1584 = vlaneseq
          %v1585 = vshrl.u32 %v1584, 7
          %v1586 = vsub.s32 %v1583, %v1585
          %v1587 = vrot.slane %v1571, %v1586
          %v1589 = vunpack.c.l.s4 1966171168
          %v1590 = vunpack.c.0.s8 %v1589
          %v1591 = vlaneseq
          %v1592 = vshrl.u32 %v1591, 7
          %v1593 = vsub.s32 %v1590, %v1592
          %v1594 = vrot.slane %v1578, %v1593
          %v1596 = vunpack.c.l.s4 1966171168
          %v1597 = vunpack.c.0.s8 %v1596
          %v1598 = vlaneseq
          %v1599 = vshrl.u32 %v1598, 7
          %v1600 = vsub.s32 %v1597, %v1599
          %v1601 = vrot.slane %v1579, %v1600
          %v1603 = vunpack.c.l.s4 1966171168
          %v1604 = vunpack.c.0.s8 %v1603
          %v1605 = vlaneseq
          %v1606 = vshrl.u32 %v1605, 7
          %v1607 = vsub.s32 %v1604, %v1606
          %v1608 = vrot.slane %v1580, %v1607
          %v1609 = vcombine.high %v1587, %v1587
          %v1610 = vcombine.high %v1594, %v1594
          %v1611 = vcombine.high %v1601, %v1601
          %v1612 = vcombine.high %v1608, %v1608
          %v1613 = vcombine.high %v349, %v349
          %v1615 = vunpack.c.l.s4 1966171168
          %v1616 = vunpack.c.0.s8 %v1615
          %v1617 = vlaneseq
          %v1618 = vshrl.u32 %v1617, 7
          %v1619 = vsub.s32 %v1616, %v1618
          %v1620 = vrot.slane %v349, %v1619
          %v1622 = vunpack.c.l.s4 1966171168
          %v1623 = vunpack.c.0.s8 %v1622
          %v1624 = vlaneseq
          %v1625 = vshrl.u32 %v1624, 7
          %v1626 = vsub.s32 %v1623, %v1625
          %v1627 = vrot.slane %v1613, %v1626
          %v1628 = vcombine.high %v1620, %v1620
          %v1629 = vcombine.high %v1627, %v1627
          %v1631 = vunpack.c.l.s4 1966171168
          %v1632 = vunpack.c.0.s8 %v1631
          %v1633 = vlaneseq
          %v1634 = vshrl.u32 %v1633, 7
          %v1635 = vsub.s32 %v1632, %v1634
          %v1636 = vrot.slane %v1620, %v1635
          %v1638 = vunpack.c.l.s4 1966171168
          %v1639 = vunpack.c.0.s8 %v1638
          %v1640 = vlaneseq
          %v1641 = vshrl.u32 %v1640, 7
          %v1642 = vsub.s32 %v1639, %v1641
          %v1643 = vrot.slane %v1627, %v1642
          %v1645 = vunpack.c.l.s4 1966171168
          %v1646 = vunpack.c.0.s8 %v1645
          %v1647 = vlaneseq
          %v1648 = vshrl.u32 %v1647, 7
          %v1649 = vsub.s32 %v1646, %v1648
          %v1650 = vrot.slane %v1628, %v1649
          %v1652 = vunpack.c.l.s4 1966171168
          %v1653 = vunpack.c.0.s8 %v1652
          %v1654 = vlaneseq
          %v1655 = vshrl.u32 %v1654, 7
          %v1656 = vsub.s32 %v1653, %v1655
          %v1657 = vrot.slane %v1629, %v1656
          %v1658 = vcombine.high %v1636, %v1636
          %v1659 = vcombine.high %v1643, %v1643
          %v1660 = vcombine.high %v1650, %v1650
          %v1661 = vcombine.high %v1657, %v1657
          %v1662 = vcombine.high %v350, %v350
          %v1664 = vunpack.c.l.s4 1966171168
          %v1665 = vunpack.c.0.s8 %v1664
          %v1666 = vlaneseq
          %v1667 = vshrl.u32 %v1666, 7
          %v1668 = vsub.s32 %v1665, %v1667
          %v1669 = vrot.slane %v350, %v1668
          %v1671 = vunpack.c.l.s4 1966171168
          %v1672 = vunpack.c.0.s8 %v1671
          %v1673 = vlaneseq
          %v1674 = vshrl.u32 %v1673, 7
          %v1675 = vsub.s32 %v1672, %v1674
          %v1676 = vrot.slane %v1662, %v1675
          %v1677 = vcombine.high %v1669, %v1669
          %v1678 = vcombine.high %v1676, %v1676
          %v1680 = vunpack.c.l.s4 1966171168
          %v1681 = vunpack.c.0.s8 %v1680
          %v1682 = vlaneseq
          %v1683 = vshrl.u32 %v1682, 7
          %v1684 = vsub.s32 %v1681, %v1683
          %v1685 = vrot.slane %v1669, %v1684
          %v1687 = vunpack.c.l.s4 1966171168
          %v1688 = vunpack.c.0.s8 %v1687
          %v1689 = vlaneseq
          %v1690 = vshrl.u32 %v1689, 7
          %v1691 = vsub.s32 %v1688, %v1690
          %v1692 = vrot.slane %v1676, %v1691
          %v1694 = vunpack.c.l.s4 1966171168
          %v1695 = vunpack.c.0.s8 %v1694
          %v1696 = vlaneseq
          %v1697 = vshrl.u32 %v1696, 7
          %v1698 = vsub.s32 %v1695, %v1697
          %v1699 = vrot.slane %v1677, %v1698
          %v1701 = vunpack.c.l.s4 1966171168
          %v1702 = vunpack.c.0.s8 %v1701
          %v1703 = vlaneseq
          %v1704 = vshrl.u32 %v1703, 7
          %v1705 = vsub.s32 %v1702, %v1704
          %v1706 = vrot.slane %v1678, %v1705
          %v1707 = vcombine.high %v1685, %v1685
          %v1708 = vcombine.high %v1692, %v1692
          %v1709 = vcombine.high %v1699, %v1699
          %v1710 = vcombine.high %v1706, %v1706
          %v1711 = vcombine.high %v351, %v351
          %v1713 = vunpack.c.l.s4 1966171168
          %v1714 = vunpack.c.0.s8 %v1713
          %v1715 = vlaneseq
          %v1716 = vshrl.u32 %v1715, 7
          %v1717 = vsub.s32 %v1714, %v1716
          %v1718 = vrot.slane %v351, %v1717
          %v1720 = vunpack.c.l.s4 1966171168
          %v1721 = vunpack.c.0.s8 %v1720
          %v1722 = vlaneseq
          %v1723 = vshrl.u32 %v1722, 7
          %v1724 = vsub.s32 %v1721, %v1723
          %v1725 = vrot.slane %v1711, %v1724
          %v1726 = vcombine.high %v1718, %v1718
          %v1727 = vcombine.high %v1725, %v1725
          %v1729 = vunpack.c.l.s4 1966171168
          %v1730 = vunpack.c.0.s8 %v1729
          %v1731 = vlaneseq
          %v1732 = vshrl.u32 %v1731, 7
          %v1733 = vsub.s32 %v1730, %v1732
          %v1734 = vrot.slane %v1718, %v1733
          %v1736 = vunpack.c.l.s4 1966171168
          %v1737 = vunpack.c.0.s8 %v1736
          %v1738 = vlaneseq
          %v1739 = vshrl.u32 %v1738, 7
          %v1740 = vsub.s32 %v1737, %v1739
          %v1741 = vrot.slane %v1725, %v1740
          %v1743 = vunpack.c.l.s4 1966171168
          %v1744 = vunpack.c.0.s8 %v1743
          %v1745 = vlaneseq
          %v1746 = vshrl.u32 %v1745, 7
          %v1747 = vsub.s32 %v1744, %v1746
          %v1748 = vrot.slane %v1726, %v1747
          %v1750 = vunpack.c.l.s4 1966171168
          %v1751 = vunpack.c.0.s8 %v1750
          %v1752 = vlaneseq
          %v1753 = vshrl.u32 %v1752, 7
          %v1754 = vsub.s32 %v1751, %v1753
          %v1755 = vrot.slane %v1727, %v1754
          %v1756 = vcombine.high %v1734, %v1734
          %v1757 = vcombine.high %v1741, %v1741
          %v1758 = vcombine.high %v1748, %v1748
          %v1759 = vcombine.high %v1755, %v1755
          %v1760 = vcombine.high %v352, %v352
          %v1762 = vunpack.c.l.s4 1966171168
          %v1763 = vunpack.c.0.s8 %v1762
          %v1764 = vlaneseq
          %v1765 = vshrl.u32 %v1764, 7
          %v1766 = vsub.s32 %v1763, %v1765
          %v1767 = vrot.slane %v352, %v1766
          %v1769 = vunpack.c.l.s4 1966171168
          %v1770 = vunpack.c.0.s8 %v1769
          %v1771 = vlaneseq
          %v1772 = vshrl.u32 %v1771, 7
          %v1773 = vsub.s32 %v1770, %v1772
          %v1774 = vrot.slane %v1760, %v1773
          %v1775 = vcombine.high %v1767, %v1767
          %v1776 = vcombine.high %v1774, %v1774
          %v1778 = vunpack.c.l.s4 1966171168
          %v1779 = vunpack.c.0.s8 %v1778
          %v1780 = vlaneseq
          %v1781 = vshrl.u32 %v1780, 7
          %v1782 = vsub.s32 %v1779, %v1781
          %v1783 = vrot.slane %v1767, %v1782
          %v1785 = vunpack.c.l.s4 1966171168
          %v1786 = vunpack.c.0.s8 %v1785
          %v1787 = vlaneseq
          %v1788 = vshrl.u32 %v1787, 7
          %v1789 = vsub.s32 %v1786, %v1788
          %v1790 = vrot.slane %v1774, %v1789
          %v1792 = vunpack.c.l.s4 1966171168
          %v1793 = vunpack.c.0.s8 %v1792
          %v1794 = vlaneseq
          %v1795 = vshrl.u32 %v1794, 7
          %v1796 = vsub.s32 %v1793, %v1795
          %v1797 = vrot.slane %v1775, %v1796
          %v1799 = vunpack.c.l.s4 1966171168
          %v1800 = vunpack.c.0.s8 %v1799
          %v1801 = vlaneseq
          %v1802 = vshrl.u32 %v1801, 7
          %v1803 = vsub.s32 %v1800, %v1802
          %v1804 = vrot.slane %v1776, %v1803
          %v1805 = vcombine.high %v1783, %v1783
          %v1806 = vcombine.high %v1790, %v1790
          %v1807 = vcombine.high %v1797, %v1797
          %v1808 = vcombine.high %v1804, %v1804
          %v1809 = vcombine.high %v353, %v353
          %v1811 = vunpack.c.l.s4 1966171168
          %v1812 = vunpack.c.0.s8 %v1811
          %v1813 = vlaneseq
          %v1814 = vshrl.u32 %v1813, 7
          %v1815 = vsub.s32 %v1812, %v1814
          %v1816 = vrot.slane %v353, %v1815
          %v1818 = vunpack.c.l.s4 1966171168
          %v1819 = vunpack.c.0.s8 %v1818
          %v1820 = vlaneseq
          %v1821 = vshrl.u32 %v1820, 7
          %v1822 = vsub.s32 %v1819, %v1821
          %v1823 = vrot.slane %v1809, %v1822
          %v1824 = vcombine.high %v1816, %v1816
          %v1825 = vcombine.high %v1823, %v1823
          %v1827 = vunpack.c.l.s4 1966171168
          %v1828 = vunpack.c.0.s8 %v1827
          %v1829 = vlaneseq
          %v1830 = vshrl.u32 %v1829, 7
          %v1831 = vsub.s32 %v1828, %v1830
          %v1832 = vrot.slane %v1816, %v1831
          %v1834 = vunpack.c.l.s4 1966171168
          %v1835 = vunpack.c.0.s8 %v1834
          %v1836 = vlaneseq
          %v1837 = vshrl.u32 %v1836, 7
          %v1838 = vsub.s32 %v1835, %v1837
          %v1839 = vrot.slane %v1823, %v1838
          %v1841 = vunpack.c.l.s4 1966171168
          %v1842 = vunpack.c.0.s8 %v1841
          %v1843 = vlaneseq
          %v1844 = vshrl.u32 %v1843, 7
          %v1845 = vsub.s32 %v1842, %v1844
          %v1846 = vrot.slane %v1824, %v1845
          %v1848 = vunpack.c.l.s4 1966171168
          %v1849 = vunpack.c.0.s8 %v1848
          %v1850 = vlaneseq
          %v1851 = vshrl.u32 %v1850, 7
          %v1852 = vsub.s32 %v1849, %v1851
          %v1853 = vrot.slane %v1825, %v1852
          %v1854 = vcombine.high %v1832, %v1832
          %v1855 = vcombine.high %v1839, %v1839
          %v1856 = vcombine.high %v1846, %v1846
          %v1857 = vcombine.high %v1853, %v1853
          %v1858 = vcombine.high %v354, %v354
          %v1860 = vunpack.c.l.s4 1966171168
          %v1861 = vunpack.c.0.s8 %v1860
          %v1862 = vlaneseq
          %v1863 = vshrl.u32 %v1862, 7
          %v1864 = vsub.s32 %v1861, %v1863
          %v1865 = vrot.slane %v354, %v1864
          %v1867 = vunpack.c.l.s4 1966171168
          %v1868 = vunpack.c.0.s8 %v1867
          %v1869 = vlaneseq
          %v1870 = vshrl.u32 %v1869, 7
          %v1871 = vsub.s32 %v1868, %v1870
          %v1872 = vrot.slane %v1858, %v1871
          %v1873 = vcombine.high %v1865, %v1865
          %v1874 = vcombine.high %v1872, %v1872
          %v1876 = vunpack.c.l.s4 1966171168
          %v1877 = vunpack.c.0.s8 %v1876
          %v1878 = vlaneseq
          %v1879 = vshrl.u32 %v1878, 7
          %v1880 = vsub.s32 %v1877, %v1879
          %v1881 = vrot.slane %v1865, %v1880
          %v1883 = vunpack.c.l.s4 1966171168
          %v1884 = vunpack.c.0.s8 %v1883
          %v1885 = vlaneseq
          %v1886 = vshrl.u32 %v1885, 7
          %v1887 = vsub.s32 %v1884, %v1886
          %v1888 = vrot.slane %v1872, %v1887
          %v1890 = vunpack.c.l.s4 1966171168
          %v1891 = vunpack.c.0.s8 %v1890
          %v1892 = vlaneseq
          %v1893 = vshrl.u32 %v1892, 7
          %v1894 = vsub.s32 %v1891, %v1893
          %v1895 = vrot.slane %v1873, %v1894
          %v1897 = vunpack.c.l.s4 1966171168
          %v1898 = vunpack.c.0.s8 %v1897
          %v1899 = vlaneseq
          %v1900 = vshrl.u32 %v1899, 7
          %v1901 = vsub.s32 %v1898, %v1900
          %v1902 = vrot.slane %v1874, %v1901
          %v1903 = vcombine.high %v1881, %v1881
          %v1904 = vcombine.high %v1888, %v1888
          %v1905 = vcombine.high %v1895, %v1895
          %v1906 = vcombine.high %v1902, %v1902
          %v1907 = vcombine.high %v355, %v355
          %v1909 = vunpack.c.l.s4 1966171168
          %v1910 = vunpack.c.0.s8 %v1909
          %v1911 = vlaneseq
          %v1912 = vshrl.u32 %v1911, 7
          %v1913 = vsub.s32 %v1910, %v1912
          %v1914 = vrot.slane %v355, %v1913
          %v1916 = vunpack.c.l.s4 1966171168
          %v1917 = vunpack.c.0.s8 %v1916
          %v1918 = vlaneseq
          %v1919 = vshrl.u32 %v1918, 7
          %v1920 = vsub.s32 %v1917, %v1919
          %v1921 = vrot.slane %v1907, %v1920
          %v1922 = vcombine.high %v1914, %v1914
          %v1923 = vcombine.high %v1921, %v1921
          %v1925 = vunpack.c.l.s4 1966171168
          %v1926 = vunpack.c.0.s8 %v1925
          %v1927 = vlaneseq
          %v1928 = vshrl.u32 %v1927, 7
          %v1929 = vsub.s32 %v1926, %v1928
          %v1930 = vrot.slane %v1914, %v1929
          %v1932 = vunpack.c.l.s4 1966171168
          %v1933 = vunpack.c.0.s8 %v1932
          %v1934 = vlaneseq
          %v1935 = vshrl.u32 %v1934, 7
          %v1936 = vsub.s32 %v1933, %v1935
          %v1937 = vrot.slane %v1921, %v1936
          %v1939 = vunpack.c.l.s4 1966171168
          %v1940 = vunpack.c.0.s8 %v1939
          %v1941 = vlaneseq
          %v1942 = vshrl.u32 %v1941, 7
          %v1943 = vsub.s32 %v1940, %v1942
          %v1944 = vrot.slane %v1922, %v1943
          %v1946 = vunpack.c.l.s4 1966171168
          %v1947 = vunpack.c.0.s8 %v1946
          %v1948 = vlaneseq
          %v1949 = vshrl.u32 %v1948, 7
          %v1950 = vsub.s32 %v1947, %v1949
          %v1951 = vrot.slane %v1923, %v1950
          %v1952 = vcombine.high %v1930, %v1930
          %v1953 = vcombine.high %v1937, %v1937
          %v1954 = vcombine.high %v1944, %v1944
          %v1955 = vcombine.high %v1951, %v1951
          %v1956 = vlaneseq
          %v1957 = vshrl.u32 %v1956, 7
          %v1958 = vsub.s32 0, %v1957
          %v1959 = vrot.slane %v411, %v1958
          %v1960 = vlaneseq
          %v1961 = vshrl.u32 %v1960, 7
          %v1962 = vsub.s32 0, %v1961
          %v1963 = vrot.slane %v425, %v1962
          %v1964 = vlaneseq
          %v1965 = vshrl.u32 %v1964, 7
          %v1966 = vsub.s32 0, %v1965
          %v1967 = vrot.slane %v433, %v1966
          %v1968 = vlaneseq
          %v1969 = vshrl.u32 %v1968, 7
          %v1970 = vsub.s32 0, %v1969
          %v1971 = vrot.slane %v435, %v1970
          %v1972 = vlaneseq
          %v1973 = vshrl.u32 %v1972, 7
          %v1974 = vsub.s32 0, %v1973
          %v1975 = vrot.slane %v418, %v1974
          %v1976 = vlaneseq
          %v1977 = vshrl.u32 %v1976, 7
          %v1978 = vsub.s32 0, %v1977
          %v1979 = vrot.slane %v432, %v1978
          %v1980 = vlaneseq
          %v1981 = vshrl.u32 %v1980, 7
          %v1982 = vsub.s32 0, %v1981
          %v1983 = vrot.slane %v434, %v1982
          %v1984 = vlaneseq
          %v1985 = vshrl.u32 %v1984, 7
          %v1986 = vsub.s32 0, %v1985
          %v1987 = vrot.slane %v436, %v1986
          %v1988 = vlaneseq
          %v1989 = vshrl.u32 %v1988, 7
          %v1990 = vsub.s32 0, %v1989
          %v1991 = vrot.slane %v460, %v1990
          %v1992 = vlaneseq
          %v1993 = vshrl.u32 %v1992, 7
          %v1994 = vsub.s32 0, %v1993
          %v1995 = vrot.slane %v474, %v1994
          %v1996 = vlaneseq
          %v1997 = vshrl.u32 %v1996, 7
          %v1998 = vsub.s32 0, %v1997
          %v1999 = vrot.slane %v482, %v1998
          %v2000 = vlaneseq
          %v2001 = vshrl.u32 %v2000, 7
          %v2002 = vsub.s32 0, %v2001
          %v2003 = vrot.slane %v484, %v2002
          %v2004 = vlaneseq
          %v2005 = vshrl.u32 %v2004, 7
          %v2006 = vsub.s32 0, %v2005
          %v2007 = vrot.slane %v467, %v2006
          %v2008 = vlaneseq
          %v2009 = vshrl.u32 %v2008, 7
          %v2010 = vsub.s32 0, %v2009
          %v2011 = vrot.slane %v481, %v2010
          %v2012 = vlaneseq
          %v2013 = vshrl.u32 %v2012, 7
          %v2014 = vsub.s32 0, %v2013
          %v2015 = vrot.slane %v483, %v2014
          %v2016 = vlaneseq
          %v2017 = vshrl.u32 %v2016, 7
          %v2018 = vsub.s32 0, %v2017
          %v2019 = vrot.slane %v485, %v2018
          %v2020 = vlaneseq
          %v2021 = vshrl.u32 %v2020, 7
          %v2022 = vsub.s32 0, %v2021
          %v2023 = vrot.slane %v509, %v2022
          %v2024 = vlaneseq
          %v2025 = vshrl.u32 %v2024, 7
          %v2026 = vsub.s32 0, %v2025
          %v2027 = vrot.slane %v523, %v2026
          %v2028 = vlaneseq
          %v2029 = vshrl.u32 %v2028, 7
          %v2030 = vsub.s32 0, %v2029
          %v2031 = vrot.slane %v531, %v2030
          %v2032 = vlaneseq
          %v2033 = vshrl.u32 %v2032, 7
          %v2034 = vsub.s32 0, %v2033
          %v2035 = vrot.slane %v533, %v2034
          %v2036 = vlaneseq
          %v2037 = vshrl.u32 %v2036, 7
          %v2038 = vsub.s32 0, %v2037
          %v2039 = vrot.slane %v516, %v2038
          %v2040 = vlaneseq
          %v2041 = vshrl.u32 %v2040, 7
          %v2042 = vsub.s32 0, %v2041
          %v2043 = vrot.slane %v530, %v2042
          %v2044 = vlaneseq
          %v2045 = vshrl.u32 %v2044, 7
          %v2046 = vsub.s32 0, %v2045
          %v2047 = vrot.slane %v532, %v2046
          %v2048 = vlaneseq
          %v2049 = vshrl.u32 %v2048, 7
          %v2050 = vsub.s32 0, %v2049
          %v2051 = vrot.slane %v534, %v2050
          %v2052 = vlaneseq
          %v2053 = vshrl.u32 %v2052, 7
          %v2054 = vsub.s32 0, %v2053
          %v2055 = vrot.slane %v558, %v2054
          %v2056 = vlaneseq
          %v2057 = vshrl.u32 %v2056, 7
          %v2058 = vsub.s32 0, %v2057
          %v2059 = vrot.slane %v572, %v2058
          %v2060 = vlaneseq
          %v2061 = vshrl.u32 %v2060, 7
          %v2062 = vsub.s32 0, %v2061
          %v2063 = vrot.slane %v580, %v2062
          %v2064 = vlaneseq
          %v2065 = vshrl.u32 %v2064, 7
          %v2066 = vsub.s32 0, %v2065
          %v2067 = vrot.slane %v582, %v2066
          %v2068 = vlaneseq
          %v2069 = vshrl.u32 %v2068, 7
          %v2070 = vsub.s32 0, %v2069
          %v2071 = vrot.slane %v565, %v2070
          %v2072 = vlaneseq
          %v2073 = vshrl.u32 %v2072, 7
          %v2074 = vsub.s32 0, %v2073
          %v2075 = vrot.slane %v579, %v2074
          %v2076 = vlaneseq
          %v2077 = vshrl.u32 %v2076, 7
          %v2078 = vsub.s32 0, %v2077
          %v2079 = vrot.slane %v581, %v2078
          %v2080 = vlaneseq
          %v2081 = vshrl.u32 %v2080, 7
          %v2082 = vsub.s32 0, %v2081
          %v2083 = vrot.slane %v583, %v2082
          %v2084 = vlaneseq
          %v2085 = vshrl.u32 %v2084, 7
          %v2086 = vsub.s32 0, %v2085
          %v2087 = vrot.slane %v607, %v2086
          %v2088 = vlaneseq
          %v2089 = vshrl.u32 %v2088, 7
          %v2090 = vsub.s32 0, %v2089
          %v2091 = vrot.slane %v621, %v2090
          %v2092 = vlaneseq
          %v2093 = vshrl.u32 %v2092, 7
          %v2094 = vsub.s32 0, %v2093
          %v2095 = vrot.slane %v629, %v2094
          %v2096 = vlaneseq
          %v2097 = vshrl.u32 %v2096, 7
          %v2098 = vsub.s32 0, %v2097
          %v2099 = vrot.slane %v631, %v2098
          %v2100 = vlaneseq
          %v2101 = vshrl.u32 %v2100, 7
          %v2102 = vsub.s32 0, %v2101
          %v2103 = vrot.slane %v614, %v2102
          %v2104 = vlaneseq
          %v2105 = vshrl.u32 %v2104, 7
          %v2106 = vsub.s32 0, %v2105
          %v2107 = vrot.slane %v628, %v2106
          %v2108 = vlaneseq
          %v2109 = vshrl.u32 %v2108, 7
          %v2110 = vsub.s32 0, %v2109
          %v2111 = vrot.slane %v630, %v2110
          %v2112 = vlaneseq
          %v2113 = vshrl.u32 %v2112, 7
          %v2114 = vsub.s32 0, %v2113
          %v2115 = vrot.slane %v632, %v2114
          %v2116 = vlaneseq
          %v2117 = vshrl.u32 %v2116, 7
          %v2118 = vsub.s32 0, %v2117
          %v2119 = vrot.slane %v656, %v2118
          %v2120 = vlaneseq
          %v2121 = vshrl.u32 %v2120, 7
          %v2122 = vsub.s32 0, %v2121
          %v2123 = vrot.slane %v670, %v2122
          %v2124 = vlaneseq
          %v2125 = vshrl.u32 %v2124, 7
          %v2126 = vsub.s32 0, %v2125
          %v2127 = vrot.slane %v678, %v2126
          %v2128 = vlaneseq
          %v2129 = vshrl.u32 %v2128, 7
          %v2130 = vsub.s32 0, %v2129
          %v2131 = vrot.slane %v680, %v2130
          %v2132 = vlaneseq
          %v2133 = vshrl.u32 %v2132, 7
          %v2134 = vsub.s32 0, %v2133
          %v2135 = vrot.slane %v663, %v2134
          %v2136 = vlaneseq
          %v2137 = vshrl.u32 %v2136, 7
          %v2138 = vsub.s32 0, %v2137
          %v2139 = vrot.slane %v677, %v2138
          %v2140 = vlaneseq
          %v2141 = vshrl.u32 %v2140, 7
          %v2142 = vsub.s32 0, %v2141
          %v2143 = vrot.slane %v679, %v2142
          %v2144 = vlaneseq
          %v2145 = vshrl.u32 %v2144, 7
          %v2146 = vsub.s32 0, %v2145
          %v2147 = vrot.slane %v681, %v2146
          %v2148 = vlaneseq
          %v2149 = vshrl.u32 %v2148, 7
          %v2150 = vsub.s32 0, %v2149
          %v2151 = vrot.slane %v705, %v2150
          %v2152 = vlaneseq
          %v2153 = vshrl.u32 %v2152, 7
          %v2154 = vsub.s32 0, %v2153
          %v2155 = vrot.slane %v719, %v2154
          %v2156 = vlaneseq
          %v2157 = vshrl.u32 %v2156, 7
          %v2158 = vsub.s32 0, %v2157
          %v2159 = vrot.slane %v727, %v2158
          %v2160 = vlaneseq
          %v2161 = vshrl.u32 %v2160, 7
          %v2162 = vsub.s32 0, %v2161
          %v2163 = vrot.slane %v729, %v2162
          %v2164 = vlaneseq
          %v2165 = vshrl.u32 %v2164, 7
          %v2166 = vsub.s32 0, %v2165
          %v2167 = vrot.slane %v712, %v2166
          %v2168 = vlaneseq
          %v2169 = vshrl.u32 %v2168, 7
          %v2170 = vsub.s32 0, %v2169
          %v2171 = vrot.slane %v726, %v2170
          %v2172 = vlaneseq
          %v2173 = vshrl.u32 %v2172, 7
          %v2174 = vsub.s32 0, %v2173
          %v2175 = vrot.slane %v728, %v2174
          %v2176 = vlaneseq
          %v2177 = vshrl.u32 %v2176, 7
          %v2178 = vsub.s32 0, %v2177
          %v2179 = vrot.slane %v730, %v2178
          %v2180 = vlaneseq
          %v2181 = vshrl.u32 %v2180, 7
          %v2182 = vsub.s32 0, %v2181
          %v2183 = vrot.slane %v754, %v2182
          %v2184 = vlaneseq
          %v2185 = vshrl.u32 %v2184, 7
          %v2186 = vsub.s32 0, %v2185
          %v2187 = vrot.slane %v768, %v2186
          %v2188 = vlaneseq
          %v2189 = vshrl.u32 %v2188, 7
          %v2190 = vsub.s32 0, %v2189
          %v2191 = vrot.slane %v776, %v2190
          %v2192 = vlaneseq
          %v2193 = vshrl.u32 %v2192, 7
          %v2194 = vsub.s32 0, %v2193
          %v2195 = vrot.slane %v778, %v2194
          %v2196 = vlaneseq
          %v2197 = vshrl.u32 %v2196, 7
          %v2198 = vsub.s32 0, %v2197
          %v2199 = vrot.slane %v761, %v2198
          %v2200 = vlaneseq
          %v2201 = vshrl.u32 %v2200, 7
          %v2202 = vsub.s32 0, %v2201
          %v2203 = vrot.slane %v775, %v2202
          %v2204 = vlaneseq
          %v2205 = vshrl.u32 %v2204, 7
          %v2206 = vsub.s32 0, %v2205
          %v2207 = vrot.slane %v777, %v2206
          %v2208 = vlaneseq
          %v2209 = vshrl.u32 %v2208, 7
          %v2210 = vsub.s32 0, %v2209
          %v2211 = vrot.slane %v779, %v2210
          %v2212 = vlaneseq
          %v2213 = vshrl.u32 %v2212, 7
          %v2214 = vsub.s32 0, %v2213
          %v2215 = vrot.slane %v803, %v2214
          %v2216 = vlaneseq
          %v2217 = vshrl.u32 %v2216, 7
          %v2218 = vsub.s32 0, %v2217
          %v2219 = vrot.slane %v817, %v2218
          %v2220 = vlaneseq
          %v2221 = vshrl.u32 %v2220, 7
          %v2222 = vsub.s32 0, %v2221
          %v2223 = vrot.slane %v825, %v2222
          %v2224 = vlaneseq
          %v2225 = vshrl.u32 %v2224, 7
          %v2226 = vsub.s32 0, %v2225
          %v2227 = vrot.slane %v827, %v2226
          %v2228 = vlaneseq
          %v2229 = vshrl.u32 %v2228, 7
          %v2230 = vsub.s32 0, %v2229
          %v2231 = vrot.slane %v810, %v2230
          %v2232 = vlaneseq
          %v2233 = vshrl.u32 %v2232, 7
          %v2234 = vsub.s32 0, %v2233
          %v2235 = vrot.slane %v824, %v2234
          %v2236 = vlaneseq
          %v2237 = vshrl.u32 %v2236, 7
          %v2238 = vsub.s32 0, %v2237
          %v2239 = vrot.slane %v826, %v2238
          %v2240 = vlaneseq
          %v2241 = vshrl.u32 %v2240, 7
          %v2242 = vsub.s32 0, %v2241
          %v2243 = vrot.slane %v828, %v2242
          %v2244 = vlaneseq
          %v2245 = vshrl.u32 %v2244, 7
          %v2246 = vsub.s32 0, %v2245
          %v2247 = vrot.slane %v852, %v2246
          %v2248 = vlaneseq
          %v2249 = vshrl.u32 %v2248, 7
          %v2250 = vsub.s32 0, %v2249
          %v2251 = vrot.slane %v866, %v2250
          %v2252 = vlaneseq
          %v2253 = vshrl.u32 %v2252, 7
          %v2254 = vsub.s32 0, %v2253
          %v2255 = vrot.slane %v874, %v2254
          %v2256 = vlaneseq
          %v2257 = vshrl.u32 %v2256, 7
          %v2258 = vsub.s32 0, %v2257
          %v2259 = vrot.slane %v876, %v2258
          %v2260 = vlaneseq
          %v2261 = vshrl.u32 %v2260, 7
          %v2262 = vsub.s32 0, %v2261
          %v2263 = vrot.slane %v859, %v2262
          %v2264 = vlaneseq
          %v2265 = vshrl.u32 %v2264, 7
          %v2266 = vsub.s32 0, %v2265
          %v2267 = vrot.slane %v873, %v2266
          %v2268 = vlaneseq
          %v2269 = vshrl.u32 %v2268, 7
          %v2270 = vsub.s32 0, %v2269
          %v2271 = vrot.slane %v875, %v2270
          %v2272 = vlaneseq
          %v2273 = vshrl.u32 %v2272, 7
          %v2274 = vsub.s32 0, %v2273
          %v2275 = vrot.slane %v877, %v2274
          %v2276 = vlaneseq
          %v2277 = vshrl.u32 %v2276, 7
          %v2278 = vsub.s32 0, %v2277
          %v2279 = vrot.slane %v901, %v2278
          %v2280 = vlaneseq
          %v2281 = vshrl.u32 %v2280, 7
          %v2282 = vsub.s32 0, %v2281
          %v2283 = vrot.slane %v915, %v2282
          %v2284 = vlaneseq
          %v2285 = vshrl.u32 %v2284, 7
          %v2286 = vsub.s32 0, %v2285
          %v2287 = vrot.slane %v923, %v2286
          %v2288 = vlaneseq
          %v2289 = vshrl.u32 %v2288, 7
          %v2290 = vsub.s32 0, %v2289
          %v2291 = vrot.slane %v925, %v2290
          %v2292 = vlaneseq
          %v2293 = vshrl.u32 %v2292, 7
          %v2294 = vsub.s32 0, %v2293
          %v2295 = vrot.slane %v908, %v2294
          %v2296 = vlaneseq
          %v2297 = vshrl.u32 %v2296, 7
          %v2298 = vsub.s32 0, %v2297
          %v2299 = vrot.slane %v922, %v2298
          %v2300 = vlaneseq
          %v2301 = vshrl.u32 %v2300, 7
          %v2302 = vsub.s32 0, %v2301
          %v2303 = vrot.slane %v924, %v2302
          %v2304 = vlaneseq
          %v2305 = vshrl.u32 %v2304, 7
          %v2306 = vsub.s32 0, %v2305
          %v2307 = vrot.slane %v926, %v2306
          %v2308 = vlaneseq
          %v2309 = vshrl.u32 %v2308, 7
          %v2310 = vsub.s32 0, %v2309
          %v2311 = vrot.slane %v950, %v2310
          %v2312 = vlaneseq
          %v2313 = vshrl.u32 %v2312, 7
          %v2314 = vsub.s32 0, %v2313
          %v2315 = vrot.slane %v964, %v2314
          %v2316 = vlaneseq
          %v2317 = vshrl.u32 %v2316, 7
          %v2318 = vsub.s32 0, %v2317
          %v2319 = vrot.slane %v972, %v2318
          %v2320 = vlaneseq
          %v2321 = vshrl.u32 %v2320, 7
          %v2322 = vsub.s32 0, %v2321
          %v2323 = vrot.slane %v974, %v2322
          %v2324 = vlaneseq
          %v2325 = vshrl.u32 %v2324, 7
          %v2326 = vsub.s32 0, %v2325
          %v2327 = vrot.slane %v957, %v2326
          %v2328 = vlaneseq
          %v2329 = vshrl.u32 %v2328, 7
          %v2330 = vsub.s32 0, %v2329
          %v2331 = vrot.slane %v971, %v2330
          %v2332 = vlaneseq
          %v2333 = vshrl.u32 %v2332, 7
          %v2334 = vsub.s32 0, %v2333
          %v2335 = vrot.slane %v973, %v2334
          %v2336 = vlaneseq
          %v2337 = vshrl.u32 %v2336, 7
          %v2338 = vsub.s32 0, %v2337
          %v2339 = vrot.slane %v975, %v2338
          %v2340 = vlaneseq
          %v2341 = vshrl.u32 %v2340, 7
          %v2342 = vsub.s32 0, %v2341
          %v2343 = vrot.slane %v999, %v2342
          %v2344 = vlaneseq
          %v2345 = vshrl.u32 %v2344, 7
          %v2346 = vsub.s32 0, %v2345
          %v2347 = vrot.slane %v1013, %v2346
          %v2348 = vlaneseq
          %v2349 = vshrl.u32 %v2348, 7
          %v2350 = vsub.s32 0, %v2349
          %v2351 = vrot.slane %v1021, %v2350
          %v2352 = vlaneseq
          %v2353 = vshrl.u32 %v2352, 7
          %v2354 = vsub.s32 0, %v2353
          %v2355 = vrot.slane %v1023, %v2354
          %v2356 = vlaneseq
          %v2357 = vshrl.u32 %v2356, 7
          %v2358 = vsub.s32 0, %v2357
          %v2359 = vrot.slane %v1006, %v2358
          %v2360 = vlaneseq
          %v2361 = vshrl.u32 %v2360, 7
          %v2362 = vsub.s32 0, %v2361
          %v2363 = vrot.slane %v1020, %v2362
          %v2364 = vlaneseq
          %v2365 = vshrl.u32 %v2364, 7
          %v2366 = vsub.s32 0, %v2365
          %v2367 = vrot.slane %v1022, %v2366
          %v2368 = vlaneseq
          %v2369 = vshrl.u32 %v2368, 7
          %v2370 = vsub.s32 0, %v2369
          %v2371 = vrot.slane %v1024, %v2370
          %v2372 = vlaneseq
          %v2373 = vshrl.u32 %v2372, 7
          %v2374 = vsub.s32 0, %v2373
          %v2375 = vrot.slane %v1048, %v2374
          %v2376 = vlaneseq
          %v2377 = vshrl.u32 %v2376, 7
          %v2378 = vsub.s32 0, %v2377
          %v2379 = vrot.slane %v1062, %v2378
          %v2380 = vlaneseq
          %v2381 = vshrl.u32 %v2380, 7
          %v2382 = vsub.s32 0, %v2381
          %v2383 = vrot.slane %v1070, %v2382
          %v2384 = vlaneseq
          %v2385 = vshrl.u32 %v2384, 7
          %v2386 = vsub.s32 0, %v2385
          %v2387 = vrot.slane %v1072, %v2386
          %v2388 = vlaneseq
          %v2389 = vshrl.u32 %v2388, 7
          %v2390 = vsub.s32 0, %v2389
          %v2391 = vrot.slane %v1055, %v2390
          %v2392 = vlaneseq
          %v2393 = vshrl.u32 %v2392, 7
          %v2394 = vsub.s32 0, %v2393
          %v2395 = vrot.slane %v1069, %v2394
          %v2396 = vlaneseq
          %v2397 = vshrl.u32 %v2396, 7
          %v2398 = vsub.s32 0, %v2397
          %v2399 = vrot.slane %v1071, %v2398
          %v2400 = vlaneseq
          %v2401 = vshrl.u32 %v2400, 7
          %v2402 = vsub.s32 0, %v2401
          %v2403 = vrot.slane %v1073, %v2402
          %v2404 = vlaneseq
          %v2405 = vshrl.u32 %v2404, 7
          %v2406 = vsub.s32 0, %v2405
          %v2407 = vrot.slane %v1097, %v2406
          %v2408 = vlaneseq
          %v2409 = vshrl.u32 %v2408, 7
          %v2410 = vsub.s32 0, %v2409
          %v2411 = vrot.slane %v1111, %v2410
          %v2412 = vlaneseq
          %v2413 = vshrl.u32 %v2412, 7
          %v2414 = vsub.s32 0, %v2413
          %v2415 = vrot.slane %v1119, %v2414
          %v2416 = vlaneseq
          %v2417 = vshrl.u32 %v2416, 7
          %v2418 = vsub.s32 0, %v2417
          %v2419 = vrot.slane %v1121, %v2418
          %v2420 = vlaneseq
          %v2421 = vshrl.u32 %v2420, 7
          %v2422 = vsub.s32 0, %v2421
          %v2423 = vrot.slane %v1104, %v2422
          %v2424 = vlaneseq
          %v2425 = vshrl.u32 %v2424, 7
          %v2426 = vsub.s32 0, %v2425
          %v2427 = vrot.slane %v1118, %v2426
          %v2428 = vlaneseq
          %v2429 = vshrl.u32 %v2428, 7
          %v2430 = vsub.s32 0, %v2429
          %v2431 = vrot.slane %v1120, %v2430
          %v2432 = vlaneseq
          %v2433 = vshrl.u32 %v2432, 7
          %v2434 = vsub.s32 0, %v2433
          %v2435 = vrot.slane %v1122, %v2434
          %v2436 = vlaneseq
          %v2437 = vshrl.u32 %v2436, 7
          %v2438 = vsub.s32 0, %v2437
          %v2439 = vrot.slane %v1146, %v2438
          %v2440 = vlaneseq
          %v2441 = vshrl.u32 %v2440, 7
          %v2442 = vsub.s32 0, %v2441
          %v2443 = vrot.slane %v1160, %v2442
          %v2444 = vlaneseq
          %v2445 = vshrl.u32 %v2444, 7
          %v2446 = vsub.s32 0, %v2445
          %v2447 = vrot.slane %v1168, %v2446
          %v2448 = vlaneseq
          %v2449 = vshrl.u32 %v2448, 7
          %v2450 = vsub.s32 0, %v2449
          %v2451 = vrot.slane %v1170, %v2450
          %v2452 = vlaneseq
          %v2453 = vshrl.u32 %v2452, 7
          %v2454 = vsub.s32 0, %v2453
          %v2455 = vrot.slane %v1153, %v2454
          %v2456 = vlaneseq
          %v2457 = vshrl.u32 %v2456, 7
          %v2458 = vsub.s32 0, %v2457
          %v2459 = vrot.slane %v1167, %v2458
          %v2460 = vlaneseq
          %v2461 = vshrl.u32 %v2460, 7
          %v2462 = vsub.s32 0, %v2461
          %v2463 = vrot.slane %v1169, %v2462
          %v2464 = vlaneseq
          %v2465 = vshrl.u32 %v2464, 7
          %v2466 = vsub.s32 0, %v2465
          %v2467 = vrot.slane %v1171, %v2466
          %v2468 = vlaneseq
          %v2469 = vshrl.u32 %v2468, 7
          %v2470 = vsub.s32 0, %v2469
          %v2471 = vrot.slane %v1195, %v2470
          %v2472 = vlaneseq
          %v2473 = vshrl.u32 %v2472, 7
          %v2474 = vsub.s32 0, %v2473
          %v2475 = vrot.slane %v1209, %v2474
          %v2476 = vlaneseq
          %v2477 = vshrl.u32 %v2476, 7
          %v2478 = vsub.s32 0, %v2477
          %v2479 = vrot.slane %v1217, %v2478
          %v2480 = vlaneseq
          %v2481 = vshrl.u32 %v2480, 7
          %v2482 = vsub.s32 0, %v2481
          %v2483 = vrot.slane %v1219, %v2482
          %v2484 = vlaneseq
          %v2485 = vshrl.u32 %v2484, 7
          %v2486 = vsub.s32 0, %v2485
          %v2487 = vrot.slane %v1202, %v2486
          %v2488 = vlaneseq
          %v2489 = vshrl.u32 %v2488, 7
          %v2490 = vsub.s32 0, %v2489
          %v2491 = vrot.slane %v1216, %v2490
          %v2492 = vlaneseq
          %v2493 = vshrl.u32 %v2492, 7
          %v2494 = vsub.s32 0, %v2493
          %v2495 = vrot.slane %v1218, %v2494
          %v2496 = vlaneseq
          %v2497 = vshrl.u32 %v2496, 7
          %v2498 = vsub.s32 0, %v2497
          %v2499 = vrot.slane %v1220, %v2498
          %v2500 = vlaneseq
          %v2501 = vshrl.u32 %v2500, 7
          %v2502 = vsub.s32 0, %v2501
          %v2503 = vrot.slane %v1244, %v2502
          %v2504 = vlaneseq
          %v2505 = vshrl.u32 %v2504, 7
          %v2506 = vsub.s32 0, %v2505
          %v2507 = vrot.slane %v1258, %v2506
          %v2508 = vlaneseq
          %v2509 = vshrl.u32 %v2508, 7
          %v2510 = vsub.s32 0, %v2509
          %v2511 = vrot.slane %v1266, %v2510
          %v2512 = vlaneseq
          %v2513 = vshrl.u32 %v2512, 7
          %v2514 = vsub.s32 0, %v2513
          %v2515 = vrot.slane %v1268, %v2514
          %v2516 = vlaneseq
          %v2517 = vshrl.u32 %v2516, 7
          %v2518 = vsub.s32 0, %v2517
          %v2519 = vrot.slane %v1251, %v2518
          %v2520 = vlaneseq
          %v2521 = vshrl.u32 %v2520, 7
          %v2522 = vsub.s32 0, %v2521
          %v2523 = vrot.slane %v1265, %v2522
          %v2524 = vlaneseq
          %v2525 = vshrl.u32 %v2524, 7
          %v2526 = vsub.s32 0, %v2525
          %v2527 = vrot.slane %v1267, %v2526
          %v2528 = vlaneseq
          %v2529 = vshrl.u32 %v2528, 7
          %v2530 = vsub.s32 0, %v2529
          %v2531 = vrot.slane %v1269, %v2530
          %v2532 = vlaneseq
          %v2533 = vshrl.u32 %v2532, 7
          %v2534 = vsub.s32 0, %v2533
          %v2535 = vrot.slane %v1293, %v2534
          %v2536 = vlaneseq
          %v2537 = vshrl.u32 %v2536, 7
          %v2538 = vsub.s32 0, %v2537
          %v2539 = vrot.slane %v1307, %v2538
          %v2540 = vlaneseq
          %v2541 = vshrl.u32 %v2540, 7
          %v2542 = vsub.s32 0, %v2541
          %v2543 = vrot.slane %v1315, %v2542
          %v2544 = vlaneseq
          %v2545 = vshrl.u32 %v2544, 7
          %v2546 = vsub.s32 0, %v2545
          %v2547 = vrot.slane %v1317, %v2546
          %v2548 = vlaneseq
          %v2549 = vshrl.u32 %v2548, 7
          %v2550 = vsub.s32 0, %v2549
          %v2551 = vrot.slane %v1300, %v2550
          %v2552 = vlaneseq
          %v2553 = vshrl.u32 %v2552, 7
          %v2554 = vsub.s32 0, %v2553
          %v2555 = vrot.slane %v1314, %v2554
          %v2556 = vlaneseq
          %v2557 = vshrl.u32 %v2556, 7
          %v2558 = vsub.s32 0, %v2557
          %v2559 = vrot.slane %v1316, %v2558
          %v2560 = vlaneseq
          %v2561 = vshrl.u32 %v2560, 7
          %v2562 = vsub.s32 0, %v2561
          %v2563 = vrot.slane %v1318, %v2562
          %v2564 = vlaneseq
          %v2565 = vshrl.u32 %v2564, 7
          %v2566 = vsub.s32 0, %v2565
          %v2567 = vrot.slane %v1342, %v2566
          %v2568 = vlaneseq
          %v2569 = vshrl.u32 %v2568, 7
          %v2570 = vsub.s32 0, %v2569
          %v2571 = vrot.slane %v1356, %v2570
          %v2572 = vlaneseq
          %v2573 = vshrl.u32 %v2572, 7
          %v2574 = vsub.s32 0, %v2573
          %v2575 = vrot.slane %v1364, %v2574
          %v2576 = vlaneseq
          %v2577 = vshrl.u32 %v2576, 7
          %v2578 = vsub.s32 0, %v2577
          %v2579 = vrot.slane %v1366, %v2578
          %v2580 = vlaneseq
          %v2581 = vshrl.u32 %v2580, 7
          %v2582 = vsub.s32 0, %v2581
          %v2583 = vrot.slane %v1349, %v2582
          %v2584 = vlaneseq
          %v2585 = vshrl.u32 %v2584, 7
          %v2586 = vsub.s32 0, %v2585
          %v2587 = vrot.slane %v1363, %v2586
          %v2588 = vlaneseq
          %v2589 = vshrl.u32 %v2588, 7
          %v2590 = vsub.s32 0, %v2589
          %v2591 = vrot.slane %v1365, %v2590
          %v2592 = vlaneseq
          %v2593 = vshrl.u32 %v2592, 7
          %v2594 = vsub.s32 0, %v2593
          %v2595 = vrot.slane %v1367, %v2594
          %v2596 = vlaneseq
          %v2597 = vshrl.u32 %v2596, 7
          %v2598 = vsub.s32 0, %v2597
          %v2599 = vrot.slane %v1391, %v2598
          %v2600 = vlaneseq
          %v2601 = vshrl.u32 %v2600, 7
          %v2602 = vsub.s32 0, %v2601
          %v2603 = vrot.slane %v1405, %v2602
          %v2604 = vlaneseq
          %v2605 = vshrl.u32 %v2604, 7
          %v2606 = vsub.s32 0, %v2605
          %v2607 = vrot.slane %v1413, %v2606
          %v2608 = vlaneseq
          %v2609 = vshrl.u32 %v2608, 7
          %v2610 = vsub.s32 0, %v2609
          %v2611 = vrot.slane %v1415, %v2610
          %v2612 = vlaneseq
          %v2613 = vshrl.u32 %v2612, 7
          %v2614 = vsub.s32 0, %v2613
          %v2615 = vrot.slane %v1398, %v2614
          %v2616 = vlaneseq
          %v2617 = vshrl.u32 %v2616, 7
          %v2618 = vsub.s32 0, %v2617
          %v2619 = vrot.slane %v1412, %v2618
          %v2620 = vlaneseq
          %v2621 = vshrl.u32 %v2620, 7
          %v2622 = vsub.s32 0, %v2621
          %v2623 = vrot.slane %v1414, %v2622
          %v2624 = vlaneseq
          %v2625 = vshrl.u32 %v2624, 7
          %v2626 = vsub.s32 0, %v2625
          %v2627 = vrot.slane %v1416, %v2626
          %v2628 = vlaneseq
          %v2629 = vshrl.u32 %v2628, 7
          %v2630 = vsub.s32 0, %v2629
          %v2631 = vrot.slane %v1440, %v2630
          %v2632 = vlaneseq
          %v2633 = vshrl.u32 %v2632, 7
          %v2634 = vsub.s32 0, %v2633
          %v2635 = vrot.slane %v1454, %v2634
          %v2636 = vlaneseq
          %v2637 = vshrl.u32 %v2636, 7
          %v2638 = vsub.s32 0, %v2637
          %v2639 = vrot.slane %v1462, %v2638
          %v2640 = vlaneseq
          %v2641 = vshrl.u32 %v2640, 7
          %v2642 = vsub.s32 0, %v2641
          %v2643 = vrot.slane %v1464, %v2642
          %v2644 = vlaneseq
          %v2645 = vshrl.u32 %v2644, 7
          %v2646 = vsub.s32 0, %v2645
          %v2647 = vrot.slane %v1447, %v2646
          %v2648 = vlaneseq
          %v2649 = vshrl.u32 %v2648, 7
          %v2650 = vsub.s32 0, %v2649
          %v2651 = vrot.slane %v1461, %v2650
          %v2652 = vlaneseq
          %v2653 = vshrl.u32 %v2652, 7
          %v2654 = vsub.s32 0, %v2653
          %v2655 = vrot.slane %v1463, %v2654
          %v2656 = vlaneseq
          %v2657 = vshrl.u32 %v2656, 7
          %v2658 = vsub.s32 0, %v2657
          %v2659 = vrot.slane %v1465, %v2658
          %v2660 = vlaneseq
          %v2661 = vshrl.u32 %v2660, 7
          %v2662 = vsub.s32 0, %v2661
          %v2663 = vrot.slane %v1489, %v2662
          %v2664 = vlaneseq
          %v2665 = vshrl.u32 %v2664, 7
          %v2666 = vsub.s32 0, %v2665
          %v2667 = vrot.slane %v1503, %v2666
          %v2668 = vlaneseq
          %v2669 = vshrl.u32 %v2668, 7
          %v2670 = vsub.s32 0, %v2669
          %v2671 = vrot.slane %v1511, %v2670
          %v2672 = vlaneseq
          %v2673 = vshrl.u32 %v2672, 7
          %v2674 = vsub.s32 0, %v2673
          %v2675 = vrot.slane %v1513, %v2674
          %v2676 = vlaneseq
          %v2677 = vshrl.u32 %v2676, 7
          %v2678 = vsub.s32 0, %v2677
          %v2679 = vrot.slane %v1496, %v2678
          %v2680 = vlaneseq
          %v2681 = vshrl.u32 %v2680, 7
          %v2682 = vsub.s32 0, %v2681
          %v2683 = vrot.slane %v1510, %v2682
          %v2684 = vlaneseq
          %v2685 = vshrl.u32 %v2684, 7
          %v2686 = vsub.s32 0, %v2685
          %v2687 = vrot.slane %v1512, %v2686
          %v2688 = vlaneseq
          %v2689 = vshrl.u32 %v2688, 7
          %v2690 = vsub.s32 0, %v2689
          %v2691 = vrot.slane %v1514, %v2690
          %v2692 = vlaneseq
          %v2693 = vshrl.u32 %v2692, 7
          %v2694 = vsub.s32 0, %v2693
          %v2695 = vrot.slane %v1538, %v2694
          %v2696 = vlaneseq
          %v2697 = vshrl.u32 %v2696, 7
          %v2698 = vsub.s32 0, %v2697
          %v2699 = vrot.slane %v1552, %v2698
          %v2700 = vlaneseq
          %v2701 = vshrl.u32 %v2700, 7
          %v2702 = vsub.s32 0, %v2701
          %v2703 = vrot.slane %v1560, %v2702
          %v2704 = vlaneseq
          %v2705 = vshrl.u32 %v2704, 7
          %v2706 = vsub.s32 0, %v2705
          %v2707 = vrot.slane %v1562, %v2706
          %v2708 = vlaneseq
          %v2709 = vshrl.u32 %v2708, 7
          %v2710 = vsub.s32 0, %v2709
          %v2711 = vrot.slane %v1545, %v2710
          %v2712 = vlaneseq
          %v2713 = vshrl.u32 %v2712, 7
          %v2714 = vsub.s32 0, %v2713
          %v2715 = vrot.slane %v1559, %v2714
          %v2716 = vlaneseq
          %v2717 = vshrl.u32 %v2716, 7
          %v2718 = vsub.s32 0, %v2717
          %v2719 = vrot.slane %v1561, %v2718
          %v2720 = vlaneseq
          %v2721 = vshrl.u32 %v2720, 7
          %v2722 = vsub.s32 0, %v2721
          %v2723 = vrot.slane %v1563, %v2722
          %v2724 = vlaneseq
          %v2725 = vshrl.u32 %v2724, 7
          %v2726 = vsub.s32 0, %v2725
          %v2727 = vrot.slane %v1587, %v2726
          %v2728 = vlaneseq
          %v2729 = vshrl.u32 %v2728, 7
          %v2730 = vsub.s32 0, %v2729
          %v2731 = vrot.slane %v1601, %v2730
          %v2732 = vlaneseq
          %v2733 = vshrl.u32 %v2732, 7
          %v2734 = vsub.s32 0, %v2733
          %v2735 = vrot.slane %v1609, %v2734
          %v2736 = vlaneseq
          %v2737 = vshrl.u32 %v2736, 7
          %v2738 = vsub.s32 0, %v2737
          %v2739 = vrot.slane %v1611, %v2738
          %v2740 = vlaneseq
          %v2741 = vshrl.u32 %v2740, 7
          %v2742 = vsub.s32 0, %v2741
          %v2743 = vrot.slane %v1594, %v2742
          %v2744 = vlaneseq
          %v2745 = vshrl.u32 %v2744, 7
          %v2746 = vsub.s32 0, %v2745
          %v2747 = vrot.slane %v1608, %v2746
          %v2748 = vlaneseq
          %v2749 = vshrl.u32 %v2748, 7
          %v2750 = vsub.s32 0, %v2749
          %v2751 = vrot.slane %v1610, %v2750
          %v2752 = vlaneseq
          %v2753 = vshrl.u32 %v2752, 7
          %v2754 = vsub.s32 0, %v2753
          %v2755 = vrot.slane %v1612, %v2754
          %v2756 = vlaneseq
          %v2757 = vshrl.u32 %v2756, 7
          %v2758 = vsub.s32 0, %v2757
          %v2759 = vrot.slane %v1636, %v2758
          %v2760 = vlaneseq
          %v2761 = vshrl.u32 %v2760, 7
          %v2762 = vsub.s32 0, %v2761
          %v2763 = vrot.slane %v1650, %v2762
          %v2764 = vlaneseq
          %v2765 = vshrl.u32 %v2764, 7
          %v2766 = vsub.s32 0, %v2765
          %v2767 = vrot.slane %v1658, %v2766
          %v2768 = vlaneseq
          %v2769 = vshrl.u32 %v2768, 7
          %v2770 = vsub.s32 0, %v2769
          %v2771 = vrot.slane %v1660, %v2770
          %v2772 = vlaneseq
          %v2773 = vshrl.u32 %v2772, 7
          %v2774 = vsub.s32 0, %v2773
          %v2775 = vrot.slane %v1643, %v2774
          %v2776 = vlaneseq
          %v2777 = vshrl.u32 %v2776, 7
          %v2778 = vsub.s32 0, %v2777
          %v2779 = vrot.slane %v1657, %v2778
          %v2780 = vlaneseq
          %v2781 = vshrl.u32 %v2780, 7
          %v2782 = vsub.s32 0, %v2781
          %v2783 = vrot.slane %v1659, %v2782
          %v2784 = vlaneseq
          %v2785 = vshrl.u32 %v2784, 7
          %v2786 = vsub.s32 0, %v2785
          %v2787 = vrot.slane %v1661, %v2786
          %v2788 = vlaneseq
          %v2789 = vshrl.u32 %v2788, 7
          %v2790 = vsub.s32 0, %v2789
          %v2791 = vrot.slane %v1685, %v2790
          %v2792 = vlaneseq
          %v2793 = vshrl.u32 %v2792, 7
          %v2794 = vsub.s32 0, %v2793
          %v2795 = vrot.slane %v1699, %v2794
          %v2796 = vlaneseq
          %v2797 = vshrl.u32 %v2796, 7
          %v2798 = vsub.s32 0, %v2797
          %v2799 = vrot.slane %v1707, %v2798
          %v2800 = vlaneseq
          %v2801 = vshrl.u32 %v2800, 7
          %v2802 = vsub.s32 0, %v2801
          %v2803 = vrot.slane %v1709, %v2802
          %v2804 = vlaneseq
          %v2805 = vshrl.u32 %v2804, 7
          %v2806 = vsub.s32 0, %v2805
          %v2807 = vrot.slane %v1692, %v2806
          %v2808 = vlaneseq
          %v2809 = vshrl.u32 %v2808, 7
          %v2810 = vsub.s32 0, %v2809
          %v2811 = vrot.slane %v1706, %v2810
          %v2812 = vlaneseq
          %v2813 = vshrl.u32 %v2812, 7
          %v2814 = vsub.s32 0, %v2813
          %v2815 = vrot.slane %v1708, %v2814
          %v2816 = vlaneseq
          %v2817 = vshrl.u32 %v2816, 7
          %v2818 = vsub.s32 0, %v2817
          %v2819 = vrot.slane %v1710, %v2818
          %v2820 = vlaneseq
          %v2821 = vshrl.u32 %v2820, 7
          %v2822 = vsub.s32 0, %v2821
          %v2823 = vrot.slane %v1734, %v2822
          %v2824 = vlaneseq
          %v2825 = vshrl.u32 %v2824, 7
          %v2826 = vsub.s32 0, %v2825
          %v2827 = vrot.slane %v1748, %v2826
          %v2828 = vlaneseq
          %v2829 = vshrl.u32 %v2828, 7
          %v2830 = vsub.s32 0, %v2829
          %v2831 = vrot.slane %v1756, %v2830
          %v2832 = vlaneseq
          %v2833 = vshrl.u32 %v2832, 7
          %v2834 = vsub.s32 0, %v2833
          %v2835 = vrot.slane %v1758, %v2834
          %v2836 = vlaneseq
          %v2837 = vshrl.u32 %v2836, 7
          %v2838 = vsub.s32 0, %v2837
          %v2839 = vrot.slane %v1741, %v2838
          %v2840 = vlaneseq
          %v2841 = vshrl.u32 %v2840, 7
          %v2842 = vsub.s32 0, %v2841
          %v2843 = vrot.slane %v1755, %v2842
          %v2844 = vlaneseq
          %v2845 = vshrl.u32 %v2844, 7
          %v2846 = vsub.s32 0, %v2845
          %v2847 = vrot.slane %v1757, %v2846
          %v2848 = vlaneseq
          %v2849 = vshrl.u32 %v2848, 7
          %v2850 = vsub.s32 0, %v2849
          %v2851 = vrot.slane %v1759, %v2850
          %v2852 = vlaneseq
          %v2853 = vshrl.u32 %v2852, 7
          %v2854 = vsub.s32 0, %v2853
          %v2855 = vrot.slane %v1783, %v2854
          %v2856 = vlaneseq
          %v2857 = vshrl.u32 %v2856, 7
          %v2858 = vsub.s32 0, %v2857
          %v2859 = vrot.slane %v1797, %v2858
          %v2860 = vlaneseq
          %v2861 = vshrl.u32 %v2860, 7
          %v2862 = vsub.s32 0, %v2861
          %v2863 = vrot.slane %v1805, %v2862
          %v2864 = vlaneseq
          %v2865 = vshrl.u32 %v2864, 7
          %v2866 = vsub.s32 0, %v2865
          %v2867 = vrot.slane %v1807, %v2866
          %v2868 = vlaneseq
          %v2869 = vshrl.u32 %v2868, 7
          %v2870 = vsub.s32 0, %v2869
          %v2871 = vrot.slane %v1790, %v2870
          %v2872 = vlaneseq
          %v2873 = vshrl.u32 %v2872, 7
          %v2874 = vsub.s32 0, %v2873
          %v2875 = vrot.slane %v1804, %v2874
          %v2876 = vlaneseq
          %v2877 = vshrl.u32 %v2876, 7
          %v2878 = vsub.s32 0, %v2877
          %v2879 = vrot.slane %v1806, %v2878
          %v2880 = vlaneseq
          %v2881 = vshrl.u32 %v2880, 7
          %v2882 = vsub.s32 0, %v2881
          %v2883 = vrot.slane %v1808, %v2882
          %v2884 = vlaneseq
          %v2885 = vshrl.u32 %v2884, 7
          %v2886 = vsub.s32 0, %v2885
          %v2887 = vrot.slane %v1832, %v2886
          %v2888 = vlaneseq
          %v2889 = vshrl.u32 %v2888, 7
          %v2890 = vsub.s32 0, %v2889
          %v2891 = vrot.slane %v1846, %v2890
          %v2892 = vlaneseq
          %v2893 = vshrl.u32 %v2892, 7
          %v2894 = vsub.s32 0, %v2893
          %v2895 = vrot.slane %v1854, %v2894
          %v2896 = vlaneseq
          %v2897 = vshrl.u32 %v2896, 7
          %v2898 = vsub.s32 0, %v2897
          %v2899 = vrot.slane %v1856, %v2898
          %v2900 = vlaneseq
          %v2901 = vshrl.u32 %v2900, 7
          %v2902 = vsub.s32 0, %v2901
          %v2903 = vrot.slane %v1839, %v2902
          %v2904 = vlaneseq
          %v2905 = vshrl.u32 %v2904, 7
          %v2906 = vsub.s32 0, %v2905
          %v2907 = vrot.slane %v1853, %v2906
          %v2908 = vlaneseq
          %v2909 = vshrl.u32 %v2908, 7
          %v2910 = vsub.s32 0, %v2909
          %v2911 = vrot.slane %v1855, %v2910
          %v2912 = vlaneseq
          %v2913 = vshrl.u32 %v2912, 7
          %v2914 = vsub.s32 0, %v2913
          %v2915 = vrot.slane %v1857, %v2914
          %v2916 = vlaneseq
          %v2917 = vshrl.u32 %v2916, 7
          %v2918 = vsub.s32 0, %v2917
          %v2919 = vrot.slane %v1881, %v2918
          %v2920 = vlaneseq
          %v2921 = vshrl.u32 %v2920, 7
          %v2922 = vsub.s32 0, %v2921
          %v2923 = vrot.slane %v1895, %v2922
          %v2924 = vlaneseq
          %v2925 = vshrl.u32 %v2924, 7
          %v2926 = vsub.s32 0, %v2925
          %v2927 = vrot.slane %v1903, %v2926
          %v2928 = vlaneseq
          %v2929 = vshrl.u32 %v2928, 7
          %v2930 = vsub.s32 0, %v2929
          %v2931 = vrot.slane %v1905, %v2930
          %v2932 = vlaneseq
          %v2933 = vshrl.u32 %v2932, 7
          %v2934 = vsub.s32 0, %v2933
          %v2935 = vrot.slane %v1888, %v2934
          %v2936 = vlaneseq
          %v2937 = vshrl.u32 %v2936, 7
          %v2938 = vsub.s32 0, %v2937
          %v2939 = vrot.slane %v1902, %v2938
          %v2940 = vlaneseq
          %v2941 = vshrl.u32 %v2940, 7
          %v2942 = vsub.s32 0, %v2941
          %v2943 = vrot.slane %v1904, %v2942
          %v2944 = vlaneseq
          %v2945 = vshrl.u32 %v2944, 7
          %v2946 = vsub.s32 0, %v2945
          %v2947 = vrot.slane %v1906, %v2946
          %v2948 = vlaneseq
          %v2949 = vshrl.u32 %v2948, 7
          %v2950 = vsub.s32 0, %v2949
          %v2951 = vrot.slane %v1930, %v2950
          %v2952 = vlaneseq
          %v2953 = vshrl.u32 %v2952, 7
          %v2954 = vsub.s32 0, %v2953
          %v2955 = vrot.slane %v1944, %v2954
          %v2956 = vlaneseq
          %v2957 = vshrl.u32 %v2956, 7
          %v2958 = vsub.s32 0, %v2957
          %v2959 = vrot.slane %v1952, %v2958
          %v2960 = vlaneseq
          %v2961 = vshrl.u32 %v2960, 7
          %v2962 = vsub.s32 0, %v2961
          %v2963 = vrot.slane %v1954, %v2962
          %v2964 = vlaneseq
          %v2965 = vshrl.u32 %v2964, 7
          %v2966 = vsub.s32 0, %v2965
          %v2967 = vrot.slane %v1937, %v2966
          %v2968 = vlaneseq
          %v2969 = vshrl.u32 %v2968, 7
          %v2970 = vsub.s32 0, %v2969
          %v2971 = vrot.slane %v1951, %v2970
          %v2972 = vlaneseq
          %v2973 = vshrl.u32 %v2972, 7
          %v2974 = vsub.s32 0, %v2973
          %v2975 = vrot.slane %v1953, %v2974
          %v2976 = vlaneseq
          %v2977 = vshrl.u32 %v2976, 7
          %v2978 = vsub.s32 0, %v2977
          %v2979 = vrot.slane %v1955, %v2978
          %v2980 = vcombine.low %v1959, %v1963
          %v2981 = vcombine.low %v1967, %v1971
          %v2983 = vunpack.c.l.s4 1983009808
          %v2984 = vunpack.c.0.s8 %v2983
          %v2985 = vlaneseq
          %v2986 = vshrl.u32 %v2985, 7
          %v2987 = vsub.s32 %v2984, %v2986
          %v2988 = vrot.slane %v2980, %v2987
          %v2990 = vunpack.c.l.s4 1983009808
          %v2991 = vunpack.c.0.s8 %v2990
          %v2992 = vlaneseq
          %v2993 = vshrl.u32 %v2992, 7
          %v2994 = vsub.s32 %v2991, %v2993
          %v2995 = vrot.slane %v2981, %v2994
          %v2996 = vcombine.low %v2988, %v2995
          %v2997 = vcombine.low %v1975, %v1979
          %v2998 = vcombine.low %v1983, %v1987
          %v3000 = vunpack.c.l.s4 1983009808
          %v3001 = vunpack.c.0.s8 %v3000
          %v3002 = vlaneseq
          %v3003 = vshrl.u32 %v3002, 7
          %v3004 = vsub.s32 %v3001, %v3003
          %v3005 = vrot.slane %v2997, %v3004
          %v3007 = vunpack.c.l.s4 1983009808
          %v3008 = vunpack.c.0.s8 %v3007
          %v3009 = vlaneseq
          %v3010 = vshrl.u32 %v3009, 7
          %v3011 = vsub.s32 %v3008, %v3010
          %v3012 = vrot.slane %v2998, %v3011
          %v3013 = vcombine.low %v3005, %v3012
          %v3014 = vcombine.low %v1991, %v1995
          %v3015 = vcombine.low %v1999, %v2003
          %v3017 = vunpack.c.l.s4 1983009808
          %v3018 = vunpack.c.0.s8 %v3017
          %v3019 = vlaneseq
          %v3020 = vshrl.u32 %v3019, 7
          %v3021 = vsub.s32 %v3018, %v3020
          %v3022 = vrot.slane %v3014, %v3021
          %v3024 = vunpack.c.l.s4 1983009808
          %v3025 = vunpack.c.0.s8 %v3024
          %v3026 = vlaneseq
          %v3027 = vshrl.u32 %v3026, 7
          %v3028 = vsub.s32 %v3025, %v3027
          %v3029 = vrot.slane %v3015, %v3028
          %v3030 = vcombine.low %v3022, %v3029
          %v3031 = vcombine.low %v2007, %v2011
          %v3032 = vcombine.low %v2015, %v2019
          %v3034 = vunpack.c.l.s4 1983009808
          %v3035 = vunpack.c.0.s8 %v3034
          %v3036 = vlaneseq
          %v3037 = vshrl.u32 %v3036, 7
          %v3038 = vsub.s32 %v3035, %v3037
          %v3039 = vrot.slane %v3031, %v3038
          %v3041 = vunpack.c.l.s4 1983009808
          %v3042 = vunpack.c.0.s8 %v3041
          %v3043 = vlaneseq
          %v3044 = vshrl.u32 %v3043, 7
          %v3045 = vsub.s32 %v3042, %v3044
          %v3046 = vrot.slane %v3032, %v3045
          %v3047 = vcombine.low %v3039, %v3046
          %v3048 = vcombine.low %v2023, %v2027
          %v3049 = vcombine.low %v2031, %v2035
          %v3051 = vunpack.c.l.s4 1983009808
          %v3052 = vunpack.c.0.s8 %v3051
          %v3053 = vlaneseq
          %v3054 = vshrl.u32 %v3053, 7
          %v3055 = vsub.s32 %v3052, %v3054
          %v3056 = vrot.slane %v3048, %v3055
          %v3058 = vunpack.c.l.s4 1983009808
          %v3059 = vunpack.c.0.s8 %v3058
          %v3060 = vlaneseq
          %v3061 = vshrl.u32 %v3060, 7
          %v3062 = vsub.s32 %v3059, %v3061
          %v3063 = vrot.slane %v3049, %v3062
          %v3064 = vcombine.low %v3056, %v3063
          %v3065 = vcombine.low %v2039, %v2043
          %v3066 = vcombine.low %v2047, %v2051
          %v3068 = vunpack.c.l.s4 1983009808
          %v3069 = vunpack.c.0.s8 %v3068
          %v3070 = vlaneseq
          %v3071 = vshrl.u32 %v3070, 7
          %v3072 = vsub.s32 %v3069, %v3071
          %v3073 = vrot.slane %v3065, %v3072
          %v3075 = vunpack.c.l.s4 1983009808
          %v3076 = vunpack.c.0.s8 %v3075
          %v3077 = vlaneseq
          %v3078 = vshrl.u32 %v3077, 7
          %v3079 = vsub.s32 %v3076, %v3078
          %v3080 = vrot.slane %v3066, %v3079
          %v3081 = vcombine.low %v3073, %v3080
          %v3082 = vcombine.low %v2055, %v2059
          %v3083 = vcombine.low %v2063, %v2067
          %v3085 = vunpack.c.l.s4 1983009808
          %v3086 = vunpack.c.0.s8 %v3085
          %v3087 = vlaneseq
          %v3088 = vshrl.u32 %v3087, 7
          %v3089 = vsub.s32 %v3086, %v3088
          %v3090 = vrot.slane %v3082, %v3089
          %v3092 = vunpack.c.l.s4 1983009808
          %v3093 = vunpack.c.0.s8 %v3092
          %v3094 = vlaneseq
          %v3095 = vshrl.u32 %v3094, 7
          %v3096 = vsub.s32 %v3093, %v3095
          %v3097 = vrot.slane %v3083, %v3096
          %v3098 = vcombine.low %v3090, %v3097
          %v3099 = vcombine.low %v2071, %v2075
          %v3100 = vcombine.low %v2079, %v2083
          %v3102 = vunpack.c.l.s4 1983009808
          %v3103 = vunpack.c.0.s8 %v3102
          %v3104 = vlaneseq
          %v3105 = vshrl.u32 %v3104, 7
          %v3106 = vsub.s32 %v3103, %v3105
          %v3107 = vrot.slane %v3099, %v3106
          %v3109 = vunpack.c.l.s4 1983009808
          %v3110 = vunpack.c.0.s8 %v3109
          %v3111 = vlaneseq
          %v3112 = vshrl.u32 %v3111, 7
          %v3113 = vsub.s32 %v3110, %v3112
          %v3114 = vrot.slane %v3100, %v3113
          %v3115 = vcombine.low %v3107, %v3114
          %v3116 = vcombine.low %v2087, %v2091
          %v3117 = vcombine.low %v2095, %v2099
          %v3119 = vunpack.c.l.s4 1983009808
          %v3120 = vunpack.c.0.s8 %v3119
          %v3121 = vlaneseq
          %v3122 = vshrl.u32 %v3121, 7
          %v3123 = vsub.s32 %v3120, %v3122
          %v3124 = vrot.slane %v3116, %v3123
          %v3126 = vunpack.c.l.s4 1983009808
          %v3127 = vunpack.c.0.s8 %v3126
          %v3128 = vlaneseq
          %v3129 = vshrl.u32 %v3128, 7
          %v3130 = vsub.s32 %v3127, %v3129
          %v3131 = vrot.slane %v3117, %v3130
          %v3132 = vcombine.low %v3124, %v3131
          %v3133 = vcombine.low %v2103, %v2107
          %v3134 = vcombine.low %v2111, %v2115
          %v3136 = vunpack.c.l.s4 1983009808
          %v3137 = vunpack.c.0.s8 %v3136
          %v3138 = vlaneseq
          %v3139 = vshrl.u32 %v3138, 7
          %v3140 = vsub.s32 %v3137, %v3139
          %v3141 = vrot.slane %v3133, %v3140
          %v3143 = vunpack.c.l.s4 1983009808
          %v3144 = vunpack.c.0.s8 %v3143
          %v3145 = vlaneseq
          %v3146 = vshrl.u32 %v3145, 7
          %v3147 = vsub.s32 %v3144, %v3146
          %v3148 = vrot.slane %v3134, %v3147
          %v3149 = vcombine.low %v3141, %v3148
          %v3150 = vcombine.low %v2119, %v2123
          %v3151 = vcombine.low %v2127, %v2131
          %v3153 = vunpack.c.l.s4 1983009808
          %v3154 = vunpack.c.0.s8 %v3153
          %v3155 = vlaneseq
          %v3156 = vshrl.u32 %v3155, 7
          %v3157 = vsub.s32 %v3154, %v3156
          %v3158 = vrot.slane %v3150, %v3157
          %v3160 = vunpack.c.l.s4 1983009808
          %v3161 = vunpack.c.0.s8 %v3160
          %v3162 = vlaneseq
          %v3163 = vshrl.u32 %v3162, 7
          %v3164 = vsub.s32 %v3161, %v3163
          %v3165 = vrot.slane %v3151, %v3164
          %v3166 = vcombine.low %v3158, %v3165
          %v3167 = vcombine.low %v2135, %v2139
          %v3168 = vcombine.low %v2143, %v2147
          %v3170 = vunpack.c.l.s4 1983009808
          %v3171 = vunpack.c.0.s8 %v3170
          %v3172 = vlaneseq
          %v3173 = vshrl.u32 %v3172, 7
          %v3174 = vsub.s32 %v3171, %v3173
          %v3175 = vrot.slane %v3167, %v3174
          %v3177 = vunpack.c.l.s4 1983009808
          %v3178 = vunpack.c.0.s8 %v3177
          %v3179 = vlaneseq
          %v3180 = vshrl.u32 %v3179, 7
          %v3181 = vsub.s32 %v3178, %v3180
          %v3182 = vrot.slane %v3168, %v3181
          %v3183 = vcombine.low %v3175, %v3182
          %v3184 = vcombine.low %v2151, %v2155
          %v3185 = vcombine.low %v2159, %v2163
          %v3187 = vunpack.c.l.s4 1983009808
          %v3188 = vunpack.c.0.s8 %v3187
          %v3189 = vlaneseq
          %v3190 = vshrl.u32 %v3189, 7
          %v3191 = vsub.s32 %v3188, %v3190
          %v3192 = vrot.slane %v3184, %v3191
          %v3194 = vunpack.c.l.s4 1983009808
          %v3195 = vunpack.c.0.s8 %v3194
          %v3196 = vlaneseq
          %v3197 = vshrl.u32 %v3196, 7
          %v3198 = vsub.s32 %v3195, %v3197
          %v3199 = vrot.slane %v3185, %v3198
          %v3200 = vcombine.low %v3192, %v3199
          %v3201 = vcombine.low %v2167, %v2171
          %v3202 = vcombine.low %v2175, %v2179
          %v3204 = vunpack.c.l.s4 1983009808
          %v3205 = vunpack.c.0.s8 %v3204
          %v3206 = vlaneseq
          %v3207 = vshrl.u32 %v3206, 7
          %v3208 = vsub.s32 %v3205, %v3207
          %v3209 = vrot.slane %v3201, %v3208
          %v3211 = vunpack.c.l.s4 1983009808
          %v3212 = vunpack.c.0.s8 %v3211
          %v3213 = vlaneseq
          %v3214 = vshrl.u32 %v3213, 7
          %v3215 = vsub.s32 %v3212, %v3214
          %v3216 = vrot.slane %v3202, %v3215
          %v3217 = vcombine.low %v3209, %v3216
          %v3218 = vcombine.low %v2183, %v2187
          %v3219 = vcombine.low %v2191, %v2195
          %v3221 = vunpack.c.l.s4 1983009808
          %v3222 = vunpack.c.0.s8 %v3221
          %v3223 = vlaneseq
          %v3224 = vshrl.u32 %v3223, 7
          %v3225 = vsub.s32 %v3222, %v3224
          %v3226 = vrot.slane %v3218, %v3225
          %v3228 = vunpack.c.l.s4 1983009808
          %v3229 = vunpack.c.0.s8 %v3228
          %v3230 = vlaneseq
          %v3231 = vshrl.u32 %v3230, 7
          %v3232 = vsub.s32 %v3229, %v3231
          %v3233 = vrot.slane %v3219, %v3232
          %v3234 = vcombine.low %v3226, %v3233
          %v3235 = vcombine.low %v2199, %v2203
          %v3236 = vcombine.low %v2207, %v2211
          %v3238 = vunpack.c.l.s4 1983009808
          %v3239 = vunpack.c.0.s8 %v3238
          %v3240 = vlaneseq
          %v3241 = vshrl.u32 %v3240, 7
          %v3242 = vsub.s32 %v3239, %v3241
          %v3243 = vrot.slane %v3235, %v3242
          %v3245 = vunpack.c.l.s4 1983009808
          %v3246 = vunpack.c.0.s8 %v3245
          %v3247 = vlaneseq
          %v3248 = vshrl.u32 %v3247, 7
          %v3249 = vsub.s32 %v3246, %v3248
          %v3250 = vrot.slane %v3236, %v3249
          %v3251 = vcombine.low %v3243, %v3250
          %v3252 = vcombine.low %v2215, %v2219
          %v3253 = vcombine.low %v2223, %v2227
          %v3255 = vunpack.c.l.s4 1983009808
          %v3256 = vunpack.c.0.s8 %v3255
          %v3257 = vlaneseq
          %v3258 = vshrl.u32 %v3257, 7
          %v3259 = vsub.s32 %v3256, %v3258
          %v3260 = vrot.slane %v3252, %v3259
          %v3262 = vunpack.c.l.s4 1983009808
          %v3263 = vunpack.c.0.s8 %v3262
          %v3264 = vlaneseq
          %v3265 = vshrl.u32 %v3264, 7
          %v3266 = vsub.s32 %v3263, %v3265
          %v3267 = vrot.slane %v3253, %v3266
          %v3268 = vcombine.low %v3260, %v3267
          %v3269 = vcombine.low %v2231, %v2235
          %v3270 = vcombine.low %v2239, %v2243
          %v3272 = vunpack.c.l.s4 1983009808
          %v3273 = vunpack.c.0.s8 %v3272
          %v3274 = vlaneseq
          %v3275 = vshrl.u32 %v3274, 7
          %v3276 = vsub.s32 %v3273, %v3275
          %v3277 = vrot.slane %v3269, %v3276
          %v3279 = vunpack.c.l.s4 1983009808
          %v3280 = vunpack.c.0.s8 %v3279
          %v3281 = vlaneseq
          %v3282 = vshrl.u32 %v3281, 7
          %v3283 = vsub.s32 %v3280, %v3282
          %v3284 = vrot.slane %v3270, %v3283
          %v3285 = vcombine.low %v3277, %v3284
          %v3286 = vcombine.low %v2247, %v2251
          %v3287 = vcombine.low %v2255, %v2259
          %v3289 = vunpack.c.l.s4 1983009808
          %v3290 = vunpack.c.0.s8 %v3289
          %v3291 = vlaneseq
          %v3292 = vshrl.u32 %v3291, 7
          %v3293 = vsub.s32 %v3290, %v3292
          %v3294 = vrot.slane %v3286, %v3293
          %v3296 = vunpack.c.l.s4 1983009808
          %v3297 = vunpack.c.0.s8 %v3296
          %v3298 = vlaneseq
          %v3299 = vshrl.u32 %v3298, 7
          %v3300 = vsub.s32 %v3297, %v3299
          %v3301 = vrot.slane %v3287, %v3300
          %v3302 = vcombine.low %v3294, %v3301
          %v3303 = vcombine.low %v2263, %v2267
          %v3304 = vcombine.low %v2271, %v2275
          %v3306 = vunpack.c.l.s4 1983009808
          %v3307 = vunpack.c.0.s8 %v3306
          %v3308 = vlaneseq
          %v3309 = vshrl.u32 %v3308, 7
          %v3310 = vsub.s32 %v3307, %v3309
          %v3311 = vrot.slane %v3303, %v3310
          %v3313 = vunpack.c.l.s4 1983009808
          %v3314 = vunpack.c.0.s8 %v3313
          %v3315 = vlaneseq
          %v3316 = vshrl.u32 %v3315, 7
          %v3317 = vsub.s32 %v3314, %v3316
          %v3318 = vrot.slane %v3304, %v3317
          %v3319 = vcombine.low %v3311, %v3318
          %v3320 = vcombine.low %v2279, %v2283
          %v3321 = vcombine.low %v2287, %v2291
          %v3323 = vunpack.c.l.s4 1983009808
          %v3324 = vunpack.c.0.s8 %v3323
          %v3325 = vlaneseq
          %v3326 = vshrl.u32 %v3325, 7
          %v3327 = vsub.s32 %v3324, %v3326
          %v3328 = vrot.slane %v3320, %v3327
          %v3330 = vunpack.c.l.s4 1983009808
          %v3331 = vunpack.c.0.s8 %v3330
          %v3332 = vlaneseq
          %v3333 = vshrl.u32 %v3332, 7
          %v3334 = vsub.s32 %v3331, %v3333
          %v3335 = vrot.slane %v3321, %v3334
          %v3336 = vcombine.low %v3328, %v3335
          %v3337 = vcombine.low %v2295, %v2299
          %v3338 = vcombine.low %v2303, %v2307
          %v3340 = vunpack.c.l.s4 1983009808
          %v3341 = vunpack.c.0.s8 %v3340
          %v3342 = vlaneseq
          %v3343 = vshrl.u32 %v3342, 7
          %v3344 = vsub.s32 %v3341, %v3343
          %v3345 = vrot.slane %v3337, %v3344
          %v3347 = vunpack.c.l.s4 1983009808
          %v3348 = vunpack.c.0.s8 %v3347
          %v3349 = vlaneseq
          %v3350 = vshrl.u32 %v3349, 7
          %v3351 = vsub.s32 %v3348, %v3350
          %v3352 = vrot.slane %v3338, %v3351
          %v3353 = vcombine.low %v3345, %v3352
          %v3354 = vcombine.low %v2311, %v2315
          %v3355 = vcombine.low %v2319, %v2323
          %v3357 = vunpack.c.l.s4 1983009808
          %v3358 = vunpack.c.0.s8 %v3357
          %v3359 = vlaneseq
          %v3360 = vshrl.u32 %v3359, 7
          %v3361 = vsub.s32 %v3358, %v3360
          %v3362 = vrot.slane %v3354, %v3361
          %v3364 = vunpack.c.l.s4 1983009808
          %v3365 = vunpack.c.0.s8 %v3364
          %v3366 = vlaneseq
          %v3367 = vshrl.u32 %v3366, 7
          %v3368 = vsub.s32 %v3365, %v3367
          %v3369 = vrot.slane %v3355, %v3368
          %v3370 = vcombine.low %v3362, %v3369
          %v3371 = vcombine.low %v2327, %v2331
          %v3372 = vcombine.low %v2335, %v2339
          %v3374 = vunpack.c.l.s4 1983009808
          %v3375 = vunpack.c.0.s8 %v3374
          %v3376 = vlaneseq
          %v3377 = vshrl.u32 %v3376, 7
          %v3378 = vsub.s32 %v3375, %v3377
          %v3379 = vrot.slane %v3371, %v3378
          %v3381 = vunpack.c.l.s4 1983009808
          %v3382 = vunpack.c.0.s8 %v3381
          %v3383 = vlaneseq
          %v3384 = vshrl.u32 %v3383, 7
          %v3385 = vsub.s32 %v3382, %v3384
          %v3386 = vrot.slane %v3372, %v3385
          %v3387 = vcombine.low %v3379, %v3386
          %v3388 = vcombine.low %v2343, %v2347
          %v3389 = vcombine.low %v2351, %v2355
          %v3391 = vunpack.c.l.s4 1983009808
          %v3392 = vunpack.c.0.s8 %v3391
          %v3393 = vlaneseq
          %v3394 = vshrl.u32 %v3393, 7
          %v3395 = vsub.s32 %v3392, %v3394
          %v3396 = vrot.slane %v3388, %v3395
          %v3398 = vunpack.c.l.s4 1983009808
          %v3399 = vunpack.c.0.s8 %v3398
          %v3400 = vlaneseq
          %v3401 = vshrl.u32 %v3400, 7
          %v3402 = vsub.s32 %v3399, %v3401
          %v3403 = vrot.slane %v3389, %v3402
          %v3404 = vcombine.low %v3396, %v3403
          %v3405 = vcombine.low %v2359, %v2363
          %v3406 = vcombine.low %v2367, %v2371
          %v3408 = vunpack.c.l.s4 1983009808
          %v3409 = vunpack.c.0.s8 %v3408
          %v3410 = vlaneseq
          %v3411 = vshrl.u32 %v3410, 7
          %v3412 = vsub.s32 %v3409, %v3411
          %v3413 = vrot.slane %v3405, %v3412
          %v3415 = vunpack.c.l.s4 1983009808
          %v3416 = vunpack.c.0.s8 %v3415
          %v3417 = vlaneseq
          %v3418 = vshrl.u32 %v3417, 7
          %v3419 = vsub.s32 %v3416, %v3418
          %v3420 = vrot.slane %v3406, %v3419
          %v3421 = vcombine.low %v3413, %v3420
          %v3422 = vcombine.low %v2375, %v2379
          %v3423 = vcombine.low %v2383, %v2387
          %v3425 = vunpack.c.l.s4 1983009808
          %v3426 = vunpack.c.0.s8 %v3425
          %v3427 = vlaneseq
          %v3428 = vshrl.u32 %v3427, 7
          %v3429 = vsub.s32 %v3426, %v3428
          %v3430 = vrot.slane %v3422, %v3429
          %v3432 = vunpack.c.l.s4 1983009808
          %v3433 = vunpack.c.0.s8 %v3432
          %v3434 = vlaneseq
          %v3435 = vshrl.u32 %v3434, 7
          %v3436 = vsub.s32 %v3433, %v3435
          %v3437 = vrot.slane %v3423, %v3436
          %v3438 = vcombine.low %v3430, %v3437
          %v3439 = vcombine.low %v2391, %v2395
          %v3440 = vcombine.low %v2399, %v2403
          %v3442 = vunpack.c.l.s4 1983009808
          %v3443 = vunpack.c.0.s8 %v3442
          %v3444 = vlaneseq
          %v3445 = vshrl.u32 %v3444, 7
          %v3446 = vsub.s32 %v3443, %v3445
          %v3447 = vrot.slane %v3439, %v3446
          %v3449 = vunpack.c.l.s4 1983009808
          %v3450 = vunpack.c.0.s8 %v3449
          %v3451 = vlaneseq
          %v3452 = vshrl.u32 %v3451, 7
          %v3453 = vsub.s32 %v3450, %v3452
          %v3454 = vrot.slane %v3440, %v3453
          %v3455 = vcombine.low %v3447, %v3454
          %v3456 = vcombine.low %v2407, %v2411
          %v3457 = vcombine.low %v2415, %v2419
          %v3459 = vunpack.c.l.s4 1983009808
          %v3460 = vunpack.c.0.s8 %v3459
          %v3461 = vlaneseq
          %v3462 = vshrl.u32 %v3461, 7
          %v3463 = vsub.s32 %v3460, %v3462
          %v3464 = vrot.slane %v3456, %v3463
          %v3466 = vunpack.c.l.s4 1983009808
          %v3467 = vunpack.c.0.s8 %v3466
          %v3468 = vlaneseq
          %v3469 = vshrl.u32 %v3468, 7
          %v3470 = vsub.s32 %v3467, %v3469
          %v3471 = vrot.slane %v3457, %v3470
          %v3472 = vcombine.low %v3464, %v3471
          %v3473 = vcombine.low %v2423, %v2427
          %v3474 = vcombine.low %v2431, %v2435
          %v3476 = vunpack.c.l.s4 1983009808
          %v3477 = vunpack.c.0.s8 %v3476
          %v3478 = vlaneseq
          %v3479 = vshrl.u32 %v3478, 7
          %v3480 = vsub.s32 %v3477, %v3479
          %v3481 = vrot.slane %v3473, %v3480
          %v3483 = vunpack.c.l.s4 1983009808
          %v3484 = vunpack.c.0.s8 %v3483
          %v3485 = vlaneseq
          %v3486 = vshrl.u32 %v3485, 7
          %v3487 = vsub.s32 %v3484, %v3486
          %v3488 = vrot.slane %v3474, %v3487
          %v3489 = vcombine.low %v3481, %v3488
          %v3490 = vcombine.low %v2439, %v2443
          %v3491 = vcombine.low %v2447, %v2451
          %v3493 = vunpack.c.l.s4 1983009808
          %v3494 = vunpack.c.0.s8 %v3493
          %v3495 = vlaneseq
          %v3496 = vshrl.u32 %v3495, 7
          %v3497 = vsub.s32 %v3494, %v3496
          %v3498 = vrot.slane %v3490, %v3497
          %v3500 = vunpack.c.l.s4 1983009808
          %v3501 = vunpack.c.0.s8 %v3500
          %v3502 = vlaneseq
          %v3503 = vshrl.u32 %v3502, 7
          %v3504 = vsub.s32 %v3501, %v3503
          %v3505 = vrot.slane %v3491, %v3504
          %v3506 = vcombine.low %v3498, %v3505
          %v3507 = vcombine.low %v2455, %v2459
          %v3508 = vcombine.low %v2463, %v2467
          %v3510 = vunpack.c.l.s4 1983009808
          %v3511 = vunpack.c.0.s8 %v3510
          %v3512 = vlaneseq
          %v3513 = vshrl.u32 %v3512, 7
          %v3514 = vsub.s32 %v3511, %v3513
          %v3515 = vrot.slane %v3507, %v3514
          %v3517 = vunpack.c.l.s4 1983009808
          %v3518 = vunpack.c.0.s8 %v3517
          %v3519 = vlaneseq
          %v3520 = vshrl.u32 %v3519, 7
          %v3521 = vsub.s32 %v3518, %v3520
          %v3522 = vrot.slane %v3508, %v3521
          %v3523 = vcombine.low %v3515, %v3522
          %v3524 = vcombine.low %v2471, %v2475
          %v3525 = vcombine.low %v2479, %v2483
          %v3527 = vunpack.c.l.s4 1983009808
          %v3528 = vunpack.c.0.s8 %v3527
          %v3529 = vlaneseq
          %v3530 = vshrl.u32 %v3529, 7
          %v3531 = vsub.s32 %v3528, %v3530
          %v3532 = vrot.slane %v3524, %v3531
          %v3534 = vunpack.c.l.s4 1983009808
          %v3535 = vunpack.c.0.s8 %v3534
          %v3536 = vlaneseq
          %v3537 = vshrl.u32 %v3536, 7
          %v3538 = vsub.s32 %v3535, %v3537
          %v3539 = vrot.slane %v3525, %v3538
          %v3540 = vcombine.low %v3532, %v3539
          %v3541 = vcombine.low %v2487, %v2491
          %v3542 = vcombine.low %v2495, %v2499
          %v3544 = vunpack.c.l.s4 1983009808
          %v3545 = vunpack.c.0.s8 %v3544
          %v3546 = vlaneseq
          %v3547 = vshrl.u32 %v3546, 7
          %v3548 = vsub.s32 %v3545, %v3547
          %v3549 = vrot.slane %v3541, %v3548
          %v3551 = vunpack.c.l.s4 1983009808
          %v3552 = vunpack.c.0.s8 %v3551
          %v3553 = vlaneseq
          %v3554 = vshrl.u32 %v3553, 7
          %v3555 = vsub.s32 %v3552, %v3554
          %v3556 = vrot.slane %v3542, %v3555
          %v3557 = vcombine.low %v3549, %v3556
          %v3558 = vcombine.low %v2503, %v2507
          %v3559 = vcombine.low %v2511, %v2515
          %v3561 = vunpack.c.l.s4 1983009808
          %v3562 = vunpack.c.0.s8 %v3561
          %v3563 = vlaneseq
          %v3564 = vshrl.u32 %v3563, 7
          %v3565 = vsub.s32 %v3562, %v3564
          %v3566 = vrot.slane %v3558, %v3565
          %v3568 = vunpack.c.l.s4 1983009808
          %v3569 = vunpack.c.0.s8 %v3568
          %v3570 = vlaneseq
          %v3571 = vshrl.u32 %v3570, 7
          %v3572 = vsub.s32 %v3569, %v3571
          %v3573 = vrot.slane %v3559, %v3572
          %v3574 = vcombine.low %v3566, %v3573
          %v3575 = vcombine.low %v2519, %v2523
          %v3576 = vcombine.low %v2527, %v2531
          %v3578 = vunpack.c.l.s4 1983009808
          %v3579 = vunpack.c.0.s8 %v3578
          %v3580 = vlaneseq
          %v3581 = vshrl.u32 %v3580, 7
          %v3582 = vsub.s32 %v3579, %v3581
          %v3583 = vrot.slane %v3575, %v3582
          %v3585 = vunpack.c.l.s4 1983009808
          %v3586 = vunpack.c.0.s8 %v3585
          %v3587 = vlaneseq
          %v3588 = vshrl.u32 %v3587, 7
          %v3589 = vsub.s32 %v3586, %v3588
          %v3590 = vrot.slane %v3576, %v3589
          %v3591 = vcombine.low %v3583, %v3590
          %v3592 = vcombine.low %v2535, %v2539
          %v3593 = vcombine.low %v2543, %v2547
          %v3595 = vunpack.c.l.s4 1983009808
          %v3596 = vunpack.c.0.s8 %v3595
          %v3597 = vlaneseq
          %v3598 = vshrl.u32 %v3597, 7
          %v3599 = vsub.s32 %v3596, %v3598
          %v3600 = vrot.slane %v3592, %v3599
          %v3602 = vunpack.c.l.s4 1983009808
          %v3603 = vunpack.c.0.s8 %v3602
          %v3604 = vlaneseq
          %v3605 = vshrl.u32 %v3604, 7
          %v3606 = vsub.s32 %v3603, %v3605
          %v3607 = vrot.slane %v3593, %v3606
          %v3608 = vcombine.low %v3600, %v3607
          %v3609 = vcombine.low %v2551, %v2555
          %v3610 = vcombine.low %v2559, %v2563
          %v3612 = vunpack.c.l.s4 1983009808
          %v3613 = vunpack.c.0.s8 %v3612
          %v3614 = vlaneseq
          %v3615 = vshrl.u32 %v3614, 7
          %v3616 = vsub.s32 %v3613, %v3615
          %v3617 = vrot.slane %v3609, %v3616
          %v3619 = vunpack.c.l.s4 1983009808
          %v3620 = vunpack.c.0.s8 %v3619
          %v3621 = vlaneseq
          %v3622 = vshrl.u32 %v3621, 7
          %v3623 = vsub.s32 %v3620, %v3622
          %v3624 = vrot.slane %v3610, %v3623
          %v3625 = vcombine.low %v3617, %v3624
          %v3626 = vcombine.low %v2567, %v2571
          %v3627 = vcombine.low %v2575, %v2579
          %v3629 = vunpack.c.l.s4 1983009808
          %v3630 = vunpack.c.0.s8 %v3629
          %v3631 = vlaneseq
          %v3632 = vshrl.u32 %v3631, 7
          %v3633 = vsub.s32 %v3630, %v3632
          %v3634 = vrot.slane %v3626, %v3633
          %v3636 = vunpack.c.l.s4 1983009808
          %v3637 = vunpack.c.0.s8 %v3636
          %v3638 = vlaneseq
          %v3639 = vshrl.u32 %v3638, 7
          %v3640 = vsub.s32 %v3637, %v3639
          %v3641 = vrot.slane %v3627, %v3640
          %v3642 = vcombine.low %v3634, %v3641
          %v3643 = vcombine.low %v2583, %v2587
          %v3644 = vcombine.low %v2591, %v2595
          %v3646 = vunpack.c.l.s4 1983009808
          %v3647 = vunpack.c.0.s8 %v3646
          %v3648 = vlaneseq
          %v3649 = vshrl.u32 %v3648, 7
          %v3650 = vsub.s32 %v3647, %v3649
          %v3651 = vrot.slane %v3643, %v3650
          %v3653 = vunpack.c.l.s4 1983009808
          %v3654 = vunpack.c.0.s8 %v3653
          %v3655 = vlaneseq
          %v3656 = vshrl.u32 %v3655, 7
          %v3657 = vsub.s32 %v3654, %v3656
          %v3658 = vrot.slane %v3644, %v3657
          %v3659 = vcombine.low %v3651, %v3658
          %v3660 = vcombine.low %v2599, %v2603
          %v3661 = vcombine.low %v2607, %v2611
          %v3663 = vunpack.c.l.s4 1983009808
          %v3664 = vunpack.c.0.s8 %v3663
          %v3665 = vlaneseq
          %v3666 = vshrl.u32 %v3665, 7
          %v3667 = vsub.s32 %v3664, %v3666
          %v3668 = vrot.slane %v3660, %v3667
          %v3670 = vunpack.c.l.s4 1983009808
          %v3671 = vunpack.c.0.s8 %v3670
          %v3672 = vlaneseq
          %v3673 = vshrl.u32 %v3672, 7
          %v3674 = vsub.s32 %v3671, %v3673
          %v3675 = vrot.slane %v3661, %v3674
          %v3676 = vcombine.low %v3668, %v3675
          %v3677 = vcombine.low %v2615, %v2619
          %v3678 = vcombine.low %v2623, %v2627
          %v3680 = vunpack.c.l.s4 1983009808
          %v3681 = vunpack.c.0.s8 %v3680
          %v3682 = vlaneseq
          %v3683 = vshrl.u32 %v3682, 7
          %v3684 = vsub.s32 %v3681, %v3683
          %v3685 = vrot.slane %v3677, %v3684
          %v3687 = vunpack.c.l.s4 1983009808
          %v3688 = vunpack.c.0.s8 %v3687
          %v3689 = vlaneseq
          %v3690 = vshrl.u32 %v3689, 7
          %v3691 = vsub.s32 %v3688, %v3690
          %v3692 = vrot.slane %v3678, %v3691
          %v3693 = vcombine.low %v3685, %v3692
          %v3694 = vcombine.low %v2631, %v2635
          %v3695 = vcombine.low %v2639, %v2643
          %v3697 = vunpack.c.l.s4 1983009808
          %v3698 = vunpack.c.0.s8 %v3697
          %v3699 = vlaneseq
          %v3700 = vshrl.u32 %v3699, 7
          %v3701 = vsub.s32 %v3698, %v3700
          %v3702 = vrot.slane %v3694, %v3701
          %v3704 = vunpack.c.l.s4 1983009808
          %v3705 = vunpack.c.0.s8 %v3704
          %v3706 = vlaneseq
          %v3707 = vshrl.u32 %v3706, 7
          %v3708 = vsub.s32 %v3705, %v3707
          %v3709 = vrot.slane %v3695, %v3708
          %v3710 = vcombine.low %v3702, %v3709
          %v3711 = vcombine.low %v2647, %v2651
          %v3712 = vcombine.low %v2655, %v2659
          %v3714 = vunpack.c.l.s4 1983009808
          %v3715 = vunpack.c.0.s8 %v3714
          %v3716 = vlaneseq
          %v3717 = vshrl.u32 %v3716, 7
          %v3718 = vsub.s32 %v3715, %v3717
          %v3719 = vrot.slane %v3711, %v3718
          %v3721 = vunpack.c.l.s4 1983009808
          %v3722 = vunpack.c.0.s8 %v3721
          %v3723 = vlaneseq
          %v3724 = vshrl.u32 %v3723, 7
          %v3725 = vsub.s32 %v3722, %v3724
          %v3726 = vrot.slane %v3712, %v3725
          %v3727 = vcombine.low %v3719, %v3726
          %v3728 = vcombine.low %v2663, %v2667
          %v3729 = vcombine.low %v2671, %v2675
          %v3731 = vunpack.c.l.s4 1983009808
          %v3732 = vunpack.c.0.s8 %v3731
          %v3733 = vlaneseq
          %v3734 = vshrl.u32 %v3733, 7
          %v3735 = vsub.s32 %v3732, %v3734
          %v3736 = vrot.slane %v3728, %v3735
          %v3738 = vunpack.c.l.s4 1983009808
          %v3739 = vunpack.c.0.s8 %v3738
          %v3740 = vlaneseq
          %v3741 = vshrl.u32 %v3740, 7
          %v3742 = vsub.s32 %v3739, %v3741
          %v3743 = vrot.slane %v3729, %v3742
          %v3744 = vcombine.low %v3736, %v3743
          %v3745 = vcombine.low %v2679, %v2683
          %v3746 = vcombine.low %v2687, %v2691
          %v3748 = vunpack.c.l.s4 1983009808
          %v3749 = vunpack.c.0.s8 %v3748
          %v3750 = vlaneseq
          %v3751 = vshrl.u32 %v3750, 7
          %v3752 = vsub.s32 %v3749, %v3751
          %v3753 = vrot.slane %v3745, %v3752
          %v3755 = vunpack.c.l.s4 1983009808
          %v3756 = vunpack.c.0.s8 %v3755
          %v3757 = vlaneseq
          %v3758 = vshrl.u32 %v3757, 7
          %v3759 = vsub.s32 %v3756, %v3758
          %v3760 = vrot.slane %v3746, %v3759
          %v3761 = vcombine.low %v3753, %v3760
          %v3762 = vcombine.low %v2695, %v2699
          %v3763 = vcombine.low %v2703, %v2707
          %v3765 = vunpack.c.l.s4 1983009808
          %v3766 = vunpack.c.0.s8 %v3765
          %v3767 = vlaneseq
          %v3768 = vshrl.u32 %v3767, 7
          %v3769 = vsub.s32 %v3766, %v3768
          %v3770 = vrot.slane %v3762, %v3769
          %v3772 = vunpack.c.l.s4 1983009808
          %v3773 = vunpack.c.0.s8 %v3772
          %v3774 = vlaneseq
          %v3775 = vshrl.u32 %v3774, 7
          %v3776 = vsub.s32 %v3773, %v3775
          %v3777 = vrot.slane %v3763, %v3776
          %v3778 = vcombine.low %v3770, %v3777
          %v3779 = vcombine.low %v2711, %v2715
          %v3780 = vcombine.low %v2719, %v2723
          %v3782 = vunpack.c.l.s4 1983009808
          %v3783 = vunpack.c.0.s8 %v3782
          %v3784 = vlaneseq
          %v3785 = vshrl.u32 %v3784, 7
          %v3786 = vsub.s32 %v3783, %v3785
          %v3787 = vrot.slane %v3779, %v3786
          %v3789 = vunpack.c.l.s4 1983009808
          %v3790 = vunpack.c.0.s8 %v3789
          %v3791 = vlaneseq
          %v3792 = vshrl.u32 %v3791, 7
          %v3793 = vsub.s32 %v3790, %v3792
          %v3794 = vrot.slane %v3780, %v3793
          %v3795 = vcombine.low %v3787, %v3794
          %v3796 = vcombine.low %v2727, %v2731
          %v3797 = vcombine.low %v2735, %v2739
          %v3799 = vunpack.c.l.s4 1983009808
          %v3800 = vunpack.c.0.s8 %v3799
          %v3801 = vlaneseq
          %v3802 = vshrl.u32 %v3801, 7
          %v3803 = vsub.s32 %v3800, %v3802
          %v3804 = vrot.slane %v3796, %v3803
          %v3806 = vunpack.c.l.s4 1983009808
          %v3807 = vunpack.c.0.s8 %v3806
          %v3808 = vlaneseq
          %v3809 = vshrl.u32 %v3808, 7
          %v3810 = vsub.s32 %v3807, %v3809
          %v3811 = vrot.slane %v3797, %v3810
          %v3812 = vcombine.low %v3804, %v3811
          %v3813 = vcombine.low %v2743, %v2747
          %v3814 = vcombine.low %v2751, %v2755
          %v3816 = vunpack.c.l.s4 1983009808
          %v3817 = vunpack.c.0.s8 %v3816
          %v3818 = vlaneseq
          %v3819 = vshrl.u32 %v3818, 7
          %v3820 = vsub.s32 %v3817, %v3819
          %v3821 = vrot.slane %v3813, %v3820
          %v3823 = vunpack.c.l.s4 1983009808
          %v3824 = vunpack.c.0.s8 %v3823
          %v3825 = vlaneseq
          %v3826 = vshrl.u32 %v3825, 7
          %v3827 = vsub.s32 %v3824, %v3826
          %v3828 = vrot.slane %v3814, %v3827
          %v3829 = vcombine.low %v3821, %v3828
          %v3830 = vcombine.low %v2759, %v2763
          %v3831 = vcombine.low %v2767, %v2771
          %v3833 = vunpack.c.l.s4 1983009808
          %v3834 = vunpack.c.0.s8 %v3833
          %v3835 = vlaneseq
          %v3836 = vshrl.u32 %v3835, 7
          %v3837 = vsub.s32 %v3834, %v3836
          %v3838 = vrot.slane %v3830, %v3837
          %v3840 = vunpack.c.l.s4 1983009808
          %v3841 = vunpack.c.0.s8 %v3840
          %v3842 = vlaneseq
          %v3843 = vshrl.u32 %v3842, 7
          %v3844 = vsub.s32 %v3841, %v3843
          %v3845 = vrot.slane %v3831, %v3844
          %v3846 = vcombine.low %v3838, %v3845
          %v3847 = vcombine.low %v2775, %v2779
          %v3848 = vcombine.low %v2783, %v2787
          %v3850 = vunpack.c.l.s4 1983009808
          %v3851 = vunpack.c.0.s8 %v3850
          %v3852 = vlaneseq
          %v3853 = vshrl.u32 %v3852, 7
          %v3854 = vsub.s32 %v3851, %v3853
          %v3855 = vrot.slane %v3847, %v3854
          %v3857 = vunpack.c.l.s4 1983009808
          %v3858 = vunpack.c.0.s8 %v3857
          %v3859 = vlaneseq
          %v3860 = vshrl.u32 %v3859, 7
          %v3861 = vsub.s32 %v3858, %v3860
          %v3862 = vrot.slane %v3848, %v3861
          %v3863 = vcombine.low %v3855, %v3862
          %v3864 = vcombine.low %v2791, %v2795
          %v3865 = vcombine.low %v2799, %v2803
          %v3867 = vunpack.c.l.s4 1983009808
          %v3868 = vunpack.c.0.s8 %v3867
          %v3869 = vlaneseq
          %v3870 = vshrl.u32 %v3869, 7
          %v3871 = vsub.s32 %v3868, %v3870
          %v3872 = vrot.slane %v3864, %v3871
          %v3874 = vunpack.c.l.s4 1983009808
          %v3875 = vunpack.c.0.s8 %v3874
          %v3876 = vlaneseq
          %v3877 = vshrl.u32 %v3876, 7
          %v3878 = vsub.s32 %v3875, %v3877
          %v3879 = vrot.slane %v3865, %v3878
          %v3880 = vcombine.low %v3872, %v3879
          %v3881 = vcombine.low %v2807, %v2811
          %v3882 = vcombine.low %v2815, %v2819
          %v3884 = vunpack.c.l.s4 1983009808
          %v3885 = vunpack.c.0.s8 %v3884
          %v3886 = vlaneseq
          %v3887 = vshrl.u32 %v3886, 7
          %v3888 = vsub.s32 %v3885, %v3887
          %v3889 = vrot.slane %v3881, %v3888
          %v3891 = vunpack.c.l.s4 1983009808
          %v3892 = vunpack.c.0.s8 %v3891
          %v3893 = vlaneseq
          %v3894 = vshrl.u32 %v3893, 7
          %v3895 = vsub.s32 %v3892, %v3894
          %v3896 = vrot.slane %v3882, %v3895
          %v3897 = vcombine.low %v3889, %v3896
          %v3898 = vcombine.low %v2823, %v2827
          %v3899 = vcombine.low %v2831, %v2835
          %v3901 = vunpack.c.l.s4 1983009808
          %v3902 = vunpack.c.0.s8 %v3901
          %v3903 = vlaneseq
          %v3904 = vshrl.u32 %v3903, 7
          %v3905 = vsub.s32 %v3902, %v3904
          %v3906 = vrot.slane %v3898, %v3905
          %v3908 = vunpack.c.l.s4 1983009808
          %v3909 = vunpack.c.0.s8 %v3908
          %v3910 = vlaneseq
          %v3911 = vshrl.u32 %v3910, 7
          %v3912 = vsub.s32 %v3909, %v3911
          %v3913 = vrot.slane %v3899, %v3912
          %v3914 = vcombine.low %v3906, %v3913
          %v3915 = vcombine.low %v2839, %v2843
          %v3916 = vcombine.low %v2847, %v2851
          %v3918 = vunpack.c.l.s4 1983009808
          %v3919 = vunpack.c.0.s8 %v3918
          %v3920 = vlaneseq
          %v3921 = vshrl.u32 %v3920, 7
          %v3922 = vsub.s32 %v3919, %v3921
          %v3923 = vrot.slane %v3915, %v3922
          %v3925 = vunpack.c.l.s4 1983009808
          %v3926 = vunpack.c.0.s8 %v3925
          %v3927 = vlaneseq
          %v3928 = vshrl.u32 %v3927, 7
          %v3929 = vsub.s32 %v3926, %v3928
          %v3930 = vrot.slane %v3916, %v3929
          %v3931 = vcombine.low %v3923, %v3930
          %v3932 = vcombine.low %v2855, %v2859
          %v3933 = vcombine.low %v2863, %v2867
          %v3935 = vunpack.c.l.s4 1983009808
          %v3936 = vunpack.c.0.s8 %v3935
          %v3937 = vlaneseq
          %v3938 = vshrl.u32 %v3937, 7
          %v3939 = vsub.s32 %v3936, %v3938
          %v3940 = vrot.slane %v3932, %v3939
          %v3942 = vunpack.c.l.s4 1983009808
          %v3943 = vunpack.c.0.s8 %v3942
          %v3944 = vlaneseq
          %v3945 = vshrl.u32 %v3944, 7
          %v3946 = vsub.s32 %v3943, %v3945
          %v3947 = vrot.slane %v3933, %v3946
          %v3948 = vcombine.low %v3940, %v3947
          %v3949 = vcombine.low %v2871, %v2875
          %v3950 = vcombine.low %v2879, %v2883
          %v3952 = vunpack.c.l.s4 1983009808
          %v3953 = vunpack.c.0.s8 %v3952
          %v3954 = vlaneseq
          %v3955 = vshrl.u32 %v3954, 7
          %v3956 = vsub.s32 %v3953, %v3955
          %v3957 = vrot.slane %v3949, %v3956
          %v3959 = vunpack.c.l.s4 1983009808
          %v3960 = vunpack.c.0.s8 %v3959
          %v3961 = vlaneseq
          %v3962 = vshrl.u32 %v3961, 7
          %v3963 = vsub.s32 %v3960, %v3962
          %v3964 = vrot.slane %v3950, %v3963
          %v3965 = vcombine.low %v3957, %v3964
          %v3966 = vcombine.low %v2887, %v2891
          %v3967 = vcombine.low %v2895, %v2899
          %v3969 = vunpack.c.l.s4 1983009808
          %v3970 = vunpack.c.0.s8 %v3969
          %v3971 = vlaneseq
          %v3972 = vshrl.u32 %v3971, 7
          %v3973 = vsub.s32 %v3970, %v3972
          %v3974 = vrot.slane %v3966, %v3973
          %v3976 = vunpack.c.l.s4 1983009808
          %v3977 = vunpack.c.0.s8 %v3976
          %v3978 = vlaneseq
          %v3979 = vshrl.u32 %v3978, 7
          %v3980 = vsub.s32 %v3977, %v3979
          %v3981 = vrot.slane %v3967, %v3980
          %v3982 = vcombine.low %v3974, %v3981
          %v3983 = vcombine.low %v2903, %v2907
          %v3984 = vcombine.low %v2911, %v2915
          %v3986 = vunpack.c.l.s4 1983009808
          %v3987 = vunpack.c.0.s8 %v3986
          %v3988 = vlaneseq
          %v3989 = vshrl.u32 %v3988, 7
          %v3990 = vsub.s32 %v3987, %v3989
          %v3991 = vrot.slane %v3983, %v3990
          %v3993 = vunpack.c.l.s4 1983009808
          %v3994 = vunpack.c.0.s8 %v3993
          %v3995 = vlaneseq
          %v3996 = vshrl.u32 %v3995, 7
          %v3997 = vsub.s32 %v3994, %v3996
          %v3998 = vrot.slane %v3984, %v3997
          %v3999 = vcombine.low %v3991, %v3998
          %v4000 = vcombine.low %v2919, %v2923
          %v4001 = vcombine.low %v2927, %v2931
          %v4003 = vunpack.c.l.s4 1983009808
          %v4004 = vunpack.c.0.s8 %v4003
          %v4005 = vlaneseq
          %v4006 = vshrl.u32 %v4005, 7
          %v4007 = vsub.s32 %v4004, %v4006
          %v4008 = vrot.slane %v4000, %v4007
          %v4010 = vunpack.c.l.s4 1983009808
          %v4011 = vunpack.c.0.s8 %v4010
          %v4012 = vlaneseq
          %v4013 = vshrl.u32 %v4012, 7
          %v4014 = vsub.s32 %v4011, %v4013
          %v4015 = vrot.slane %v4001, %v4014
          %v4016 = vcombine.low %v4008, %v4015
          %v4017 = vcombine.low %v2935, %v2939
          %v4018 = vcombine.low %v2943, %v2947
          %v4020 = vunpack.c.l.s4 1983009808
          %v4021 = vunpack.c.0.s8 %v4020
          %v4022 = vlaneseq
          %v4023 = vshrl.u32 %v4022, 7
          %v4024 = vsub.s32 %v4021, %v4023
          %v4025 = vrot.slane %v4017, %v4024
          %v4027 = vunpack.c.l.s4 1983009808
          %v4028 = vunpack.c.0.s8 %v4027
          %v4029 = vlaneseq
          %v4030 = vshrl.u32 %v4029, 7
          %v4031 = vsub.s32 %v4028, %v4030
          %v4032 = vrot.slane %v4018, %v4031
          %v4033 = vcombine.low %v4025, %v4032
          %v4034 = vcombine.low %v2951, %v2955
          %v4035 = vcombine.low %v2959, %v2963
          %v4037 = vunpack.c.l.s4 1983009808
          %v4038 = vunpack.c.0.s8 %v4037
          %v4039 = vlaneseq
          %v4040 = vshrl.u32 %v4039, 7
          %v4041 = vsub.s32 %v4038, %v4040
          %v4042 = vrot.slane %v4034, %v4041
          %v4044 = vunpack.c.l.s4 1983009808
          %v4045 = vunpack.c.0.s8 %v4044
          %v4046 = vlaneseq
          %v4047 = vshrl.u32 %v4046, 7
          %v4048 = vsub.s32 %v4045, %v4047
          %v4049 = vrot.slane %v4035, %v4048
          %v4050 = vcombine.low %v4042, %v4049
          %v4051 = vcombine.low %v2967, %v2971
          %v4052 = vcombine.low %v2975, %v2979
          %v4054 = vunpack.c.l.s4 1983009808
          %v4055 = vunpack.c.0.s8 %v4054
          %v4056 = vlaneseq
          %v4057 = vshrl.u32 %v4056, 7
          %v4058 = vsub.s32 %v4055, %v4057
          %v4059 = vrot.slane %v4051, %v4058
          %v4061 = vunpack.c.l.s4 1983009808
          %v4062 = vunpack.c.0.s8 %v4061
          %v4063 = vlaneseq
          %v4064 = vshrl.u32 %v4063, 7
          %v4065 = vsub.s32 %v4062, %v4064
          %v4066 = vrot.slane %v4052, %v4065
          %v4067 = vcombine.low %v4059, %v4066
          %s4132 = scalar_lea.vmem [#allocation2], 40
          %4133 = vst.msk [vmem:[%s4132 + $0x1] sm:$0xff] %vm206, %v2996
          %4134 = vst.msk [vmem:[%s4132 + $0x9] sm:$0xff] %vm206, %v3013
          %4135 = vst.msk [vmem:[%s4132 + $0x11] sm:$0xff] %vm206, %v3030
          %4136 = vst.msk [vmem:[%s4132 + $0x19] sm:$0xff] %vm206, %v3047
          %4137 = vst.msk [vmem:[%s4132 + $0x29] sm:$0xff] %vm206, %v2996
          %4138 = vst.msk [vmem:[%s4132 + $0x31] sm:$0xff] %vm206, %v3013
          %4139 = vst.msk [vmem:[%s4132 + $0x39] sm:$0xff] %vm206, %v3030
          %4140 = vst.msk [vmem:[%s4132 + $0x41] sm:$0xff] %vm206, %v3047
          %4141 = vst.msk [vmem:[%s4132 + $0x51] sm:$0xff] %vm206, %v3064
          %4142 = vst.msk [vmem:[%s4132 + $0x59] sm:$0xff] %vm206, %v3081
          %4143 = vst.msk [vmem:[%s4132 + $0x61] sm:$0xff] %vm206, %v3098
          %4144 = vst.msk [vmem:[%s4132 + $0x69] sm:$0xff] %vm206, %v3115
          %4145 = vst.msk [vmem:[%s4132 + $0x79] sm:$0xff] %vm206, %v3064
          %4146 = vst.msk [vmem:[%s4132 + $0x81] sm:$0xff] %vm206, %v3081
          %4147 = vst.msk [vmem:[%s4132 + $0x89] sm:$0xff] %vm206, %v3098
          %4148 = vst.msk [vmem:[%s4132 + $0x91] sm:$0xff] %vm206, %v3115
          %4149 = vst.msk [vmem:[%s4132 + $0xa1] sm:$0xff] %vm206, %v3132
          %4150 = vst.msk [vmem:[%s4132 + $0xa9] sm:$0xff] %vm206, %v3149
          %4151 = vst.msk [vmem:[%s4132 + $0xb1] sm:$0xff] %vm206, %v3166
          %4152 = vst.msk [vmem:[%s4132 + $0xb9] sm:$0xff] %vm206, %v3183
          %4153 = vst.msk [vmem:[%s4132 + $0xc9] sm:$0xff] %vm206, %v3132
          %4154 = vst.msk [vmem:[%s4132 + $0xd1] sm:$0xff] %vm206, %v3149
          %4155 = vst.msk [vmem:[%s4132 + $0xd9] sm:$0xff] %vm206, %v3166
          %4156 = vst.msk [vmem:[%s4132 + $0xe1] sm:$0xff] %vm206, %v3183
          %4157 = vst.msk [vmem:[%s4132 + $0xf1] sm:$0xff] %vm206, %v3200
          %4158 = vst.msk [vmem:[%s4132 + $0xf9] sm:$0xff] %vm206, %v3217
          %4159 = vst.msk [vmem:[%s4132 + $0x101] sm:$0xff] %vm206, %v3234
          %4160 = vst.msk [vmem:[%s4132 + $0x109] sm:$0xff] %vm206, %v3251
          %4161 = vst.msk [vmem:[%s4132 + $0x119] sm:$0xff] %vm206, %v3200
          %4162 = vst.msk [vmem:[%s4132 + $0x121] sm:$0xff] %vm206, %v3217
          %4163 = vst.msk [vmem:[%s4132 + $0x129] sm:$0xff] %vm206, %v3234
          %4164 = vst.msk [vmem:[%s4132 + $0x131] sm:$0xff] %vm206, %v3251
          %4165 = vst.msk [vmem:[%s4132 + $0x141] sm:$0xff] %vm206, %v3268
          %4166 = vst.msk [vmem:[%s4132 + $0x149] sm:$0xff] %vm206, %v3285
          %4167 = vst.msk [vmem:[%s4132 + $0x151] sm:$0xff] %vm206, %v3302
          %4168 = vst.msk [vmem:[%s4132 + $0x159] sm:$0xff] %vm206, %v3319
          %4169 = vst.msk [vmem:[%s4132 + $0x169] sm:$0xff] %vm206, %v3268
          %4170 = vst.msk [vmem:[%s4132 + $0x171] sm:$0xff] %vm206, %v3285
          %4171 = vst.msk [vmem:[%s4132 + $0x179] sm:$0xff] %vm206, %v3302
          %4172 = vst.msk [vmem:[%s4132 + $0x181] sm:$0xff] %vm206, %v3319
          %4173 = vst.msk [vmem:[%s4132 + $0x191] sm:$0xff] %vm206, %v3336
          %4174 = vst.msk [vmem:[%s4132 + $0x199] sm:$0xff] %vm206, %v3353
          %4175 = vst.msk [vmem:[%s4132 + $0x1a1] sm:$0xff] %vm206, %v3370
          %4176 = vst.msk [vmem:[%s4132 + $0x1a9] sm:$0xff] %vm206, %v3387
          %4177 = vst.msk [vmem:[%s4132 + $0x1b9] sm:$0xff] %vm206, %v3336
          %4178 = vst.msk [vmem:[%s4132 + $0x1c1] sm:$0xff] %vm206, %v3353
          %4179 = vst.msk [vmem:[%s4132 + $0x1c9] sm:$0xff] %vm206, %v3370
          %4180 = vst.msk [vmem:[%s4132 + $0x1d1] sm:$0xff] %vm206, %v3387
          %4181 = vst.msk [vmem:[%s4132 + $0x1e1] sm:$0xff] %vm206, %v3404
          %4182 = vst.msk [vmem:[%s4132 + $0x1e9] sm:$0xff] %vm206, %v3421
          %4183 = vst.msk [vmem:[%s4132 + $0x1f1] sm:$0xff] %vm206, %v3438
          %4184 = vst.msk [vmem:[%s4132 + $0x1f9] sm:$0xff] %vm206, %v3455
          %4185 = vst.msk [vmem:[%s4132 + $0x209] sm:$0xff] %vm206, %v3404
          %4186 = vst.msk [vmem:[%s4132 + $0x211] sm:$0xff] %vm206, %v3421
          %4187 = vst.msk [vmem:[%s4132 + $0x219] sm:$0xff] %vm206, %v3438
          %4188 = vst.msk [vmem:[%s4132 + $0x221] sm:$0xff] %vm206, %v3455
          %4189 = vst.msk [vmem:[%s4132 + $0x231] sm:$0xff] %vm206, %v3472
          %4190 = vst.msk [vmem:[%s4132 + $0x239] sm:$0xff] %vm206, %v3489
          %4191 = vst.msk [vmem:[%s4132 + $0x241] sm:$0xff] %vm206, %v3506
          %4192 = vst.msk [vmem:[%s4132 + $0x249] sm:$0xff] %vm206, %v3523
          %4193 = vst.msk [vmem:[%s4132 + $0x259] sm:$0xff] %vm206, %v3472
          %4194 = vst.msk [vmem:[%s4132 + $0x261] sm:$0xff] %vm206, %v3489
          %4195 = vst.msk [vmem:[%s4132 + $0x269] sm:$0xff] %vm206, %v3506
          %4196 = vst.msk [vmem:[%s4132 + $0x271] sm:$0xff] %vm206, %v3523
          %4197 = vst.msk [vmem:[%s4132 + $0x281] sm:$0xff] %vm206, %v3540
          %4198 = vst.msk [vmem:[%s4132 + $0x289] sm:$0xff] %vm206, %v3557
          %4199 = vst.msk [vmem:[%s4132 + $0x291] sm:$0xff] %vm206, %v3574
          %4200 = vst.msk [vmem:[%s4132 + $0x299] sm:$0xff] %vm206, %v3591
          %4201 = vst.msk [vmem:[%s4132 + $0x2a9] sm:$0xff] %vm206, %v3540
          %4202 = vst.msk [vmem:[%s4132 + $0x2b1] sm:$0xff] %vm206, %v3557
          %4203 = vst.msk [vmem:[%s4132 + $0x2b9] sm:$0xff] %vm206, %v3574
          %4204 = vst.msk [vmem:[%s4132 + $0x2c1] sm:$0xff] %vm206, %v3591
          %4205 = vst.msk [vmem:[%s4132 + $0x2d1] sm:$0xff] %vm206, %v3608
          %4206 = vst.msk [vmem:[%s4132 + $0x2d9] sm:$0xff] %vm206, %v3625
          %4207 = vst.msk [vmem:[%s4132 + $0x2e1] sm:$0xff] %vm206, %v3642
          %4208 = vst.msk [vmem:[%s4132 + $0x2e9] sm:$0xff] %vm206, %v3659
          %4209 = vst.msk [vmem:[%s4132 + $0x2f9] sm:$0xff] %vm206, %v3608
          %4210 = vst.msk [vmem:[%s4132 + $0x301] sm:$0xff] %vm206, %v3625
          %4211 = vst.msk [vmem:[%s4132 + $0x309] sm:$0xff] %vm206, %v3642
          %4212 = vst.msk [vmem:[%s4132 + $0x311] sm:$0xff] %vm206, %v3659
          %4213 = vst.msk [vmem:[%s4132 + $0x321] sm:$0xff] %vm206, %v3676
          %4214 = vst.msk [vmem:[%s4132 + $0x329] sm:$0xff] %vm206, %v3693
          %4215 = vst.msk [vmem:[%s4132 + $0x331] sm:$0xff] %vm206, %v3710
          %4216 = vst.msk [vmem:[%s4132 + $0x339] sm:$0xff] %vm206, %v3727
          %4217 = vst.msk [vmem:[%s4132 + $0x349] sm:$0xff] %vm206, %v3676
          %4218 = vst.msk [vmem:[%s4132 + $0x351] sm:$0xff] %vm206, %v3693
          %4219 = vst.msk [vmem:[%s4132 + $0x359] sm:$0xff] %vm206, %v3710
          %4220 = vst.msk [vmem:[%s4132 + $0x361] sm:$0xff] %vm206, %v3727
          %4221 = vst.msk [vmem:[%s4132 + $0x371] sm:$0xff] %vm206, %v3744
          %4222 = vst.msk [vmem:[%s4132 + $0x379] sm:$0xff] %vm206, %v3761
          %4223 = vst.msk [vmem:[%s4132 + $0x381] sm:$0xff] %vm206, %v3778
          %4224 = vst.msk [vmem:[%s4132 + $0x389] sm:$0xff] %vm206, %v3795
          %4225 = vst.msk [vmem:[%s4132 + $0x399] sm:$0xff] %vm206, %v3744
          %4226 = vst.msk [vmem:[%s4132 + $0x3a1] sm:$0xff] %vm206, %v3761
          %4227 = vst.msk [vmem:[%s4132 + $0x3a9] sm:$0xff] %vm206, %v3778
          %4228 = vst.msk [vmem:[%s4132 + $0x3b1] sm:$0xff] %vm206, %v3795
          %4229 = vst.msk [vmem:[%s4132 + $0x3c1] sm:$0xff] %vm206, %v3812
          %4230 = vst.msk [vmem:[%s4132 + $0x3c9] sm:$0xff] %vm206, %v3829
          %4231 = vst.msk [vmem:[%s4132 + $0x3d1] sm:$0xff] %vm206, %v3846
          %4232 = vst.msk [vmem:[%s4132 + $0x3d9] sm:$0xff] %vm206, %v3863
          %4233 = vst.msk [vmem:[%s4132 + $0x3e9] sm:$0xff] %vm206, %v3812
          %4234 = vst.msk [vmem:[%s4132 + $0x3f1] sm:$0xff] %vm206, %v3829
          %4235 = vst.msk [vmem:[%s4132 + $0x3f9] sm:$0xff] %vm206, %v3846
          %4236 = vst.msk [vmem:[%s4132 + $0x401] sm:$0xff] %vm206, %v3863
          %4237 = vst.msk [vmem:[%s4132 + $0x411] sm:$0xff] %vm206, %v3880
          %4238 = vst.msk [vmem:[%s4132 + $0x419] sm:$0xff] %vm206, %v3897
          %4239 = vst.msk [vmem:[%s4132 + $0x421] sm:$0xff] %vm206, %v3914
          %4240 = vst.msk [vmem:[%s4132 + $0x429] sm:$0xff] %vm206, %v3931
          %4241 = vst.msk [vmem:[%s4132 + $0x439] sm:$0xff] %vm206, %v3880
          %4242 = vst.msk [vmem:[%s4132 + $0x441] sm:$0xff] %vm206, %v3897
          %4243 = vst.msk [vmem:[%s4132 + $0x449] sm:$0xff] %vm206, %v3914
          %4244 = vst.msk [vmem:[%s4132 + $0x451] sm:$0xff] %vm206, %v3931
          %4245 = vst.msk [vmem:[%s4132 + $0x461] sm:$0xff] %vm206, %v3948
          %4246 = vst.msk [vmem:[%s4132 + $0x469] sm:$0xff] %vm206, %v3965
          %4247 = vst.msk [vmem:[%s4132 + $0x471] sm:$0xff] %vm206, %v3982
          %4248 = vst.msk [vmem:[%s4132 + $0x479] sm:$0xff] %vm206, %v3999
          %4249 = vst.msk [vmem:[%s4132 + $0x489] sm:$0xff] %vm206, %v3948
          %4250 = vst.msk [vmem:[%s4132 + $0x491] sm:$0xff] %vm206, %v3965
          %4251 = vst.msk [vmem:[%s4132 + $0x499] sm:$0xff] %vm206, %v3982
          %4252 = vst.msk [vmem:[%s4132 + $0x4a1] sm:$0xff] %vm206, %v3999
          %4253 = vst.msk [vmem:[%s4132 + $0x4b1] sm:$0xff] %vm206, %v4016
          %4254 = vst.msk [vmem:[%s4132 + $0x4b9] sm:$0xff] %vm206, %v4033
          %4255 = vst.msk [vmem:[%s4132 + $0x4c1] sm:$0xff] %vm206, %v4050
          %4256 = vst.msk [vmem:[%s4132 + $0x4c9] sm:$0xff] %vm206, %v4067
          %4257 = vst.msk [vmem:[%s4132 + $0x4d9] sm:$0xff] %vm206, %v4016
          %4258 = vst.msk [vmem:[%s4132 + $0x4e1] sm:$0xff] %vm206, %v4033
          %4259 = vst.msk [vmem:[%s4132 + $0x4e9] sm:$0xff] %vm206, %v4050
          %4260 = vst.msk [vmem:[%s4132 + $0x4f1] sm:$0xff] %vm206, %v4067
        $region40: #{tpu_custom_call.1} parent=31 // pred_fallthru
          _
        %s4261 = smul.u32 %s25, 32
        %s4262 = smul.u32 %s4261, 40
        %s4263 = scalar_lea.vmem [#allocation2], %s4262
        %v4264 = vld [vmem:[%s4263] sm:$0xff]
        %v4265 = vld [vmem:[%s4263 + $0x8] sm:$0xff]
        %v4266 = vld [vmem:[%s4263 + $0x10] sm:$0xff]
        %v4267 = vld [vmem:[%s4263 + $0x18] sm:$0xff]
        %v4268 = vld [vmem:[%s4263 + $0x28] sm:$0xff]
        %v4269 = vld [vmem:[%s4263 + $0x30] sm:$0xff]
        %v4270 = vld [vmem:[%s4263 + $0x38] sm:$0xff]
        %v4271 = vld [vmem:[%s4263 + $0x40] sm:$0xff]
        %v4272 = vld [vmem:[%s4263 + $0x50] sm:$0xff]
        %v4273 = vld [vmem:[%s4263 + $0x58] sm:$0xff]
        %v4274 = vld [vmem:[%s4263 + $0x60] sm:$0xff]
        %v4275 = vld [vmem:[%s4263 + $0x68] sm:$0xff]
        %v4276 = vld [vmem:[%s4263 + $0x78] sm:$0xff]
        %v4277 = vld [vmem:[%s4263 + $0x80] sm:$0xff]
        %v4278 = vld [vmem:[%s4263 + $0x88] sm:$0xff]
        %v4279 = vld [vmem:[%s4263 + $0x90] sm:$0xff]
        %v4280 = vld [vmem:[%s4263 + $0xa0] sm:$0xff]
        %v4281 = vld [vmem:[%s4263 + $0xa8] sm:$0xff]
        %v4282 = vld [vmem:[%s4263 + $0xb0] sm:$0xff]
        %v4283 = vld [vmem:[%s4263 + $0xb8] sm:$0xff]
        %v4284 = vld [vmem:[%s4263 + $0xc8] sm:$0xff]
        %v4285 = vld [vmem:[%s4263 + $0xd0] sm:$0xff]
        %v4286 = vld [vmem:[%s4263 + $0xd8] sm:$0xff]
        %v4287 = vld [vmem:[%s4263 + $0xe0] sm:$0xff]
        %v4288 = vld [vmem:[%s4263 + $0xf0] sm:$0xff]
        %v4289 = vld [vmem:[%s4263 + $0xf8] sm:$0xff]
        %v4290 = vld [vmem:[%s4263 + $0x100] sm:$0xff]
        %v4291 = vld [vmem:[%s4263 + $0x108] sm:$0xff]
        %v4292 = vld [vmem:[%s4263 + $0x118] sm:$0xff]
        %v4293 = vld [vmem:[%s4263 + $0x120] sm:$0xff]
        %v4294 = vld [vmem:[%s4263 + $0x128] sm:$0xff]
        %v4295 = vld [vmem:[%s4263 + $0x130] sm:$0xff]
        %v4296 = vld [vmem:[%s4263 + $0x140] sm:$0xff]
        %v4297 = vld [vmem:[%s4263 + $0x148] sm:$0xff]
        %v4298 = vld [vmem:[%s4263 + $0x150] sm:$0xff]
        %v4299 = vld [vmem:[%s4263 + $0x158] sm:$0xff]
        %v4300 = vld [vmem:[%s4263 + $0x168] sm:$0xff]
        %v4301 = vld [vmem:[%s4263 + $0x170] sm:$0xff]
        %v4302 = vld [vmem:[%s4263 + $0x178] sm:$0xff]
        %v4303 = vld [vmem:[%s4263 + $0x180] sm:$0xff]
        %v4304 = vld [vmem:[%s4263 + $0x190] sm:$0xff]
        %v4305 = vld [vmem:[%s4263 + $0x198] sm:$0xff]
        %v4306 = vld [vmem:[%s4263 + $0x1a0] sm:$0xff]
        %v4307 = vld [vmem:[%s4263 + $0x1a8] sm:$0xff]
        %v4308 = vld [vmem:[%s4263 + $0x1b8] sm:$0xff]
        %v4309 = vld [vmem:[%s4263 + $0x1c0] sm:$0xff]
        %v4310 = vld [vmem:[%s4263 + $0x1c8] sm:$0xff]
        %v4311 = vld [vmem:[%s4263 + $0x1d0] sm:$0xff]
        %v4312 = vld [vmem:[%s4263 + $0x1e0] sm:$0xff]
        %v4313 = vld [vmem:[%s4263 + $0x1e8] sm:$0xff]
        %v4314 = vld [vmem:[%s4263 + $0x1f0] sm:$0xff]
        %v4315 = vld [vmem:[%s4263 + $0x1f8] sm:$0xff]
        %v4316 = vld [vmem:[%s4263 + $0x208] sm:$0xff]
        %v4317 = vld [vmem:[%s4263 + $0x210] sm:$0xff]
        %v4318 = vld [vmem:[%s4263 + $0x218] sm:$0xff]
        %v4319 = vld [vmem:[%s4263 + $0x220] sm:$0xff]
        %v4320 = vld [vmem:[%s4263 + $0x230] sm:$0xff]
        %v4321 = vld [vmem:[%s4263 + $0x238] sm:$0xff]
        %v4322 = vld [vmem:[%s4263 + $0x240] sm:$0xff]
        %v4323 = vld [vmem:[%s4263 + $0x248] sm:$0xff]
        %v4324 = vld [vmem:[%s4263 + $0x258] sm:$0xff]
        %v4325 = vld [vmem:[%s4263 + $0x260] sm:$0xff]
        %v4326 = vld [vmem:[%s4263 + $0x268] sm:$0xff]
        %v4327 = vld [vmem:[%s4263 + $0x270] sm:$0xff]
        %v4328 = vld [vmem:[%s4263 + $0x280] sm:$0xff]
        %v4329 = vld [vmem:[%s4263 + $0x288] sm:$0xff]
        %v4330 = vld [vmem:[%s4263 + $0x290] sm:$0xff]
        %v4331 = vld [vmem:[%s4263 + $0x298] sm:$0xff]
        %v4332 = vld [vmem:[%s4263 + $0x2a8] sm:$0xff]
        %v4333 = vld [vmem:[%s4263 + $0x2b0] sm:$0xff]
        %v4334 = vld [vmem:[%s4263 + $0x2b8] sm:$0xff]
        %v4335 = vld [vmem:[%s4263 + $0x2c0] sm:$0xff]
        %v4336 = vld [vmem:[%s4263 + $0x2d0] sm:$0xff]
        %v4337 = vld [vmem:[%s4263 + $0x2d8] sm:$0xff]
        %v4338 = vld [vmem:[%s4263 + $0x2e0] sm:$0xff]
        %v4339 = vld [vmem:[%s4263 + $0x2e8] sm:$0xff]
        %v4340 = vld [vmem:[%s4263 + $0x2f8] sm:$0xff]
        %v4341 = vld [vmem:[%s4263 + $0x300] sm:$0xff]
        %v4342 = vld [vmem:[%s4263 + $0x308] sm:$0xff]
        %v4343 = vld [vmem:[%s4263 + $0x310] sm:$0xff]
        %v4344 = vld [vmem:[%s4263 + $0x320] sm:$0xff]
        %v4345 = vld [vmem:[%s4263 + $0x328] sm:$0xff]
        %v4346 = vld [vmem:[%s4263 + $0x330] sm:$0xff]
        %v4347 = vld [vmem:[%s4263 + $0x338] sm:$0xff]
        %v4348 = vld [vmem:[%s4263 + $0x348] sm:$0xff]
        %v4349 = vld [vmem:[%s4263 + $0x350] sm:$0xff]
        %v4350 = vld [vmem:[%s4263 + $0x358] sm:$0xff]
        %v4351 = vld [vmem:[%s4263 + $0x360] sm:$0xff]
        %v4352 = vld [vmem:[%s4263 + $0x370] sm:$0xff]
        %v4353 = vld [vmem:[%s4263 + $0x378] sm:$0xff]
        %v4354 = vld [vmem:[%s4263 + $0x380] sm:$0xff]
        %v4355 = vld [vmem:[%s4263 + $0x388] sm:$0xff]
        %v4356 = vld [vmem:[%s4263 + $0x398] sm:$0xff]
        %v4357 = vld [vmem:[%s4263 + $0x3a0] sm:$0xff]
        %v4358 = vld [vmem:[%s4263 + $0x3a8] sm:$0xff]
        %v4359 = vld [vmem:[%s4263 + $0x3b0] sm:$0xff]
        %v4360 = vld [vmem:[%s4263 + $0x3c0] sm:$0xff]
        %v4361 = vld [vmem:[%s4263 + $0x3c8] sm:$0xff]
        %v4362 = vld [vmem:[%s4263 + $0x3d0] sm:$0xff]
        %v4363 = vld [vmem:[%s4263 + $0x3d8] sm:$0xff]
        %v4364 = vld [vmem:[%s4263 + $0x3e8] sm:$0xff]
        %v4365 = vld [vmem:[%s4263 + $0x3f0] sm:$0xff]
        %v4366 = vld [vmem:[%s4263 + $0x3f8] sm:$0xff]
        %v4367 = vld [vmem:[%s4263 + $0x400] sm:$0xff]
        %v4368 = vld [vmem:[%s4263 + $0x410] sm:$0xff]
        %v4369 = vld [vmem:[%s4263 + $0x418] sm:$0xff]
        %v4370 = vld [vmem:[%s4263 + $0x420] sm:$0xff]
        %v4371 = vld [vmem:[%s4263 + $0x428] sm:$0xff]
        %v4372 = vld [vmem:[%s4263 + $0x438] sm:$0xff]
        %v4373 = vld [vmem:[%s4263 + $0x440] sm:$0xff]
        %v4374 = vld [vmem:[%s4263 + $0x448] sm:$0xff]
        %v4375 = vld [vmem:[%s4263 + $0x450] sm:$0xff]
        %v4376 = vld [vmem:[%s4263 + $0x460] sm:$0xff]
        %v4377 = vld [vmem:[%s4263 + $0x468] sm:$0xff]
        %v4378 = vld [vmem:[%s4263 + $0x470] sm:$0xff]
        %v4379 = vld [vmem:[%s4263 + $0x478] sm:$0xff]
        %v4380 = vld [vmem:[%s4263 + $0x488] sm:$0xff]
        %v4381 = vld [vmem:[%s4263 + $0x490] sm:$0xff]
        %v4382 = vld [vmem:[%s4263 + $0x498] sm:$0xff]
        %v4383 = vld [vmem:[%s4263 + $0x4a0] sm:$0xff]
        %v4384 = vld [vmem:[%s4263 + $0x4b0] sm:$0xff]
        %v4385 = vld [vmem:[%s4263 + $0x4b8] sm:$0xff]
        %v4386 = vld [vmem:[%s4263 + $0x4c0] sm:$0xff]
        %v4387 = vld [vmem:[%s4263 + $0x4c8] sm:$0xff]
        %v4388 = vld [vmem:[%s4263 + $0x4d8] sm:$0xff]
        %v4389 = vld [vmem:[%s4263 + $0x4e0] sm:$0xff]
        %v4390 = vld [vmem:[%s4263 + $0x4e8] sm:$0xff]
        %v4391 = vld [vmem:[%s4263 + $0x4f0] sm:$0xff]
        %4392 = vxpose.xlu0.b32.start [1/16] %v4264, 128
        %4393 = vxpose.xlu0.b32.cont [2/16] %v4265, 128
        %4394 = vxpose.xlu0.b32.cont [3/16] %v4266, 128
        %4395 = vxpose.xlu0.b32.cont [4/16] %v4267, 128
        %4396 = vxpose.xlu0.b32.cont [5/16] %v4268, 128
        %4397 = vxpose.xlu0.b32.cont [6/16] %v4269, 128
        %4398 = vxpose.xlu0.b32.cont [7/16] %v4270, 128
        %4399 = vxpose.xlu0.b32.cont [8/16] %v4271, 128
        %4400 = vxpose.xlu0.b32.cont [9/16] %v4272, 128
        %4401 = vxpose.xlu0.b32.cont [10/16] %v4273, 128
        %4402 = vxpose.xlu0.b32.cont [11/16] %v4274, 128
        %4403 = vxpose.xlu0.b32.cont [12/16] %v4275, 128
        %4404 = vxpose.xlu0.b32.cont [13/16] %v4276, 128
        %4405 = vxpose.xlu0.b32.cont [14/16] %v4277, 128
        %4406 = vxpose.xlu0.b32.cont [15/16] %v4278, 128
        %4407 = vxpose.xlu0.b32.end [16/16] %v4279, 128
        %v4408 = vpop.trf.xlu0
        %v4409 = vpop.trf.xlu0
        %v4410 = vpop.trf.xlu0
        %v4411 = vpop.trf.xlu0
        %v4412 = vpop.trf.xlu0
        %v4413 = vpop.trf.xlu0
        %v4414 = vpop.trf.xlu0
        %v4415 = vpop.trf.xlu0
        %v4416 = vpop.trf.xlu0
        %v4417 = vpop.trf.xlu0
        %v4418 = vpop.trf.xlu0
        %v4419 = vpop.trf.xlu0
        %v4420 = vpop.trf.xlu0
        %v4421 = vpop.trf.xlu0
        %v4422 = vpop.trf.xlu0
        %v4423 = vpop.trf.xlu0
        %4424 = vxpose.xlu0.b32.start [1/16] %v4280, 128
        %4425 = vxpose.xlu0.b32.cont [2/16] %v4281, 128
        %4426 = vxpose.xlu0.b32.cont [3/16] %v4282, 128
        %4427 = vxpose.xlu0.b32.cont [4/16] %v4283, 128
        %4428 = vxpose.xlu0.b32.cont [5/16] %v4284, 128
        %4429 = vxpose.xlu0.b32.cont [6/16] %v4285, 128
        %4430 = vxpose.xlu0.b32.cont [7/16] %v4286, 128
        %4431 = vxpose.xlu0.b32.cont [8/16] %v4287, 128
        %4432 = vxpose.xlu0.b32.cont [9/16] %v4288, 128
        %4433 = vxpose.xlu0.b32.cont [10/16] %v4289, 128
        %4434 = vxpose.xlu0.b32.cont [11/16] %v4290, 128
        %4435 = vxpose.xlu0.b32.cont [12/16] %v4291, 128
        %4436 = vxpose.xlu0.b32.cont [13/16] %v4292, 128
        %4437 = vxpose.xlu0.b32.cont [14/16] %v4293, 128
        %4438 = vxpose.xlu0.b32.cont [15/16] %v4294, 128
        %4439 = vxpose.xlu0.b32.end [16/16] %v4295, 128
        %v4440 = vpop.trf.xlu0
        %v4441 = vpop.trf.xlu0
        %v4442 = vpop.trf.xlu0
        %v4443 = vpop.trf.xlu0
        %v4444 = vpop.trf.xlu0
        %v4445 = vpop.trf.xlu0
        %v4446 = vpop.trf.xlu0
        %v4447 = vpop.trf.xlu0
        %v4448 = vpop.trf.xlu0
        %v4449 = vpop.trf.xlu0
        %v4450 = vpop.trf.xlu0
        %v4451 = vpop.trf.xlu0
        %v4452 = vpop.trf.xlu0
        %v4453 = vpop.trf.xlu0
        %v4454 = vpop.trf.xlu0
        %v4455 = vpop.trf.xlu0
        %4456 = vxpose.xlu0.b32.start [1/16] %v4296, 128
        %4457 = vxpose.xlu0.b32.cont [2/16] %v4297, 128
        %4458 = vxpose.xlu0.b32.cont [3/16] %v4298, 128
        %4459 = vxpose.xlu0.b32.cont [4/16] %v4299, 128
        %4460 = vxpose.xlu0.b32.cont [5/16] %v4300, 128
        %4461 = vxpose.xlu0.b32.cont [6/16] %v4301, 128
        %4462 = vxpose.xlu0.b32.cont [7/16] %v4302, 128
        %4463 = vxpose.xlu0.b32.cont [8/16] %v4303, 128
        %4464 = vxpose.xlu0.b32.cont [9/16] %v4304, 128
        %4465 = vxpose.xlu0.b32.cont [10/16] %v4305, 128
        %4466 = vxpose.xlu0.b32.cont [11/16] %v4306, 128
        %4467 = vxpose.xlu0.b32.cont [12/16] %v4307, 128
        %4468 = vxpose.xlu0.b32.cont [13/16] %v4308, 128
        %4469 = vxpose.xlu0.b32.cont [14/16] %v4309, 128
        %4470 = vxpose.xlu0.b32.cont [15/16] %v4310, 128
        %4471 = vxpose.xlu0.b32.end [16/16] %v4311, 128
        %v4472 = vpop.trf.xlu0
        %v4473 = vpop.trf.xlu0
        %v4474 = vpop.trf.xlu0
        %v4475 = vpop.trf.xlu0
        %v4476 = vpop.trf.xlu0
        %v4477 = vpop.trf.xlu0
        %v4478 = vpop.trf.xlu0
        %v4479 = vpop.trf.xlu0
        %v4480 = vpop.trf.xlu0
        %v4481 = vpop.trf.xlu0
        %v4482 = vpop.trf.xlu0
        %v4483 = vpop.trf.xlu0
        %v4484 = vpop.trf.xlu0
        %v4485 = vpop.trf.xlu0
        %v4486 = vpop.trf.xlu0
        %v4487 = vpop.trf.xlu0
        %4488 = vxpose.xlu0.b32.start [1/16] %v4312, 128
        %4489 = vxpose.xlu0.b32.cont [2/16] %v4313, 128
        %4490 = vxpose.xlu0.b32.cont [3/16] %v4314, 128
        %4491 = vxpose.xlu0.b32.cont [4/16] %v4315, 128
        %4492 = vxpose.xlu0.b32.cont [5/16] %v4316, 128
        %4493 = vxpose.xlu0.b32.cont [6/16] %v4317, 128
        %4494 = vxpose.xlu0.b32.cont [7/16] %v4318, 128
        %4495 = vxpose.xlu0.b32.cont [8/16] %v4319, 128
        %4496 = vxpose.xlu0.b32.cont [9/16] %v4320, 128
        %4497 = vxpose.xlu0.b32.cont [10/16] %v4321, 128
        %4498 = vxpose.xlu0.b32.cont [11/16] %v4322, 128
        %4499 = vxpose.xlu0.b32.cont [12/16] %v4323, 128
        %4500 = vxpose.xlu0.b32.cont [13/16] %v4324, 128
        %4501 = vxpose.xlu0.b32.cont [14/16] %v4325, 128
        %4502 = vxpose.xlu0.b32.cont [15/16] %v4326, 128
        %4503 = vxpose.xlu0.b32.end [16/16] %v4327, 128
        %v4504 = vpop.trf.xlu0
        %v4505 = vpop.trf.xlu0
        %v4506 = vpop.trf.xlu0
        %v4507 = vpop.trf.xlu0
        %v4508 = vpop.trf.xlu0
        %v4509 = vpop.trf.xlu0
        %v4510 = vpop.trf.xlu0
        %v4511 = vpop.trf.xlu0
        %v4512 = vpop.trf.xlu0
        %v4513 = vpop.trf.xlu0
        %v4514 = vpop.trf.xlu0
        %v4515 = vpop.trf.xlu0
        %v4516 = vpop.trf.xlu0
        %v4517 = vpop.trf.xlu0
        %v4518 = vpop.trf.xlu0
        %v4519 = vpop.trf.xlu0
        %4520 = vxpose.xlu0.b32.start [1/16] %v4328, 128
        %4521 = vxpose.xlu0.b32.cont [2/16] %v4329, 128
        %4522 = vxpose.xlu0.b32.cont [3/16] %v4330, 128
        %4523 = vxpose.xlu0.b32.cont [4/16] %v4331, 128
        %4524 = vxpose.xlu0.b32.cont [5/16] %v4332, 128
        %4525 = vxpose.xlu0.b32.cont [6/16] %v4333, 128
        %4526 = vxpose.xlu0.b32.cont [7/16] %v4334, 128
        %4527 = vxpose.xlu0.b32.cont [8/16] %v4335, 128
        %4528 = vxpose.xlu0.b32.cont [9/16] %v4336, 128
        %4529 = vxpose.xlu0.b32.cont [10/16] %v4337, 128
        %4530 = vxpose.xlu0.b32.cont [11/16] %v4338, 128
        %4531 = vxpose.xlu0.b32.cont [12/16] %v4339, 128
        %4532 = vxpose.xlu0.b32.cont [13/16] %v4340, 128
        %4533 = vxpose.xlu0.b32.cont [14/16] %v4341, 128
        %4534 = vxpose.xlu0.b32.cont [15/16] %v4342, 128
        %4535 = vxpose.xlu0.b32.end [16/16] %v4343, 128
        %v4536 = vpop.trf.xlu0
        %v4537 = vpop.trf.xlu0
        %v4538 = vpop.trf.xlu0
        %v4539 = vpop.trf.xlu0
        %v4540 = vpop.trf.xlu0
        %v4541 = vpop.trf.xlu0
        %v4542 = vpop.trf.xlu0
        %v4543 = vpop.trf.xlu0
        %v4544 = vpop.trf.xlu0
        %v4545 = vpop.trf.xlu0
        %v4546 = vpop.trf.xlu0
        %v4547 = vpop.trf.xlu0
        %v4548 = vpop.trf.xlu0
        %v4549 = vpop.trf.xlu0
        %v4550 = vpop.trf.xlu0
        %v4551 = vpop.trf.xlu0
        %4552 = vxpose.xlu0.b32.start [1/16] %v4344, 128
        %4553 = vxpose.xlu0.b32.cont [2/16] %v4345, 128
        %4554 = vxpose.xlu0.b32.cont [3/16] %v4346, 128
        %4555 = vxpose.xlu0.b32.cont [4/16] %v4347, 128
        %4556 = vxpose.xlu0.b32.cont [5/16] %v4348, 128
        %4557 = vxpose.xlu0.b32.cont [6/16] %v4349, 128
        %4558 = vxpose.xlu0.b32.cont [7/16] %v4350, 128
        %4559 = vxpose.xlu0.b32.cont [8/16] %v4351, 128
        %4560 = vxpose.xlu0.b32.cont [9/16] %v4352, 128
        %4561 = vxpose.xlu0.b32.cont [10/16] %v4353, 128
        %4562 = vxpose.xlu0.b32.cont [11/16] %v4354, 128
        %4563 = vxpose.xlu0.b32.cont [12/16] %v4355, 128
        %4564 = vxpose.xlu0.b32.cont [13/16] %v4356, 128
        %4565 = vxpose.xlu0.b32.cont [14/16] %v4357, 128
        %4566 = vxpose.xlu0.b32.cont [15/16] %v4358, 128
        %4567 = vxpose.xlu0.b32.end [16/16] %v4359, 128
        %v4568 = vpop.trf.xlu0
        %v4569 = vpop.trf.xlu0
        %v4570 = vpop.trf.xlu0
        %v4571 = vpop.trf.xlu0
        %v4572 = vpop.trf.xlu0
        %v4573 = vpop.trf.xlu0
        %v4574 = vpop.trf.xlu0
        %v4575 = vpop.trf.xlu0
        %v4576 = vpop.trf.xlu0
        %v4577 = vpop.trf.xlu0
        %v4578 = vpop.trf.xlu0
        %v4579 = vpop.trf.xlu0
        %v4580 = vpop.trf.xlu0
        %v4581 = vpop.trf.xlu0
        %v4582 = vpop.trf.xlu0
        %v4583 = vpop.trf.xlu0
        %4584 = vxpose.xlu0.b32.start [1/16] %v4360, 128
        %4585 = vxpose.xlu0.b32.cont [2/16] %v4361, 128
        %4586 = vxpose.xlu0.b32.cont [3/16] %v4362, 128
        %4587 = vxpose.xlu0.b32.cont [4/16] %v4363, 128
        %4588 = vxpose.xlu0.b32.cont [5/16] %v4364, 128
        %4589 = vxpose.xlu0.b32.cont [6/16] %v4365, 128
        %4590 = vxpose.xlu0.b32.cont [7/16] %v4366, 128
        %4591 = vxpose.xlu0.b32.cont [8/16] %v4367, 128
        %4592 = vxpose.xlu0.b32.cont [9/16] %v4368, 128
        %4593 = vxpose.xlu0.b32.cont [10/16] %v4369, 128
        %4594 = vxpose.xlu0.b32.cont [11/16] %v4370, 128
        %4595 = vxpose.xlu0.b32.cont [12/16] %v4371, 128
        %4596 = vxpose.xlu0.b32.cont [13/16] %v4372, 128
        %4597 = vxpose.xlu0.b32.cont [14/16] %v4373, 128
        %4598 = vxpose.xlu0.b32.cont [15/16] %v4374, 128
        %4599 = vxpose.xlu0.b32.end [16/16] %v4375, 128
        %v4600 = vpop.trf.xlu0
        %v4601 = vpop.trf.xlu0
        %v4602 = vpop.trf.xlu0
        %v4603 = vpop.trf.xlu0
        %v4604 = vpop.trf.xlu0
        %v4605 = vpop.trf.xlu0
        %v4606 = vpop.trf.xlu0
        %v4607 = vpop.trf.xlu0
        %v4608 = vpop.trf.xlu0
        %v4609 = vpop.trf.xlu0
        %v4610 = vpop.trf.xlu0
        %v4611 = vpop.trf.xlu0
        %v4612 = vpop.trf.xlu0
        %v4613 = vpop.trf.xlu0
        %v4614 = vpop.trf.xlu0
        %v4615 = vpop.trf.xlu0
        %4616 = vxpose.xlu0.b32.start [1/16] %v4376, 128
        %4617 = vxpose.xlu0.b32.cont [2/16] %v4377, 128
        %4618 = vxpose.xlu0.b32.cont [3/16] %v4378, 128
        %4619 = vxpose.xlu0.b32.cont [4/16] %v4379, 128
        %4620 = vxpose.xlu0.b32.cont [5/16] %v4380, 128
        %4621 = vxpose.xlu0.b32.cont [6/16] %v4381, 128
        %4622 = vxpose.xlu0.b32.cont [7/16] %v4382, 128
        %4623 = vxpose.xlu0.b32.cont [8/16] %v4383, 128
        %4624 = vxpose.xlu0.b32.cont [9/16] %v4384, 128
        %4625 = vxpose.xlu0.b32.cont [10/16] %v4385, 128
        %4626 = vxpose.xlu0.b32.cont [11/16] %v4386, 128
        %4627 = vxpose.xlu0.b32.cont [12/16] %v4387, 128
        %4628 = vxpose.xlu0.b32.cont [13/16] %v4388, 128
        %4629 = vxpose.xlu0.b32.cont [14/16] %v4389, 128
        %4630 = vxpose.xlu0.b32.cont [15/16] %v4390, 128
        %4631 = vxpose.xlu0.b32.end [16/16] %v4391, 128
        %v4632 = vpop.trf.xlu0
        %v4633 = vpop.trf.xlu0
        %v4634 = vpop.trf.xlu0
        %v4635 = vpop.trf.xlu0
        %v4636 = vpop.trf.xlu0
        %v4637 = vpop.trf.xlu0
        %v4638 = vpop.trf.xlu0
        %v4639 = vpop.trf.xlu0
        %v4640 = vpop.trf.xlu0
        %v4641 = vpop.trf.xlu0
        %v4642 = vpop.trf.xlu0
        %v4643 = vpop.trf.xlu0
        %v4644 = vpop.trf.xlu0
        %v4645 = vpop.trf.xlu0
        %v4646 = vpop.trf.xlu0
        %v4647 = vpop.trf.xlu0
        %v4648 = vld [vmem:[%s4263 + $0x1] sm:$0xff]
        %v4649 = vld [vmem:[%s4263 + $0x9] sm:$0xff]
        %v4650 = vld [vmem:[%s4263 + $0x11] sm:$0xff]
        %v4651 = vld [vmem:[%s4263 + $0x19] sm:$0xff]
        %v4652 = vld [vmem:[%s4263 + $0x29] sm:$0xff]
        %v4653 = vld [vmem:[%s4263 + $0x31] sm:$0xff]
        %v4654 = vld [vmem:[%s4263 + $0x39] sm:$0xff]
        %v4655 = vld [vmem:[%s4263 + $0x41] sm:$0xff]
        %v4656 = vld [vmem:[%s4263 + $0x51] sm:$0xff]
        %v4657 = vld [vmem:[%s4263 + $0x59] sm:$0xff]
        %v4658 = vld [vmem:[%s4263 + $0x61] sm:$0xff]
        %v4659 = vld [vmem:[%s4263 + $0x69] sm:$0xff]
        %v4660 = vld [vmem:[%s4263 + $0x79] sm:$0xff]
        %v4661 = vld [vmem:[%s4263 + $0x81] sm:$0xff]
        %v4662 = vld [vmem:[%s4263 + $0x89] sm:$0xff]
        %v4663 = vld [vmem:[%s4263 + $0x91] sm:$0xff]
        %v4664 = vld [vmem:[%s4263 + $0xa1] sm:$0xff]
        %v4665 = vld [vmem:[%s4263 + $0xa9] sm:$0xff]
        %v4666 = vld [vmem:[%s4263 + $0xb1] sm:$0xff]
        %v4667 = vld [vmem:[%s4263 + $0xb9] sm:$0xff]
        %v4668 = vld [vmem:[%s4263 + $0xc9] sm:$0xff]
        %v4669 = vld [vmem:[%s4263 + $0xd1] sm:$0xff]
        %v4670 = vld [vmem:[%s4263 + $0xd9] sm:$0xff]
        %v4671 = vld [vmem:[%s4263 + $0xe1] sm:$0xff]
        %v4672 = vld [vmem:[%s4263 + $0xf1] sm:$0xff]
        %v4673 = vld [vmem:[%s4263 + $0xf9] sm:$0xff]
        %v4674 = vld [vmem:[%s4263 + $0x101] sm:$0xff]
        %v4675 = vld [vmem:[%s4263 + $0x109] sm:$0xff]
        %v4676 = vld [vmem:[%s4263 + $0x119] sm:$0xff]
        %v4677 = vld [vmem:[%s4263 + $0x121] sm:$0xff]
        %v4678 = vld [vmem:[%s4263 + $0x129] sm:$0xff]
        %v4679 = vld [vmem:[%s4263 + $0x131] sm:$0xff]
        %v4680 = vld [vmem:[%s4263 + $0x141] sm:$0xff]
        %v4681 = vld [vmem:[%s4263 + $0x149] sm:$0xff]
        %v4682 = vld [vmem:[%s4263 + $0x151] sm:$0xff]
        %v4683 = vld [vmem:[%s4263 + $0x159] sm:$0xff]
        %v4684 = vld [vmem:[%s4263 + $0x169] sm:$0xff]
        %v4685 = vld [vmem:[%s4263 + $0x171] sm:$0xff]
        %v4686 = vld [vmem:[%s4263 + $0x179] sm:$0xff]
        %v4687 = vld [vmem:[%s4263 + $0x181] sm:$0xff]
        %v4688 = vld [vmem:[%s4263 + $0x191] sm:$0xff]
        %v4689 = vld [vmem:[%s4263 + $0x199] sm:$0xff]
        %v4690 = vld [vmem:[%s4263 + $0x1a1] sm:$0xff]
        %v4691 = vld [vmem:[%s4263 + $0x1a9] sm:$0xff]
        %v4692 = vld [vmem:[%s4263 + $0x1b9] sm:$0xff]
        %v4693 = vld [vmem:[%s4263 + $0x1c1] sm:$0xff]
        %v4694 = vld [vmem:[%s4263 + $0x1c9] sm:$0xff]
        %v4695 = vld [vmem:[%s4263 + $0x1d1] sm:$0xff]
        %v4696 = vld [vmem:[%s4263 + $0x1e1] sm:$0xff]
        %v4697 = vld [vmem:[%s4263 + $0x1e9] sm:$0xff]
        %v4698 = vld [vmem:[%s4263 + $0x1f1] sm:$0xff]
        %v4699 = vld [vmem:[%s4263 + $0x1f9] sm:$0xff]
        %v4700 = vld [vmem:[%s4263 + $0x209] sm:$0xff]
        %v4701 = vld [vmem:[%s4263 + $0x211] sm:$0xff]
        %v4702 = vld [vmem:[%s4263 + $0x219] sm:$0xff]
        %v4703 = vld [vmem:[%s4263 + $0x221] sm:$0xff]
        %v4704 = vld [vmem:[%s4263 + $0x231] sm:$0xff]
        %v4705 = vld [vmem:[%s4263 + $0x239] sm:$0xff]
        %v4706 = vld [vmem:[%s4263 + $0x241] sm:$0xff]
        %v4707 = vld [vmem:[%s4263 + $0x249] sm:$0xff]
        %v4708 = vld [vmem:[%s4263 + $0x259] sm:$0xff]
        %v4709 = vld [vmem:[%s4263 + $0x261] sm:$0xff]
        %v4710 = vld [vmem:[%s4263 + $0x269] sm:$0xff]
        %v4711 = vld [vmem:[%s4263 + $0x271] sm:$0xff]
        %v4712 = vld [vmem:[%s4263 + $0x281] sm:$0xff]
        %v4713 = vld [vmem:[%s4263 + $0x289] sm:$0xff]
        %v4714 = vld [vmem:[%s4263 + $0x291] sm:$0xff]
        %v4715 = vld [vmem:[%s4263 + $0x299] sm:$0xff]
        %v4716 = vld [vmem:[%s4263 + $0x2a9] sm:$0xff]
        %v4717 = vld [vmem:[%s4263 + $0x2b1] sm:$0xff]
        %v4718 = vld [vmem:[%s4263 + $0x2b9] sm:$0xff]
        %v4719 = vld [vmem:[%s4263 + $0x2c1] sm:$0xff]
        %v4720 = vld [vmem:[%s4263 + $0x2d1] sm:$0xff]
        %v4721 = vld [vmem:[%s4263 + $0x2d9] sm:$0xff]
        %v4722 = vld [vmem:[%s4263 + $0x2e1] sm:$0xff]
        %v4723 = vld [vmem:[%s4263 + $0x2e9] sm:$0xff]
        %v4724 = vld [vmem:[%s4263 + $0x2f9] sm:$0xff]
        %v4725 = vld [vmem:[%s4263 + $0x301] sm:$0xff]
        %v4726 = vld [vmem:[%s4263 + $0x309] sm:$0xff]
        %v4727 = vld [vmem:[%s4263 + $0x311] sm:$0xff]
        %v4728 = vld [vmem:[%s4263 + $0x321] sm:$0xff]
        %v4729 = vld [vmem:[%s4263 + $0x329] sm:$0xff]
        %v4730 = vld [vmem:[%s4263 + $0x331] sm:$0xff]
        %v4731 = vld [vmem:[%s4263 + $0x339] sm:$0xff]
        %v4732 = vld [vmem:[%s4263 + $0x349] sm:$0xff]
        %v4733 = vld [vmem:[%s4263 + $0x351] sm:$0xff]
        %v4734 = vld [vmem:[%s4263 + $0x359] sm:$0xff]
        %v4735 = vld [vmem:[%s4263 + $0x361] sm:$0xff]
        %v4736 = vld [vmem:[%s4263 + $0x371] sm:$0xff]
        %v4737 = vld [vmem:[%s4263 + $0x379] sm:$0xff]
        %v4738 = vld [vmem:[%s4263 + $0x381] sm:$0xff]
        %v4739 = vld [vmem:[%s4263 + $0x389] sm:$0xff]
        %v4740 = vld [vmem:[%s4263 + $0x399] sm:$0xff]
        %v4741 = vld [vmem:[%s4263 + $0x3a1] sm:$0xff]
        %v4742 = vld [vmem:[%s4263 + $0x3a9] sm:$0xff]
        %v4743 = vld [vmem:[%s4263 + $0x3b1] sm:$0xff]
        %v4744 = vld [vmem:[%s4263 + $0x3c1] sm:$0xff]
        %v4745 = vld [vmem:[%s4263 + $0x3c9] sm:$0xff]
        %v4746 = vld [vmem:[%s4263 + $0x3d1] sm:$0xff]
        %v4747 = vld [vmem:[%s4263 + $0x3d9] sm:$0xff]
        %v4748 = vld [vmem:[%s4263 + $0x3e9] sm:$0xff]
        %v4749 = vld [vmem:[%s4263 + $0x3f1] sm:$0xff]
        %v4750 = vld [vmem:[%s4263 + $0x3f9] sm:$0xff]
        %v4751 = vld [vmem:[%s4263 + $0x401] sm:$0xff]
        %v4752 = vld [vmem:[%s4263 + $0x411] sm:$0xff]
        %v4753 = vld [vmem:[%s4263 + $0x419] sm:$0xff]
        %v4754 = vld [vmem:[%s4263 + $0x421] sm:$0xff]
        %v4755 = vld [vmem:[%s4263 + $0x429] sm:$0xff]
        %v4756 = vld [vmem:[%s4263 + $0x439] sm:$0xff]
        %v4757 = vld [vmem:[%s4263 + $0x441] sm:$0xff]
        %v4758 = vld [vmem:[%s4263 + $0x449] sm:$0xff]
        %v4759 = vld [vmem:[%s4263 + $0x451] sm:$0xff]
        %v4760 = vld [vmem:[%s4263 + $0x461] sm:$0xff]
        %v4761 = vld [vmem:[%s4263 + $0x469] sm:$0xff]
        %v4762 = vld [vmem:[%s4263 + $0x471] sm:$0xff]
        %v4763 = vld [vmem:[%s4263 + $0x479] sm:$0xff]
        %v4764 = vld [vmem:[%s4263 + $0x489] sm:$0xff]
        %v4765 = vld [vmem:[%s4263 + $0x491] sm:$0xff]
        %v4766 = vld [vmem:[%s4263 + $0x499] sm:$0xff]
        %v4767 = vld [vmem:[%s4263 + $0x4a1] sm:$0xff]
        %v4768 = vld [vmem:[%s4263 + $0x4b1] sm:$0xff]
        %v4769 = vld [vmem:[%s4263 + $0x4b9] sm:$0xff]
        %v4770 = vld [vmem:[%s4263 + $0x4c1] sm:$0xff]
        %v4771 = vld [vmem:[%s4263 + $0x4c9] sm:$0xff]
        %v4772 = vld [vmem:[%s4263 + $0x4d9] sm:$0xff]
        %v4773 = vld [vmem:[%s4263 + $0x4e1] sm:$0xff]
        %v4774 = vld [vmem:[%s4263 + $0x4e9] sm:$0xff]
        %v4775 = vld [vmem:[%s4263 + $0x4f1] sm:$0xff]
        %4776 = vxpose.xlu0.b32.start [1/16] %v4648, 128
        %4777 = vxpose.xlu0.b32.cont [2/16] %v4649, 128
        %4778 = vxpose.xlu0.b32.cont [3/16] %v4650, 128
        %4779 = vxpose.xlu0.b32.cont [4/16] %v4651, 128
        %4780 = vxpose.xlu0.b32.cont [5/16] %v4652, 128
        %4781 = vxpose.xlu0.b32.cont [6/16] %v4653, 128
        %4782 = vxpose.xlu0.b32.cont [7/16] %v4654, 128
        %4783 = vxpose.xlu0.b32.cont [8/16] %v4655, 128
        %4784 = vxpose.xlu0.b32.cont [9/16] %v4656, 128
        %4785 = vxpose.xlu0.b32.cont [10/16] %v4657, 128
        %4786 = vxpose.xlu0.b32.cont [11/16] %v4658, 128
        %4787 = vxpose.xlu0.b32.cont [12/16] %v4659, 128
        %4788 = vxpose.xlu0.b32.cont [13/16] %v4660, 128
        %4789 = vxpose.xlu0.b32.cont [14/16] %v4661, 128
        %4790 = vxpose.xlu0.b32.cont [15/16] %v4662, 128
        %4791 = vxpose.xlu0.b32.end [16/16] %v4663, 128
        %v4792 = vpop.trf.xlu0
        %v4793 = vpop.trf.xlu0
        %v4794 = vpop.trf.xlu0
        %v4795 = vpop.trf.xlu0
        %v4796 = vpop.trf.xlu0
        %v4797 = vpop.trf.xlu0
        %v4798 = vpop.trf.xlu0
        %v4799 = vpop.trf.xlu0
        %v4800 = vpop.trf.xlu0
        %v4801 = vpop.trf.xlu0
        %v4802 = vpop.trf.xlu0
        %v4803 = vpop.trf.xlu0
        %v4804 = vpop.trf.xlu0
        %v4805 = vpop.trf.xlu0
        %v4806 = vpop.trf.xlu0
        %v4807 = vpop.trf.xlu0
        %4808 = vxpose.xlu0.b32.start [1/16] %v4664, 128
        %4809 = vxpose.xlu0.b32.cont [2/16] %v4665, 128
        %4810 = vxpose.xlu0.b32.cont [3/16] %v4666, 128
        %4811 = vxpose.xlu0.b32.cont [4/16] %v4667, 128
        %4812 = vxpose.xlu0.b32.cont [5/16] %v4668, 128
        %4813 = vxpose.xlu0.b32.cont [6/16] %v4669, 128
        %4814 = vxpose.xlu0.b32.cont [7/16] %v4670, 128
        %4815 = vxpose.xlu0.b32.cont [8/16] %v4671, 128
        %4816 = vxpose.xlu0.b32.cont [9/16] %v4672, 128
        %4817 = vxpose.xlu0.b32.cont [10/16] %v4673, 128
        %4818 = vxpose.xlu0.b32.cont [11/16] %v4674, 128
        %4819 = vxpose.xlu0.b32.cont [12/16] %v4675, 128
        %4820 = vxpose.xlu0.b32.cont [13/16] %v4676, 128
        %4821 = vxpose.xlu0.b32.cont [14/16] %v4677, 128
        %4822 = vxpose.xlu0.b32.cont [15/16] %v4678, 128
        %4823 = vxpose.xlu0.b32.end [16/16] %v4679, 128
        %v4824 = vpop.trf.xlu0
        %v4825 = vpop.trf.xlu0
        %v4826 = vpop.trf.xlu0
        %v4827 = vpop.trf.xlu0
        %v4828 = vpop.trf.xlu0
        %v4829 = vpop.trf.xlu0
        %v4830 = vpop.trf.xlu0
        %v4831 = vpop.trf.xlu0
        %v4832 = vpop.trf.xlu0
        %v4833 = vpop.trf.xlu0
        %v4834 = vpop.trf.xlu0
        %v4835 = vpop.trf.xlu0
        %v4836 = vpop.trf.xlu0
        %v4837 = vpop.trf.xlu0
        %v4838 = vpop.trf.xlu0
        %v4839 = vpop.trf.xlu0
        %4840 = vxpose.xlu0.b32.start [1/16] %v4680, 128
        %4841 = vxpose.xlu0.b32.cont [2/16] %v4681, 128
        %4842 = vxpose.xlu0.b32.cont [3/16] %v4682, 128
        %4843 = vxpose.xlu0.b32.cont [4/16] %v4683, 128
        %4844 = vxpose.xlu0.b32.cont [5/16] %v4684, 128
        %4845 = vxpose.xlu0.b32.cont [6/16] %v4685, 128
        %4846 = vxpose.xlu0.b32.cont [7/16] %v4686, 128
        %4847 = vxpose.xlu0.b32.cont [8/16] %v4687, 128
        %4848 = vxpose.xlu0.b32.cont [9/16] %v4688, 128
        %4849 = vxpose.xlu0.b32.cont [10/16] %v4689, 128
        %4850 = vxpose.xlu0.b32.cont [11/16] %v4690, 128
        %4851 = vxpose.xlu0.b32.cont [12/16] %v4691, 128
        %4852 = vxpose.xlu0.b32.cont [13/16] %v4692, 128
        %4853 = vxpose.xlu0.b32.cont [14/16] %v4693, 128
        %4854 = vxpose.xlu0.b32.cont [15/16] %v4694, 128
        %4855 = vxpose.xlu0.b32.end [16/16] %v4695, 128
        %v4856 = vpop.trf.xlu0
        %v4857 = vpop.trf.xlu0
        %v4858 = vpop.trf.xlu0
        %v4859 = vpop.trf.xlu0
        %v4860 = vpop.trf.xlu0
        %v4861 = vpop.trf.xlu0
        %v4862 = vpop.trf.xlu0
        %v4863 = vpop.trf.xlu0
        %v4864 = vpop.trf.xlu0
        %v4865 = vpop.trf.xlu0
        %v4866 = vpop.trf.xlu0
        %v4867 = vpop.trf.xlu0
        %v4868 = vpop.trf.xlu0
        %v4869 = vpop.trf.xlu0
        %v4870 = vpop.trf.xlu0
        %v4871 = vpop.trf.xlu0
        %4872 = vxpose.xlu0.b32.start [1/16] %v4696, 128
        %4873 = vxpose.xlu0.b32.cont [2/16] %v4697, 128
        %4874 = vxpose.xlu0.b32.cont [3/16] %v4698, 128
        %4875 = vxpose.xlu0.b32.cont [4/16] %v4699, 128
        %4876 = vxpose.xlu0.b32.cont [5/16] %v4700, 128
        %4877 = vxpose.xlu0.b32.cont [6/16] %v4701, 128
        %4878 = vxpose.xlu0.b32.cont [7/16] %v4702, 128
        %4879 = vxpose.xlu0.b32.cont [8/16] %v4703, 128
        %4880 = vxpose.xlu0.b32.cont [9/16] %v4704, 128
        %4881 = vxpose.xlu0.b32.cont [10/16] %v4705, 128
        %4882 = vxpose.xlu0.b32.cont [11/16] %v4706, 128
        %4883 = vxpose.xlu0.b32.cont [12/16] %v4707, 128
        %4884 = vxpose.xlu0.b32.cont [13/16] %v4708, 128
        %4885 = vxpose.xlu0.b32.cont [14/16] %v4709, 128
        %4886 = vxpose.xlu0.b32.cont [15/16] %v4710, 128
        %4887 = vxpose.xlu0.b32.end [16/16] %v4711, 128
        %v4888 = vpop.trf.xlu0
        %v4889 = vpop.trf.xlu0
        %v4890 = vpop.trf.xlu0
        %v4891 = vpop.trf.xlu0
        %v4892 = vpop.trf.xlu0
        %v4893 = vpop.trf.xlu0
        %v4894 = vpop.trf.xlu0
        %v4895 = vpop.trf.xlu0
        %v4896 = vpop.trf.xlu0
        %v4897 = vpop.trf.xlu0
        %v4898 = vpop.trf.xlu0
        %v4899 = vpop.trf.xlu0
        %v4900 = vpop.trf.xlu0
        %v4901 = vpop.trf.xlu0
        %v4902 = vpop.trf.xlu0
        %v4903 = vpop.trf.xlu0
        %4904 = vxpose.xlu0.b32.start [1/16] %v4712, 128
        %4905 = vxpose.xlu0.b32.cont [2/16] %v4713, 128
        %4906 = vxpose.xlu0.b32.cont [3/16] %v4714, 128
        %4907 = vxpose.xlu0.b32.cont [4/16] %v4715, 128
        %4908 = vxpose.xlu0.b32.cont [5/16] %v4716, 128
        %4909 = vxpose.xlu0.b32.cont [6/16] %v4717, 128
        %4910 = vxpose.xlu0.b32.cont [7/16] %v4718, 128
        %4911 = vxpose.xlu0.b32.cont [8/16] %v4719, 128
        %4912 = vxpose.xlu0.b32.cont [9/16] %v4720, 128
        %4913 = vxpose.xlu0.b32.cont [10/16] %v4721, 128
        %4914 = vxpose.xlu0.b32.cont [11/16] %v4722, 128
        %4915 = vxpose.xlu0.b32.cont [12/16] %v4723, 128
        %4916 = vxpose.xlu0.b32.cont [13/16] %v4724, 128
        %4917 = vxpose.xlu0.b32.cont [14/16] %v4725, 128
        %4918 = vxpose.xlu0.b32.cont [15/16] %v4726, 128
        %4919 = vxpose.xlu0.b32.end [16/16] %v4727, 128
        %v4920 = vpop.trf.xlu0
        %v4921 = vpop.trf.xlu0
        %v4922 = vpop.trf.xlu0
        %v4923 = vpop.trf.xlu0
        %v4924 = vpop.trf.xlu0
        %v4925 = vpop.trf.xlu0
        %v4926 = vpop.trf.xlu0
        %v4927 = vpop.trf.xlu0
        %v4928 = vpop.trf.xlu0
        %v4929 = vpop.trf.xlu0
        %v4930 = vpop.trf.xlu0
        %v4931 = vpop.trf.xlu0
        %v4932 = vpop.trf.xlu0
        %v4933 = vpop.trf.xlu0
        %v4934 = vpop.trf.xlu0
        %v4935 = vpop.trf.xlu0
        %4936 = vxpose.xlu0.b32.start [1/16] %v4728, 128
        %4937 = vxpose.xlu0.b32.cont [2/16] %v4729, 128
        %4938 = vxpose.xlu0.b32.cont [3/16] %v4730, 128
        %4939 = vxpose.xlu0.b32.cont [4/16] %v4731, 128
        %4940 = vxpose.xlu0.b32.cont [5/16] %v4732, 128
        %4941 = vxpose.xlu0.b32.cont [6/16] %v4733, 128
        %4942 = vxpose.xlu0.b32.cont [7/16] %v4734, 128
        %4943 = vxpose.xlu0.b32.cont [8/16] %v4735, 128
        %4944 = vxpose.xlu0.b32.cont [9/16] %v4736, 128
        %4945 = vxpose.xlu0.b32.cont [10/16] %v4737, 128
        %4946 = vxpose.xlu0.b32.cont [11/16] %v4738, 128
        %4947 = vxpose.xlu0.b32.cont [12/16] %v4739, 128
        %4948 = vxpose.xlu0.b32.cont [13/16] %v4740, 128
        %4949 = vxpose.xlu0.b32.cont [14/16] %v4741, 128
        %4950 = vxpose.xlu0.b32.cont [15/16] %v4742, 128
        %4951 = vxpose.xlu0.b32.end [16/16] %v4743, 128
        %v4952 = vpop.trf.xlu0
        %v4953 = vpop.trf.xlu0
        %v4954 = vpop.trf.xlu0
        %v4955 = vpop.trf.xlu0
        %v4956 = vpop.trf.xlu0
        %v4957 = vpop.trf.xlu0
        %v4958 = vpop.trf.xlu0
        %v4959 = vpop.trf.xlu0
        %v4960 = vpop.trf.xlu0
        %v4961 = vpop.trf.xlu0
        %v4962 = vpop.trf.xlu0
        %v4963 = vpop.trf.xlu0
        %v4964 = vpop.trf.xlu0
        %v4965 = vpop.trf.xlu0
        %v4966 = vpop.trf.xlu0
        %v4967 = vpop.trf.xlu0
        %4968 = vxpose.xlu0.b32.start [1/16] %v4744, 128
        %4969 = vxpose.xlu0.b32.cont [2/16] %v4745, 128
        %4970 = vxpose.xlu0.b32.cont [3/16] %v4746, 128
        %4971 = vxpose.xlu0.b32.cont [4/16] %v4747, 128
        %4972 = vxpose.xlu0.b32.cont [5/16] %v4748, 128
        %4973 = vxpose.xlu0.b32.cont [6/16] %v4749, 128
        %4974 = vxpose.xlu0.b32.cont [7/16] %v4750, 128
        %4975 = vxpose.xlu0.b32.cont [8/16] %v4751, 128
        %4976 = vxpose.xlu0.b32.cont [9/16] %v4752, 128
        %4977 = vxpose.xlu0.b32.cont [10/16] %v4753, 128
        %4978 = vxpose.xlu0.b32.cont [11/16] %v4754, 128
        %4979 = vxpose.xlu0.b32.cont [12/16] %v4755, 128
        %4980 = vxpose.xlu0.b32.cont [13/16] %v4756, 128
        %4981 = vxpose.xlu0.b32.cont [14/16] %v4757, 128
        %4982 = vxpose.xlu0.b32.cont [15/16] %v4758, 128
        %4983 = vxpose.xlu0.b32.end [16/16] %v4759, 128
        %v4984 = vpop.trf.xlu0
        %v4985 = vpop.trf.xlu0
        %v4986 = vpop.trf.xlu0
        %v4987 = vpop.trf.xlu0
        %v4988 = vpop.trf.xlu0
        %v4989 = vpop.trf.xlu0
        %v4990 = vpop.trf.xlu0
        %v4991 = vpop.trf.xlu0
        %v4992 = vpop.trf.xlu0
        %v4993 = vpop.trf.xlu0
        %v4994 = vpop.trf.xlu0
        %v4995 = vpop.trf.xlu0
        %v4996 = vpop.trf.xlu0
        %v4997 = vpop.trf.xlu0
        %v4998 = vpop.trf.xlu0
        %v4999 = vpop.trf.xlu0
        %5000 = vxpose.xlu0.b32.start [1/16] %v4760, 128
        %5001 = vxpose.xlu0.b32.cont [2/16] %v4761, 128
        %5002 = vxpose.xlu0.b32.cont [3/16] %v4762, 128
        %5003 = vxpose.xlu0.b32.cont [4/16] %v4763, 128
        %5004 = vxpose.xlu0.b32.cont [5/16] %v4764, 128
        %5005 = vxpose.xlu0.b32.cont [6/16] %v4765, 128
        %5006 = vxpose.xlu0.b32.cont [7/16] %v4766, 128
        %5007 = vxpose.xlu0.b32.cont [8/16] %v4767, 128
        %5008 = vxpose.xlu0.b32.cont [9/16] %v4768, 128
        %5009 = vxpose.xlu0.b32.cont [10/16] %v4769, 128
        %5010 = vxpose.xlu0.b32.cont [11/16] %v4770, 128
        %5011 = vxpose.xlu0.b32.cont [12/16] %v4771, 128
        %5012 = vxpose.xlu0.b32.cont [13/16] %v4772, 128
        %5013 = vxpose.xlu0.b32.cont [14/16] %v4773, 128
        %5014 = vxpose.xlu0.b32.cont [15/16] %v4774, 128
        %5015 = vxpose.xlu0.b32.end [16/16] %v4775, 128
        %v5016 = vpop.trf.xlu0
        %v5017 = vpop.trf.xlu0
        %v5018 = vpop.trf.xlu0
        %v5019 = vpop.trf.xlu0
        %v5020 = vpop.trf.xlu0
        %v5021 = vpop.trf.xlu0
        %v5022 = vpop.trf.xlu0
        %v5023 = vpop.trf.xlu0
        %v5024 = vpop.trf.xlu0
        %v5025 = vpop.trf.xlu0
        %v5026 = vpop.trf.xlu0
        %v5027 = vpop.trf.xlu0
        %v5028 = vpop.trf.xlu0
        %v5029 = vpop.trf.xlu0
        %v5030 = vpop.trf.xlu0
        %v5031 = vpop.trf.xlu0
        %v5032 = vld [vmem:[%s4263 + $0x2] sm:$0xff]
        %v5033 = vld [vmem:[%s4263 + $0xa] sm:$0xff]
        %v5034 = vld [vmem:[%s4263 + $0x12] sm:$0xff]
        %v5035 = vld [vmem:[%s4263 + $0x1a] sm:$0xff]
        %v5036 = vld [vmem:[%s4263 + $0x2a] sm:$0xff]
        %v5037 = vld [vmem:[%s4263 + $0x32] sm:$0xff]
        %v5038 = vld [vmem:[%s4263 + $0x3a] sm:$0xff]
        %v5039 = vld [vmem:[%s4263 + $0x42] sm:$0xff]
        %v5040 = vld [vmem:[%s4263 + $0x52] sm:$0xff]
        %v5041 = vld [vmem:[%s4263 + $0x5a] sm:$0xff]
        %v5042 = vld [vmem:[%s4263 + $0x62] sm:$0xff]
        %v5043 = vld [vmem:[%s4263 + $0x6a] sm:$0xff]
        %v5044 = vld [vmem:[%s4263 + $0x7a] sm:$0xff]
        %v5045 = vld [vmem:[%s4263 + $0x82] sm:$0xff]
        %v5046 = vld [vmem:[%s4263 + $0x8a] sm:$0xff]
        %v5047 = vld [vmem:[%s4263 + $0x92] sm:$0xff]
        %v5048 = vld [vmem:[%s4263 + $0xa2] sm:$0xff]
        %v5049 = vld [vmem:[%s4263 + $0xaa] sm:$0xff]
        %v5050 = vld [vmem:[%s4263 + $0xb2] sm:$0xff]
        %v5051 = vld [vmem:[%s4263 + $0xba] sm:$0xff]
        %v5052 = vld [vmem:[%s4263 + $0xca] sm:$0xff]
        %v5053 = vld [vmem:[%s4263 + $0xd2] sm:$0xff]
        %v5054 = vld [vmem:[%s4263 + $0xda] sm:$0xff]
        %v5055 = vld [vmem:[%s4263 + $0xe2] sm:$0xff]
        %v5056 = vld [vmem:[%s4263 + $0xf2] sm:$0xff]
        %v5057 = vld [vmem:[%s4263 + $0xfa] sm:$0xff]
        %v5058 = vld [vmem:[%s4263 + $0x102] sm:$0xff]
        %v5059 = vld [vmem:[%s4263 + $0x10a] sm:$0xff]
        %v5060 = vld [vmem:[%s4263 + $0x11a] sm:$0xff]
        %v5061 = vld [vmem:[%s4263 + $0x122] sm:$0xff]
        %v5062 = vld [vmem:[%s4263 + $0x12a] sm:$0xff]
        %v5063 = vld [vmem:[%s4263 + $0x132] sm:$0xff]
        %v5064 = vld [vmem:[%s4263 + $0x142] sm:$0xff]
        %v5065 = vld [vmem:[%s4263 + $0x14a] sm:$0xff]
        %v5066 = vld [vmem:[%s4263 + $0x152] sm:$0xff]
        %v5067 = vld [vmem:[%s4263 + $0x15a] sm:$0xff]
        %v5068 = vld [vmem:[%s4263 + $0x16a] sm:$0xff]
        %v5069 = vld [vmem:[%s4263 + $0x172] sm:$0xff]
        %v5070 = vld [vmem:[%s4263 + $0x17a] sm:$0xff]
        %v5071 = vld [vmem:[%s4263 + $0x182] sm:$0xff]
        %v5072 = vld [vmem:[%s4263 + $0x192] sm:$0xff]
        %v5073 = vld [vmem:[%s4263 + $0x19a] sm:$0xff]
        %v5074 = vld [vmem:[%s4263 + $0x1a2] sm:$0xff]
        %v5075 = vld [vmem:[%s4263 + $0x1aa] sm:$0xff]
        %v5076 = vld [vmem:[%s4263 + $0x1ba] sm:$0xff]
        %v5077 = vld [vmem:[%s4263 + $0x1c2] sm:$0xff]
        %v5078 = vld [vmem:[%s4263 + $0x1ca] sm:$0xff]
        %v5079 = vld [vmem:[%s4263 + $0x1d2] sm:$0xff]
        %v5080 = vld [vmem:[%s4263 + $0x1e2] sm:$0xff]
        %v5081 = vld [vmem:[%s4263 + $0x1ea] sm:$0xff]
        %v5082 = vld [vmem:[%s4263 + $0x1f2] sm:$0xff]
        %v5083 = vld [vmem:[%s4263 + $0x1fa] sm:$0xff]
        %v5084 = vld [vmem:[%s4263 + $0x20a] sm:$0xff]
        %v5085 = vld [vmem:[%s4263 + $0x212] sm:$0xff]
        %v5086 = vld [vmem:[%s4263 + $0x21a] sm:$0xff]
        %v5087 = vld [vmem:[%s4263 + $0x222] sm:$0xff]
        %v5088 = vld [vmem:[%s4263 + $0x232] sm:$0xff]
        %v5089 = vld [vmem:[%s4263 + $0x23a] sm:$0xff]
        %v5090 = vld [vmem:[%s4263 + $0x242] sm:$0xff]
        %v5091 = vld [vmem:[%s4263 + $0x24a] sm:$0xff]
        %v5092 = vld [vmem:[%s4263 + $0x25a] sm:$0xff]
        %v5093 = vld [vmem:[%s4263 + $0x262] sm:$0xff]
        %v5094 = vld [vmem:[%s4263 + $0x26a] sm:$0xff]
        %v5095 = vld [vmem:[%s4263 + $0x272] sm:$0xff]
        %v5096 = vld [vmem:[%s4263 + $0x282] sm:$0xff]
        %v5097 = vld [vmem:[%s4263 + $0x28a] sm:$0xff]
        %v5098 = vld [vmem:[%s4263 + $0x292] sm:$0xff]
        %v5099 = vld [vmem:[%s4263 + $0x29a] sm:$0xff]
        %v5100 = vld [vmem:[%s4263 + $0x2aa] sm:$0xff]
        %v5101 = vld [vmem:[%s4263 + $0x2b2] sm:$0xff]
        %v5102 = vld [vmem:[%s4263 + $0x2ba] sm:$0xff]
        %v5103 = vld [vmem:[%s4263 + $0x2c2] sm:$0xff]
        %v5104 = vld [vmem:[%s4263 + $0x2d2] sm:$0xff]
        %v5105 = vld [vmem:[%s4263 + $0x2da] sm:$0xff]
        %v5106 = vld [vmem:[%s4263 + $0x2e2] sm:$0xff]
        %v5107 = vld [vmem:[%s4263 + $0x2ea] sm:$0xff]
        %v5108 = vld [vmem:[%s4263 + $0x2fa] sm:$0xff]
        %v5109 = vld [vmem:[%s4263 + $0x302] sm:$0xff]
        %v5110 = vld [vmem:[%s4263 + $0x30a] sm:$0xff]
        %v5111 = vld [vmem:[%s4263 + $0x312] sm:$0xff]
        %v5112 = vld [vmem:[%s4263 + $0x322] sm:$0xff]
        %v5113 = vld [vmem:[%s4263 + $0x32a] sm:$0xff]
        %v5114 = vld [vmem:[%s4263 + $0x332] sm:$0xff]
        %v5115 = vld [vmem:[%s4263 + $0x33a] sm:$0xff]
        %v5116 = vld [vmem:[%s4263 + $0x34a] sm:$0xff]
        %v5117 = vld [vmem:[%s4263 + $0x352] sm:$0xff]
        %v5118 = vld [vmem:[%s4263 + $0x35a] sm:$0xff]
        %v5119 = vld [vmem:[%s4263 + $0x362] sm:$0xff]
        %v5120 = vld [vmem:[%s4263 + $0x372] sm:$0xff]
        %v5121 = vld [vmem:[%s4263 + $0x37a] sm:$0xff]
        %v5122 = vld [vmem:[%s4263 + $0x382] sm:$0xff]
        %v5123 = vld [vmem:[%s4263 + $0x38a] sm:$0xff]
        %v5124 = vld [vmem:[%s4263 + $0x39a] sm:$0xff]
        %v5125 = vld [vmem:[%s4263 + $0x3a2] sm:$0xff]
        %v5126 = vld [vmem:[%s4263 + $0x3aa] sm:$0xff]
        %v5127 = vld [vmem:[%s4263 + $0x3b2] sm:$0xff]
        %v5128 = vld [vmem:[%s4263 + $0x3c2] sm:$0xff]
        %v5129 = vld [vmem:[%s4263 + $0x3ca] sm:$0xff]
        %v5130 = vld [vmem:[%s4263 + $0x3d2] sm:$0xff]
        %v5131 = vld [vmem:[%s4263 + $0x3da] sm:$0xff]
        %v5132 = vld [vmem:[%s4263 + $0x3ea] sm:$0xff]
        %v5133 = vld [vmem:[%s4263 + $0x3f2] sm:$0xff]
        %v5134 = vld [vmem:[%s4263 + $0x3fa] sm:$0xff]
        %v5135 = vld [vmem:[%s4263 + $0x402] sm:$0xff]
        %v5136 = vld [vmem:[%s4263 + $0x412] sm:$0xff]
        %v5137 = vld [vmem:[%s4263 + $0x41a] sm:$0xff]
        %v5138 = vld [vmem:[%s4263 + $0x422] sm:$0xff]
        %v5139 = vld [vmem:[%s4263 + $0x42a] sm:$0xff]
        %v5140 = vld [vmem:[%s4263 + $0x43a] sm:$0xff]
        %v5141 = vld [vmem:[%s4263 + $0x442] sm:$0xff]
        %v5142 = vld [vmem:[%s4263 + $0x44a] sm:$0xff]
        %v5143 = vld [vmem:[%s4263 + $0x452] sm:$0xff]
        %v5144 = vld [vmem:[%s4263 + $0x462] sm:$0xff]
        %v5145 = vld [vmem:[%s4263 + $0x46a] sm:$0xff]
        %v5146 = vld [vmem:[%s4263 + $0x472] sm:$0xff]
        %v5147 = vld [vmem:[%s4263 + $0x47a] sm:$0xff]
        %v5148 = vld [vmem:[%s4263 + $0x48a] sm:$0xff]
        %v5149 = vld [vmem:[%s4263 + $0x492] sm:$0xff]
        %v5150 = vld [vmem:[%s4263 + $0x49a] sm:$0xff]
        %v5151 = vld [vmem:[%s4263 + $0x4a2] sm:$0xff]
        %v5152 = vld [vmem:[%s4263 + $0x4b2] sm:$0xff]
        %v5153 = vld [vmem:[%s4263 + $0x4ba] sm:$0xff]
        %v5154 = vld [vmem:[%s4263 + $0x4c2] sm:$0xff]
        %v5155 = vld [vmem:[%s4263 + $0x4ca] sm:$0xff]
        %v5156 = vld [vmem:[%s4263 + $0x4da] sm:$0xff]
        %v5157 = vld [vmem:[%s4263 + $0x4e2] sm:$0xff]
        %v5158 = vld [vmem:[%s4263 + $0x4ea] sm:$0xff]
        %v5159 = vld [vmem:[%s4263 + $0x4f2] sm:$0xff]
        %5160 = vxpose.xlu0.b32.start [1/16] %v5032, 128
        %5161 = vxpose.xlu0.b32.cont [2/16] %v5033, 128
        %5162 = vxpose.xlu0.b32.cont [3/16] %v5034, 128
        %5163 = vxpose.xlu0.b32.cont [4/16] %v5035, 128
        %5164 = vxpose.xlu0.b32.cont [5/16] %v5036, 128
        %5165 = vxpose.xlu0.b32.cont [6/16] %v5037, 128
        %5166 = vxpose.xlu0.b32.cont [7/16] %v5038, 128
        %5167 = vxpose.xlu0.b32.cont [8/16] %v5039, 128
        %5168 = vxpose.xlu0.b32.cont [9/16] %v5040, 128
        %5169 = vxpose.xlu0.b32.cont [10/16] %v5041, 128
        %5170 = vxpose.xlu0.b32.cont [11/16] %v5042, 128
        %5171 = vxpose.xlu0.b32.cont [12/16] %v5043, 128
        %5172 = vxpose.xlu0.b32.cont [13/16] %v5044, 128
        %5173 = vxpose.xlu0.b32.cont [14/16] %v5045, 128
        %5174 = vxpose.xlu0.b32.cont [15/16] %v5046, 128
        %5175 = vxpose.xlu0.b32.end [16/16] %v5047, 128
        %v5176 = vpop.trf.xlu0
        %v5177 = vpop.trf.xlu0
        %v5178 = vpop.trf.xlu0
        %v5179 = vpop.trf.xlu0
        %v5180 = vpop.trf.xlu0
        %v5181 = vpop.trf.xlu0
        %v5182 = vpop.trf.xlu0
        %v5183 = vpop.trf.xlu0
        %v5184 = vpop.trf.xlu0
        %v5185 = vpop.trf.xlu0
        %v5186 = vpop.trf.xlu0
        %v5187 = vpop.trf.xlu0
        %v5188 = vpop.trf.xlu0
        %v5189 = vpop.trf.xlu0
        %v5190 = vpop.trf.xlu0
        %v5191 = vpop.trf.xlu0
        %5192 = vxpose.xlu0.b32.start [1/16] %v5048, 128
        %5193 = vxpose.xlu0.b32.cont [2/16] %v5049, 128
        %5194 = vxpose.xlu0.b32.cont [3/16] %v5050, 128
        %5195 = vxpose.xlu0.b32.cont [4/16] %v5051, 128
        %5196 = vxpose.xlu0.b32.cont [5/16] %v5052, 128
        %5197 = vxpose.xlu0.b32.cont [6/16] %v5053, 128
        %5198 = vxpose.xlu0.b32.cont [7/16] %v5054, 128
        %5199 = vxpose.xlu0.b32.cont [8/16] %v5055, 128
        %5200 = vxpose.xlu0.b32.cont [9/16] %v5056, 128
        %5201 = vxpose.xlu0.b32.cont [10/16] %v5057, 128
        %5202 = vxpose.xlu0.b32.cont [11/16] %v5058, 128
        %5203 = vxpose.xlu0.b32.cont [12/16] %v5059, 128
        %5204 = vxpose.xlu0.b32.cont [13/16] %v5060, 128
        %5205 = vxpose.xlu0.b32.cont [14/16] %v5061, 128
        %5206 = vxpose.xlu0.b32.cont [15/16] %v5062, 128
        %5207 = vxpose.xlu0.b32.end [16/16] %v5063, 128
        %v5208 = vpop.trf.xlu0
        %v5209 = vpop.trf.xlu0
        %v5210 = vpop.trf.xlu0
        %v5211 = vpop.trf.xlu0
        %v5212 = vpop.trf.xlu0
        %v5213 = vpop.trf.xlu0
        %v5214 = vpop.trf.xlu0
        %v5215 = vpop.trf.xlu0
        %v5216 = vpop.trf.xlu0
        %v5217 = vpop.trf.xlu0
        %v5218 = vpop.trf.xlu0
        %v5219 = vpop.trf.xlu0
        %v5220 = vpop.trf.xlu0
        %v5221 = vpop.trf.xlu0
        %v5222 = vpop.trf.xlu0
        %v5223 = vpop.trf.xlu0
        %5224 = vxpose.xlu0.b32.start [1/16] %v5064, 128
        %5225 = vxpose.xlu0.b32.cont [2/16] %v5065, 128
        %5226 = vxpose.xlu0.b32.cont [3/16] %v5066, 128
        %5227 = vxpose.xlu0.b32.cont [4/16] %v5067, 128
        %5228 = vxpose.xlu0.b32.cont [5/16] %v5068, 128
        %5229 = vxpose.xlu0.b32.cont [6/16] %v5069, 128
        %5230 = vxpose.xlu0.b32.cont [7/16] %v5070, 128
        %5231 = vxpose.xlu0.b32.cont [8/16] %v5071, 128
        %5232 = vxpose.xlu0.b32.cont [9/16] %v5072, 128
        %5233 = vxpose.xlu0.b32.cont [10/16] %v5073, 128
        %5234 = vxpose.xlu0.b32.cont [11/16] %v5074, 128
        %5235 = vxpose.xlu0.b32.cont [12/16] %v5075, 128
        %5236 = vxpose.xlu0.b32.cont [13/16] %v5076, 128
        %5237 = vxpose.xlu0.b32.cont [14/16] %v5077, 128
        %5238 = vxpose.xlu0.b32.cont [15/16] %v5078, 128
        %5239 = vxpose.xlu0.b32.end [16/16] %v5079, 128
        %v5240 = vpop.trf.xlu0
        %v5241 = vpop.trf.xlu0
        %v5242 = vpop.trf.xlu0
        %v5243 = vpop.trf.xlu0
        %v5244 = vpop.trf.xlu0
        %v5245 = vpop.trf.xlu0
        %v5246 = vpop.trf.xlu0
        %v5247 = vpop.trf.xlu0
        %v5248 = vpop.trf.xlu0
        %v5249 = vpop.trf.xlu0
        %v5250 = vpop.trf.xlu0
        %v5251 = vpop.trf.xlu0
        %v5252 = vpop.trf.xlu0
        %v5253 = vpop.trf.xlu0
        %v5254 = vpop.trf.xlu0
        %v5255 = vpop.trf.xlu0
        %5256 = vxpose.xlu0.b32.start [1/16] %v5080, 128
        %5257 = vxpose.xlu0.b32.cont [2/16] %v5081, 128
        %5258 = vxpose.xlu0.b32.cont [3/16] %v5082, 128
        %5259 = vxpose.xlu0.b32.cont [4/16] %v5083, 128
        %5260 = vxpose.xlu0.b32.cont [5/16] %v5084, 128
        %5261 = vxpose.xlu0.b32.cont [6/16] %v5085, 128
        %5262 = vxpose.xlu0.b32.cont [7/16] %v5086, 128
        %5263 = vxpose.xlu0.b32.cont [8/16] %v5087, 128
        %5264 = vxpose.xlu0.b32.cont [9/16] %v5088, 128
        %5265 = vxpose.xlu0.b32.cont [10/16] %v5089, 128
        %5266 = vxpose.xlu0.b32.cont [11/16] %v5090, 128
        %5267 = vxpose.xlu0.b32.cont [12/16] %v5091, 128
        %5268 = vxpose.xlu0.b32.cont [13/16] %v5092, 128
        %5269 = vxpose.xlu0.b32.cont [14/16] %v5093, 128
        %5270 = vxpose.xlu0.b32.cont [15/16] %v5094, 128
        %5271 = vxpose.xlu0.b32.end [16/16] %v5095, 128
        %v5272 = vpop.trf.xlu0
        %v5273 = vpop.trf.xlu0
        %v5274 = vpop.trf.xlu0
        %v5275 = vpop.trf.xlu0
        %v5276 = vpop.trf.xlu0
        %v5277 = vpop.trf.xlu0
        %v5278 = vpop.trf.xlu0
        %v5279 = vpop.trf.xlu0
        %v5280 = vpop.trf.xlu0
        %v5281 = vpop.trf.xlu0
        %v5282 = vpop.trf.xlu0
        %v5283 = vpop.trf.xlu0
        %v5284 = vpop.trf.xlu0
        %v5285 = vpop.trf.xlu0
        %v5286 = vpop.trf.xlu0
        %v5287 = vpop.trf.xlu0
        %5288 = vxpose.xlu0.b32.start [1/16] %v5096, 128
        %5289 = vxpose.xlu0.b32.cont [2/16] %v5097, 128
        %5290 = vxpose.xlu0.b32.cont [3/16] %v5098, 128
        %5291 = vxpose.xlu0.b32.cont [4/16] %v5099, 128
        %5292 = vxpose.xlu0.b32.cont [5/16] %v5100, 128
        %5293 = vxpose.xlu0.b32.cont [6/16] %v5101, 128
        %5294 = vxpose.xlu0.b32.cont [7/16] %v5102, 128
        %5295 = vxpose.xlu0.b32.cont [8/16] %v5103, 128
        %5296 = vxpose.xlu0.b32.cont [9/16] %v5104, 128
        %5297 = vxpose.xlu0.b32.cont [10/16] %v5105, 128
        %5298 = vxpose.xlu0.b32.cont [11/16] %v5106, 128
        %5299 = vxpose.xlu0.b32.cont [12/16] %v5107, 128
        %5300 = vxpose.xlu0.b32.cont [13/16] %v5108, 128
        %5301 = vxpose.xlu0.b32.cont [14/16] %v5109, 128
        %5302 = vxpose.xlu0.b32.cont [15/16] %v5110, 128
        %5303 = vxpose.xlu0.b32.end [16/16] %v5111, 128
        %v5304 = vpop.trf.xlu0
        %v5305 = vpop.trf.xlu0
        %v5306 = vpop.trf.xlu0
        %v5307 = vpop.trf.xlu0
        %v5308 = vpop.trf.xlu0
        %v5309 = vpop.trf.xlu0
        %v5310 = vpop.trf.xlu0
        %v5311 = vpop.trf.xlu0
        %v5312 = vpop.trf.xlu0
        %v5313 = vpop.trf.xlu0
        %v5314 = vpop.trf.xlu0
        %v5315 = vpop.trf.xlu0
        %v5316 = vpop.trf.xlu0
        %v5317 = vpop.trf.xlu0
        %v5318 = vpop.trf.xlu0
        %v5319 = vpop.trf.xlu0
        %5320 = vxpose.xlu0.b32.start [1/16] %v5112, 128
        %5321 = vxpose.xlu0.b32.cont [2/16] %v5113, 128
        %5322 = vxpose.xlu0.b32.cont [3/16] %v5114, 128
        %5323 = vxpose.xlu0.b32.cont [4/16] %v5115, 128
        %5324 = vxpose.xlu0.b32.cont [5/16] %v5116, 128
        %5325 = vxpose.xlu0.b32.cont [6/16] %v5117, 128
        %5326 = vxpose.xlu0.b32.cont [7/16] %v5118, 128
        %5327 = vxpose.xlu0.b32.cont [8/16] %v5119, 128
        %5328 = vxpose.xlu0.b32.cont [9/16] %v5120, 128
        %5329 = vxpose.xlu0.b32.cont [10/16] %v5121, 128
        %5330 = vxpose.xlu0.b32.cont [11/16] %v5122, 128
        %5331 = vxpose.xlu0.b32.cont [12/16] %v5123, 128
        %5332 = vxpose.xlu0.b32.cont [13/16] %v5124, 128
        %5333 = vxpose.xlu0.b32.cont [14/16] %v5125, 128
        %5334 = vxpose.xlu0.b32.cont [15/16] %v5126, 128
        %5335 = vxpose.xlu0.b32.end [16/16] %v5127, 128
        %v5336 = vpop.trf.xlu0
        %v5337 = vpop.trf.xlu0
        %v5338 = vpop.trf.xlu0
        %v5339 = vpop.trf.xlu0
        %v5340 = vpop.trf.xlu0
        %v5341 = vpop.trf.xlu0
        %v5342 = vpop.trf.xlu0
        %v5343 = vpop.trf.xlu0
        %v5344 = vpop.trf.xlu0
        %v5345 = vpop.trf.xlu0
        %v5346 = vpop.trf.xlu0
        %v5347 = vpop.trf.xlu0
        %v5348 = vpop.trf.xlu0
        %v5349 = vpop.trf.xlu0
        %v5350 = vpop.trf.xlu0
        %v5351 = vpop.trf.xlu0
        %5352 = vxpose.xlu0.b32.start [1/16] %v5128, 128
        %5353 = vxpose.xlu0.b32.cont [2/16] %v5129, 128
        %5354 = vxpose.xlu0.b32.cont [3/16] %v5130, 128
        %5355 = vxpose.xlu0.b32.cont [4/16] %v5131, 128
        %5356 = vxpose.xlu0.b32.cont [5/16] %v5132, 128
        %5357 = vxpose.xlu0.b32.cont [6/16] %v5133, 128
        %5358 = vxpose.xlu0.b32.cont [7/16] %v5134, 128
        %5359 = vxpose.xlu0.b32.cont [8/16] %v5135, 128
        %5360 = vxpose.xlu0.b32.cont [9/16] %v5136, 128
        %5361 = vxpose.xlu0.b32.cont [10/16] %v5137, 128
        %5362 = vxpose.xlu0.b32.cont [11/16] %v5138, 128
        %5363 = vxpose.xlu0.b32.cont [12/16] %v5139, 128
        %5364 = vxpose.xlu0.b32.cont [13/16] %v5140, 128
        %5365 = vxpose.xlu0.b32.cont [14/16] %v5141, 128
        %5366 = vxpose.xlu0.b32.cont [15/16] %v5142, 128
        %5367 = vxpose.xlu0.b32.end [16/16] %v5143, 128
        %v5368 = vpop.trf.xlu0
        %v5369 = vpop.trf.xlu0
        %v5370 = vpop.trf.xlu0
        %v5371 = vpop.trf.xlu0
        %v5372 = vpop.trf.xlu0
        %v5373 = vpop.trf.xlu0
        %v5374 = vpop.trf.xlu0
        %v5375 = vpop.trf.xlu0
        %v5376 = vpop.trf.xlu0
        %v5377 = vpop.trf.xlu0
        %v5378 = vpop.trf.xlu0
        %v5379 = vpop.trf.xlu0
        %v5380 = vpop.trf.xlu0
        %v5381 = vpop.trf.xlu0
        %v5382 = vpop.trf.xlu0
        %v5383 = vpop.trf.xlu0
        %5384 = vxpose.xlu0.b32.start [1/16] %v5144, 128
        %5385 = vxpose.xlu0.b32.cont [2/16] %v5145, 128
        %5386 = vxpose.xlu0.b32.cont [3/16] %v5146, 128
        %5387 = vxpose.xlu0.b32.cont [4/16] %v5147, 128
        %5388 = vxpose.xlu0.b32.cont [5/16] %v5148, 128
        %5389 = vxpose.xlu0.b32.cont [6/16] %v5149, 128
        %5390 = vxpose.xlu0.b32.cont [7/16] %v5150, 128
        %5391 = vxpose.xlu0.b32.cont [8/16] %v5151, 128
        %5392 = vxpose.xlu0.b32.cont [9/16] %v5152, 128
        %5393 = vxpose.xlu0.b32.cont [10/16] %v5153, 128
        %5394 = vxpose.xlu0.b32.cont [11/16] %v5154, 128
        %5395 = vxpose.xlu0.b32.cont [12/16] %v5155, 128
        %5396 = vxpose.xlu0.b32.cont [13/16] %v5156, 128
        %5397 = vxpose.xlu0.b32.cont [14/16] %v5157, 128
        %5398 = vxpose.xlu0.b32.cont [15/16] %v5158, 128
        %5399 = vxpose.xlu0.b32.end [16/16] %v5159, 128
        %v5400 = vpop.trf.xlu0
        %v5401 = vpop.trf.xlu0
        %v5402 = vpop.trf.xlu0
        %v5403 = vpop.trf.xlu0
        %v5404 = vpop.trf.xlu0
        %v5405 = vpop.trf.xlu0
        %v5406 = vpop.trf.xlu0
        %v5407 = vpop.trf.xlu0
        %v5408 = vpop.trf.xlu0
        %v5409 = vpop.trf.xlu0
        %v5410 = vpop.trf.xlu0
        %v5411 = vpop.trf.xlu0
        %v5412 = vpop.trf.xlu0
        %v5413 = vpop.trf.xlu0
        %v5414 = vpop.trf.xlu0
        %v5415 = vpop.trf.xlu0
        %s5416 = sadd.s32 %s4261, 1
        %s5417 = smul.u32 %s5416, 40
        %s5418 = scalar_lea.vmem [#allocation2], %s5417
        %v5419 = vld [vmem:[%s5418] sm:$0xff]
        %v5420 = vld [vmem:[%s5418 + $0x8] sm:$0xff]
        %v5421 = vld [vmem:[%s5418 + $0x10] sm:$0xff]
        %v5422 = vld [vmem:[%s5418 + $0x18] sm:$0xff]
        %v5423 = vld [vmem:[%s5418 + $0x28] sm:$0xff]
        %v5424 = vld [vmem:[%s5418 + $0x30] sm:$0xff]
        %v5425 = vld [vmem:[%s5418 + $0x38] sm:$0xff]
        %v5426 = vld [vmem:[%s5418 + $0x40] sm:$0xff]
        %v5427 = vld [vmem:[%s5418 + $0x50] sm:$0xff]
        %v5428 = vld [vmem:[%s5418 + $0x58] sm:$0xff]
        %v5429 = vld [vmem:[%s5418 + $0x60] sm:$0xff]
        %v5430 = vld [vmem:[%s5418 + $0x68] sm:$0xff]
        %v5431 = vld [vmem:[%s5418 + $0x78] sm:$0xff]
        %v5432 = vld [vmem:[%s5418 + $0x80] sm:$0xff]
        %v5433 = vld [vmem:[%s5418 + $0x88] sm:$0xff]
        %v5434 = vld [vmem:[%s5418 + $0x90] sm:$0xff]
        %v5435 = vld [vmem:[%s5418 + $0xa0] sm:$0xff]
        %v5436 = vld [vmem:[%s5418 + $0xa8] sm:$0xff]
        %v5437 = vld [vmem:[%s5418 + $0xb0] sm:$0xff]
        %v5438 = vld [vmem:[%s5418 + $0xb8] sm:$0xff]
        %v5439 = vld [vmem:[%s5418 + $0xc8] sm:$0xff]
        %v5440 = vld [vmem:[%s5418 + $0xd0] sm:$0xff]
        %v5441 = vld [vmem:[%s5418 + $0xd8] sm:$0xff]
        %v5442 = vld [vmem:[%s5418 + $0xe0] sm:$0xff]
        %v5443 = vld [vmem:[%s5418 + $0xf0] sm:$0xff]
        %v5444 = vld [vmem:[%s5418 + $0xf8] sm:$0xff]
        %v5445 = vld [vmem:[%s5418 + $0x100] sm:$0xff]
        %v5446 = vld [vmem:[%s5418 + $0x108] sm:$0xff]
        %v5447 = vld [vmem:[%s5418 + $0x118] sm:$0xff]
        %v5448 = vld [vmem:[%s5418 + $0x120] sm:$0xff]
        %v5449 = vld [vmem:[%s5418 + $0x128] sm:$0xff]
        %v5450 = vld [vmem:[%s5418 + $0x130] sm:$0xff]
        %v5451 = vld [vmem:[%s5418 + $0x140] sm:$0xff]
        %v5452 = vld [vmem:[%s5418 + $0x148] sm:$0xff]
        %v5453 = vld [vmem:[%s5418 + $0x150] sm:$0xff]
        %v5454 = vld [vmem:[%s5418 + $0x158] sm:$0xff]
        %v5455 = vld [vmem:[%s5418 + $0x168] sm:$0xff]
        %v5456 = vld [vmem:[%s5418 + $0x170] sm:$0xff]
        %v5457 = vld [vmem:[%s5418 + $0x178] sm:$0xff]
        %v5458 = vld [vmem:[%s5418 + $0x180] sm:$0xff]
        %v5459 = vld [vmem:[%s5418 + $0x190] sm:$0xff]
        %v5460 = vld [vmem:[%s5418 + $0x198] sm:$0xff]
        %v5461 = vld [vmem:[%s5418 + $0x1a0] sm:$0xff]
        %v5462 = vld [vmem:[%s5418 + $0x1a8] sm:$0xff]
        %v5463 = vld [vmem:[%s5418 + $0x1b8] sm:$0xff]
        %v5464 = vld [vmem:[%s5418 + $0x1c0] sm:$0xff]
        %v5465 = vld [vmem:[%s5418 + $0x1c8] sm:$0xff]
        %v5466 = vld [vmem:[%s5418 + $0x1d0] sm:$0xff]
        %v5467 = vld [vmem:[%s5418 + $0x1e0] sm:$0xff]
        %v5468 = vld [vmem:[%s5418 + $0x1e8] sm:$0xff]
        %v5469 = vld [vmem:[%s5418 + $0x1f0] sm:$0xff]
        %v5470 = vld [vmem:[%s5418 + $0x1f8] sm:$0xff]
        %v5471 = vld [vmem:[%s5418 + $0x208] sm:$0xff]
        %v5472 = vld [vmem:[%s5418 + $0x210] sm:$0xff]
        %v5473 = vld [vmem:[%s5418 + $0x218] sm:$0xff]
        %v5474 = vld [vmem:[%s5418 + $0x220] sm:$0xff]
        %v5475 = vld [vmem:[%s5418 + $0x230] sm:$0xff]
        %v5476 = vld [vmem:[%s5418 + $0x238] sm:$0xff]
        %v5477 = vld [vmem:[%s5418 + $0x240] sm:$0xff]
        %v5478 = vld [vmem:[%s5418 + $0x248] sm:$0xff]
        %v5479 = vld [vmem:[%s5418 + $0x258] sm:$0xff]
        %v5480 = vld [vmem:[%s5418 + $0x260] sm:$0xff]
        %v5481 = vld [vmem:[%s5418 + $0x268] sm:$0xff]
        %v5482 = vld [vmem:[%s5418 + $0x270] sm:$0xff]
        %v5483 = vld [vmem:[%s5418 + $0x280] sm:$0xff]
        %v5484 = vld [vmem:[%s5418 + $0x288] sm:$0xff]
        %v5485 = vld [vmem:[%s5418 + $0x290] sm:$0xff]
        %v5486 = vld [vmem:[%s5418 + $0x298] sm:$0xff]
        %v5487 = vld [vmem:[%s5418 + $0x2a8] sm:$0xff]
        %v5488 = vld [vmem:[%s5418 + $0x2b0] sm:$0xff]
        %v5489 = vld [vmem:[%s5418 + $0x2b8] sm:$0xff]
        %v5490 = vld [vmem:[%s5418 + $0x2c0] sm:$0xff]
        %v5491 = vld [vmem:[%s5418 + $0x2d0] sm:$0xff]
        %v5492 = vld [vmem:[%s5418 + $0x2d8] sm:$0xff]
        %v5493 = vld [vmem:[%s5418 + $0x2e0] sm:$0xff]
        %v5494 = vld [vmem:[%s5418 + $0x2e8] sm:$0xff]
        %v5495 = vld [vmem:[%s5418 + $0x2f8] sm:$0xff]
        %v5496 = vld [vmem:[%s5418 + $0x300] sm:$0xff]
        %v5497 = vld [vmem:[%s5418 + $0x308] sm:$0xff]
        %v5498 = vld [vmem:[%s5418 + $0x310] sm:$0xff]
        %v5499 = vld [vmem:[%s5418 + $0x320] sm:$0xff]
        %v5500 = vld [vmem:[%s5418 + $0x328] sm:$0xff]
        %v5501 = vld [vmem:[%s5418 + $0x330] sm:$0xff]
        %v5502 = vld [vmem:[%s5418 + $0x338] sm:$0xff]
        %v5503 = vld [vmem:[%s5418 + $0x348] sm:$0xff]
        %v5504 = vld [vmem:[%s5418 + $0x350] sm:$0xff]
        %v5505 = vld [vmem:[%s5418 + $0x358] sm:$0xff]
        %v5506 = vld [vmem:[%s5418 + $0x360] sm:$0xff]
        %v5507 = vld [vmem:[%s5418 + $0x370] sm:$0xff]
        %v5508 = vld [vmem:[%s5418 + $0x378] sm:$0xff]
        %v5509 = vld [vmem:[%s5418 + $0x380] sm:$0xff]
        %v5510 = vld [vmem:[%s5418 + $0x388] sm:$0xff]
        %v5511 = vld [vmem:[%s5418 + $0x398] sm:$0xff]
        %v5512 = vld [vmem:[%s5418 + $0x3a0] sm:$0xff]
        %v5513 = vld [vmem:[%s5418 + $0x3a8] sm:$0xff]
        %v5514 = vld [vmem:[%s5418 + $0x3b0] sm:$0xff]
        %v5515 = vld [vmem:[%s5418 + $0x3c0] sm:$0xff]
        %v5516 = vld [vmem:[%s5418 + $0x3c8] sm:$0xff]
        %v5517 = vld [vmem:[%s5418 + $0x3d0] sm:$0xff]
        %v5518 = vld [vmem:[%s5418 + $0x3d8] sm:$0xff]
        %v5519 = vld [vmem:[%s5418 + $0x3e8] sm:$0xff]
        %v5520 = vld [vmem:[%s5418 + $0x3f0] sm:$0xff]
        %v5521 = vld [vmem:[%s5418 + $0x3f8] sm:$0xff]
        %v5522 = vld [vmem:[%s5418 + $0x400] sm:$0xff]
        %v5523 = vld [vmem:[%s5418 + $0x410] sm:$0xff]
        %v5524 = vld [vmem:[%s5418 + $0x418] sm:$0xff]
        %v5525 = vld [vmem:[%s5418 + $0x420] sm:$0xff]
        %v5526 = vld [vmem:[%s5418 + $0x428] sm:$0xff]
        %v5527 = vld [vmem:[%s5418 + $0x438] sm:$0xff]
        %v5528 = vld [vmem:[%s5418 + $0x440] sm:$0xff]
        %v5529 = vld [vmem:[%s5418 + $0x448] sm:$0xff]
        %v5530 = vld [vmem:[%s5418 + $0x450] sm:$0xff]
        %v5531 = vld [vmem:[%s5418 + $0x460] sm:$0xff]
        %v5532 = vld [vmem:[%s5418 + $0x468] sm:$0xff]
        %v5533 = vld [vmem:[%s5418 + $0x470] sm:$0xff]
        %v5534 = vld [vmem:[%s5418 + $0x478] sm:$0xff]
        %v5535 = vld [vmem:[%s5418 + $0x488] sm:$0xff]
        %v5536 = vld [vmem:[%s5418 + $0x490] sm:$0xff]
        %v5537 = vld [vmem:[%s5418 + $0x498] sm:$0xff]
        %v5538 = vld [vmem:[%s5418 + $0x4a0] sm:$0xff]
        %v5539 = vld [vmem:[%s5418 + $0x4b0] sm:$0xff]
        %v5540 = vld [vmem:[%s5418 + $0x4b8] sm:$0xff]
        %v5541 = vld [vmem:[%s5418 + $0x4c0] sm:$0xff]
        %v5542 = vld [vmem:[%s5418 + $0x4c8] sm:$0xff]
        %v5543 = vld [vmem:[%s5418 + $0x4d8] sm:$0xff]
        %v5544 = vld [vmem:[%s5418 + $0x4e0] sm:$0xff]
        %v5545 = vld [vmem:[%s5418 + $0x4e8] sm:$0xff]
        %v5546 = vld [vmem:[%s5418 + $0x4f0] sm:$0xff]
        %5547 = vxpose.xlu0.b32.start [1/16] %v5419, 128
        %5548 = vxpose.xlu0.b32.cont [2/16] %v5420, 128
        %5549 = vxpose.xlu0.b32.cont [3/16] %v5421, 128
        %5550 = vxpose.xlu0.b32.cont [4/16] %v5422, 128
        %5551 = vxpose.xlu0.b32.cont [5/16] %v5423, 128
        %5552 = vxpose.xlu0.b32.cont [6/16] %v5424, 128
        %5553 = vxpose.xlu0.b32.cont [7/16] %v5425, 128
        %5554 = vxpose.xlu0.b32.cont [8/16] %v5426, 128
        %5555 = vxpose.xlu0.b32.cont [9/16] %v5427, 128
        %5556 = vxpose.xlu0.b32.cont [10/16] %v5428, 128
        %5557 = vxpose.xlu0.b32.cont [11/16] %v5429, 128
        %5558 = vxpose.xlu0.b32.cont [12/16] %v5430, 128
        %5559 = vxpose.xlu0.b32.cont [13/16] %v5431, 128
        %5560 = vxpose.xlu0.b32.cont [14/16] %v5432, 128
        %5561 = vxpose.xlu0.b32.cont [15/16] %v5433, 128
        %5562 = vxpose.xlu0.b32.end [16/16] %v5434, 128
        %v5563 = vpop.trf.xlu0
        %v5564 = vpop.trf.xlu0
        %v5565 = vpop.trf.xlu0
        %v5566 = vpop.trf.xlu0
        %v5567 = vpop.trf.xlu0
        %v5568 = vpop.trf.xlu0
        %v5569 = vpop.trf.xlu0
        %v5570 = vpop.trf.xlu0
        %v5571 = vpop.trf.xlu0
        %v5572 = vpop.trf.xlu0
        %v5573 = vpop.trf.xlu0
        %v5574 = vpop.trf.xlu0
        %v5575 = vpop.trf.xlu0
        %v5576 = vpop.trf.xlu0
        %v5577 = vpop.trf.xlu0
        %v5578 = vpop.trf.xlu0
        %5579 = vxpose.xlu0.b32.start [1/16] %v5435, 128
        %5580 = vxpose.xlu0.b32.cont [2/16] %v5436, 128
        %5581 = vxpose.xlu0.b32.cont [3/16] %v5437, 128
        %5582 = vxpose.xlu0.b32.cont [4/16] %v5438, 128
        %5583 = vxpose.xlu0.b32.cont [5/16] %v5439, 128
        %5584 = vxpose.xlu0.b32.cont [6/16] %v5440, 128
        %5585 = vxpose.xlu0.b32.cont [7/16] %v5441, 128
        %5586 = vxpose.xlu0.b32.cont [8/16] %v5442, 128
        %5587 = vxpose.xlu0.b32.cont [9/16] %v5443, 128
        %5588 = vxpose.xlu0.b32.cont [10/16] %v5444, 128
        %5589 = vxpose.xlu0.b32.cont [11/16] %v5445, 128
        %5590 = vxpose.xlu0.b32.cont [12/16] %v5446, 128
        %5591 = vxpose.xlu0.b32.cont [13/16] %v5447, 128
        %5592 = vxpose.xlu0.b32.cont [14/16] %v5448, 128
        %5593 = vxpose.xlu0.b32.cont [15/16] %v5449, 128
        %5594 = vxpose.xlu0.b32.end [16/16] %v5450, 128
        %v5595 = vpop.trf.xlu0
        %v5596 = vpop.trf.xlu0
        %v5597 = vpop.trf.xlu0
        %v5598 = vpop.trf.xlu0
        %v5599 = vpop.trf.xlu0
        %v5600 = vpop.trf.xlu0
        %v5601 = vpop.trf.xlu0
        %v5602 = vpop.trf.xlu0
        %v5603 = vpop.trf.xlu0
        %v5604 = vpop.trf.xlu0
        %v5605 = vpop.trf.xlu0
        %v5606 = vpop.trf.xlu0
        %v5607 = vpop.trf.xlu0
        %v5608 = vpop.trf.xlu0
        %v5609 = vpop.trf.xlu0
        %v5610 = vpop.trf.xlu0
        %5611 = vxpose.xlu0.b32.start [1/16] %v5451, 128
        %5612 = vxpose.xlu0.b32.cont [2/16] %v5452, 128
        %5613 = vxpose.xlu0.b32.cont [3/16] %v5453, 128
        %5614 = vxpose.xlu0.b32.cont [4/16] %v5454, 128
        %5615 = vxpose.xlu0.b32.cont [5/16] %v5455, 128
        %5616 = vxpose.xlu0.b32.cont [6/16] %v5456, 128
        %5617 = vxpose.xlu0.b32.cont [7/16] %v5457, 128
        %5618 = vxpose.xlu0.b32.cont [8/16] %v5458, 128
        %5619 = vxpose.xlu0.b32.cont [9/16] %v5459, 128
        %5620 = vxpose.xlu0.b32.cont [10/16] %v5460, 128
        %5621 = vxpose.xlu0.b32.cont [11/16] %v5461, 128
        %5622 = vxpose.xlu0.b32.cont [12/16] %v5462, 128
        %5623 = vxpose.xlu0.b32.cont [13/16] %v5463, 128
        %5624 = vxpose.xlu0.b32.cont [14/16] %v5464, 128
        %5625 = vxpose.xlu0.b32.cont [15/16] %v5465, 128
        %5626 = vxpose.xlu0.b32.end [16/16] %v5466, 128
        %v5627 = vpop.trf.xlu0
        %v5628 = vpop.trf.xlu0
        %v5629 = vpop.trf.xlu0
        %v5630 = vpop.trf.xlu0
        %v5631 = vpop.trf.xlu0
        %v5632 = vpop.trf.xlu0
        %v5633 = vpop.trf.xlu0
        %v5634 = vpop.trf.xlu0
        %v5635 = vpop.trf.xlu0
        %v5636 = vpop.trf.xlu0
        %v5637 = vpop.trf.xlu0
        %v5638 = vpop.trf.xlu0
        %v5639 = vpop.trf.xlu0
        %v5640 = vpop.trf.xlu0
        %v5641 = vpop.trf.xlu0
        %v5642 = vpop.trf.xlu0
        %5643 = vxpose.xlu0.b32.start [1/16] %v5467, 128
        %5644 = vxpose.xlu0.b32.cont [2/16] %v5468, 128
        %5645 = vxpose.xlu0.b32.cont [3/16] %v5469, 128
        %5646 = vxpose.xlu0.b32.cont [4/16] %v5470, 128
        %5647 = vxpose.xlu0.b32.cont [5/16] %v5471, 128
        %5648 = vxpose.xlu0.b32.cont [6/16] %v5472, 128
        %5649 = vxpose.xlu0.b32.cont [7/16] %v5473, 128
        %5650 = vxpose.xlu0.b32.cont [8/16] %v5474, 128
        %5651 = vxpose.xlu0.b32.cont [9/16] %v5475, 128
        %5652 = vxpose.xlu0.b32.cont [10/16] %v5476, 128
        %5653 = vxpose.xlu0.b32.cont [11/16] %v5477, 128
        %5654 = vxpose.xlu0.b32.cont [12/16] %v5478, 128
        %5655 = vxpose.xlu0.b32.cont [13/16] %v5479, 128
        %5656 = vxpose.xlu0.b32.cont [14/16] %v5480, 128
        %5657 = vxpose.xlu0.b32.cont [15/16] %v5481, 128
        %5658 = vxpose.xlu0.b32.end [16/16] %v5482, 128
        %v5659 = vpop.trf.xlu0
        %v5660 = vpop.trf.xlu0
        %v5661 = vpop.trf.xlu0
        %v5662 = vpop.trf.xlu0
        %v5663 = vpop.trf.xlu0
        %v5664 = vpop.trf.xlu0
        %v5665 = vpop.trf.xlu0
        %v5666 = vpop.trf.xlu0
        %v5667 = vpop.trf.xlu0
        %v5668 = vpop.trf.xlu0
        %v5669 = vpop.trf.xlu0
        %v5670 = vpop.trf.xlu0
        %v5671 = vpop.trf.xlu0
        %v5672 = vpop.trf.xlu0
        %v5673 = vpop.trf.xlu0
        %v5674 = vpop.trf.xlu0
        %5675 = vxpose.xlu0.b32.start [1/16] %v5483, 128
        %5676 = vxpose.xlu0.b32.cont [2/16] %v5484, 128
        %5677 = vxpose.xlu0.b32.cont [3/16] %v5485, 128
        %5678 = vxpose.xlu0.b32.cont [4/16] %v5486, 128
        %5679 = vxpose.xlu0.b32.cont [5/16] %v5487, 128
        %5680 = vxpose.xlu0.b32.cont [6/16] %v5488, 128
        %5681 = vxpose.xlu0.b32.cont [7/16] %v5489, 128
        %5682 = vxpose.xlu0.b32.cont [8/16] %v5490, 128
        %5683 = vxpose.xlu0.b32.cont [9/16] %v5491, 128
        %5684 = vxpose.xlu0.b32.cont [10/16] %v5492, 128
        %5685 = vxpose.xlu0.b32.cont [11/16] %v5493, 128
        %5686 = vxpose.xlu0.b32.cont [12/16] %v5494, 128
        %5687 = vxpose.xlu0.b32.cont [13/16] %v5495, 128
        %5688 = vxpose.xlu0.b32.cont [14/16] %v5496, 128
        %5689 = vxpose.xlu0.b32.cont [15/16] %v5497, 128
        %5690 = vxpose.xlu0.b32.end [16/16] %v5498, 128
        %v5691 = vpop.trf.xlu0
        %v5692 = vpop.trf.xlu0
        %v5693 = vpop.trf.xlu0
        %v5694 = vpop.trf.xlu0
        %v5695 = vpop.trf.xlu0
        %v5696 = vpop.trf.xlu0
        %v5697 = vpop.trf.xlu0
        %v5698 = vpop.trf.xlu0
        %v5699 = vpop.trf.xlu0
        %v5700 = vpop.trf.xlu0
        %v5701 = vpop.trf.xlu0
        %v5702 = vpop.trf.xlu0
        %v5703 = vpop.trf.xlu0
        %v5704 = vpop.trf.xlu0
        %v5705 = vpop.trf.xlu0
        %v5706 = vpop.trf.xlu0
        %5707 = vxpose.xlu0.b32.start [1/16] %v5499, 128
        %5708 = vxpose.xlu0.b32.cont [2/16] %v5500, 128
        %5709 = vxpose.xlu0.b32.cont [3/16] %v5501, 128
        %5710 = vxpose.xlu0.b32.cont [4/16] %v5502, 128
        %5711 = vxpose.xlu0.b32.cont [5/16] %v5503, 128
        %5712 = vxpose.xlu0.b32.cont [6/16] %v5504, 128
        %5713 = vxpose.xlu0.b32.cont [7/16] %v5505, 128
        %5714 = vxpose.xlu0.b32.cont [8/16] %v5506, 128
        %5715 = vxpose.xlu0.b32.cont [9/16] %v5507, 128
        %5716 = vxpose.xlu0.b32.cont [10/16] %v5508, 128
        %5717 = vxpose.xlu0.b32.cont [11/16] %v5509, 128
        %5718 = vxpose.xlu0.b32.cont [12/16] %v5510, 128
        %5719 = vxpose.xlu0.b32.cont [13/16] %v5511, 128
        %5720 = vxpose.xlu0.b32.cont [14/16] %v5512, 128
        %5721 = vxpose.xlu0.b32.cont [15/16] %v5513, 128
        %5722 = vxpose.xlu0.b32.end [16/16] %v5514, 128
        %v5723 = vpop.trf.xlu0
        %v5724 = vpop.trf.xlu0
        %v5725 = vpop.trf.xlu0
        %v5726 = vpop.trf.xlu0
        %v5727 = vpop.trf.xlu0
        %v5728 = vpop.trf.xlu0
        %v5729 = vpop.trf.xlu0
        %v5730 = vpop.trf.xlu0
        %v5731 = vpop.trf.xlu0
        %v5732 = vpop.trf.xlu0
        %v5733 = vpop.trf.xlu0
        %v5734 = vpop.trf.xlu0
        %v5735 = vpop.trf.xlu0
        %v5736 = vpop.trf.xlu0
        %v5737 = vpop.trf.xlu0
        %v5738 = vpop.trf.xlu0
        %5739 = vxpose.xlu0.b32.start [1/16] %v5515, 128
        %5740 = vxpose.xlu0.b32.cont [2/16] %v5516, 128
        %5741 = vxpose.xlu0.b32.cont [3/16] %v5517, 128
        %5742 = vxpose.xlu0.b32.cont [4/16] %v5518, 128
        %5743 = vxpose.xlu0.b32.cont [5/16] %v5519, 128
        %5744 = vxpose.xlu0.b32.cont [6/16] %v5520, 128
        %5745 = vxpose.xlu0.b32.cont [7/16] %v5521, 128
        %5746 = vxpose.xlu0.b32.cont [8/16] %v5522, 128
        %5747 = vxpose.xlu0.b32.cont [9/16] %v5523, 128
        %5748 = vxpose.xlu0.b32.cont [10/16] %v5524, 128
        %5749 = vxpose.xlu0.b32.cont [11/16] %v5525, 128
        %5750 = vxpose.xlu0.b32.cont [12/16] %v5526, 128
        %5751 = vxpose.xlu0.b32.cont [13/16] %v5527, 128
        %5752 = vxpose.xlu0.b32.cont [14/16] %v5528, 128
        %5753 = vxpose.xlu0.b32.cont [15/16] %v5529, 128
        %5754 = vxpose.xlu0.b32.end [16/16] %v5530, 128
        %v5755 = vpop.trf.xlu0
        %v5756 = vpop.trf.xlu0
        %v5757 = vpop.trf.xlu0
        %v5758 = vpop.trf.xlu0
        %v5759 = vpop.trf.xlu0
        %v5760 = vpop.trf.xlu0
        %v5761 = vpop.trf.xlu0
        %v5762 = vpop.trf.xlu0
        %v5763 = vpop.trf.xlu0
        %v5764 = vpop.trf.xlu0
        %v5765 = vpop.trf.xlu0
        %v5766 = vpop.trf.xlu0
        %v5767 = vpop.trf.xlu0
        %v5768 = vpop.trf.xlu0
        %v5769 = vpop.trf.xlu0
        %v5770 = vpop.trf.xlu0
        %5771 = vxpose.xlu0.b32.start [1/16] %v5531, 128
        %5772 = vxpose.xlu0.b32.cont [2/16] %v5532, 128
        %5773 = vxpose.xlu0.b32.cont [3/16] %v5533, 128
        %5774 = vxpose.xlu0.b32.cont [4/16] %v5534, 128
        %5775 = vxpose.xlu0.b32.cont [5/16] %v5535, 128
        %5776 = vxpose.xlu0.b32.cont [6/16] %v5536, 128
        %5777 = vxpose.xlu0.b32.cont [7/16] %v5537, 128
        %5778 = vxpose.xlu0.b32.cont [8/16] %v5538, 128
        %5779 = vxpose.xlu0.b32.cont [9/16] %v5539, 128
        %5780 = vxpose.xlu0.b32.cont [10/16] %v5540, 128
        %5781 = vxpose.xlu0.b32.cont [11/16] %v5541, 128
        %5782 = vxpose.xlu0.b32.cont [12/16] %v5542, 128
        %5783 = vxpose.xlu0.b32.cont [13/16] %v5543, 128
        %5784 = vxpose.xlu0.b32.cont [14/16] %v5544, 128
        %5785 = vxpose.xlu0.b32.cont [15/16] %v5545, 128
        %5786 = vxpose.xlu0.b32.end [16/16] %v5546, 128
        %v5787 = vpop.trf.xlu0
        %v5788 = vpop.trf.xlu0
        %v5789 = vpop.trf.xlu0
        %v5790 = vpop.trf.xlu0
        %v5791 = vpop.trf.xlu0
        %v5792 = vpop.trf.xlu0
        %v5793 = vpop.trf.xlu0
        %v5794 = vpop.trf.xlu0
        %v5795 = vpop.trf.xlu0
        %v5796 = vpop.trf.xlu0
        %v5797 = vpop.trf.xlu0
        %v5798 = vpop.trf.xlu0
        %v5799 = vpop.trf.xlu0
        %v5800 = vpop.trf.xlu0
        %v5801 = vpop.trf.xlu0
        %v5802 = vpop.trf.xlu0
        %v5803 = vld [vmem:[%s5418 + $0x1] sm:$0xff]
        %v5804 = vld [vmem:[%s5418 + $0x9] sm:$0xff]
        %v5805 = vld [vmem:[%s5418 + $0x11] sm:$0xff]
        %v5806 = vld [vmem:[%s5418 + $0x19] sm:$0xff]
        %v5807 = vld [vmem:[%s5418 + $0x29] sm:$0xff]
        %v5808 = vld [vmem:[%s5418 + $0x31] sm:$0xff]
        %v5809 = vld [vmem:[%s5418 + $0x39] sm:$0xff]
        %v5810 = vld [vmem:[%s5418 + $0x41] sm:$0xff]
        %v5811 = vld [vmem:[%s5418 + $0x51] sm:$0xff]
        %v5812 = vld [vmem:[%s5418 + $0x59] sm:$0xff]
        %v5813 = vld [vmem:[%s5418 + $0x61] sm:$0xff]
        %v5814 = vld [vmem:[%s5418 + $0x69] sm:$0xff]
        %v5815 = vld [vmem:[%s5418 + $0x79] sm:$0xff]
        %v5816 = vld [vmem:[%s5418 + $0x81] sm:$0xff]
        %v5817 = vld [vmem:[%s5418 + $0x89] sm:$0xff]
        %v5818 = vld [vmem:[%s5418 + $0x91] sm:$0xff]
        %v5819 = vld [vmem:[%s5418 + $0xa1] sm:$0xff]
        %v5820 = vld [vmem:[%s5418 + $0xa9] sm:$0xff]
        %v5821 = vld [vmem:[%s5418 + $0xb1] sm:$0xff]
        %v5822 = vld [vmem:[%s5418 + $0xb9] sm:$0xff]
        %v5823 = vld [vmem:[%s5418 + $0xc9] sm:$0xff]
        %v5824 = vld [vmem:[%s5418 + $0xd1] sm:$0xff]
        %v5825 = vld [vmem:[%s5418 + $0xd9] sm:$0xff]
        %v5826 = vld [vmem:[%s5418 + $0xe1] sm:$0xff]
        %v5827 = vld [vmem:[%s5418 + $0xf1] sm:$0xff]
        %v5828 = vld [vmem:[%s5418 + $0xf9] sm:$0xff]
        %v5829 = vld [vmem:[%s5418 + $0x101] sm:$0xff]
        %v5830 = vld [vmem:[%s5418 + $0x109] sm:$0xff]
        %v5831 = vld [vmem:[%s5418 + $0x119] sm:$0xff]
        %v5832 = vld [vmem:[%s5418 + $0x121] sm:$0xff]
        %v5833 = vld [vmem:[%s5418 + $0x129] sm:$0xff]
        %v5834 = vld [vmem:[%s5418 + $0x131] sm:$0xff]
        %v5835 = vld [vmem:[%s5418 + $0x141] sm:$0xff]
        %v5836 = vld [vmem:[%s5418 + $0x149] sm:$0xff]
        %v5837 = vld [vmem:[%s5418 + $0x151] sm:$0xff]
        %v5838 = vld [vmem:[%s5418 + $0x159] sm:$0xff]
        %v5839 = vld [vmem:[%s5418 + $0x169] sm:$0xff]
        %v5840 = vld [vmem:[%s5418 + $0x171] sm:$0xff]
        %v5841 = vld [vmem:[%s5418 + $0x179] sm:$0xff]
        %v5842 = vld [vmem:[%s5418 + $0x181] sm:$0xff]
        %v5843 = vld [vmem:[%s5418 + $0x191] sm:$0xff]
        %v5844 = vld [vmem:[%s5418 + $0x199] sm:$0xff]
        %v5845 = vld [vmem:[%s5418 + $0x1a1] sm:$0xff]
        %v5846 = vld [vmem:[%s5418 + $0x1a9] sm:$0xff]
        %v5847 = vld [vmem:[%s5418 + $0x1b9] sm:$0xff]
        %v5848 = vld [vmem:[%s5418 + $0x1c1] sm:$0xff]
        %v5849 = vld [vmem:[%s5418 + $0x1c9] sm:$0xff]
        %v5850 = vld [vmem:[%s5418 + $0x1d1] sm:$0xff]
        %v5851 = vld [vmem:[%s5418 + $0x1e1] sm:$0xff]
        %v5852 = vld [vmem:[%s5418 + $0x1e9] sm:$0xff]
        %v5853 = vld [vmem:[%s5418 + $0x1f1] sm:$0xff]
        %v5854 = vld [vmem:[%s5418 + $0x1f9] sm:$0xff]
        %v5855 = vld [vmem:[%s5418 + $0x209] sm:$0xff]
        %v5856 = vld [vmem:[%s5418 + $0x211] sm:$0xff]
        %v5857 = vld [vmem:[%s5418 + $0x219] sm:$0xff]
        %v5858 = vld [vmem:[%s5418 + $0x221] sm:$0xff]
        %v5859 = vld [vmem:[%s5418 + $0x231] sm:$0xff]
        %v5860 = vld [vmem:[%s5418 + $0x239] sm:$0xff]
        %v5861 = vld [vmem:[%s5418 + $0x241] sm:$0xff]
        %v5862 = vld [vmem:[%s5418 + $0x249] sm:$0xff]
        %v5863 = vld [vmem:[%s5418 + $0x259] sm:$0xff]
        %v5864 = vld [vmem:[%s5418 + $0x261] sm:$0xff]
        %v5865 = vld [vmem:[%s5418 + $0x269] sm:$0xff]
        %v5866 = vld [vmem:[%s5418 + $0x271] sm:$0xff]
        %v5867 = vld [vmem:[%s5418 + $0x281] sm:$0xff]
        %v5868 = vld [vmem:[%s5418 + $0x289] sm:$0xff]
        %v5869 = vld [vmem:[%s5418 + $0x291] sm:$0xff]
        %v5870 = vld [vmem:[%s5418 + $0x299] sm:$0xff]
        %v5871 = vld [vmem:[%s5418 + $0x2a9] sm:$0xff]
        %v5872 = vld [vmem:[%s5418 + $0x2b1] sm:$0xff]
        %v5873 = vld [vmem:[%s5418 + $0x2b9] sm:$0xff]
        %v5874 = vld [vmem:[%s5418 + $0x2c1] sm:$0xff]
        %v5875 = vld [vmem:[%s5418 + $0x2d1] sm:$0xff]
        %v5876 = vld [vmem:[%s5418 + $0x2d9] sm:$0xff]
        %v5877 = vld [vmem:[%s5418 + $0x2e1] sm:$0xff]
        %v5878 = vld [vmem:[%s5418 + $0x2e9] sm:$0xff]
        %v5879 = vld [vmem:[%s5418 + $0x2f9] sm:$0xff]
        %v5880 = vld [vmem:[%s5418 + $0x301] sm:$0xff]
        %v5881 = vld [vmem:[%s5418 + $0x309] sm:$0xff]
        %v5882 = vld [vmem:[%s5418 + $0x311] sm:$0xff]
        %v5883 = vld [vmem:[%s5418 + $0x321] sm:$0xff]
        %v5884 = vld [vmem:[%s5418 + $0x329] sm:$0xff]
        %v5885 = vld [vmem:[%s5418 + $0x331] sm:$0xff]
        %v5886 = vld [vmem:[%s5418 + $0x339] sm:$0xff]
        %v5887 = vld [vmem:[%s5418 + $0x349] sm:$0xff]
        %v5888 = vld [vmem:[%s5418 + $0x351] sm:$0xff]
        %v5889 = vld [vmem:[%s5418 + $0x359] sm:$0xff]
        %v5890 = vld [vmem:[%s5418 + $0x361] sm:$0xff]
        %v5891 = vld [vmem:[%s5418 + $0x371] sm:$0xff]
        %v5892 = vld [vmem:[%s5418 + $0x379] sm:$0xff]
        %v5893 = vld [vmem:[%s5418 + $0x381] sm:$0xff]
        %v5894 = vld [vmem:[%s5418 + $0x389] sm:$0xff]
        %v5895 = vld [vmem:[%s5418 + $0x399] sm:$0xff]
        %v5896 = vld [vmem:[%s5418 + $0x3a1] sm:$0xff]
        %v5897 = vld [vmem:[%s5418 + $0x3a9] sm:$0xff]
        %v5898 = vld [vmem:[%s5418 + $0x3b1] sm:$0xff]
        %v5899 = vld [vmem:[%s5418 + $0x3c1] sm:$0xff]
        %v5900 = vld [vmem:[%s5418 + $0x3c9] sm:$0xff]
        %v5901 = vld [vmem:[%s5418 + $0x3d1] sm:$0xff]
        %v5902 = vld [vmem:[%s5418 + $0x3d9] sm:$0xff]
        %v5903 = vld [vmem:[%s5418 + $0x3e9] sm:$0xff]
        %v5904 = vld [vmem:[%s5418 + $0x3f1] sm:$0xff]
        %v5905 = vld [vmem:[%s5418 + $0x3f9] sm:$0xff]
        %v5906 = vld [vmem:[%s5418 + $0x401] sm:$0xff]
        %v5907 = vld [vmem:[%s5418 + $0x411] sm:$0xff]
        %v5908 = vld [vmem:[%s5418 + $0x419] sm:$0xff]
        %v5909 = vld [vmem:[%s5418 + $0x421] sm:$0xff]
        %v5910 = vld [vmem:[%s5418 + $0x429] sm:$0xff]
        %v5911 = vld [vmem:[%s5418 + $0x439] sm:$0xff]
        %v5912 = vld [vmem:[%s5418 + $0x441] sm:$0xff]
        %v5913 = vld [vmem:[%s5418 + $0x449] sm:$0xff]
        %v5914 = vld [vmem:[%s5418 + $0x451] sm:$0xff]
        %v5915 = vld [vmem:[%s5418 + $0x461] sm:$0xff]
        %v5916 = vld [vmem:[%s5418 + $0x469] sm:$0xff]
        %v5917 = vld [vmem:[%s5418 + $0x471] sm:$0xff]
        %v5918 = vld [vmem:[%s5418 + $0x479] sm:$0xff]
        %v5919 = vld [vmem:[%s5418 + $0x489] sm:$0xff]
        %v5920 = vld [vmem:[%s5418 + $0x491] sm:$0xff]
        %v5921 = vld [vmem:[%s5418 + $0x499] sm:$0xff]
        %v5922 = vld [vmem:[%s5418 + $0x4a1] sm:$0xff]
        %v5923 = vld [vmem:[%s5418 + $0x4b1] sm:$0xff]
        %v5924 = vld [vmem:[%s5418 + $0x4b9] sm:$0xff]
        %v5925 = vld [vmem:[%s5418 + $0x4c1] sm:$0xff]
        %v5926 = vld [vmem:[%s5418 + $0x4c9] sm:$0xff]
        %v5927 = vld [vmem:[%s5418 + $0x4d9] sm:$0xff]
        %v5928 = vld [vmem:[%s5418 + $0x4e1] sm:$0xff]
        %v5929 = vld [vmem:[%s5418 + $0x4e9] sm:$0xff]
        %v5930 = vld [vmem:[%s5418 + $0x4f1] sm:$0xff]
        %5931 = vxpose.xlu0.b32.start [1/16] %v5803, 128
        %5932 = vxpose.xlu0.b32.cont [2/16] %v5804, 128
        %5933 = vxpose.xlu0.b32.cont [3/16] %v5805, 128
        %5934 = vxpose.xlu0.b32.cont [4/16] %v5806, 128
        %5935 = vxpose.xlu0.b32.cont [5/16] %v5807, 128
        %5936 = vxpose.xlu0.b32.cont [6/16] %v5808, 128
        %5937 = vxpose.xlu0.b32.cont [7/16] %v5809, 128
        %5938 = vxpose.xlu0.b32.cont [8/16] %v5810, 128
        %5939 = vxpose.xlu0.b32.cont [9/16] %v5811, 128
        %5940 = vxpose.xlu0.b32.cont [10/16] %v5812, 128
        %5941 = vxpose.xlu0.b32.cont [11/16] %v5813, 128
        %5942 = vxpose.xlu0.b32.cont [12/16] %v5814, 128
        %5943 = vxpose.xlu0.b32.cont [13/16] %v5815, 128
        %5944 = vxpose.xlu0.b32.cont [14/16] %v5816, 128
        %5945 = vxpose.xlu0.b32.cont [15/16] %v5817, 128
        %5946 = vxpose.xlu0.b32.end [16/16] %v5818, 128
        %v5947 = vpop.trf.xlu0
        %v5948 = vpop.trf.xlu0
        %v5949 = vpop.trf.xlu0
        %v5950 = vpop.trf.xlu0
        %v5951 = vpop.trf.xlu0
        %v5952 = vpop.trf.xlu0
        %v5953 = vpop.trf.xlu0
        %v5954 = vpop.trf.xlu0
        %v5955 = vpop.trf.xlu0
        %v5956 = vpop.trf.xlu0
        %v5957 = vpop.trf.xlu0
        %v5958 = vpop.trf.xlu0
        %v5959 = vpop.trf.xlu0
        %v5960 = vpop.trf.xlu0
        %v5961 = vpop.trf.xlu0
        %v5962 = vpop.trf.xlu0
        %5963 = vxpose.xlu0.b32.start [1/16] %v5819, 128
        %5964 = vxpose.xlu0.b32.cont [2/16] %v5820, 128
        %5965 = vxpose.xlu0.b32.cont [3/16] %v5821, 128
        %5966 = vxpose.xlu0.b32.cont [4/16] %v5822, 128
        %5967 = vxpose.xlu0.b32.cont [5/16] %v5823, 128
        %5968 = vxpose.xlu0.b32.cont [6/16] %v5824, 128
        %5969 = vxpose.xlu0.b32.cont [7/16] %v5825, 128
        %5970 = vxpose.xlu0.b32.cont [8/16] %v5826, 128
        %5971 = vxpose.xlu0.b32.cont [9/16] %v5827, 128
        %5972 = vxpose.xlu0.b32.cont [10/16] %v5828, 128
        %5973 = vxpose.xlu0.b32.cont [11/16] %v5829, 128
        %5974 = vxpose.xlu0.b32.cont [12/16] %v5830, 128
        %5975 = vxpose.xlu0.b32.cont [13/16] %v5831, 128
        %5976 = vxpose.xlu0.b32.cont [14/16] %v5832, 128
        %5977 = vxpose.xlu0.b32.cont [15/16] %v5833, 128
        %5978 = vxpose.xlu0.b32.end [16/16] %v5834, 128
        %v5979 = vpop.trf.xlu0
        %v5980 = vpop.trf.xlu0
        %v5981 = vpop.trf.xlu0
        %v5982 = vpop.trf.xlu0
        %v5983 = vpop.trf.xlu0
        %v5984 = vpop.trf.xlu0
        %v5985 = vpop.trf.xlu0
        %v5986 = vpop.trf.xlu0
        %v5987 = vpop.trf.xlu0
        %v5988 = vpop.trf.xlu0
        %v5989 = vpop.trf.xlu0
        %v5990 = vpop.trf.xlu0
        %v5991 = vpop.trf.xlu0
        %v5992 = vpop.trf.xlu0
        %v5993 = vpop.trf.xlu0
        %v5994 = vpop.trf.xlu0
        %5995 = vxpose.xlu0.b32.start [1/16] %v5835, 128
        %5996 = vxpose.xlu0.b32.cont [2/16] %v5836, 128
        %5997 = vxpose.xlu0.b32.cont [3/16] %v5837, 128
        %5998 = vxpose.xlu0.b32.cont [4/16] %v5838, 128
        %5999 = vxpose.xlu0.b32.cont [5/16] %v5839, 128
        %6000 = vxpose.xlu0.b32.cont [6/16] %v5840, 128
        %6001 = vxpose.xlu0.b32.cont [7/16] %v5841, 128
        %6002 = vxpose.xlu0.b32.cont [8/16] %v5842, 128
        %6003 = vxpose.xlu0.b32.cont [9/16] %v5843, 128
        %6004 = vxpose.xlu0.b32.cont [10/16] %v5844, 128
        %6005 = vxpose.xlu0.b32.cont [11/16] %v5845, 128
        %6006 = vxpose.xlu0.b32.cont [12/16] %v5846, 128
        %6007 = vxpose.xlu0.b32.cont [13/16] %v5847, 128
        %6008 = vxpose.xlu0.b32.cont [14/16] %v5848, 128
        %6009 = vxpose.xlu0.b32.cont [15/16] %v5849, 128
        %6010 = vxpose.xlu0.b32.end [16/16] %v5850, 128
        %v6011 = vpop.trf.xlu0
        %v6012 = vpop.trf.xlu0
        %v6013 = vpop.trf.xlu0
        %v6014 = vpop.trf.xlu0
        %v6015 = vpop.trf.xlu0
        %v6016 = vpop.trf.xlu0
        %v6017 = vpop.trf.xlu0
        %v6018 = vpop.trf.xlu0
        %v6019 = vpop.trf.xlu0
        %v6020 = vpop.trf.xlu0
        %v6021 = vpop.trf.xlu0
        %v6022 = vpop.trf.xlu0
        %v6023 = vpop.trf.xlu0
        %v6024 = vpop.trf.xlu0
        %v6025 = vpop.trf.xlu0
        %v6026 = vpop.trf.xlu0
        %6027 = vxpose.xlu0.b32.start [1/16] %v5851, 128
        %6028 = vxpose.xlu0.b32.cont [2/16] %v5852, 128
        %6029 = vxpose.xlu0.b32.cont [3/16] %v5853, 128
        %6030 = vxpose.xlu0.b32.cont [4/16] %v5854, 128
        %6031 = vxpose.xlu0.b32.cont [5/16] %v5855, 128
        %6032 = vxpose.xlu0.b32.cont [6/16] %v5856, 128
        %6033 = vxpose.xlu0.b32.cont [7/16] %v5857, 128
        %6034 = vxpose.xlu0.b32.cont [8/16] %v5858, 128
        %6035 = vxpose.xlu0.b32.cont [9/16] %v5859, 128
        %6036 = vxpose.xlu0.b32.cont [10/16] %v5860, 128
        %6037 = vxpose.xlu0.b32.cont [11/16] %v5861, 128
        %6038 = vxpose.xlu0.b32.cont [12/16] %v5862, 128
        %6039 = vxpose.xlu0.b32.cont [13/16] %v5863, 128
        %6040 = vxpose.xlu0.b32.cont [14/16] %v5864, 128
        %6041 = vxpose.xlu0.b32.cont [15/16] %v5865, 128
        %6042 = vxpose.xlu0.b32.end [16/16] %v5866, 128
        %v6043 = vpop.trf.xlu0
        %v6044 = vpop.trf.xlu0
        %v6045 = vpop.trf.xlu0
        %v6046 = vpop.trf.xlu0
        %v6047 = vpop.trf.xlu0
        %v6048 = vpop.trf.xlu0
        %v6049 = vpop.trf.xlu0
        %v6050 = vpop.trf.xlu0
        %v6051 = vpop.trf.xlu0
        %v6052 = vpop.trf.xlu0
        %v6053 = vpop.trf.xlu0
        %v6054 = vpop.trf.xlu0
        %v6055 = vpop.trf.xlu0
        %v6056 = vpop.trf.xlu0
        %v6057 = vpop.trf.xlu0
        %v6058 = vpop.trf.xlu0
        %6059 = vxpose.xlu0.b32.start [1/16] %v5867, 128
        %6060 = vxpose.xlu0.b32.cont [2/16] %v5868, 128
        %6061 = vxpose.xlu0.b32.cont [3/16] %v5869, 128
        %6062 = vxpose.xlu0.b32.cont [4/16] %v5870, 128
        %6063 = vxpose.xlu0.b32.cont [5/16] %v5871, 128
        %6064 = vxpose.xlu0.b32.cont [6/16] %v5872, 128
        %6065 = vxpose.xlu0.b32.cont [7/16] %v5873, 128
        %6066 = vxpose.xlu0.b32.cont [8/16] %v5874, 128
        %6067 = vxpose.xlu0.b32.cont [9/16] %v5875, 128
        %6068 = vxpose.xlu0.b32.cont [10/16] %v5876, 128
        %6069 = vxpose.xlu0.b32.cont [11/16] %v5877, 128
        %6070 = vxpose.xlu0.b32.cont [12/16] %v5878, 128
        %6071 = vxpose.xlu0.b32.cont [13/16] %v5879, 128
        %6072 = vxpose.xlu0.b32.cont [14/16] %v5880, 128
        %6073 = vxpose.xlu0.b32.cont [15/16] %v5881, 128
        %6074 = vxpose.xlu0.b32.end [16/16] %v5882, 128
        %v6075 = vpop.trf.xlu0
        %v6076 = vpop.trf.xlu0
        %v6077 = vpop.trf.xlu0
        %v6078 = vpop.trf.xlu0
        %v6079 = vpop.trf.xlu0
        %v6080 = vpop.trf.xlu0
        %v6081 = vpop.trf.xlu0
        %v6082 = vpop.trf.xlu0
        %v6083 = vpop.trf.xlu0
        %v6084 = vpop.trf.xlu0
        %v6085 = vpop.trf.xlu0
        %v6086 = vpop.trf.xlu0
        %v6087 = vpop.trf.xlu0
        %v6088 = vpop.trf.xlu0
        %v6089 = vpop.trf.xlu0
        %v6090 = vpop.trf.xlu0
        %6091 = vxpose.xlu0.b32.start [1/16] %v5883, 128
        %6092 = vxpose.xlu0.b32.cont [2/16] %v5884, 128
        %6093 = vxpose.xlu0.b32.cont [3/16] %v5885, 128
        %6094 = vxpose.xlu0.b32.cont [4/16] %v5886, 128
        %6095 = vxpose.xlu0.b32.cont [5/16] %v5887, 128
        %6096 = vxpose.xlu0.b32.cont [6/16] %v5888, 128
        %6097 = vxpose.xlu0.b32.cont [7/16] %v5889, 128
        %6098 = vxpose.xlu0.b32.cont [8/16] %v5890, 128
        %6099 = vxpose.xlu0.b32.cont [9/16] %v5891, 128
        %6100 = vxpose.xlu0.b32.cont [10/16] %v5892, 128
        %6101 = vxpose.xlu0.b32.cont [11/16] %v5893, 128
        %6102 = vxpose.xlu0.b32.cont [12/16] %v5894, 128
        %6103 = vxpose.xlu0.b32.cont [13/16] %v5895, 128
        %6104 = vxpose.xlu0.b32.cont [14/16] %v5896, 128
        %6105 = vxpose.xlu0.b32.cont [15/16] %v5897, 128
        %6106 = vxpose.xlu0.b32.end [16/16] %v5898, 128
        %v6107 = vpop.trf.xlu0
        %v6108 = vpop.trf.xlu0
        %v6109 = vpop.trf.xlu0
        %v6110 = vpop.trf.xlu0
        %v6111 = vpop.trf.xlu0
        %v6112 = vpop.trf.xlu0
        %v6113 = vpop.trf.xlu0
        %v6114 = vpop.trf.xlu0
        %v6115 = vpop.trf.xlu0
        %v6116 = vpop.trf.xlu0
        %v6117 = vpop.trf.xlu0
        %v6118 = vpop.trf.xlu0
        %v6119 = vpop.trf.xlu0
        %v6120 = vpop.trf.xlu0
        %v6121 = vpop.trf.xlu0
        %v6122 = vpop.trf.xlu0
        %6123 = vxpose.xlu0.b32.start [1/16] %v5899, 128
        %6124 = vxpose.xlu0.b32.cont [2/16] %v5900, 128
        %6125 = vxpose.xlu0.b32.cont [3/16] %v5901, 128
        %6126 = vxpose.xlu0.b32.cont [4/16] %v5902, 128
        %6127 = vxpose.xlu0.b32.cont [5/16] %v5903, 128
        %6128 = vxpose.xlu0.b32.cont [6/16] %v5904, 128
        %6129 = vxpose.xlu0.b32.cont [7/16] %v5905, 128
        %6130 = vxpose.xlu0.b32.cont [8/16] %v5906, 128
        %6131 = vxpose.xlu0.b32.cont [9/16] %v5907, 128
        %6132 = vxpose.xlu0.b32.cont [10/16] %v5908, 128
        %6133 = vxpose.xlu0.b32.cont [11/16] %v5909, 128
        %6134 = vxpose.xlu0.b32.cont [12/16] %v5910, 128
        %6135 = vxpose.xlu0.b32.cont [13/16] %v5911, 128
        %6136 = vxpose.xlu0.b32.cont [14/16] %v5912, 128
        %6137 = vxpose.xlu0.b32.cont [15/16] %v5913, 128
        %6138 = vxpose.xlu0.b32.end [16/16] %v5914, 128
        %v6139 = vpop.trf.xlu0
        %v6140 = vpop.trf.xlu0
        %v6141 = vpop.trf.xlu0
        %v6142 = vpop.trf.xlu0
        %v6143 = vpop.trf.xlu0
        %v6144 = vpop.trf.xlu0
        %v6145 = vpop.trf.xlu0
        %v6146 = vpop.trf.xlu0
        %v6147 = vpop.trf.xlu0
        %v6148 = vpop.trf.xlu0
        %v6149 = vpop.trf.xlu0
        %v6150 = vpop.trf.xlu0
        %v6151 = vpop.trf.xlu0
        %v6152 = vpop.trf.xlu0
        %v6153 = vpop.trf.xlu0
        %v6154 = vpop.trf.xlu0
        %6155 = vxpose.xlu0.b32.start [1/16] %v5915, 128
        %6156 = vxpose.xlu0.b32.cont [2/16] %v5916, 128
        %6157 = vxpose.xlu0.b32.cont [3/16] %v5917, 128
        %6158 = vxpose.xlu0.b32.cont [4/16] %v5918, 128
        %6159 = vxpose.xlu0.b32.cont [5/16] %v5919, 128
        %6160 = vxpose.xlu0.b32.cont [6/16] %v5920, 128
        %6161 = vxpose.xlu0.b32.cont [7/16] %v5921, 128
        %6162 = vxpose.xlu0.b32.cont [8/16] %v5922, 128
        %6163 = vxpose.xlu0.b32.cont [9/16] %v5923, 128
        %6164 = vxpose.xlu0.b32.cont [10/16] %v5924, 128
        %6165 = vxpose.xlu0.b32.cont [11/16] %v5925, 128
        %6166 = vxpose.xlu0.b32.cont [12/16] %v5926, 128
        %6167 = vxpose.xlu0.b32.cont [13/16] %v5927, 128
        %6168 = vxpose.xlu0.b32.cont [14/16] %v5928, 128
        %6169 = vxpose.xlu0.b32.cont [15/16] %v5929, 128
        %6170 = vxpose.xlu0.b32.end [16/16] %v5930, 128
        %v6171 = vpop.trf.xlu0
        %v6172 = vpop.trf.xlu0
        %v6173 = vpop.trf.xlu0
        %v6174 = vpop.trf.xlu0
        %v6175 = vpop.trf.xlu0
        %v6176 = vpop.trf.xlu0
        %v6177 = vpop.trf.xlu0
        %v6178 = vpop.trf.xlu0
        %v6179 = vpop.trf.xlu0
        %v6180 = vpop.trf.xlu0
        %v6181 = vpop.trf.xlu0
        %v6182 = vpop.trf.xlu0
        %v6183 = vpop.trf.xlu0
        %v6184 = vpop.trf.xlu0
        %v6185 = vpop.trf.xlu0
        %v6186 = vpop.trf.xlu0
        %v6187 = vld [vmem:[%s5418 + $0x2] sm:$0xff]
        %v6188 = vld [vmem:[%s5418 + $0xa] sm:$0xff]
        %v6189 = vld [vmem:[%s5418 + $0x12] sm:$0xff]
        %v6190 = vld [vmem:[%s5418 + $0x1a] sm:$0xff]
        %v6191 = vld [vmem:[%s5418 + $0x2a] sm:$0xff]
        %v6192 = vld [vmem:[%s5418 + $0x32] sm:$0xff]
        %v6193 = vld [vmem:[%s5418 + $0x3a] sm:$0xff]
        %v6194 = vld [vmem:[%s5418 + $0x42] sm:$0xff]
        %v6195 = vld [vmem:[%s5418 + $0x52] sm:$0xff]
        %v6196 = vld [vmem:[%s5418 + $0x5a] sm:$0xff]
        %v6197 = vld [vmem:[%s5418 + $0x62] sm:$0xff]
        %v6198 = vld [vmem:[%s5418 + $0x6a] sm:$0xff]
        %v6199 = vld [vmem:[%s5418 + $0x7a] sm:$0xff]
        %v6200 = vld [vmem:[%s5418 + $0x82] sm:$0xff]
        %v6201 = vld [vmem:[%s5418 + $0x8a] sm:$0xff]
        %v6202 = vld [vmem:[%s5418 + $0x92] sm:$0xff]
        %v6203 = vld [vmem:[%s5418 + $0xa2] sm:$0xff]
        %v6204 = vld [vmem:[%s5418 + $0xaa] sm:$0xff]
        %v6205 = vld [vmem:[%s5418 + $0xb2] sm:$0xff]
        %v6206 = vld [vmem:[%s5418 + $0xba] sm:$0xff]
        %v6207 = vld [vmem:[%s5418 + $0xca] sm:$0xff]
        %v6208 = vld [vmem:[%s5418 + $0xd2] sm:$0xff]
        %v6209 = vld [vmem:[%s5418 + $0xda] sm:$0xff]
        %v6210 = vld [vmem:[%s5418 + $0xe2] sm:$0xff]
        %v6211 = vld [vmem:[%s5418 + $0xf2] sm:$0xff]
        %v6212 = vld [vmem:[%s5418 + $0xfa] sm:$0xff]
        %v6213 = vld [vmem:[%s5418 + $0x102] sm:$0xff]
        %v6214 = vld [vmem:[%s5418 + $0x10a] sm:$0xff]
        %v6215 = vld [vmem:[%s5418 + $0x11a] sm:$0xff]
        %v6216 = vld [vmem:[%s5418 + $0x122] sm:$0xff]
        %v6217 = vld [vmem:[%s5418 + $0x12a] sm:$0xff]
        %v6218 = vld [vmem:[%s5418 + $0x132] sm:$0xff]
        %v6219 = vld [vmem:[%s5418 + $0x142] sm:$0xff]
        %v6220 = vld [vmem:[%s5418 + $0x14a] sm:$0xff]
        %v6221 = vld [vmem:[%s5418 + $0x152] sm:$0xff]
        %v6222 = vld [vmem:[%s5418 + $0x15a] sm:$0xff]
        %v6223 = vld [vmem:[%s5418 + $0x16a] sm:$0xff]
        %v6224 = vld [vmem:[%s5418 + $0x172] sm:$0xff]
        %v6225 = vld [vmem:[%s5418 + $0x17a] sm:$0xff]
        %v6226 = vld [vmem:[%s5418 + $0x182] sm:$0xff]
        %v6227 = vld [vmem:[%s5418 + $0x192] sm:$0xff]
        %v6228 = vld [vmem:[%s5418 + $0x19a] sm:$0xff]
        %v6229 = vld [vmem:[%s5418 + $0x1a2] sm:$0xff]
        %v6230 = vld [vmem:[%s5418 + $0x1aa] sm:$0xff]
        %v6231 = vld [vmem:[%s5418 + $0x1ba] sm:$0xff]
        %v6232 = vld [vmem:[%s5418 + $0x1c2] sm:$0xff]
        %v6233 = vld [vmem:[%s5418 + $0x1ca] sm:$0xff]
        %v6234 = vld [vmem:[%s5418 + $0x1d2] sm:$0xff]
        %v6235 = vld [vmem:[%s5418 + $0x1e2] sm:$0xff]
        %v6236 = vld [vmem:[%s5418 + $0x1ea] sm:$0xff]
        %v6237 = vld [vmem:[%s5418 + $0x1f2] sm:$0xff]
        %v6238 = vld [vmem:[%s5418 + $0x1fa] sm:$0xff]
        %v6239 = vld [vmem:[%s5418 + $0x20a] sm:$0xff]
        %v6240 = vld [vmem:[%s5418 + $0x212] sm:$0xff]
        %v6241 = vld [vmem:[%s5418 + $0x21a] sm:$0xff]
        %v6242 = vld [vmem:[%s5418 + $0x222] sm:$0xff]
        %v6243 = vld [vmem:[%s5418 + $0x232] sm:$0xff]
        %v6244 = vld [vmem:[%s5418 + $0x23a] sm:$0xff]
        %v6245 = vld [vmem:[%s5418 + $0x242] sm:$0xff]
        %v6246 = vld [vmem:[%s5418 + $0x24a] sm:$0xff]
        %v6247 = vld [vmem:[%s5418 + $0x25a] sm:$0xff]
        %v6248 = vld [vmem:[%s5418 + $0x262] sm:$0xff]
        %v6249 = vld [vmem:[%s5418 + $0x26a] sm:$0xff]
        %v6250 = vld [vmem:[%s5418 + $0x272] sm:$0xff]
        %v6251 = vld [vmem:[%s5418 + $0x282] sm:$0xff]
        %v6252 = vld [vmem:[%s5418 + $0x28a] sm:$0xff]
        %v6253 = vld [vmem:[%s5418 + $0x292] sm:$0xff]
        %v6254 = vld [vmem:[%s5418 + $0x29a] sm:$0xff]
        %v6255 = vld [vmem:[%s5418 + $0x2aa] sm:$0xff]
        %v6256 = vld [vmem:[%s5418 + $0x2b2] sm:$0xff]
        %v6257 = vld [vmem:[%s5418 + $0x2ba] sm:$0xff]
        %v6258 = vld [vmem:[%s5418 + $0x2c2] sm:$0xff]
        %v6259 = vld [vmem:[%s5418 + $0x2d2] sm:$0xff]
        %v6260 = vld [vmem:[%s5418 + $0x2da] sm:$0xff]
        %v6261 = vld [vmem:[%s5418 + $0x2e2] sm:$0xff]
        %v6262 = vld [vmem:[%s5418 + $0x2ea] sm:$0xff]
        %v6263 = vld [vmem:[%s5418 + $0x2fa] sm:$0xff]
        %v6264 = vld [vmem:[%s5418 + $0x302] sm:$0xff]
        %v6265 = vld [vmem:[%s5418 + $0x30a] sm:$0xff]
        %v6266 = vld [vmem:[%s5418 + $0x312] sm:$0xff]
        %v6267 = vld [vmem:[%s5418 + $0x322] sm:$0xff]
        %v6268 = vld [vmem:[%s5418 + $0x32a] sm:$0xff]
        %v6269 = vld [vmem:[%s5418 + $0x332] sm:$0xff]
        %v6270 = vld [vmem:[%s5418 + $0x33a] sm:$0xff]
        %v6271 = vld [vmem:[%s5418 + $0x34a] sm:$0xff]
        %v6272 = vld [vmem:[%s5418 + $0x352] sm:$0xff]
        %v6273 = vld [vmem:[%s5418 + $0x35a] sm:$0xff]
        %v6274 = vld [vmem:[%s5418 + $0x362] sm:$0xff]
        %v6275 = vld [vmem:[%s5418 + $0x372] sm:$0xff]
        %v6276 = vld [vmem:[%s5418 + $0x37a] sm:$0xff]
        %v6277 = vld [vmem:[%s5418 + $0x382] sm:$0xff]
        %v6278 = vld [vmem:[%s5418 + $0x38a] sm:$0xff]
        %v6279 = vld [vmem:[%s5418 + $0x39a] sm:$0xff]
        %v6280 = vld [vmem:[%s5418 + $0x3a2] sm:$0xff]
        %v6281 = vld [vmem:[%s5418 + $0x3aa] sm:$0xff]
        %v6282 = vld [vmem:[%s5418 + $0x3b2] sm:$0xff]
        %v6283 = vld [vmem:[%s5418 + $0x3c2] sm:$0xff]
        %v6284 = vld [vmem:[%s5418 + $0x3ca] sm:$0xff]
        %v6285 = vld [vmem:[%s5418 + $0x3d2] sm:$0xff]
        %v6286 = vld [vmem:[%s5418 + $0x3da] sm:$0xff]
        %v6287 = vld [vmem:[%s5418 + $0x3ea] sm:$0xff]
        %v6288 = vld [vmem:[%s5418 + $0x3f2] sm:$0xff]
        %v6289 = vld [vmem:[%s5418 + $0x3fa] sm:$0xff]
        %v6290 = vld [vmem:[%s5418 + $0x402] sm:$0xff]
        %v6291 = vld [vmem:[%s5418 + $0x412] sm:$0xff]
        %v6292 = vld [vmem:[%s5418 + $0x41a] sm:$0xff]
        %v6293 = vld [vmem:[%s5418 + $0x422] sm:$0xff]
        %v6294 = vld [vmem:[%s5418 + $0x42a] sm:$0xff]
        %v6295 = vld [vmem:[%s5418 + $0x43a] sm:$0xff]
        %v6296 = vld [vmem:[%s5418 + $0x442] sm:$0xff]
        %v6297 = vld [vmem:[%s5418 + $0x44a] sm:$0xff]
        %v6298 = vld [vmem:[%s5418 + $0x452] sm:$0xff]
        %v6299 = vld [vmem:[%s5418 + $0x462] sm:$0xff]
        %v6300 = vld [vmem:[%s5418 + $0x46a] sm:$0xff]
        %v6301 = vld [vmem:[%s5418 + $0x472] sm:$0xff]
        %v6302 = vld [vmem:[%s5418 + $0x47a] sm:$0xff]
        %v6303 = vld [vmem:[%s5418 + $0x48a] sm:$0xff]
        %v6304 = vld [vmem:[%s5418 + $0x492] sm:$0xff]
        %v6305 = vld [vmem:[%s5418 + $0x49a] sm:$0xff]
        %v6306 = vld [vmem:[%s5418 + $0x4a2] sm:$0xff]
        %v6307 = vld [vmem:[%s5418 + $0x4b2] sm:$0xff]
        %v6308 = vld [vmem:[%s5418 + $0x4ba] sm:$0xff]
        %v6309 = vld [vmem:[%s5418 + $0x4c2] sm:$0xff]
        %v6310 = vld [vmem:[%s5418 + $0x4ca] sm:$0xff]
        %v6311 = vld [vmem:[%s5418 + $0x4da] sm:$0xff]
        %v6312 = vld [vmem:[%s5418 + $0x4e2] sm:$0xff]
        %v6313 = vld [vmem:[%s5418 + $0x4ea] sm:$0xff]
        %v6314 = vld [vmem:[%s5418 + $0x4f2] sm:$0xff]
        %6315 = vxpose.xlu0.b32.start [1/16] %v6187, 128
        %6316 = vxpose.xlu0.b32.cont [2/16] %v6188, 128
        %6317 = vxpose.xlu0.b32.cont [3/16] %v6189, 128
        %6318 = vxpose.xlu0.b32.cont [4/16] %v6190, 128
        %6319 = vxpose.xlu0.b32.cont [5/16] %v6191, 128
        %6320 = vxpose.xlu0.b32.cont [6/16] %v6192, 128
        %6321 = vxpose.xlu0.b32.cont [7/16] %v6193, 128
        %6322 = vxpose.xlu0.b32.cont [8/16] %v6194, 128
        %6323 = vxpose.xlu0.b32.cont [9/16] %v6195, 128
        %6324 = vxpose.xlu0.b32.cont [10/16] %v6196, 128
        %6325 = vxpose.xlu0.b32.cont [11/16] %v6197, 128
        %6326 = vxpose.xlu0.b32.cont [12/16] %v6198, 128
        %6327 = vxpose.xlu0.b32.cont [13/16] %v6199, 128
        %6328 = vxpose.xlu0.b32.cont [14/16] %v6200, 128
        %6329 = vxpose.xlu0.b32.cont [15/16] %v6201, 128
        %6330 = vxpose.xlu0.b32.end [16/16] %v6202, 128
        %v6331 = vpop.trf.xlu0
        %v6332 = vpop.trf.xlu0
        %v6333 = vpop.trf.xlu0
        %v6334 = vpop.trf.xlu0
        %v6335 = vpop.trf.xlu0
        %v6336 = vpop.trf.xlu0
        %v6337 = vpop.trf.xlu0
        %v6338 = vpop.trf.xlu0
        %v6339 = vpop.trf.xlu0
        %v6340 = vpop.trf.xlu0
        %v6341 = vpop.trf.xlu0
        %v6342 = vpop.trf.xlu0
        %v6343 = vpop.trf.xlu0
        %v6344 = vpop.trf.xlu0
        %v6345 = vpop.trf.xlu0
        %v6346 = vpop.trf.xlu0
        %6347 = vxpose.xlu0.b32.start [1/16] %v6203, 128
        %6348 = vxpose.xlu0.b32.cont [2/16] %v6204, 128
        %6349 = vxpose.xlu0.b32.cont [3/16] %v6205, 128
        %6350 = vxpose.xlu0.b32.cont [4/16] %v6206, 128
        %6351 = vxpose.xlu0.b32.cont [5/16] %v6207, 128
        %6352 = vxpose.xlu0.b32.cont [6/16] %v6208, 128
        %6353 = vxpose.xlu0.b32.cont [7/16] %v6209, 128
        %6354 = vxpose.xlu0.b32.cont [8/16] %v6210, 128
        %6355 = vxpose.xlu0.b32.cont [9/16] %v6211, 128
        %6356 = vxpose.xlu0.b32.cont [10/16] %v6212, 128
        %6357 = vxpose.xlu0.b32.cont [11/16] %v6213, 128
        %6358 = vxpose.xlu0.b32.cont [12/16] %v6214, 128
        %6359 = vxpose.xlu0.b32.cont [13/16] %v6215, 128
        %6360 = vxpose.xlu0.b32.cont [14/16] %v6216, 128
        %6361 = vxpose.xlu0.b32.cont [15/16] %v6217, 128
        %6362 = vxpose.xlu0.b32.end [16/16] %v6218, 128
        %v6363 = vpop.trf.xlu0
        %v6364 = vpop.trf.xlu0
        %v6365 = vpop.trf.xlu0
        %v6366 = vpop.trf.xlu0
        %v6367 = vpop.trf.xlu0
        %v6368 = vpop.trf.xlu0
        %v6369 = vpop.trf.xlu0
        %v6370 = vpop.trf.xlu0
        %v6371 = vpop.trf.xlu0
        %v6372 = vpop.trf.xlu0
        %v6373 = vpop.trf.xlu0
        %v6374 = vpop.trf.xlu0
        %v6375 = vpop.trf.xlu0
        %v6376 = vpop.trf.xlu0
        %v6377 = vpop.trf.xlu0
        %v6378 = vpop.trf.xlu0
        %6379 = vxpose.xlu0.b32.start [1/16] %v6219, 128
        %6380 = vxpose.xlu0.b32.cont [2/16] %v6220, 128
        %6381 = vxpose.xlu0.b32.cont [3/16] %v6221, 128
        %6382 = vxpose.xlu0.b32.cont [4/16] %v6222, 128
        %6383 = vxpose.xlu0.b32.cont [5/16] %v6223, 128
        %6384 = vxpose.xlu0.b32.cont [6/16] %v6224, 128
        %6385 = vxpose.xlu0.b32.cont [7/16] %v6225, 128
        %6386 = vxpose.xlu0.b32.cont [8/16] %v6226, 128
        %6387 = vxpose.xlu0.b32.cont [9/16] %v6227, 128
        %6388 = vxpose.xlu0.b32.cont [10/16] %v6228, 128
        %6389 = vxpose.xlu0.b32.cont [11/16] %v6229, 128
        %6390 = vxpose.xlu0.b32.cont [12/16] %v6230, 128
        %6391 = vxpose.xlu0.b32.cont [13/16] %v6231, 128
        %6392 = vxpose.xlu0.b32.cont [14/16] %v6232, 128
        %6393 = vxpose.xlu0.b32.cont [15/16] %v6233, 128
        %6394 = vxpose.xlu0.b32.end [16/16] %v6234, 128
        %v6395 = vpop.trf.xlu0
        %v6396 = vpop.trf.xlu0
        %v6397 = vpop.trf.xlu0
        %v6398 = vpop.trf.xlu0
        %v6399 = vpop.trf.xlu0
        %v6400 = vpop.trf.xlu0
        %v6401 = vpop.trf.xlu0
        %v6402 = vpop.trf.xlu0
        %v6403 = vpop.trf.xlu0
        %v6404 = vpop.trf.xlu0
        %v6405 = vpop.trf.xlu0
        %v6406 = vpop.trf.xlu0
        %v6407 = vpop.trf.xlu0
        %v6408 = vpop.trf.xlu0
        %v6409 = vpop.trf.xlu0
        %v6410 = vpop.trf.xlu0
        %6411 = vxpose.xlu0.b32.start [1/16] %v6235, 128
        %6412 = vxpose.xlu0.b32.cont [2/16] %v6236, 128
        %6413 = vxpose.xlu0.b32.cont [3/16] %v6237, 128
        %6414 = vxpose.xlu0.b32.cont [4/16] %v6238, 128
        %6415 = vxpose.xlu0.b32.cont [5/16] %v6239, 128
        %6416 = vxpose.xlu0.b32.cont [6/16] %v6240, 128
        %6417 = vxpose.xlu0.b32.cont [7/16] %v6241, 128
        %6418 = vxpose.xlu0.b32.cont [8/16] %v6242, 128
        %6419 = vxpose.xlu0.b32.cont [9/16] %v6243, 128
        %6420 = vxpose.xlu0.b32.cont [10/16] %v6244, 128
        %6421 = vxpose.xlu0.b32.cont [11/16] %v6245, 128
        %6422 = vxpose.xlu0.b32.cont [12/16] %v6246, 128
        %6423 = vxpose.xlu0.b32.cont [13/16] %v6247, 128
        %6424 = vxpose.xlu0.b32.cont [14/16] %v6248, 128
        %6425 = vxpose.xlu0.b32.cont [15/16] %v6249, 128
        %6426 = vxpose.xlu0.b32.end [16/16] %v6250, 128
        %v6427 = vpop.trf.xlu0
        %v6428 = vpop.trf.xlu0
        %v6429 = vpop.trf.xlu0
        %v6430 = vpop.trf.xlu0
        %v6431 = vpop.trf.xlu0
        %v6432 = vpop.trf.xlu0
        %v6433 = vpop.trf.xlu0
        %v6434 = vpop.trf.xlu0
        %v6435 = vpop.trf.xlu0
        %v6436 = vpop.trf.xlu0
        %v6437 = vpop.trf.xlu0
        %v6438 = vpop.trf.xlu0
        %v6439 = vpop.trf.xlu0
        %v6440 = vpop.trf.xlu0
        %v6441 = vpop.trf.xlu0
        %v6442 = vpop.trf.xlu0
        %6443 = vxpose.xlu0.b32.start [1/16] %v6251, 128
        %6444 = vxpose.xlu0.b32.cont [2/16] %v6252, 128
        %6445 = vxpose.xlu0.b32.cont [3/16] %v6253, 128
        %6446 = vxpose.xlu0.b32.cont [4/16] %v6254, 128
        %6447 = vxpose.xlu0.b32.cont [5/16] %v6255, 128
        %6448 = vxpose.xlu0.b32.cont [6/16] %v6256, 128
        %6449 = vxpose.xlu0.b32.cont [7/16] %v6257, 128
        %6450 = vxpose.xlu0.b32.cont [8/16] %v6258, 128
        %6451 = vxpose.xlu0.b32.cont [9/16] %v6259, 128
        %6452 = vxpose.xlu0.b32.cont [10/16] %v6260, 128
        %6453 = vxpose.xlu0.b32.cont [11/16] %v6261, 128
        %6454 = vxpose.xlu0.b32.cont [12/16] %v6262, 128
        %6455 = vxpose.xlu0.b32.cont [13/16] %v6263, 128
        %6456 = vxpose.xlu0.b32.cont [14/16] %v6264, 128
        %6457 = vxpose.xlu0.b32.cont [15/16] %v6265, 128
        %6458 = vxpose.xlu0.b32.end [16/16] %v6266, 128
        %v6459 = vpop.trf.xlu0
        %v6460 = vpop.trf.xlu0
        %v6461 = vpop.trf.xlu0
        %v6462 = vpop.trf.xlu0
        %v6463 = vpop.trf.xlu0
        %v6464 = vpop.trf.xlu0
        %v6465 = vpop.trf.xlu0
        %v6466 = vpop.trf.xlu0
        %v6467 = vpop.trf.xlu0
        %v6468 = vpop.trf.xlu0
        %v6469 = vpop.trf.xlu0
        %v6470 = vpop.trf.xlu0
        %v6471 = vpop.trf.xlu0
        %v6472 = vpop.trf.xlu0
        %v6473 = vpop.trf.xlu0
        %v6474 = vpop.trf.xlu0
        %6475 = vxpose.xlu0.b32.start [1/16] %v6267, 128
        %6476 = vxpose.xlu0.b32.cont [2/16] %v6268, 128
        %6477 = vxpose.xlu0.b32.cont [3/16] %v6269, 128
        %6478 = vxpose.xlu0.b32.cont [4/16] %v6270, 128
        %6479 = vxpose.xlu0.b32.cont [5/16] %v6271, 128
        %6480 = vxpose.xlu0.b32.cont [6/16] %v6272, 128
        %6481 = vxpose.xlu0.b32.cont [7/16] %v6273, 128
        %6482 = vxpose.xlu0.b32.cont [8/16] %v6274, 128
        %6483 = vxpose.xlu0.b32.cont [9/16] %v6275, 128
        %6484 = vxpose.xlu0.b32.cont [10/16] %v6276, 128
        %6485 = vxpose.xlu0.b32.cont [11/16] %v6277, 128
        %6486 = vxpose.xlu0.b32.cont [12/16] %v6278, 128
        %6487 = vxpose.xlu0.b32.cont [13/16] %v6279, 128
        %6488 = vxpose.xlu0.b32.cont [14/16] %v6280, 128
        %6489 = vxpose.xlu0.b32.cont [15/16] %v6281, 128
        %6490 = vxpose.xlu0.b32.end [16/16] %v6282, 128
        %v6491 = vpop.trf.xlu0
        %v6492 = vpop.trf.xlu0
        %v6493 = vpop.trf.xlu0
        %v6494 = vpop.trf.xlu0
        %v6495 = vpop.trf.xlu0
        %v6496 = vpop.trf.xlu0
        %v6497 = vpop.trf.xlu0
        %v6498 = vpop.trf.xlu0
        %v6499 = vpop.trf.xlu0
        %v6500 = vpop.trf.xlu0
        %v6501 = vpop.trf.xlu0
        %v6502 = vpop.trf.xlu0
        %v6503 = vpop.trf.xlu0
        %v6504 = vpop.trf.xlu0
        %v6505 = vpop.trf.xlu0
        %v6506 = vpop.trf.xlu0
        %6507 = vxpose.xlu0.b32.start [1/16] %v6283, 128
        %6508 = vxpose.xlu0.b32.cont [2/16] %v6284, 128
        %6509 = vxpose.xlu0.b32.cont [3/16] %v6285, 128
        %6510 = vxpose.xlu0.b32.cont [4/16] %v6286, 128
        %6511 = vxpose.xlu0.b32.cont [5/16] %v6287, 128
        %6512 = vxpose.xlu0.b32.cont [6/16] %v6288, 128
        %6513 = vxpose.xlu0.b32.cont [7/16] %v6289, 128
        %6514 = vxpose.xlu0.b32.cont [8/16] %v6290, 128
        %6515 = vxpose.xlu0.b32.cont [9/16] %v6291, 128
        %6516 = vxpose.xlu0.b32.cont [10/16] %v6292, 128
        %6517 = vxpose.xlu0.b32.cont [11/16] %v6293, 128
        %6518 = vxpose.xlu0.b32.cont [12/16] %v6294, 128
        %6519 = vxpose.xlu0.b32.cont [13/16] %v6295, 128
        %6520 = vxpose.xlu0.b32.cont [14/16] %v6296, 128
        %6521 = vxpose.xlu0.b32.cont [15/16] %v6297, 128
        %6522 = vxpose.xlu0.b32.end [16/16] %v6298, 128
        %v6523 = vpop.trf.xlu0
        %v6524 = vpop.trf.xlu0
        %v6525 = vpop.trf.xlu0
        %v6526 = vpop.trf.xlu0
        %v6527 = vpop.trf.xlu0
        %v6528 = vpop.trf.xlu0
        %v6529 = vpop.trf.xlu0
        %v6530 = vpop.trf.xlu0
        %v6531 = vpop.trf.xlu0
        %v6532 = vpop.trf.xlu0
        %v6533 = vpop.trf.xlu0
        %v6534 = vpop.trf.xlu0
        %v6535 = vpop.trf.xlu0
        %v6536 = vpop.trf.xlu0
        %v6537 = vpop.trf.xlu0
        %v6538 = vpop.trf.xlu0
        %6539 = vxpose.xlu0.b32.start [1/16] %v6299, 128
        %6540 = vxpose.xlu0.b32.cont [2/16] %v6300, 128
        %6541 = vxpose.xlu0.b32.cont [3/16] %v6301, 128
        %6542 = vxpose.xlu0.b32.cont [4/16] %v6302, 128
        %6543 = vxpose.xlu0.b32.cont [5/16] %v6303, 128
        %6544 = vxpose.xlu0.b32.cont [6/16] %v6304, 128
        %6545 = vxpose.xlu0.b32.cont [7/16] %v6305, 128
        %6546 = vxpose.xlu0.b32.cont [8/16] %v6306, 128
        %6547 = vxpose.xlu0.b32.cont [9/16] %v6307, 128
        %6548 = vxpose.xlu0.b32.cont [10/16] %v6308, 128
        %6549 = vxpose.xlu0.b32.cont [11/16] %v6309, 128
        %6550 = vxpose.xlu0.b32.cont [12/16] %v6310, 128
        %6551 = vxpose.xlu0.b32.cont [13/16] %v6311, 128
        %6552 = vxpose.xlu0.b32.cont [14/16] %v6312, 128
        %6553 = vxpose.xlu0.b32.cont [15/16] %v6313, 128
        %6554 = vxpose.xlu0.b32.end [16/16] %v6314, 128
        %v6555 = vpop.trf.xlu0
        %v6556 = vpop.trf.xlu0
        %v6557 = vpop.trf.xlu0
        %v6558 = vpop.trf.xlu0
        %v6559 = vpop.trf.xlu0
        %v6560 = vpop.trf.xlu0
        %v6561 = vpop.trf.xlu0
        %v6562 = vpop.trf.xlu0
        %v6563 = vpop.trf.xlu0
        %v6564 = vpop.trf.xlu0
        %v6565 = vpop.trf.xlu0
        %v6566 = vpop.trf.xlu0
        %v6567 = vpop.trf.xlu0
        %v6568 = vpop.trf.xlu0
        %v6569 = vpop.trf.xlu0
        %v6570 = vpop.trf.xlu0
        %s6571 = sadd.s32 %s4261, 2
        %s6572 = smul.u32 %s6571, 40
        %s6573 = scalar_lea.vmem [#allocation2], %s6572
        %v6574 = vld [vmem:[%s6573] sm:$0xff]
        %v6575 = vld [vmem:[%s6573 + $0x8] sm:$0xff]
        %v6576 = vld [vmem:[%s6573 + $0x10] sm:$0xff]
        %v6577 = vld [vmem:[%s6573 + $0x18] sm:$0xff]
        %v6578 = vld [vmem:[%s6573 + $0x28] sm:$0xff]
        %v6579 = vld [vmem:[%s6573 + $0x30] sm:$0xff]
        %v6580 = vld [vmem:[%s6573 + $0x38] sm:$0xff]
        %v6581 = vld [vmem:[%s6573 + $0x40] sm:$0xff]
        %v6582 = vld [vmem:[%s6573 + $0x50] sm:$0xff]
        %v6583 = vld [vmem:[%s6573 + $0x58] sm:$0xff]
        %v6584 = vld [vmem:[%s6573 + $0x60] sm:$0xff]
        %v6585 = vld [vmem:[%s6573 + $0x68] sm:$0xff]
        %v6586 = vld [vmem:[%s6573 + $0x78] sm:$0xff]
        %v6587 = vld [vmem:[%s6573 + $0x80] sm:$0xff]
        %v6588 = vld [vmem:[%s6573 + $0x88] sm:$0xff]
        %v6589 = vld [vmem:[%s6573 + $0x90] sm:$0xff]
        %v6590 = vld [vmem:[%s6573 + $0xa0] sm:$0xff]
        %v6591 = vld [vmem:[%s6573 + $0xa8] sm:$0xff]
        %v6592 = vld [vmem:[%s6573 + $0xb0] sm:$0xff]
        %v6593 = vld [vmem:[%s6573 + $0xb8] sm:$0xff]
        %v6594 = vld [vmem:[%s6573 + $0xc8] sm:$0xff]
        %v6595 = vld [vmem:[%s6573 + $0xd0] sm:$0xff]
        %v6596 = vld [vmem:[%s6573 + $0xd8] sm:$0xff]
        %v6597 = vld [vmem:[%s6573 + $0xe0] sm:$0xff]
        %v6598 = vld [vmem:[%s6573 + $0xf0] sm:$0xff]
        %v6599 = vld [vmem:[%s6573 + $0xf8] sm:$0xff]
        %v6600 = vld [vmem:[%s6573 + $0x100] sm:$0xff]
        %v6601 = vld [vmem:[%s6573 + $0x108] sm:$0xff]
        %v6602 = vld [vmem:[%s6573 + $0x118] sm:$0xff]
        %v6603 = vld [vmem:[%s6573 + $0x120] sm:$0xff]
        %v6604 = vld [vmem:[%s6573 + $0x128] sm:$0xff]
        %v6605 = vld [vmem:[%s6573 + $0x130] sm:$0xff]
        %v6606 = vld [vmem:[%s6573 + $0x140] sm:$0xff]
        %v6607 = vld [vmem:[%s6573 + $0x148] sm:$0xff]
        %v6608 = vld [vmem:[%s6573 + $0x150] sm:$0xff]
        %v6609 = vld [vmem:[%s6573 + $0x158] sm:$0xff]
        %v6610 = vld [vmem:[%s6573 + $0x168] sm:$0xff]
        %v6611 = vld [vmem:[%s6573 + $0x170] sm:$0xff]
        %v6612 = vld [vmem:[%s6573 + $0x178] sm:$0xff]
        %v6613 = vld [vmem:[%s6573 + $0x180] sm:$0xff]
        %v6614 = vld [vmem:[%s6573 + $0x190] sm:$0xff]
        %v6615 = vld [vmem:[%s6573 + $0x198] sm:$0xff]
        %v6616 = vld [vmem:[%s6573 + $0x1a0] sm:$0xff]
        %v6617 = vld [vmem:[%s6573 + $0x1a8] sm:$0xff]
        %v6618 = vld [vmem:[%s6573 + $0x1b8] sm:$0xff]
        %v6619 = vld [vmem:[%s6573 + $0x1c0] sm:$0xff]
        %v6620 = vld [vmem:[%s6573 + $0x1c8] sm:$0xff]
        %v6621 = vld [vmem:[%s6573 + $0x1d0] sm:$0xff]
        %v6622 = vld [vmem:[%s6573 + $0x1e0] sm:$0xff]
        %v6623 = vld [vmem:[%s6573 + $0x1e8] sm:$0xff]
        %v6624 = vld [vmem:[%s6573 + $0x1f0] sm:$0xff]
        %v6625 = vld [vmem:[%s6573 + $0x1f8] sm:$0xff]
        %v6626 = vld [vmem:[%s6573 + $0x208] sm:$0xff]
        %v6627 = vld [vmem:[%s6573 + $0x210] sm:$0xff]
        %v6628 = vld [vmem:[%s6573 + $0x218] sm:$0xff]
        %v6629 = vld [vmem:[%s6573 + $0x220] sm:$0xff]
        %v6630 = vld [vmem:[%s6573 + $0x230] sm:$0xff]
        %v6631 = vld [vmem:[%s6573 + $0x238] sm:$0xff]
        %v6632 = vld [vmem:[%s6573 + $0x240] sm:$0xff]
        %v6633 = vld [vmem:[%s6573 + $0x248] sm:$0xff]
        %v6634 = vld [vmem:[%s6573 + $0x258] sm:$0xff]
        %v6635 = vld [vmem:[%s6573 + $0x260] sm:$0xff]
        %v6636 = vld [vmem:[%s6573 + $0x268] sm:$0xff]
        %v6637 = vld [vmem:[%s6573 + $0x270] sm:$0xff]
        %v6638 = vld [vmem:[%s6573 + $0x280] sm:$0xff]
        %v6639 = vld [vmem:[%s6573 + $0x288] sm:$0xff]
        %v6640 = vld [vmem:[%s6573 + $0x290] sm:$0xff]
        %v6641 = vld [vmem:[%s6573 + $0x298] sm:$0xff]
        %v6642 = vld [vmem:[%s6573 + $0x2a8] sm:$0xff]
        %v6643 = vld [vmem:[%s6573 + $0x2b0] sm:$0xff]
        %v6644 = vld [vmem:[%s6573 + $0x2b8] sm:$0xff]
        %v6645 = vld [vmem:[%s6573 + $0x2c0] sm:$0xff]
        %v6646 = vld [vmem:[%s6573 + $0x2d0] sm:$0xff]
        %v6647 = vld [vmem:[%s6573 + $0x2d8] sm:$0xff]
        %v6648 = vld [vmem:[%s6573 + $0x2e0] sm:$0xff]
        %v6649 = vld [vmem:[%s6573 + $0x2e8] sm:$0xff]
        %v6650 = vld [vmem:[%s6573 + $0x2f8] sm:$0xff]
        %v6651 = vld [vmem:[%s6573 + $0x300] sm:$0xff]
        %v6652 = vld [vmem:[%s6573 + $0x308] sm:$0xff]
        %v6653 = vld [vmem:[%s6573 + $0x310] sm:$0xff]
        %v6654 = vld [vmem:[%s6573 + $0x320] sm:$0xff]
        %v6655 = vld [vmem:[%s6573 + $0x328] sm:$0xff]
        %v6656 = vld [vmem:[%s6573 + $0x330] sm:$0xff]
        %v6657 = vld [vmem:[%s6573 + $0x338] sm:$0xff]
        %v6658 = vld [vmem:[%s6573 + $0x348] sm:$0xff]
        %v6659 = vld [vmem:[%s6573 + $0x350] sm:$0xff]
        %v6660 = vld [vmem:[%s6573 + $0x358] sm:$0xff]
        %v6661 = vld [vmem:[%s6573 + $0x360] sm:$0xff]
        %v6662 = vld [vmem:[%s6573 + $0x370] sm:$0xff]
        %v6663 = vld [vmem:[%s6573 + $0x378] sm:$0xff]
        %v6664 = vld [vmem:[%s6573 + $0x380] sm:$0xff]
        %v6665 = vld [vmem:[%s6573 + $0x388] sm:$0xff]
        %v6666 = vld [vmem:[%s6573 + $0x398] sm:$0xff]
        %v6667 = vld [vmem:[%s6573 + $0x3a0] sm:$0xff]
        %v6668 = vld [vmem:[%s6573 + $0x3a8] sm:$0xff]
        %v6669 = vld [vmem:[%s6573 + $0x3b0] sm:$0xff]
        %v6670 = vld [vmem:[%s6573 + $0x3c0] sm:$0xff]
        %v6671 = vld [vmem:[%s6573 + $0x3c8] sm:$0xff]
        %v6672 = vld [vmem:[%s6573 + $0x3d0] sm:$0xff]
        %v6673 = vld [vmem:[%s6573 + $0x3d8] sm:$0xff]
        %v6674 = vld [vmem:[%s6573 + $0x3e8] sm:$0xff]
        %v6675 = vld [vmem:[%s6573 + $0x3f0] sm:$0xff]
        %v6676 = vld [vmem:[%s6573 + $0x3f8] sm:$0xff]
        %v6677 = vld [vmem:[%s6573 + $0x400] sm:$0xff]
        %v6678 = vld [vmem:[%s6573 + $0x410] sm:$0xff]
        %v6679 = vld [vmem:[%s6573 + $0x418] sm:$0xff]
        %v6680 = vld [vmem:[%s6573 + $0x420] sm:$0xff]
        %v6681 = vld [vmem:[%s6573 + $0x428] sm:$0xff]
        %v6682 = vld [vmem:[%s6573 + $0x438] sm:$0xff]
        %v6683 = vld [vmem:[%s6573 + $0x440] sm:$0xff]
        %v6684 = vld [vmem:[%s6573 + $0x448] sm:$0xff]
        %v6685 = vld [vmem:[%s6573 + $0x450] sm:$0xff]
        %v6686 = vld [vmem:[%s6573 + $0x460] sm:$0xff]
        %v6687 = vld [vmem:[%s6573 + $0x468] sm:$0xff]
        %v6688 = vld [vmem:[%s6573 + $0x470] sm:$0xff]
        %v6689 = vld [vmem:[%s6573 + $0x478] sm:$0xff]
        %v6690 = vld [vmem:[%s6573 + $0x488] sm:$0xff]
        %v6691 = vld [vmem:[%s6573 + $0x490] sm:$0xff]
        %v6692 = vld [vmem:[%s6573 + $0x498] sm:$0xff]
        %v6693 = vld [vmem:[%s6573 + $0x4a0] sm:$0xff]
        %v6694 = vld [vmem:[%s6573 + $0x4b0] sm:$0xff]
        %v6695 = vld [vmem:[%s6573 + $0x4b8] sm:$0xff]
        %v6696 = vld [vmem:[%s6573 + $0x4c0] sm:$0xff]
        %v6697 = vld [vmem:[%s6573 + $0x4c8] sm:$0xff]
        %v6698 = vld [vmem:[%s6573 + $0x4d8] sm:$0xff]
        %v6699 = vld [vmem:[%s6573 + $0x4e0] sm:$0xff]
        %v6700 = vld [vmem:[%s6573 + $0x4e8] sm:$0xff]
        %v6701 = vld [vmem:[%s6573 + $0x4f0] sm:$0xff]
        %6702 = vxpose.xlu0.b32.start [1/16] %v6574, 128
        %6703 = vxpose.xlu0.b32.cont [2/16] %v6575, 128
        %6704 = vxpose.xlu0.b32.cont [3/16] %v6576, 128
        %6705 = vxpose.xlu0.b32.cont [4/16] %v6577, 128
        %6706 = vxpose.xlu0.b32.cont [5/16] %v6578, 128
        %6707 = vxpose.xlu0.b32.cont [6/16] %v6579, 128
        %6708 = vxpose.xlu0.b32.cont [7/16] %v6580, 128
        %6709 = vxpose.xlu0.b32.cont [8/16] %v6581, 128
        %6710 = vxpose.xlu0.b32.cont [9/16] %v6582, 128
        %6711 = vxpose.xlu0.b32.cont [10/16] %v6583, 128
        %6712 = vxpose.xlu0.b32.cont [11/16] %v6584, 128
        %6713 = vxpose.xlu0.b32.cont [12/16] %v6585, 128
        %6714 = vxpose.xlu0.b32.cont [13/16] %v6586, 128
        %6715 = vxpose.xlu0.b32.cont [14/16] %v6587, 128
        %6716 = vxpose.xlu0.b32.cont [15/16] %v6588, 128
        %6717 = vxpose.xlu0.b32.end [16/16] %v6589, 128
        %v6718 = vpop.trf.xlu0
        %v6719 = vpop.trf.xlu0
        %v6720 = vpop.trf.xlu0
        %v6721 = vpop.trf.xlu0
        %v6722 = vpop.trf.xlu0
        %v6723 = vpop.trf.xlu0
        %v6724 = vpop.trf.xlu0
        %v6725 = vpop.trf.xlu0
        %v6726 = vpop.trf.xlu0
        %v6727 = vpop.trf.xlu0
        %v6728 = vpop.trf.xlu0
        %v6729 = vpop.trf.xlu0
        %v6730 = vpop.trf.xlu0
        %v6731 = vpop.trf.xlu0
        %v6732 = vpop.trf.xlu0
        %v6733 = vpop.trf.xlu0
        %6734 = vxpose.xlu0.b32.start [1/16] %v6590, 128
        %6735 = vxpose.xlu0.b32.cont [2/16] %v6591, 128
        %6736 = vxpose.xlu0.b32.cont [3/16] %v6592, 128
        %6737 = vxpose.xlu0.b32.cont [4/16] %v6593, 128
        %6738 = vxpose.xlu0.b32.cont [5/16] %v6594, 128
        %6739 = vxpose.xlu0.b32.cont [6/16] %v6595, 128
        %6740 = vxpose.xlu0.b32.cont [7/16] %v6596, 128
        %6741 = vxpose.xlu0.b32.cont [8/16] %v6597, 128
        %6742 = vxpose.xlu0.b32.cont [9/16] %v6598, 128
        %6743 = vxpose.xlu0.b32.cont [10/16] %v6599, 128
        %6744 = vxpose.xlu0.b32.cont [11/16] %v6600, 128
        %6745 = vxpose.xlu0.b32.cont [12/16] %v6601, 128
        %6746 = vxpose.xlu0.b32.cont [13/16] %v6602, 128
        %6747 = vxpose.xlu0.b32.cont [14/16] %v6603, 128
        %6748 = vxpose.xlu0.b32.cont [15/16] %v6604, 128
        %6749 = vxpose.xlu0.b32.end [16/16] %v6605, 128
        %v6750 = vpop.trf.xlu0
        %v6751 = vpop.trf.xlu0
        %v6752 = vpop.trf.xlu0
        %v6753 = vpop.trf.xlu0
        %v6754 = vpop.trf.xlu0
        %v6755 = vpop.trf.xlu0
        %v6756 = vpop.trf.xlu0
        %v6757 = vpop.trf.xlu0
        %v6758 = vpop.trf.xlu0
        %v6759 = vpop.trf.xlu0
        %v6760 = vpop.trf.xlu0
        %v6761 = vpop.trf.xlu0
        %v6762 = vpop.trf.xlu0
        %v6763 = vpop.trf.xlu0
        %v6764 = vpop.trf.xlu0
        %v6765 = vpop.trf.xlu0
        %6766 = vxpose.xlu0.b32.start [1/16] %v6606, 128
        %6767 = vxpose.xlu0.b32.cont [2/16] %v6607, 128
        %6768 = vxpose.xlu0.b32.cont [3/16] %v6608, 128
        %6769 = vxpose.xlu0.b32.cont [4/16] %v6609, 128
        %6770 = vxpose.xlu0.b32.cont [5/16] %v6610, 128
        %6771 = vxpose.xlu0.b32.cont [6/16] %v6611, 128
        %6772 = vxpose.xlu0.b32.cont [7/16] %v6612, 128
        %6773 = vxpose.xlu0.b32.cont [8/16] %v6613, 128
        %6774 = vxpose.xlu0.b32.cont [9/16] %v6614, 128
        %6775 = vxpose.xlu0.b32.cont [10/16] %v6615, 128
        %6776 = vxpose.xlu0.b32.cont [11/16] %v6616, 128
        %6777 = vxpose.xlu0.b32.cont [12/16] %v6617, 128
        %6778 = vxpose.xlu0.b32.cont [13/16] %v6618, 128
        %6779 = vxpose.xlu0.b32.cont [14/16] %v6619, 128
        %6780 = vxpose.xlu0.b32.cont [15/16] %v6620, 128
        %6781 = vxpose.xlu0.b32.end [16/16] %v6621, 128
        %v6782 = vpop.trf.xlu0
        %v6783 = vpop.trf.xlu0
        %v6784 = vpop.trf.xlu0
        %v6785 = vpop.trf.xlu0
        %v6786 = vpop.trf.xlu0
        %v6787 = vpop.trf.xlu0
        %v6788 = vpop.trf.xlu0
        %v6789 = vpop.trf.xlu0
        %v6790 = vpop.trf.xlu0
        %v6791 = vpop.trf.xlu0
        %v6792 = vpop.trf.xlu0
        %v6793 = vpop.trf.xlu0
        %v6794 = vpop.trf.xlu0
        %v6795 = vpop.trf.xlu0
        %v6796 = vpop.trf.xlu0
        %v6797 = vpop.trf.xlu0
        %6798 = vxpose.xlu0.b32.start [1/16] %v6622, 128
        %6799 = vxpose.xlu0.b32.cont [2/16] %v6623, 128
        %6800 = vxpose.xlu0.b32.cont [3/16] %v6624, 128
        %6801 = vxpose.xlu0.b32.cont [4/16] %v6625, 128
        %6802 = vxpose.xlu0.b32.cont [5/16] %v6626, 128
        %6803 = vxpose.xlu0.b32.cont [6/16] %v6627, 128
        %6804 = vxpose.xlu0.b32.cont [7/16] %v6628, 128
        %6805 = vxpose.xlu0.b32.cont [8/16] %v6629, 128
        %6806 = vxpose.xlu0.b32.cont [9/16] %v6630, 128
        %6807 = vxpose.xlu0.b32.cont [10/16] %v6631, 128
        %6808 = vxpose.xlu0.b32.cont [11/16] %v6632, 128
        %6809 = vxpose.xlu0.b32.cont [12/16] %v6633, 128
        %6810 = vxpose.xlu0.b32.cont [13/16] %v6634, 128
        %6811 = vxpose.xlu0.b32.cont [14/16] %v6635, 128
        %6812 = vxpose.xlu0.b32.cont [15/16] %v6636, 128
        %6813 = vxpose.xlu0.b32.end [16/16] %v6637, 128
        %v6814 = vpop.trf.xlu0
        %v6815 = vpop.trf.xlu0
        %v6816 = vpop.trf.xlu0
        %v6817 = vpop.trf.xlu0
        %v6818 = vpop.trf.xlu0
        %v6819 = vpop.trf.xlu0
        %v6820 = vpop.trf.xlu0
        %v6821 = vpop.trf.xlu0
        %v6822 = vpop.trf.xlu0
        %v6823 = vpop.trf.xlu0
        %v6824 = vpop.trf.xlu0
        %v6825 = vpop.trf.xlu0
        %v6826 = vpop.trf.xlu0
        %v6827 = vpop.trf.xlu0
        %v6828 = vpop.trf.xlu0
        %v6829 = vpop.trf.xlu0
        %6830 = vxpose.xlu0.b32.start [1/16] %v6638, 128
        %6831 = vxpose.xlu0.b32.cont [2/16] %v6639, 128
        %6832 = vxpose.xlu0.b32.cont [3/16] %v6640, 128
        %6833 = vxpose.xlu0.b32.cont [4/16] %v6641, 128
        %6834 = vxpose.xlu0.b32.cont [5/16] %v6642, 128
        %6835 = vxpose.xlu0.b32.cont [6/16] %v6643, 128
        %6836 = vxpose.xlu0.b32.cont [7/16] %v6644, 128
        %6837 = vxpose.xlu0.b32.cont [8/16] %v6645, 128
        %6838 = vxpose.xlu0.b32.cont [9/16] %v6646, 128
        %6839 = vxpose.xlu0.b32.cont [10/16] %v6647, 128
        %6840 = vxpose.xlu0.b32.cont [11/16] %v6648, 128
        %6841 = vxpose.xlu0.b32.cont [12/16] %v6649, 128
        %6842 = vxpose.xlu0.b32.cont [13/16] %v6650, 128
        %6843 = vxpose.xlu0.b32.cont [14/16] %v6651, 128
        %6844 = vxpose.xlu0.b32.cont [15/16] %v6652, 128
        %6845 = vxpose.xlu0.b32.end [16/16] %v6653, 128
        %v6846 = vpop.trf.xlu0
        %v6847 = vpop.trf.xlu0
        %v6848 = vpop.trf.xlu0
        %v6849 = vpop.trf.xlu0
        %v6850 = vpop.trf.xlu0
        %v6851 = vpop.trf.xlu0
        %v6852 = vpop.trf.xlu0
        %v6853 = vpop.trf.xlu0
        %v6854 = vpop.trf.xlu0
        %v6855 = vpop.trf.xlu0
        %v6856 = vpop.trf.xlu0
        %v6857 = vpop.trf.xlu0
        %v6858 = vpop.trf.xlu0
        %v6859 = vpop.trf.xlu0
        %v6860 = vpop.trf.xlu0
        %v6861 = vpop.trf.xlu0
        %6862 = vxpose.xlu0.b32.start [1/16] %v6654, 128
        %6863 = vxpose.xlu0.b32.cont [2/16] %v6655, 128
        %6864 = vxpose.xlu0.b32.cont [3/16] %v6656, 128
        %6865 = vxpose.xlu0.b32.cont [4/16] %v6657, 128
        %6866 = vxpose.xlu0.b32.cont [5/16] %v6658, 128
        %6867 = vxpose.xlu0.b32.cont [6/16] %v6659, 128
        %6868 = vxpose.xlu0.b32.cont [7/16] %v6660, 128
        %6869 = vxpose.xlu0.b32.cont [8/16] %v6661, 128
        %6870 = vxpose.xlu0.b32.cont [9/16] %v6662, 128
        %6871 = vxpose.xlu0.b32.cont [10/16] %v6663, 128
        %6872 = vxpose.xlu0.b32.cont [11/16] %v6664, 128
        %6873 = vxpose.xlu0.b32.cont [12/16] %v6665, 128
        %6874 = vxpose.xlu0.b32.cont [13/16] %v6666, 128
        %6875 = vxpose.xlu0.b32.cont [14/16] %v6667, 128
        %6876 = vxpose.xlu0.b32.cont [15/16] %v6668, 128
        %6877 = vxpose.xlu0.b32.end [16/16] %v6669, 128
        %v6878 = vpop.trf.xlu0
        %v6879 = vpop.trf.xlu0
        %v6880 = vpop.trf.xlu0
        %v6881 = vpop.trf.xlu0
        %v6882 = vpop.trf.xlu0
        %v6883 = vpop.trf.xlu0
        %v6884 = vpop.trf.xlu0
        %v6885 = vpop.trf.xlu0
        %v6886 = vpop.trf.xlu0
        %v6887 = vpop.trf.xlu0
        %v6888 = vpop.trf.xlu0
        %v6889 = vpop.trf.xlu0
        %v6890 = vpop.trf.xlu0
        %v6891 = vpop.trf.xlu0
        %v6892 = vpop.trf.xlu0
        %v6893 = vpop.trf.xlu0
        %6894 = vxpose.xlu0.b32.start [1/16] %v6670, 128
        %6895 = vxpose.xlu0.b32.cont [2/16] %v6671, 128
        %6896 = vxpose.xlu0.b32.cont [3/16] %v6672, 128
        %6897 = vxpose.xlu0.b32.cont [4/16] %v6673, 128
        %6898 = vxpose.xlu0.b32.cont [5/16] %v6674, 128
        %6899 = vxpose.xlu0.b32.cont [6/16] %v6675, 128
        %6900 = vxpose.xlu0.b32.cont [7/16] %v6676, 128
        %6901 = vxpose.xlu0.b32.cont [8/16] %v6677, 128
        %6902 = vxpose.xlu0.b32.cont [9/16] %v6678, 128
        %6903 = vxpose.xlu0.b32.cont [10/16] %v6679, 128
        %6904 = vxpose.xlu0.b32.cont [11/16] %v6680, 128
        %6905 = vxpose.xlu0.b32.cont [12/16] %v6681, 128
        %6906 = vxpose.xlu0.b32.cont [13/16] %v6682, 128
        %6907 = vxpose.xlu0.b32.cont [14/16] %v6683, 128
        %6908 = vxpose.xlu0.b32.cont [15/16] %v6684, 128
        %6909 = vxpose.xlu0.b32.end [16/16] %v6685, 128
        %v6910 = vpop.trf.xlu0
        %v6911 = vpop.trf.xlu0
        %v6912 = vpop.trf.xlu0
        %v6913 = vpop.trf.xlu0
        %v6914 = vpop.trf.xlu0
        %v6915 = vpop.trf.xlu0
        %v6916 = vpop.trf.xlu0
        %v6917 = vpop.trf.xlu0
        %v6918 = vpop.trf.xlu0
        %v6919 = vpop.trf.xlu0
        %v6920 = vpop.trf.xlu0
        %v6921 = vpop.trf.xlu0
        %v6922 = vpop.trf.xlu0
        %v6923 = vpop.trf.xlu0
        %v6924 = vpop.trf.xlu0
        %v6925 = vpop.trf.xlu0
        %6926 = vxpose.xlu0.b32.start [1/16] %v6686, 128
        %6927 = vxpose.xlu0.b32.cont [2/16] %v6687, 128
        %6928 = vxpose.xlu0.b32.cont [3/16] %v6688, 128
        %6929 = vxpose.xlu0.b32.cont [4/16] %v6689, 128
        %6930 = vxpose.xlu0.b32.cont [5/16] %v6690, 128
        %6931 = vxpose.xlu0.b32.cont [6/16] %v6691, 128
        %6932 = vxpose.xlu0.b32.cont [7/16] %v6692, 128
        %6933 = vxpose.xlu0.b32.cont [8/16] %v6693, 128
        %6934 = vxpose.xlu0.b32.cont [9/16] %v6694, 128
        %6935 = vxpose.xlu0.b32.cont [10/16] %v6695, 128
        %6936 = vxpose.xlu0.b32.cont [11/16] %v6696, 128
        %6937 = vxpose.xlu0.b32.cont [12/16] %v6697, 128
        %6938 = vxpose.xlu0.b32.cont [13/16] %v6698, 128
        %6939 = vxpose.xlu0.b32.cont [14/16] %v6699, 128
        %6940 = vxpose.xlu0.b32.cont [15/16] %v6700, 128
        %6941 = vxpose.xlu0.b32.end [16/16] %v6701, 128
        %v6942 = vpop.trf.xlu0
        %v6943 = vpop.trf.xlu0
        %v6944 = vpop.trf.xlu0
        %v6945 = vpop.trf.xlu0
        %v6946 = vpop.trf.xlu0
        %v6947 = vpop.trf.xlu0
        %v6948 = vpop.trf.xlu0
        %v6949 = vpop.trf.xlu0
        %v6950 = vpop.trf.xlu0
        %v6951 = vpop.trf.xlu0
        %v6952 = vpop.trf.xlu0
        %v6953 = vpop.trf.xlu0
        %v6954 = vpop.trf.xlu0
        %v6955 = vpop.trf.xlu0
        %v6956 = vpop.trf.xlu0
        %v6957 = vpop.trf.xlu0
        %v6958 = vld [vmem:[%s6573 + $0x1] sm:$0xff]
        %v6959 = vld [vmem:[%s6573 + $0x9] sm:$0xff]
        %v6960 = vld [vmem:[%s6573 + $0x11] sm:$0xff]
        %v6961 = vld [vmem:[%s6573 + $0x19] sm:$0xff]
        %v6962 = vld [vmem:[%s6573 + $0x29] sm:$0xff]
        %v6963 = vld [vmem:[%s6573 + $0x31] sm:$0xff]
        %v6964 = vld [vmem:[%s6573 + $0x39] sm:$0xff]
        %v6965 = vld [vmem:[%s6573 + $0x41] sm:$0xff]
        %v6966 = vld [vmem:[%s6573 + $0x51] sm:$0xff]
        %v6967 = vld [vmem:[%s6573 + $0x59] sm:$0xff]
        %v6968 = vld [vmem:[%s6573 + $0x61] sm:$0xff]
        %v6969 = vld [vmem:[%s6573 + $0x69] sm:$0xff]
        %v6970 = vld [vmem:[%s6573 + $0x79] sm:$0xff]
        %v6971 = vld [vmem:[%s6573 + $0x81] sm:$0xff]
        %v6972 = vld [vmem:[%s6573 + $0x89] sm:$0xff]
        %v6973 = vld [vmem:[%s6573 + $0x91] sm:$0xff]
        %v6974 = vld [vmem:[%s6573 + $0xa1] sm:$0xff]
        %v6975 = vld [vmem:[%s6573 + $0xa9] sm:$0xff]
        %v6976 = vld [vmem:[%s6573 + $0xb1] sm:$0xff]
        %v6977 = vld [vmem:[%s6573 + $0xb9] sm:$0xff]
        %v6978 = vld [vmem:[%s6573 + $0xc9] sm:$0xff]
        %v6979 = vld [vmem:[%s6573 + $0xd1] sm:$0xff]
        %v6980 = vld [vmem:[%s6573 + $0xd9] sm:$0xff]
        %v6981 = vld [vmem:[%s6573 + $0xe1] sm:$0xff]
        %v6982 = vld [vmem:[%s6573 + $0xf1] sm:$0xff]
        %v6983 = vld [vmem:[%s6573 + $0xf9] sm:$0xff]
        %v6984 = vld [vmem:[%s6573 + $0x101] sm:$0xff]
        %v6985 = vld [vmem:[%s6573 + $0x109] sm:$0xff]
        %v6986 = vld [vmem:[%s6573 + $0x119] sm:$0xff]
        %v6987 = vld [vmem:[%s6573 + $0x121] sm:$0xff]
        %v6988 = vld [vmem:[%s6573 + $0x129] sm:$0xff]
        %v6989 = vld [vmem:[%s6573 + $0x131] sm:$0xff]
        %v6990 = vld [vmem:[%s6573 + $0x141] sm:$0xff]
        %v6991 = vld [vmem:[%s6573 + $0x149] sm:$0xff]
        %v6992 = vld [vmem:[%s6573 + $0x151] sm:$0xff]
        %v6993 = vld [vmem:[%s6573 + $0x159] sm:$0xff]
        %v6994 = vld [vmem:[%s6573 + $0x169] sm:$0xff]
        %v6995 = vld [vmem:[%s6573 + $0x171] sm:$0xff]
        %v6996 = vld [vmem:[%s6573 + $0x179] sm:$0xff]
        %v6997 = vld [vmem:[%s6573 + $0x181] sm:$0xff]
        %v6998 = vld [vmem:[%s6573 + $0x191] sm:$0xff]
        %v6999 = vld [vmem:[%s6573 + $0x199] sm:$0xff]
        %v7000 = vld [vmem:[%s6573 + $0x1a1] sm:$0xff]
        %v7001 = vld [vmem:[%s6573 + $0x1a9] sm:$0xff]
        %v7002 = vld [vmem:[%s6573 + $0x1b9] sm:$0xff]
        %v7003 = vld [vmem:[%s6573 + $0x1c1] sm:$0xff]
        %v7004 = vld [vmem:[%s6573 + $0x1c9] sm:$0xff]
        %v7005 = vld [vmem:[%s6573 + $0x1d1] sm:$0xff]
        %v7006 = vld [vmem:[%s6573 + $0x1e1] sm:$0xff]
        %v7007 = vld [vmem:[%s6573 + $0x1e9] sm:$0xff]
        %v7008 = vld [vmem:[%s6573 + $0x1f1] sm:$0xff]
        %v7009 = vld [vmem:[%s6573 + $0x1f9] sm:$0xff]
        %v7010 = vld [vmem:[%s6573 + $0x209] sm:$0xff]
        %v7011 = vld [vmem:[%s6573 + $0x211] sm:$0xff]
        %v7012 = vld [vmem:[%s6573 + $0x219] sm:$0xff]
        %v7013 = vld [vmem:[%s6573 + $0x221] sm:$0xff]
        %v7014 = vld [vmem:[%s6573 + $0x231] sm:$0xff]
        %v7015 = vld [vmem:[%s6573 + $0x239] sm:$0xff]
        %v7016 = vld [vmem:[%s6573 + $0x241] sm:$0xff]
        %v7017 = vld [vmem:[%s6573 + $0x249] sm:$0xff]
        %v7018 = vld [vmem:[%s6573 + $0x259] sm:$0xff]
        %v7019 = vld [vmem:[%s6573 + $0x261] sm:$0xff]
        %v7020 = vld [vmem:[%s6573 + $0x269] sm:$0xff]
        %v7021 = vld [vmem:[%s6573 + $0x271] sm:$0xff]
        %v7022 = vld [vmem:[%s6573 + $0x281] sm:$0xff]
        %v7023 = vld [vmem:[%s6573 + $0x289] sm:$0xff]
        %v7024 = vld [vmem:[%s6573 + $0x291] sm:$0xff]
        %v7025 = vld [vmem:[%s6573 + $0x299] sm:$0xff]
        %v7026 = vld [vmem:[%s6573 + $0x2a9] sm:$0xff]
        %v7027 = vld [vmem:[%s6573 + $0x2b1] sm:$0xff]
        %v7028 = vld [vmem:[%s6573 + $0x2b9] sm:$0xff]
        %v7029 = vld [vmem:[%s6573 + $0x2c1] sm:$0xff]
        %v7030 = vld [vmem:[%s6573 + $0x2d1] sm:$0xff]
        %v7031 = vld [vmem:[%s6573 + $0x2d9] sm:$0xff]
        %v7032 = vld [vmem:[%s6573 + $0x2e1] sm:$0xff]
        %v7033 = vld [vmem:[%s6573 + $0x2e9] sm:$0xff]
        %v7034 = vld [vmem:[%s6573 + $0x2f9] sm:$0xff]
        %v7035 = vld [vmem:[%s6573 + $0x301] sm:$0xff]
        %v7036 = vld [vmem:[%s6573 + $0x309] sm:$0xff]
        %v7037 = vld [vmem:[%s6573 + $0x311] sm:$0xff]
        %v7038 = vld [vmem:[%s6573 + $0x321] sm:$0xff]
        %v7039 = vld [vmem:[%s6573 + $0x329] sm:$0xff]
        %v7040 = vld [vmem:[%s6573 + $0x331] sm:$0xff]
        %v7041 = vld [vmem:[%s6573 + $0x339] sm:$0xff]
        %v7042 = vld [vmem:[%s6573 + $0x349] sm:$0xff]
        %v7043 = vld [vmem:[%s6573 + $0x351] sm:$0xff]
        %v7044 = vld [vmem:[%s6573 + $0x359] sm:$0xff]
        %v7045 = vld [vmem:[%s6573 + $0x361] sm:$0xff]
        %v7046 = vld [vmem:[%s6573 + $0x371] sm:$0xff]
        %v7047 = vld [vmem:[%s6573 + $0x379] sm:$0xff]
        %v7048 = vld [vmem:[%s6573 + $0x381] sm:$0xff]
        %v7049 = vld [vmem:[%s6573 + $0x389] sm:$0xff]
        %v7050 = vld [vmem:[%s6573 + $0x399] sm:$0xff]
        %v7051 = vld [vmem:[%s6573 + $0x3a1] sm:$0xff]
        %v7052 = vld [vmem:[%s6573 + $0x3a9] sm:$0xff]
        %v7053 = vld [vmem:[%s6573 + $0x3b1] sm:$0xff]
        %v7054 = vld [vmem:[%s6573 + $0x3c1] sm:$0xff]
        %v7055 = vld [vmem:[%s6573 + $0x3c9] sm:$0xff]
        %v7056 = vld [vmem:[%s6573 + $0x3d1] sm:$0xff]
        %v7057 = vld [vmem:[%s6573 + $0x3d9] sm:$0xff]
        %v7058 = vld [vmem:[%s6573 + $0x3e9] sm:$0xff]
        %v7059 = vld [vmem:[%s6573 + $0x3f1] sm:$0xff]
        %v7060 = vld [vmem:[%s6573 + $0x3f9] sm:$0xff]
        %v7061 = vld [vmem:[%s6573 + $0x401] sm:$0xff]
        %v7062 = vld [vmem:[%s6573 + $0x411] sm:$0xff]
        %v7063 = vld [vmem:[%s6573 + $0x419] sm:$0xff]
        %v7064 = vld [vmem:[%s6573 + $0x421] sm:$0xff]
        %v7065 = vld [vmem:[%s6573 + $0x429] sm:$0xff]
        %v7066 = vld [vmem:[%s6573 + $0x439] sm:$0xff]
        %v7067 = vld [vmem:[%s6573 + $0x441] sm:$0xff]
        %v7068 = vld [vmem:[%s6573 + $0x449] sm:$0xff]
        %v7069 = vld [vmem:[%s6573 + $0x451] sm:$0xff]
        %v7070 = vld [vmem:[%s6573 + $0x461] sm:$0xff]
        %v7071 = vld [vmem:[%s6573 + $0x469] sm:$0xff]
        %v7072 = vld [vmem:[%s6573 + $0x471] sm:$0xff]
        %v7073 = vld [vmem:[%s6573 + $0x479] sm:$0xff]
        %v7074 = vld [vmem:[%s6573 + $0x489] sm:$0xff]
        %v7075 = vld [vmem:[%s6573 + $0x491] sm:$0xff]
        %v7076 = vld [vmem:[%s6573 + $0x499] sm:$0xff]
        %v7077 = vld [vmem:[%s6573 + $0x4a1] sm:$0xff]
        %v7078 = vld [vmem:[%s6573 + $0x4b1] sm:$0xff]
        %v7079 = vld [vmem:[%s6573 + $0x4b9] sm:$0xff]
        %v7080 = vld [vmem:[%s6573 + $0x4c1] sm:$0xff]
        %v7081 = vld [vmem:[%s6573 + $0x4c9] sm:$0xff]
        %v7082 = vld [vmem:[%s6573 + $0x4d9] sm:$0xff]
        %v7083 = vld [vmem:[%s6573 + $0x4e1] sm:$0xff]
        %v7084 = vld [vmem:[%s6573 + $0x4e9] sm:$0xff]
        %v7085 = vld [vmem:[%s6573 + $0x4f1] sm:$0xff]
        %7086 = vxpose.xlu0.b32.start [1/16] %v6958, 128
        %7087 = vxpose.xlu0.b32.cont [2/16] %v6959, 128
        %7088 = vxpose.xlu0.b32.cont [3/16] %v6960, 128
        %7089 = vxpose.xlu0.b32.cont [4/16] %v6961, 128
        %7090 = vxpose.xlu0.b32.cont [5/16] %v6962, 128
        %7091 = vxpose.xlu0.b32.cont [6/16] %v6963, 128
        %7092 = vxpose.xlu0.b32.cont [7/16] %v6964, 128
        %7093 = vxpose.xlu0.b32.cont [8/16] %v6965, 128
        %7094 = vxpose.xlu0.b32.cont [9/16] %v6966, 128
        %7095 = vxpose.xlu0.b32.cont [10/16] %v6967, 128
        %7096 = vxpose.xlu0.b32.cont [11/16] %v6968, 128
        %7097 = vxpose.xlu0.b32.cont [12/16] %v6969, 128
        %7098 = vxpose.xlu0.b32.cont [13/16] %v6970, 128
        %7099 = vxpose.xlu0.b32.cont [14/16] %v6971, 128
        %7100 = vxpose.xlu0.b32.cont [15/16] %v6972, 128
        %7101 = vxpose.xlu0.b32.end [16/16] %v6973, 128
        %v7102 = vpop.trf.xlu0
        %v7103 = vpop.trf.xlu0
        %v7104 = vpop.trf.xlu0
        %v7105 = vpop.trf.xlu0
        %v7106 = vpop.trf.xlu0
        %v7107 = vpop.trf.xlu0
        %v7108 = vpop.trf.xlu0
        %v7109 = vpop.trf.xlu0
        %v7110 = vpop.trf.xlu0
        %v7111 = vpop.trf.xlu0
        %v7112 = vpop.trf.xlu0
        %v7113 = vpop.trf.xlu0
        %v7114 = vpop.trf.xlu0
        %v7115 = vpop.trf.xlu0
        %v7116 = vpop.trf.xlu0
        %v7117 = vpop.trf.xlu0
        %7118 = vxpose.xlu0.b32.start [1/16] %v6974, 128
        %7119 = vxpose.xlu0.b32.cont [2/16] %v6975, 128
        %7120 = vxpose.xlu0.b32.cont [3/16] %v6976, 128
        %7121 = vxpose.xlu0.b32.cont [4/16] %v6977, 128
        %7122 = vxpose.xlu0.b32.cont [5/16] %v6978, 128
        %7123 = vxpose.xlu0.b32.cont [6/16] %v6979, 128
        %7124 = vxpose.xlu0.b32.cont [7/16] %v6980, 128
        %7125 = vxpose.xlu0.b32.cont [8/16] %v6981, 128
        %7126 = vxpose.xlu0.b32.cont [9/16] %v6982, 128
        %7127 = vxpose.xlu0.b32.cont [10/16] %v6983, 128
        %7128 = vxpose.xlu0.b32.cont [11/16] %v6984, 128
        %7129 = vxpose.xlu0.b32.cont [12/16] %v6985, 128
        %7130 = vxpose.xlu0.b32.cont [13/16] %v6986, 128
        %7131 = vxpose.xlu0.b32.cont [14/16] %v6987, 128
        %7132 = vxpose.xlu0.b32.cont [15/16] %v6988, 128
        %7133 = vxpose.xlu0.b32.end [16/16] %v6989, 128
        %v7134 = vpop.trf.xlu0
        %v7135 = vpop.trf.xlu0
        %v7136 = vpop.trf.xlu0
        %v7137 = vpop.trf.xlu0
        %v7138 = vpop.trf.xlu0
        %v7139 = vpop.trf.xlu0
        %v7140 = vpop.trf.xlu0
        %v7141 = vpop.trf.xlu0
        %v7142 = vpop.trf.xlu0
        %v7143 = vpop.trf.xlu0
        %v7144 = vpop.trf.xlu0
        %v7145 = vpop.trf.xlu0
        %v7146 = vpop.trf.xlu0
        %v7147 = vpop.trf.xlu0
        %v7148 = vpop.trf.xlu0
        %v7149 = vpop.trf.xlu0
        %7150 = vxpose.xlu0.b32.start [1/16] %v6990, 128
        %7151 = vxpose.xlu0.b32.cont [2/16] %v6991, 128
        %7152 = vxpose.xlu0.b32.cont [3/16] %v6992, 128
        %7153 = vxpose.xlu0.b32.cont [4/16] %v6993, 128
        %7154 = vxpose.xlu0.b32.cont [5/16] %v6994, 128
        %7155 = vxpose.xlu0.b32.cont [6/16] %v6995, 128
        %7156 = vxpose.xlu0.b32.cont [7/16] %v6996, 128
        %7157 = vxpose.xlu0.b32.cont [8/16] %v6997, 128
        %7158 = vxpose.xlu0.b32.cont [9/16] %v6998, 128
        %7159 = vxpose.xlu0.b32.cont [10/16] %v6999, 128
        %7160 = vxpose.xlu0.b32.cont [11/16] %v7000, 128
        %7161 = vxpose.xlu0.b32.cont [12/16] %v7001, 128
        %7162 = vxpose.xlu0.b32.cont [13/16] %v7002, 128
        %7163 = vxpose.xlu0.b32.cont [14/16] %v7003, 128
        %7164 = vxpose.xlu0.b32.cont [15/16] %v7004, 128
        %7165 = vxpose.xlu0.b32.end [16/16] %v7005, 128
        %v7166 = vpop.trf.xlu0
        %v7167 = vpop.trf.xlu0
        %v7168 = vpop.trf.xlu0
        %v7169 = vpop.trf.xlu0
        %v7170 = vpop.trf.xlu0
        %v7171 = vpop.trf.xlu0
        %v7172 = vpop.trf.xlu0
        %v7173 = vpop.trf.xlu0
        %v7174 = vpop.trf.xlu0
        %v7175 = vpop.trf.xlu0
        %v7176 = vpop.trf.xlu0
        %v7177 = vpop.trf.xlu0
        %v7178 = vpop.trf.xlu0
        %v7179 = vpop.trf.xlu0
        %v7180 = vpop.trf.xlu0
        %v7181 = vpop.trf.xlu0
        %7182 = vxpose.xlu0.b32.start [1/16] %v7006, 128
        %7183 = vxpose.xlu0.b32.cont [2/16] %v7007, 128
        %7184 = vxpose.xlu0.b32.cont [3/16] %v7008, 128
        %7185 = vxpose.xlu0.b32.cont [4/16] %v7009, 128
        %7186 = vxpose.xlu0.b32.cont [5/16] %v7010, 128
        %7187 = vxpose.xlu0.b32.cont [6/16] %v7011, 128
        %7188 = vxpose.xlu0.b32.cont [7/16] %v7012, 128
        %7189 = vxpose.xlu0.b32.cont [8/16] %v7013, 128
        %7190 = vxpose.xlu0.b32.cont [9/16] %v7014, 128
        %7191 = vxpose.xlu0.b32.cont [10/16] %v7015, 128
        %7192 = vxpose.xlu0.b32.cont [11/16] %v7016, 128
        %7193 = vxpose.xlu0.b32.cont [12/16] %v7017, 128
        %7194 = vxpose.xlu0.b32.cont [13/16] %v7018, 128
        %7195 = vxpose.xlu0.b32.cont [14/16] %v7019, 128
        %7196 = vxpose.xlu0.b32.cont [15/16] %v7020, 128
        %7197 = vxpose.xlu0.b32.end [16/16] %v7021, 128
        %v7198 = vpop.trf.xlu0
        %v7199 = vpop.trf.xlu0
        %v7200 = vpop.trf.xlu0
        %v7201 = vpop.trf.xlu0
        %v7202 = vpop.trf.xlu0
        %v7203 = vpop.trf.xlu0
        %v7204 = vpop.trf.xlu0
        %v7205 = vpop.trf.xlu0
        %v7206 = vpop.trf.xlu0
        %v7207 = vpop.trf.xlu0
        %v7208 = vpop.trf.xlu0
        %v7209 = vpop.trf.xlu0
        %v7210 = vpop.trf.xlu0
        %v7211 = vpop.trf.xlu0
        %v7212 = vpop.trf.xlu0
        %v7213 = vpop.trf.xlu0
        %7214 = vxpose.xlu0.b32.start [1/16] %v7022, 128
        %7215 = vxpose.xlu0.b32.cont [2/16] %v7023, 128
        %7216 = vxpose.xlu0.b32.cont [3/16] %v7024, 128
        %7217 = vxpose.xlu0.b32.cont [4/16] %v7025, 128
        %7218 = vxpose.xlu0.b32.cont [5/16] %v7026, 128
        %7219 = vxpose.xlu0.b32.cont [6/16] %v7027, 128
        %7220 = vxpose.xlu0.b32.cont [7/16] %v7028, 128
        %7221 = vxpose.xlu0.b32.cont [8/16] %v7029, 128
        %7222 = vxpose.xlu0.b32.cont [9/16] %v7030, 128
        %7223 = vxpose.xlu0.b32.cont [10/16] %v7031, 128
        %7224 = vxpose.xlu0.b32.cont [11/16] %v7032, 128
        %7225 = vxpose.xlu0.b32.cont [12/16] %v7033, 128
        %7226 = vxpose.xlu0.b32.cont [13/16] %v7034, 128
        %7227 = vxpose.xlu0.b32.cont [14/16] %v7035, 128
        %7228 = vxpose.xlu0.b32.cont [15/16] %v7036, 128
        %7229 = vxpose.xlu0.b32.end [16/16] %v7037, 128
        %v7230 = vpop.trf.xlu0
        %v7231 = vpop.trf.xlu0
        %v7232 = vpop.trf.xlu0
        %v7233 = vpop.trf.xlu0
        %v7234 = vpop.trf.xlu0
        %v7235 = vpop.trf.xlu0
        %v7236 = vpop.trf.xlu0
        %v7237 = vpop.trf.xlu0
        %v7238 = vpop.trf.xlu0
        %v7239 = vpop.trf.xlu0
        %v7240 = vpop.trf.xlu0
        %v7241 = vpop.trf.xlu0
        %v7242 = vpop.trf.xlu0
        %v7243 = vpop.trf.xlu0
        %v7244 = vpop.trf.xlu0
        %v7245 = vpop.trf.xlu0
        %7246 = vxpose.xlu0.b32.start [1/16] %v7038, 128
        %7247 = vxpose.xlu0.b32.cont [2/16] %v7039, 128
        %7248 = vxpose.xlu0.b32.cont [3/16] %v7040, 128
        %7249 = vxpose.xlu0.b32.cont [4/16] %v7041, 128
        %7250 = vxpose.xlu0.b32.cont [5/16] %v7042, 128
        %7251 = vxpose.xlu0.b32.cont [6/16] %v7043, 128
        %7252 = vxpose.xlu0.b32.cont [7/16] %v7044, 128
        %7253 = vxpose.xlu0.b32.cont [8/16] %v7045, 128
        %7254 = vxpose.xlu0.b32.cont [9/16] %v7046, 128
        %7255 = vxpose.xlu0.b32.cont [10/16] %v7047, 128
        %7256 = vxpose.xlu0.b32.cont [11/16] %v7048, 128
        %7257 = vxpose.xlu0.b32.cont [12/16] %v7049, 128
        %7258 = vxpose.xlu0.b32.cont [13/16] %v7050, 128
        %7259 = vxpose.xlu0.b32.cont [14/16] %v7051, 128
        %7260 = vxpose.xlu0.b32.cont [15/16] %v7052, 128
        %7261 = vxpose.xlu0.b32.end [16/16] %v7053, 128
        %v7262 = vpop.trf.xlu0
        %v7263 = vpop.trf.xlu0
        %v7264 = vpop.trf.xlu0
        %v7265 = vpop.trf.xlu0
        %v7266 = vpop.trf.xlu0
        %v7267 = vpop.trf.xlu0
        %v7268 = vpop.trf.xlu0
        %v7269 = vpop.trf.xlu0
        %v7270 = vpop.trf.xlu0
        %v7271 = vpop.trf.xlu0
        %v7272 = vpop.trf.xlu0
        %v7273 = vpop.trf.xlu0
        %v7274 = vpop.trf.xlu0
        %v7275 = vpop.trf.xlu0
        %v7276 = vpop.trf.xlu0
        %v7277 = vpop.trf.xlu0
        %7278 = vxpose.xlu0.b32.start [1/16] %v7054, 128
        %7279 = vxpose.xlu0.b32.cont [2/16] %v7055, 128
        %7280 = vxpose.xlu0.b32.cont [3/16] %v7056, 128
        %7281 = vxpose.xlu0.b32.cont [4/16] %v7057, 128
        %7282 = vxpose.xlu0.b32.cont [5/16] %v7058, 128
        %7283 = vxpose.xlu0.b32.cont [6/16] %v7059, 128
        %7284 = vxpose.xlu0.b32.cont [7/16] %v7060, 128
        %7285 = vxpose.xlu0.b32.cont [8/16] %v7061, 128
        %7286 = vxpose.xlu0.b32.cont [9/16] %v7062, 128
        %7287 = vxpose.xlu0.b32.cont [10/16] %v7063, 128
        %7288 = vxpose.xlu0.b32.cont [11/16] %v7064, 128
        %7289 = vxpose.xlu0.b32.cont [12/16] %v7065, 128
        %7290 = vxpose.xlu0.b32.cont [13/16] %v7066, 128
        %7291 = vxpose.xlu0.b32.cont [14/16] %v7067, 128
        %7292 = vxpose.xlu0.b32.cont [15/16] %v7068, 128
        %7293 = vxpose.xlu0.b32.end [16/16] %v7069, 128
        %v7294 = vpop.trf.xlu0
        %v7295 = vpop.trf.xlu0
        %v7296 = vpop.trf.xlu0
        %v7297 = vpop.trf.xlu0
        %v7298 = vpop.trf.xlu0
        %v7299 = vpop.trf.xlu0
        %v7300 = vpop.trf.xlu0
        %v7301 = vpop.trf.xlu0
        %v7302 = vpop.trf.xlu0
        %v7303 = vpop.trf.xlu0
        %v7304 = vpop.trf.xlu0
        %v7305 = vpop.trf.xlu0
        %v7306 = vpop.trf.xlu0
        %v7307 = vpop.trf.xlu0
        %v7308 = vpop.trf.xlu0
        %v7309 = vpop.trf.xlu0
        %7310 = vxpose.xlu0.b32.start [1/16] %v7070, 128
        %7311 = vxpose.xlu0.b32.cont [2/16] %v7071, 128
        %7312 = vxpose.xlu0.b32.cont [3/16] %v7072, 128
        %7313 = vxpose.xlu0.b32.cont [4/16] %v7073, 128
        %7314 = vxpose.xlu0.b32.cont [5/16] %v7074, 128
        %7315 = vxpose.xlu0.b32.cont [6/16] %v7075, 128
        %7316 = vxpose.xlu0.b32.cont [7/16] %v7076, 128
        %7317 = vxpose.xlu0.b32.cont [8/16] %v7077, 128
        %7318 = vxpose.xlu0.b32.cont [9/16] %v7078, 128
        %7319 = vxpose.xlu0.b32.cont [10/16] %v7079, 128
        %7320 = vxpose.xlu0.b32.cont [11/16] %v7080, 128
        %7321 = vxpose.xlu0.b32.cont [12/16] %v7081, 128
        %7322 = vxpose.xlu0.b32.cont [13/16] %v7082, 128
        %7323 = vxpose.xlu0.b32.cont [14/16] %v7083, 128
        %7324 = vxpose.xlu0.b32.cont [15/16] %v7084, 128
        %7325 = vxpose.xlu0.b32.end [16/16] %v7085, 128
        %v7326 = vpop.trf.xlu0
        %v7327 = vpop.trf.xlu0
        %v7328 = vpop.trf.xlu0
        %v7329 = vpop.trf.xlu0
        %v7330 = vpop.trf.xlu0
        %v7331 = vpop.trf.xlu0
        %v7332 = vpop.trf.xlu0
        %v7333 = vpop.trf.xlu0
        %v7334 = vpop.trf.xlu0
        %v7335 = vpop.trf.xlu0
        %v7336 = vpop.trf.xlu0
        %v7337 = vpop.trf.xlu0
        %v7338 = vpop.trf.xlu0
        %v7339 = vpop.trf.xlu0
        %v7340 = vpop.trf.xlu0
        %v7341 = vpop.trf.xlu0
        %v7342 = vld [vmem:[%s6573 + $0x2] sm:$0xff]
        %v7343 = vld [vmem:[%s6573 + $0xa] sm:$0xff]
        %v7344 = vld [vmem:[%s6573 + $0x12] sm:$0xff]
        %v7345 = vld [vmem:[%s6573 + $0x1a] sm:$0xff]
        %v7346 = vld [vmem:[%s6573 + $0x2a] sm:$0xff]
        %v7347 = vld [vmem:[%s6573 + $0x32] sm:$0xff]
        %v7348 = vld [vmem:[%s6573 + $0x3a] sm:$0xff]
        %v7349 = vld [vmem:[%s6573 + $0x42] sm:$0xff]
        %v7350 = vld [vmem:[%s6573 + $0x52] sm:$0xff]
        %v7351 = vld [vmem:[%s6573 + $0x5a] sm:$0xff]
        %v7352 = vld [vmem:[%s6573 + $0x62] sm:$0xff]
        %v7353 = vld [vmem:[%s6573 + $0x6a] sm:$0xff]
        %v7354 = vld [vmem:[%s6573 + $0x7a] sm:$0xff]
        %v7355 = vld [vmem:[%s6573 + $0x82] sm:$0xff]
        %v7356 = vld [vmem:[%s6573 + $0x8a] sm:$0xff]
        %v7357 = vld [vmem:[%s6573 + $0x92] sm:$0xff]
        %v7358 = vld [vmem:[%s6573 + $0xa2] sm:$0xff]
        %v7359 = vld [vmem:[%s6573 + $0xaa] sm:$0xff]
        %v7360 = vld [vmem:[%s6573 + $0xb2] sm:$0xff]
        %v7361 = vld [vmem:[%s6573 + $0xba] sm:$0xff]
        %v7362 = vld [vmem:[%s6573 + $0xca] sm:$0xff]
        %v7363 = vld [vmem:[%s6573 + $0xd2] sm:$0xff]
        %v7364 = vld [vmem:[%s6573 + $0xda] sm:$0xff]
        %v7365 = vld [vmem:[%s6573 + $0xe2] sm:$0xff]
        %v7366 = vld [vmem:[%s6573 + $0xf2] sm:$0xff]
        %v7367 = vld [vmem:[%s6573 + $0xfa] sm:$0xff]
        %v7368 = vld [vmem:[%s6573 + $0x102] sm:$0xff]
        %v7369 = vld [vmem:[%s6573 + $0x10a] sm:$0xff]
        %v7370 = vld [vmem:[%s6573 + $0x11a] sm:$0xff]
        %v7371 = vld [vmem:[%s6573 + $0x122] sm:$0xff]
        %v7372 = vld [vmem:[%s6573 + $0x12a] sm:$0xff]
        %v7373 = vld [vmem:[%s6573 + $0x132] sm:$0xff]
        %v7374 = vld [vmem:[%s6573 + $0x142] sm:$0xff]
        %v7375 = vld [vmem:[%s6573 + $0x14a] sm:$0xff]
        %v7376 = vld [vmem:[%s6573 + $0x152] sm:$0xff]
        %v7377 = vld [vmem:[%s6573 + $0x15a] sm:$0xff]
        %v7378 = vld [vmem:[%s6573 + $0x16a] sm:$0xff]
        %v7379 = vld [vmem:[%s6573 + $0x172] sm:$0xff]
        %v7380 = vld [vmem:[%s6573 + $0x17a] sm:$0xff]
        %v7381 = vld [vmem:[%s6573 + $0x182] sm:$0xff]
        %v7382 = vld [vmem:[%s6573 + $0x192] sm:$0xff]
        %v7383 = vld [vmem:[%s6573 + $0x19a] sm:$0xff]
        %v7384 = vld [vmem:[%s6573 + $0x1a2] sm:$0xff]
        %v7385 = vld [vmem:[%s6573 + $0x1aa] sm:$0xff]
        %v7386 = vld [vmem:[%s6573 + $0x1ba] sm:$0xff]
        %v7387 = vld [vmem:[%s6573 + $0x1c2] sm:$0xff]
        %v7388 = vld [vmem:[%s6573 + $0x1ca] sm:$0xff]
        %v7389 = vld [vmem:[%s6573 + $0x1d2] sm:$0xff]
        %v7390 = vld [vmem:[%s6573 + $0x1e2] sm:$0xff]
        %v7391 = vld [vmem:[%s6573 + $0x1ea] sm:$0xff]
        %v7392 = vld [vmem:[%s6573 + $0x1f2] sm:$0xff]
        %v7393 = vld [vmem:[%s6573 + $0x1fa] sm:$0xff]
        %v7394 = vld [vmem:[%s6573 + $0x20a] sm:$0xff]
        %v7395 = vld [vmem:[%s6573 + $0x212] sm:$0xff]
        %v7396 = vld [vmem:[%s6573 + $0x21a] sm:$0xff]
        %v7397 = vld [vmem:[%s6573 + $0x222] sm:$0xff]
        %v7398 = vld [vmem:[%s6573 + $0x232] sm:$0xff]
        %v7399 = vld [vmem:[%s6573 + $0x23a] sm:$0xff]
        %v7400 = vld [vmem:[%s6573 + $0x242] sm:$0xff]
        %v7401 = vld [vmem:[%s6573 + $0x24a] sm:$0xff]
        %v7402 = vld [vmem:[%s6573 + $0x25a] sm:$0xff]
        %v7403 = vld [vmem:[%s6573 + $0x262] sm:$0xff]
        %v7404 = vld [vmem:[%s6573 + $0x26a] sm:$0xff]
        %v7405 = vld [vmem:[%s6573 + $0x272] sm:$0xff]
        %v7406 = vld [vmem:[%s6573 + $0x282] sm:$0xff]
        %v7407 = vld [vmem:[%s6573 + $0x28a] sm:$0xff]
        %v7408 = vld [vmem:[%s6573 + $0x292] sm:$0xff]
        %v7409 = vld [vmem:[%s6573 + $0x29a] sm:$0xff]
        %v7410 = vld [vmem:[%s6573 + $0x2aa] sm:$0xff]
        %v7411 = vld [vmem:[%s6573 + $0x2b2] sm:$0xff]
        %v7412 = vld [vmem:[%s6573 + $0x2ba] sm:$0xff]
        %v7413 = vld [vmem:[%s6573 + $0x2c2] sm:$0xff]
        %v7414 = vld [vmem:[%s6573 + $0x2d2] sm:$0xff]
        %v7415 = vld [vmem:[%s6573 + $0x2da] sm:$0xff]
        %v7416 = vld [vmem:[%s6573 + $0x2e2] sm:$0xff]
        %v7417 = vld [vmem:[%s6573 + $0x2ea] sm:$0xff]
        %v7418 = vld [vmem:[%s6573 + $0x2fa] sm:$0xff]
        %v7419 = vld [vmem:[%s6573 + $0x302] sm:$0xff]
        %v7420 = vld [vmem:[%s6573 + $0x30a] sm:$0xff]
        %v7421 = vld [vmem:[%s6573 + $0x312] sm:$0xff]
        %v7422 = vld [vmem:[%s6573 + $0x322] sm:$0xff]
        %v7423 = vld [vmem:[%s6573 + $0x32a] sm:$0xff]
        %v7424 = vld [vmem:[%s6573 + $0x332] sm:$0xff]
        %v7425 = vld [vmem:[%s6573 + $0x33a] sm:$0xff]
        %v7426 = vld [vmem:[%s6573 + $0x34a] sm:$0xff]
        %v7427 = vld [vmem:[%s6573 + $0x352] sm:$0xff]
        %v7428 = vld [vmem:[%s6573 + $0x35a] sm:$0xff]
        %v7429 = vld [vmem:[%s6573 + $0x362] sm:$0xff]
        %v7430 = vld [vmem:[%s6573 + $0x372] sm:$0xff]
        %v7431 = vld [vmem:[%s6573 + $0x37a] sm:$0xff]
        %v7432 = vld [vmem:[%s6573 + $0x382] sm:$0xff]
        %v7433 = vld [vmem:[%s6573 + $0x38a] sm:$0xff]
        %v7434 = vld [vmem:[%s6573 + $0x39a] sm:$0xff]
        %v7435 = vld [vmem:[%s6573 + $0x3a2] sm:$0xff]
        %v7436 = vld [vmem:[%s6573 + $0x3aa] sm:$0xff]
        %v7437 = vld [vmem:[%s6573 + $0x3b2] sm:$0xff]
        %v7438 = vld [vmem:[%s6573 + $0x3c2] sm:$0xff]
        %v7439 = vld [vmem:[%s6573 + $0x3ca] sm:$0xff]
        %v7440 = vld [vmem:[%s6573 + $0x3d2] sm:$0xff]
        %v7441 = vld [vmem:[%s6573 + $0x3da] sm:$0xff]
        %v7442 = vld [vmem:[%s6573 + $0x3ea] sm:$0xff]
        %v7443 = vld [vmem:[%s6573 + $0x3f2] sm:$0xff]
        %v7444 = vld [vmem:[%s6573 + $0x3fa] sm:$0xff]
        %v7445 = vld [vmem:[%s6573 + $0x402] sm:$0xff]
        %v7446 = vld [vmem:[%s6573 + $0x412] sm:$0xff]
        %v7447 = vld [vmem:[%s6573 + $0x41a] sm:$0xff]
        %v7448 = vld [vmem:[%s6573 + $0x422] sm:$0xff]
        %v7449 = vld [vmem:[%s6573 + $0x42a] sm:$0xff]
        %v7450 = vld [vmem:[%s6573 + $0x43a] sm:$0xff]
        %v7451 = vld [vmem:[%s6573 + $0x442] sm:$0xff]
        %v7452 = vld [vmem:[%s6573 + $0x44a] sm:$0xff]
        %v7453 = vld [vmem:[%s6573 + $0x452] sm:$0xff]
        %v7454 = vld [vmem:[%s6573 + $0x462] sm:$0xff]
        %v7455 = vld [vmem:[%s6573 + $0x46a] sm:$0xff]
        %v7456 = vld [vmem:[%s6573 + $0x472] sm:$0xff]
        %v7457 = vld [vmem:[%s6573 + $0x47a] sm:$0xff]
        %v7458 = vld [vmem:[%s6573 + $0x48a] sm:$0xff]
        %v7459 = vld [vmem:[%s6573 + $0x492] sm:$0xff]
        %v7460 = vld [vmem:[%s6573 + $0x49a] sm:$0xff]
        %v7461 = vld [vmem:[%s6573 + $0x4a2] sm:$0xff]
        %v7462 = vld [vmem:[%s6573 + $0x4b2] sm:$0xff]
        %v7463 = vld [vmem:[%s6573 + $0x4ba] sm:$0xff]
        %v7464 = vld [vmem:[%s6573 + $0x4c2] sm:$0xff]
        %v7465 = vld [vmem:[%s6573 + $0x4ca] sm:$0xff]
        %v7466 = vld [vmem:[%s6573 + $0x4da] sm:$0xff]
        %v7467 = vld [vmem:[%s6573 + $0x4e2] sm:$0xff]
        %v7468 = vld [vmem:[%s6573 + $0x4ea] sm:$0xff]
        %v7469 = vld [vmem:[%s6573 + $0x4f2] sm:$0xff]
        %7470 = vxpose.xlu0.b32.start [1/16] %v7342, 128
        %7471 = vxpose.xlu0.b32.cont [2/16] %v7343, 128
        %7472 = vxpose.xlu0.b32.cont [3/16] %v7344, 128
        %7473 = vxpose.xlu0.b32.cont [4/16] %v7345, 128
        %7474 = vxpose.xlu0.b32.cont [5/16] %v7346, 128
        %7475 = vxpose.xlu0.b32.cont [6/16] %v7347, 128
        %7476 = vxpose.xlu0.b32.cont [7/16] %v7348, 128
        %7477 = vxpose.xlu0.b32.cont [8/16] %v7349, 128
        %7478 = vxpose.xlu0.b32.cont [9/16] %v7350, 128
        %7479 = vxpose.xlu0.b32.cont [10/16] %v7351, 128
        %7480 = vxpose.xlu0.b32.cont [11/16] %v7352, 128
        %7481 = vxpose.xlu0.b32.cont [12/16] %v7353, 128
        %7482 = vxpose.xlu0.b32.cont [13/16] %v7354, 128
        %7483 = vxpose.xlu0.b32.cont [14/16] %v7355, 128
        %7484 = vxpose.xlu0.b32.cont [15/16] %v7356, 128
        %7485 = vxpose.xlu0.b32.end [16/16] %v7357, 128
        %v7486 = vpop.trf.xlu0
        %v7487 = vpop.trf.xlu0
        %v7488 = vpop.trf.xlu0
        %v7489 = vpop.trf.xlu0
        %v7490 = vpop.trf.xlu0
        %v7491 = vpop.trf.xlu0
        %v7492 = vpop.trf.xlu0
        %v7493 = vpop.trf.xlu0
        %v7494 = vpop.trf.xlu0
        %v7495 = vpop.trf.xlu0
        %v7496 = vpop.trf.xlu0
        %v7497 = vpop.trf.xlu0
        %v7498 = vpop.trf.xlu0
        %v7499 = vpop.trf.xlu0
        %v7500 = vpop.trf.xlu0
        %v7501 = vpop.trf.xlu0
        %7502 = vxpose.xlu0.b32.start [1/16] %v7358, 128
        %7503 = vxpose.xlu0.b32.cont [2/16] %v7359, 128
        %7504 = vxpose.xlu0.b32.cont [3/16] %v7360, 128
        %7505 = vxpose.xlu0.b32.cont [4/16] %v7361, 128
        %7506 = vxpose.xlu0.b32.cont [5/16] %v7362, 128
        %7507 = vxpose.xlu0.b32.cont [6/16] %v7363, 128
        %7508 = vxpose.xlu0.b32.cont [7/16] %v7364, 128
        %7509 = vxpose.xlu0.b32.cont [8/16] %v7365, 128
        %7510 = vxpose.xlu0.b32.cont [9/16] %v7366, 128
        %7511 = vxpose.xlu0.b32.cont [10/16] %v7367, 128
        %7512 = vxpose.xlu0.b32.cont [11/16] %v7368, 128
        %7513 = vxpose.xlu0.b32.cont [12/16] %v7369, 128
        %7514 = vxpose.xlu0.b32.cont [13/16] %v7370, 128
        %7515 = vxpose.xlu0.b32.cont [14/16] %v7371, 128
        %7516 = vxpose.xlu0.b32.cont [15/16] %v7372, 128
        %7517 = vxpose.xlu0.b32.end [16/16] %v7373, 128
        %v7518 = vpop.trf.xlu0
        %v7519 = vpop.trf.xlu0
        %v7520 = vpop.trf.xlu0
        %v7521 = vpop.trf.xlu0
        %v7522 = vpop.trf.xlu0
        %v7523 = vpop.trf.xlu0
        %v7524 = vpop.trf.xlu0
        %v7525 = vpop.trf.xlu0
        %v7526 = vpop.trf.xlu0
        %v7527 = vpop.trf.xlu0
        %v7528 = vpop.trf.xlu0
        %v7529 = vpop.trf.xlu0
        %v7530 = vpop.trf.xlu0
        %v7531 = vpop.trf.xlu0
        %v7532 = vpop.trf.xlu0
        %v7533 = vpop.trf.xlu0
        %7534 = vxpose.xlu0.b32.start [1/16] %v7374, 128
        %7535 = vxpose.xlu0.b32.cont [2/16] %v7375, 128
        %7536 = vxpose.xlu0.b32.cont [3/16] %v7376, 128
        %7537 = vxpose.xlu0.b32.cont [4/16] %v7377, 128
        %7538 = vxpose.xlu0.b32.cont [5/16] %v7378, 128
        %7539 = vxpose.xlu0.b32.cont [6/16] %v7379, 128
        %7540 = vxpose.xlu0.b32.cont [7/16] %v7380, 128
        %7541 = vxpose.xlu0.b32.cont [8/16] %v7381, 128
        %7542 = vxpose.xlu0.b32.cont [9/16] %v7382, 128
        %7543 = vxpose.xlu0.b32.cont [10/16] %v7383, 128
        %7544 = vxpose.xlu0.b32.cont [11/16] %v7384, 128
        %7545 = vxpose.xlu0.b32.cont [12/16] %v7385, 128
        %7546 = vxpose.xlu0.b32.cont [13/16] %v7386, 128
        %7547 = vxpose.xlu0.b32.cont [14/16] %v7387, 128
        %7548 = vxpose.xlu0.b32.cont [15/16] %v7388, 128
        %7549 = vxpose.xlu0.b32.end [16/16] %v7389, 128
        %v7550 = vpop.trf.xlu0
        %v7551 = vpop.trf.xlu0
        %v7552 = vpop.trf.xlu0
        %v7553 = vpop.trf.xlu0
        %v7554 = vpop.trf.xlu0
        %v7555 = vpop.trf.xlu0
        %v7556 = vpop.trf.xlu0
        %v7557 = vpop.trf.xlu0
        %v7558 = vpop.trf.xlu0
        %v7559 = vpop.trf.xlu0
        %v7560 = vpop.trf.xlu0
        %v7561 = vpop.trf.xlu0
        %v7562 = vpop.trf.xlu0
        %v7563 = vpop.trf.xlu0
        %v7564 = vpop.trf.xlu0
        %v7565 = vpop.trf.xlu0
        %7566 = vxpose.xlu0.b32.start [1/16] %v7390, 128
        %7567 = vxpose.xlu0.b32.cont [2/16] %v7391, 128
        %7568 = vxpose.xlu0.b32.cont [3/16] %v7392, 128
        %7569 = vxpose.xlu0.b32.cont [4/16] %v7393, 128
        %7570 = vxpose.xlu0.b32.cont [5/16] %v7394, 128
        %7571 = vxpose.xlu0.b32.cont [6/16] %v7395, 128
        %7572 = vxpose.xlu0.b32.cont [7/16] %v7396, 128
        %7573 = vxpose.xlu0.b32.cont [8/16] %v7397, 128
        %7574 = vxpose.xlu0.b32.cont [9/16] %v7398, 128
        %7575 = vxpose.xlu0.b32.cont [10/16] %v7399, 128
        %7576 = vxpose.xlu0.b32.cont [11/16] %v7400, 128
        %7577 = vxpose.xlu0.b32.cont [12/16] %v7401, 128
        %7578 = vxpose.xlu0.b32.cont [13/16] %v7402, 128
        %7579 = vxpose.xlu0.b32.cont [14/16] %v7403, 128
        %7580 = vxpose.xlu0.b32.cont [15/16] %v7404, 128
        %7581 = vxpose.xlu0.b32.end [16/16] %v7405, 128
        %v7582 = vpop.trf.xlu0
        %v7583 = vpop.trf.xlu0
        %v7584 = vpop.trf.xlu0
        %v7585 = vpop.trf.xlu0
        %v7586 = vpop.trf.xlu0
        %v7587 = vpop.trf.xlu0
        %v7588 = vpop.trf.xlu0
        %v7589 = vpop.trf.xlu0
        %v7590 = vpop.trf.xlu0
        %v7591 = vpop.trf.xlu0
        %v7592 = vpop.trf.xlu0
        %v7593 = vpop.trf.xlu0
        %v7594 = vpop.trf.xlu0
        %v7595 = vpop.trf.xlu0
        %v7596 = vpop.trf.xlu0
        %v7597 = vpop.trf.xlu0
        %7598 = vxpose.xlu0.b32.start [1/16] %v7406, 128
        %7599 = vxpose.xlu0.b32.cont [2/16] %v7407, 128
        %7600 = vxpose.xlu0.b32.cont [3/16] %v7408, 128
        %7601 = vxpose.xlu0.b32.cont [4/16] %v7409, 128
        %7602 = vxpose.xlu0.b32.cont [5/16] %v7410, 128
        %7603 = vxpose.xlu0.b32.cont [6/16] %v7411, 128
        %7604 = vxpose.xlu0.b32.cont [7/16] %v7412, 128
        %7605 = vxpose.xlu0.b32.cont [8/16] %v7413, 128
        %7606 = vxpose.xlu0.b32.cont [9/16] %v7414, 128
        %7607 = vxpose.xlu0.b32.cont [10/16] %v7415, 128
        %7608 = vxpose.xlu0.b32.cont [11/16] %v7416, 128
        %7609 = vxpose.xlu0.b32.cont [12/16] %v7417, 128
        %7610 = vxpose.xlu0.b32.cont [13/16] %v7418, 128
        %7611 = vxpose.xlu0.b32.cont [14/16] %v7419, 128
        %7612 = vxpose.xlu0.b32.cont [15/16] %v7420, 128
        %7613 = vxpose.xlu0.b32.end [16/16] %v7421, 128
        %v7614 = vpop.trf.xlu0
        %v7615 = vpop.trf.xlu0
        %v7616 = vpop.trf.xlu0
        %v7617 = vpop.trf.xlu0
        %v7618 = vpop.trf.xlu0
        %v7619 = vpop.trf.xlu0
        %v7620 = vpop.trf.xlu0
        %v7621 = vpop.trf.xlu0
        %v7622 = vpop.trf.xlu0
        %v7623 = vpop.trf.xlu0
        %v7624 = vpop.trf.xlu0
        %v7625 = vpop.trf.xlu0
        %v7626 = vpop.trf.xlu0
        %v7627 = vpop.trf.xlu0
        %v7628 = vpop.trf.xlu0
        %v7629 = vpop.trf.xlu0
        %7630 = vxpose.xlu0.b32.start [1/16] %v7422, 128
        %7631 = vxpose.xlu0.b32.cont [2/16] %v7423, 128
        %7632 = vxpose.xlu0.b32.cont [3/16] %v7424, 128
        %7633 = vxpose.xlu0.b32.cont [4/16] %v7425, 128
        %7634 = vxpose.xlu0.b32.cont [5/16] %v7426, 128
        %7635 = vxpose.xlu0.b32.cont [6/16] %v7427, 128
        %7636 = vxpose.xlu0.b32.cont [7/16] %v7428, 128
        %7637 = vxpose.xlu0.b32.cont [8/16] %v7429, 128
        %7638 = vxpose.xlu0.b32.cont [9/16] %v7430, 128
        %7639 = vxpose.xlu0.b32.cont [10/16] %v7431, 128
        %7640 = vxpose.xlu0.b32.cont [11/16] %v7432, 128
        %7641 = vxpose.xlu0.b32.cont [12/16] %v7433, 128
        %7642 = vxpose.xlu0.b32.cont [13/16] %v7434, 128
        %7643 = vxpose.xlu0.b32.cont [14/16] %v7435, 128
        %7644 = vxpose.xlu0.b32.cont [15/16] %v7436, 128
        %7645 = vxpose.xlu0.b32.end [16/16] %v7437, 128
        %v7646 = vpop.trf.xlu0
        %v7647 = vpop.trf.xlu0
        %v7648 = vpop.trf.xlu0
        %v7649 = vpop.trf.xlu0
        %v7650 = vpop.trf.xlu0
        %v7651 = vpop.trf.xlu0
        %v7652 = vpop.trf.xlu0
        %v7653 = vpop.trf.xlu0
        %v7654 = vpop.trf.xlu0
        %v7655 = vpop.trf.xlu0
        %v7656 = vpop.trf.xlu0
        %v7657 = vpop.trf.xlu0
        %v7658 = vpop.trf.xlu0
        %v7659 = vpop.trf.xlu0
        %v7660 = vpop.trf.xlu0
        %v7661 = vpop.trf.xlu0
        %7662 = vxpose.xlu0.b32.start [1/16] %v7438, 128
        %7663 = vxpose.xlu0.b32.cont [2/16] %v7439, 128
        %7664 = vxpose.xlu0.b32.cont [3/16] %v7440, 128
        %7665 = vxpose.xlu0.b32.cont [4/16] %v7441, 128
        %7666 = vxpose.xlu0.b32.cont [5/16] %v7442, 128
        %7667 = vxpose.xlu0.b32.cont [6/16] %v7443, 128
        %7668 = vxpose.xlu0.b32.cont [7/16] %v7444, 128
        %7669 = vxpose.xlu0.b32.cont [8/16] %v7445, 128
        %7670 = vxpose.xlu0.b32.cont [9/16] %v7446, 128
        %7671 = vxpose.xlu0.b32.cont [10/16] %v7447, 128
        %7672 = vxpose.xlu0.b32.cont [11/16] %v7448, 128
        %7673 = vxpose.xlu0.b32.cont [12/16] %v7449, 128
        %7674 = vxpose.xlu0.b32.cont [13/16] %v7450, 128
        %7675 = vxpose.xlu0.b32.cont [14/16] %v7451, 128
        %7676 = vxpose.xlu0.b32.cont [15/16] %v7452, 128
        %7677 = vxpose.xlu0.b32.end [16/16] %v7453, 128
        %v7678 = vpop.trf.xlu0
        %v7679 = vpop.trf.xlu0
        %v7680 = vpop.trf.xlu0
        %v7681 = vpop.trf.xlu0
        %v7682 = vpop.trf.xlu0
        %v7683 = vpop.trf.xlu0
        %v7684 = vpop.trf.xlu0
        %v7685 = vpop.trf.xlu0
        %v7686 = vpop.trf.xlu0
        %v7687 = vpop.trf.xlu0
        %v7688 = vpop.trf.xlu0
        %v7689 = vpop.trf.xlu0
        %v7690 = vpop.trf.xlu0
        %v7691 = vpop.trf.xlu0
        %v7692 = vpop.trf.xlu0
        %v7693 = vpop.trf.xlu0
        %7694 = vxpose.xlu0.b32.start [1/16] %v7454, 128
        %7695 = vxpose.xlu0.b32.cont [2/16] %v7455, 128
        %7696 = vxpose.xlu0.b32.cont [3/16] %v7456, 128
        %7697 = vxpose.xlu0.b32.cont [4/16] %v7457, 128
        %7698 = vxpose.xlu0.b32.cont [5/16] %v7458, 128
        %7699 = vxpose.xlu0.b32.cont [6/16] %v7459, 128
        %7700 = vxpose.xlu0.b32.cont [7/16] %v7460, 128
        %7701 = vxpose.xlu0.b32.cont [8/16] %v7461, 128
        %7702 = vxpose.xlu0.b32.cont [9/16] %v7462, 128
        %7703 = vxpose.xlu0.b32.cont [10/16] %v7463, 128
        %7704 = vxpose.xlu0.b32.cont [11/16] %v7464, 128
        %7705 = vxpose.xlu0.b32.cont [12/16] %v7465, 128
        %7706 = vxpose.xlu0.b32.cont [13/16] %v7466, 128
        %7707 = vxpose.xlu0.b32.cont [14/16] %v7467, 128
        %7708 = vxpose.xlu0.b32.cont [15/16] %v7468, 128
        %7709 = vxpose.xlu0.b32.end [16/16] %v7469, 128
        %v7710 = vpop.trf.xlu0
        %v7711 = vpop.trf.xlu0
        %v7712 = vpop.trf.xlu0
        %v7713 = vpop.trf.xlu0
        %v7714 = vpop.trf.xlu0
        %v7715 = vpop.trf.xlu0
        %v7716 = vpop.trf.xlu0
        %v7717 = vpop.trf.xlu0
        %v7718 = vpop.trf.xlu0
        %v7719 = vpop.trf.xlu0
        %v7720 = vpop.trf.xlu0
        %v7721 = vpop.trf.xlu0
        %v7722 = vpop.trf.xlu0
        %v7723 = vpop.trf.xlu0
        %v7724 = vpop.trf.xlu0
        %v7725 = vpop.trf.xlu0
        %v7734 = vrot.slane %v4792, 4
        %v7735 = vrot.slane %v4824, 4
        %v7736 = vrot.slane %v4856, 4
        %v7737 = vrot.slane %v4888, 4
        %v7738 = vrot.slane %v4920, 4
        %v7739 = vrot.slane %v4952, 4
        %v7740 = vrot.slane %v4984, 4
        %v7741 = vrot.slane %v5016, 4
        %v7758 = vrot.slane %v5563, 4
        %v7759 = vrot.slane %v5595, 4
        %v7760 = vrot.slane %v5627, 4
        %v7761 = vrot.slane %v5659, 4
        %v7762 = vrot.slane %v5691, 4
        %v7763 = vrot.slane %v5723, 4
        %v7764 = vrot.slane %v5755, 4
        %v7765 = vrot.slane %v5787, 4
        %v7782 = vrot.slane %v6331, 4
        %v7783 = vrot.slane %v6363, 4
        %v7784 = vrot.slane %v6395, 4
        %v7785 = vrot.slane %v6427, 4
        %v7786 = vrot.slane %v6459, 4
        %v7787 = vrot.slane %v6491, 4
        %v7788 = vrot.slane %v6523, 4
        %v7789 = vrot.slane %v6555, 4
        %v7806 = vrot.slane %v7102, 4
        %v7807 = vrot.slane %v7134, 4
        %v7808 = vrot.slane %v7166, 4
        %v7809 = vrot.slane %v7198, 4
        %v7810 = vrot.slane %v7230, 4
        %v7811 = vrot.slane %v7262, 4
        %v7812 = vrot.slane %v7294, 4
        %v7813 = vrot.slane %v7326, 4
        %vm7822 = vcmask 1043456
        %v7823 = vsel %vm7822, %v4408, %v7734
        %v7824 = vsel %vm7822, %v4440, %v7735
        %v7825 = vsel %vm7822, %v4472, %v7736
        %v7826 = vsel %vm7822, %v4504, %v7737
        %v7827 = vsel %vm7822, %v4536, %v7738
        %v7828 = vsel %vm7822, %v4568, %v7739
        %v7829 = vsel %vm7822, %v4600, %v7740
        %v7830 = vsel %vm7822, %v4632, %v7741
        %v7831 = vsel %vm7822, %v5176, %v7758
        %v7832 = vsel %vm7822, %v5208, %v7759
        %v7833 = vsel %vm7822, %v5240, %v7760
        %v7834 = vsel %vm7822, %v5272, %v7761
        %v7835 = vsel %vm7822, %v5304, %v7762
        %v7836 = vsel %vm7822, %v5336, %v7763
        %v7837 = vsel %vm7822, %v5368, %v7764
        %v7838 = vsel %vm7822, %v5400, %v7765
        %v7839 = vsel %vm7822, %v5947, %v7782
        %v7840 = vsel %vm7822, %v5979, %v7783
        %v7841 = vsel %vm7822, %v6011, %v7784
        %v7842 = vsel %vm7822, %v6043, %v7785
        %v7843 = vsel %vm7822, %v6075, %v7786
        %v7844 = vsel %vm7822, %v6107, %v7787
        %v7845 = vsel %vm7822, %v6139, %v7788
        %v7846 = vsel %vm7822, %v6171, %v7789
        %v7847 = vsel %vm7822, %v6718, %v7806
        %v7848 = vsel %vm7822, %v6750, %v7807
        %v7849 = vsel %vm7822, %v6782, %v7808
        %v7850 = vsel %vm7822, %v6814, %v7809
        %v7851 = vsel %vm7822, %v6846, %v7810
        %v7852 = vsel %vm7822, %v6878, %v7811
        %v7853 = vsel %vm7822, %v6910, %v7812
        %v7854 = vsel %vm7822, %v6942, %v7813
        %v7855 = vld [vmem:[%s1] sm:$0xff]
        %v7856 = vld [vmem:[%s2] sm:$0xff]
        %7858 = vset.pattern.permute.xlu0 0
        %7859 = vperm.xlu0 %7858, %v7856
        %v7860 = vpop.permute.xlu0 %7859
        %vm7862 = vcmask 293888
        %v7864 = vsel %vm7862, %v7855, 0
        %v7867 = vsel %vm7822, %v7486, 0
        %v7870 = vsel %vm7822, %v7518, 0
        %v7873 = vsel %vm7822, %v7550, 0
        %v7876 = vsel %vm7822, %v7582, 0
        %v7879 = vsel %vm7822, %v7614, 0
        %v7882 = vsel %vm7822, %v7646, 0
        %v7885 = vsel %vm7822, %v7678, 0
        %v7888 = vsel %vm7822, %v7710, 0
        %7890 = vmatprep.subr.mxu0 %v7824
        %7891 = vmatpush1.msra.mxu0 %v7823
        %7892 = vmatprep.subr.mxu0 %v7832
        %7893 = vmatpush1.msra.mxu0 %v7831
        %7894 = vmatprep.subr.mxu0 %v7840
        %7895 = vmatpush1.msra.mxu0 %v7839
        %7896 = vmatprep.subr.mxu0 %v7848
        %7897 = vmatpush1.msra.mxu0 %v7847
        %7898 = vmatprep.subr.mxu0 %v7870
        %7899 = vmatpush1.msra.mxu0 %v7867
        %7900 = vmatprep.subr.mxu0 0.0
        %7901 = vmatpush1.msra.mxu0 0.0
        %7902 = vmatprep.subr.mxu0 0.0
        %7903 = vmatpush1.msra.mxu0 0.0
        %7904 = vmatprep.subr.mxu0 0.0
        %7905 = vmatpush1.msra.mxu0 0.0
        %7906 = vmatprep.subr.mxu0 0.0
        %7907 = vmatpush1.msra.mxu0 0.0
        %7908 = vmatprep.subr.mxu0 0.0
        %7909 = vmatpush1.msra.mxu0 0.0
        %7910 = vmatprep.subr.mxu0 0.0
        %7911 = vmatpush1.msra.mxu0 0.0
        %7912 = vmatprep.subr.mxu0 0.0
        %7913 = vmatpush1.msra.mxu0 0.0
        %7914 = vmatprep.subr.mxu0 0.0
        %7915 = vmatpush1.msra.mxu0 0.0
        %7916 = vmatprep.subr.mxu0 0.0
        %7917 = vmatpush1.msra.mxu0 0.0
        %7918 = vmatprep.subr.mxu0 0.0
        %7919 = vmatpush1.msra.mxu0 0.0
        %7920 = vmatprep.subr.mxu0 0.0
        %7921 = vmatpush1.msra.mxu0 0.0
        %7922 = vmatprep.subr.mxu0 0.0
        %7923 = vmatpush1.msra.mxu0 0.0
        %7924 = vmatprep.subr.mxu0 0.0
        %7925 = vmatpush1.msra.mxu0 0.0
        %7926 = vmatprep.subr.mxu0 0.0
        %7927 = vmatpush1.msra.mxu0 0.0
        %7928 = vmatprep.subr.mxu0 0.0
        %7929 = vmatpush1.msra.mxu0 0.0
        %7930 = vmatprep.subr.mxu0 0.0
        %7931 = vmatpush1.msra.mxu0 0.0
        %7932 = vmatprep.subr.mxu0 0.0
        %7933 = vmatpush1.msra.mxu0 0.0
        %7934 = vmatprep.subr.mxu0 0.0
        %7935 = vmatpush1.msra.mxu0 0.0
        %7936 = vmatprep.subr.mxu0 0.0
        %7937 = vmatpush1.msra.mxu0 0.0
        %7938 = vmatprep.subr.mxu0 0.0
        %7939 = vmatpush1.msra.mxu0 0.0
        %7940 = vmatprep.subr.mxu0 0.0
        %7941 = vmatpush1.msra.mxu0 0.0
        %7942 = vmatprep.subr.mxu0 0.0
        %7943 = vmatpush1.msra.mxu0 0.0
        %7944 = vmatprep.subr.mxu0 0.0
        %7945 = vmatpush1.msra.mxu0 0.0
        %7946 = vmatprep.subr.mxu0 0.0
        %7947 = vmatpush1.msra.mxu0 0.0
        %7948 = vmatprep.subr.mxu0 0.0
        %7949 = vmatpush1.msra.mxu0 0.0
        %7950 = vmatprep.subr.mxu0 0.0
        %7951 = vmatpush1.msra.mxu0 0.0
        %7952 = vmatprep.subr.mxu0 0.0
        %7953 = vmatpush1.msra.mxu0 0.0
        %7954 = vmatprep.mubr.f32.mxu0 0.0
        %7955 = vmatmul.mubr.f32.gmra.mrb[0].mxu0 %v7864
        %v7956 = vpop.f32.mrb[0].mxu0
        %v7957 = vadd.f32 %v7860, %v7956
        %v7958 = vpop.f32.mrb[0].mxu0
        %v7959 = vadd.f32 %v7860, %v7958
        %7960 = vdwg.mxu0
        %7961 = vmatprep.subr.mxu0 %v7826
        %7962 = vmatpush1.msra.mxu0 %v7825
        %7963 = vmatprep.subr.mxu0 %v7834
        %7964 = vmatpush1.msra.mxu0 %v7833
        %7965 = vmatprep.subr.mxu0 %v7842
        %7966 = vmatpush1.msra.mxu0 %v7841
        %7967 = vmatprep.subr.mxu0 %v7850
        %7968 = vmatpush1.msra.mxu0 %v7849
        %7969 = vmatprep.subr.mxu0 %v7876
        %7970 = vmatpush1.msra.mxu0 %v7873
        %7971 = vmatprep.subr.mxu0 0.0
        %7972 = vmatpush1.msra.mxu0 0.0
        %7973 = vmatprep.subr.mxu0 0.0
        %7974 = vmatpush1.msra.mxu0 0.0
        %7975 = vmatprep.subr.mxu0 0.0
        %7976 = vmatpush1.msra.mxu0 0.0
        %7977 = vmatprep.subr.mxu0 0.0
        %7978 = vmatpush1.msra.mxu0 0.0
        %7979 = vmatprep.subr.mxu0 0.0
        %7980 = vmatpush1.msra.mxu0 0.0
        %7981 = vmatprep.subr.mxu0 0.0
        %7982 = vmatpush1.msra.mxu0 0.0
        %7983 = vmatprep.subr.mxu0 0.0
        %7984 = vmatpush1.msra.mxu0 0.0
        %7985 = vmatprep.subr.mxu0 0.0
        %7986 = vmatpush1.msra.mxu0 0.0
        %7987 = vmatprep.subr.mxu0 0.0
        %7988 = vmatpush1.msra.mxu0 0.0
        %7989 = vmatprep.subr.mxu0 0.0
        %7990 = vmatpush1.msra.mxu0 0.0
        %7991 = vmatprep.subr.mxu0 0.0
        %7992 = vmatpush1.msra.mxu0 0.0
        %7993 = vmatprep.subr.mxu0 0.0
        %7994 = vmatpush1.msra.mxu0 0.0
        %7995 = vmatprep.subr.mxu0 0.0
        %7996 = vmatpush1.msra.mxu0 0.0
        %7997 = vmatprep.subr.mxu0 0.0
        %7998 = vmatpush1.msra.mxu0 0.0
        %7999 = vmatprep.subr.mxu0 0.0
        %8000 = vmatpush1.msra.mxu0 0.0
        %8001 = vmatprep.subr.mxu0 0.0
        %8002 = vmatpush1.msra.mxu0 0.0
        %8003 = vmatprep.subr.mxu0 0.0
        %8004 = vmatpush1.msra.mxu0 0.0
        %8005 = vmatprep.subr.mxu0 0.0
        %8006 = vmatpush1.msra.mxu0 0.0
        %8007 = vmatprep.subr.mxu0 0.0
        %8008 = vmatpush1.msra.mxu0 0.0
        %8009 = vmatprep.subr.mxu0 0.0
        %8010 = vmatpush1.msra.mxu0 0.0
        %8011 = vmatprep.subr.mxu0 0.0
        %8012 = vmatpush1.msra.mxu0 0.0
        %8013 = vmatprep.subr.mxu0 0.0
        %8014 = vmatpush1.msra.mxu0 0.0
        %8015 = vmatprep.subr.mxu0 0.0
        %8016 = vmatpush1.msra.mxu0 0.0
        %8017 = vmatprep.subr.mxu0 0.0
        %8018 = vmatpush1.msra.mxu0 0.0
        %8019 = vmatprep.subr.mxu0 0.0
        %8020 = vmatpush1.msra.mxu0 0.0
        %8021 = vmatprep.subr.mxu0 0.0
        %8022 = vmatpush1.msra.mxu0 0.0
        %8023 = vmatprep.subr.mxu0 0.0
        %8024 = vmatpush1.msra.mxu0 0.0
        %8025 = vmatprep.mubr.f32.mxu0 0.0
        %8026 = vmatmul.mubr.f32.gmra.mrb[0].mxu0 %v7864
        %v8027 = vpop.f32.mrb[0].mxu0
        %v8028 = vadd.f32 %v7860, %v8027
        %v8029 = vpop.f32.mrb[0].mxu0
        %v8030 = vadd.f32 %v7860, %v8029
        %8031 = vdwg.mxu0
        %8032 = vmatprep.subr.mxu0 %v7828
        %8033 = vmatpush1.msra.mxu0 %v7827
        %8034 = vmatprep.subr.mxu0 %v7836
        %8035 = vmatpush1.msra.mxu0 %v7835
        %8036 = vmatprep.subr.mxu0 %v7844
        %8037 = vmatpush1.msra.mxu0 %v7843
        %8038 = vmatprep.subr.mxu0 %v7852
        %8039 = vmatpush1.msra.mxu0 %v7851
        %8040 = vmatprep.subr.mxu0 %v7882
        %8041 = vmatpush1.msra.mxu0 %v7879
        %8042 = vmatprep.subr.mxu0 0.0
        %8043 = vmatpush1.msra.mxu0 0.0
        %8044 = vmatprep.subr.mxu0 0.0
        %8045 = vmatpush1.msra.mxu0 0.0
        %8046 = vmatprep.subr.mxu0 0.0
        %8047 = vmatpush1.msra.mxu0 0.0
        %8048 = vmatprep.subr.mxu0 0.0
        %8049 = vmatpush1.msra.mxu0 0.0
        %8050 = vmatprep.subr.mxu0 0.0
        %8051 = vmatpush1.msra.mxu0 0.0
        %8052 = vmatprep.subr.mxu0 0.0
        %8053 = vmatpush1.msra.mxu0 0.0
        %8054 = vmatprep.subr.mxu0 0.0
        %8055 = vmatpush1.msra.mxu0 0.0
        %8056 = vmatprep.subr.mxu0 0.0
        %8057 = vmatpush1.msra.mxu0 0.0
        %8058 = vmatprep.subr.mxu0 0.0
        %8059 = vmatpush1.msra.mxu0 0.0
        %8060 = vmatprep.subr.mxu0 0.0
        %8061 = vmatpush1.msra.mxu0 0.0
        %8062 = vmatprep.subr.mxu0 0.0
        %8063 = vmatpush1.msra.mxu0 0.0
        %8064 = vmatprep.subr.mxu0 0.0
        %8065 = vmatpush1.msra.mxu0 0.0
        %8066 = vmatprep.subr.mxu0 0.0
        %8067 = vmatpush1.msra.mxu0 0.0
        %8068 = vmatprep.subr.mxu0 0.0
        %8069 = vmatpush1.msra.mxu0 0.0
        %8070 = vmatprep.subr.mxu0 0.0
        %8071 = vmatpush1.msra.mxu0 0.0
        %8072 = vmatprep.subr.mxu0 0.0
        %8073 = vmatpush1.msra.mxu0 0.0
        %8074 = vmatprep.subr.mxu0 0.0
        %8075 = vmatpush1.msra.mxu0 0.0
        %8076 = vmatprep.subr.mxu0 0.0
        %8077 = vmatpush1.msra.mxu0 0.0
        %8078 = vmatprep.subr.mxu0 0.0
        %8079 = vmatpush1.msra.mxu0 0.0
        %8080 = vmatprep.subr.mxu0 0.0
        %8081 = vmatpush1.msra.mxu0 0.0
        %8082 = vmatprep.subr.mxu0 0.0
        %8083 = vmatpush1.msra.mxu0 0.0
        %8084 = vmatprep.subr.mxu0 0.0
        %8085 = vmatpush1.msra.mxu0 0.0
        %8086 = vmatprep.subr.mxu0 0.0
        %8087 = vmatpush1.msra.mxu0 0.0
        %8088 = vmatprep.subr.mxu0 0.0
        %8089 = vmatpush1.msra.mxu0 0.0
        %8090 = vmatprep.subr.mxu0 0.0
        %8091 = vmatpush1.msra.mxu0 0.0
        %8092 = vmatprep.subr.mxu0 0.0
        %8093 = vmatpush1.msra.mxu0 0.0
        %8094 = vmatprep.subr.mxu0 0.0
        %8095 = vmatpush1.msra.mxu0 0.0
        %8096 = vmatprep.mubr.f32.mxu0 0.0
        %8097 = vmatmul.mubr.f32.gmra.mrb[0].mxu0 %v7864
        %v8098 = vpop.f32.mrb[0].mxu0
        %v8099 = vadd.f32 %v7860, %v8098
        %v8100 = vpop.f32.mrb[0].mxu0
        %v8101 = vadd.f32 %v7860, %v8100
        %8102 = vdwg.mxu0
        %8103 = vmatprep.subr.mxu0 %v7830
        %8104 = vmatpush1.msra.mxu0 %v7829
        %8105 = vmatprep.subr.mxu0 %v7838
        %8106 = vmatpush1.msra.mxu0 %v7837
        %8107 = vmatprep.subr.mxu0 %v7846
        %8108 = vmatpush1.msra.mxu0 %v7845
        %8109 = vmatprep.subr.mxu0 %v7854
        %8110 = vmatpush1.msra.mxu0 %v7853
        %8111 = vmatprep.subr.mxu0 %v7888
        %8112 = vmatpush1.msra.mxu0 %v7885
        %8113 = vmatprep.subr.mxu0 0.0
        %8114 = vmatpush1.msra.mxu0 0.0
        %8115 = vmatprep.subr.mxu0 0.0
        %8116 = vmatpush1.msra.mxu0 0.0
        %8117 = vmatprep.subr.mxu0 0.0
        %8118 = vmatpush1.msra.mxu0 0.0
        %8119 = vmatprep.subr.mxu0 0.0
        %8120 = vmatpush1.msra.mxu0 0.0
        %8121 = vmatprep.subr.mxu0 0.0
        %8122 = vmatpush1.msra.mxu0 0.0
        %8123 = vmatprep.subr.mxu0 0.0
        %8124 = vmatpush1.msra.mxu0 0.0
        %8125 = vmatprep.subr.mxu0 0.0
        %8126 = vmatpush1.msra.mxu0 0.0
        %8127 = vmatprep.subr.mxu0 0.0
        %8128 = vmatpush1.msra.mxu0 0.0
        %8129 = vmatprep.subr.mxu0 0.0
        %8130 = vmatpush1.msra.mxu0 0.0
        %8131 = vmatprep.subr.mxu0 0.0
        %8132 = vmatpush1.msra.mxu0 0.0
        %8133 = vmatprep.subr.mxu0 0.0
        %8134 = vmatpush1.msra.mxu0 0.0
        %8135 = vmatprep.subr.mxu0 0.0
        %8136 = vmatpush1.msra.mxu0 0.0
        %8137 = vmatprep.subr.mxu0 0.0
        %8138 = vmatpush1.msra.mxu0 0.0
        %8139 = vmatprep.subr.mxu0 0.0
        %8140 = vmatpush1.msra.mxu0 0.0
        %8141 = vmatprep.subr.mxu0 0.0
        %8142 = vmatpush1.msra.mxu0 0.0
        %8143 = vmatprep.subr.mxu0 0.0
        %8144 = vmatpush1.msra.mxu0 0.0
        %8145 = vmatprep.subr.mxu0 0.0
        %8146 = vmatpush1.msra.mxu0 0.0
        %8147 = vmatprep.subr.mxu0 0.0
        %8148 = vmatpush1.msra.mxu0 0.0
        %8149 = vmatprep.subr.mxu0 0.0
        %8150 = vmatpush1.msra.mxu0 0.0
        %8151 = vmatprep.subr.mxu0 0.0
        %8152 = vmatpush1.msra.mxu0 0.0
        %8153 = vmatprep.subr.mxu0 0.0
        %8154 = vmatpush1.msra.mxu0 0.0
        %8155 = vmatprep.subr.mxu0 0.0
        %8156 = vmatpush1.msra.mxu0 0.0
        %8157 = vmatprep.subr.mxu0 0.0
        %8158 = vmatpush1.msra.mxu0 0.0
        %8159 = vmatprep.subr.mxu0 0.0
        %8160 = vmatpush1.msra.mxu0 0.0
        %8161 = vmatprep.subr.mxu0 0.0
        %8162 = vmatpush1.msra.mxu0 0.0
        %8163 = vmatprep.subr.mxu0 0.0
        %8164 = vmatpush1.msra.mxu0 0.0
        %8165 = vmatprep.subr.mxu0 0.0
        %8166 = vmatpush1.msra.mxu0 0.0
        %8167 = vmatprep.mubr.f32.mxu0 0.0
        %8168 = vmatmul.mubr.f32.gmra.mrb[0].mxu0 %v7864
        %v8169 = vpop.f32.mrb[0].mxu0
        %v8170 = vadd.f32 %v7860, %v8169
        %v8171 = vpop.f32.mrb[0].mxu0
        %v8172 = vadd.f32 %v7860, %v8171
        %8173 = vdwg.mxu0
        %8174 = vst [vmem:[%s200] sm:$0xff] %v7957
        %8175 = vst [vmem:[%s200 + $0x8] sm:$0xff] %v7959
        %8176 = vst [vmem:[%s200 + $0x10] sm:$0xff] %v8028
        %8177 = vst [vmem:[%s200 + $0x18] sm:$0xff] %v8030
        %8178 = vst [vmem:[%s200 + $0x20] sm:$0xff] %v8099
        %8179 = vst [vmem:[%s200 + $0x28] sm:$0xff] %v8101
        %8180 = vst [vmem:[%s200 + $0x30] sm:$0xff] %v8170
        %8181 = vst [vmem:[%s200 + $0x38] sm:$0xff] %v8172
        %s8182 = sand.u32 %s110, 1
        %s8183 = scalar_lea.sflag [#allocation5], %s8182
        %s8184 = sand.u32 %s110, 1
        %s8185 = smul.addr %s8184, 64
        %s8186 = scalar_lea.vmem [#allocation6], %s8185
        // Predicated region
        $region41: #{tpu_custom_call.1} parent=31 // pred_check
          %p8187 = pneg %p120
        $region42: #{tpu_custom_call.1} parent=31 // pred_check_branch
          %8189 = sbr.rel (%p8187) target = $region44
        $region43: #{tpu_custom_call.1} parent=31 // pred_region
          %s8190 = smul.u32 8, %s25
          %s8192 = ssub.s32 1024, 1024
          %8193 = vsyncadd %s8183, %s8192
          %s8194 = smul.addr %s24, 8
          %s8195 = sadd.s32 %s8190, %s8194
          %s8196 = smul.addr %s8195, 128
          %s8197 = scalar_lea.hbm %s3, %s8196
          %s8199 = sshll.u32 %s8186, 4
          %s8200 = int_to_ptr.vmem [resolvable:$true] %s8199
          %8202 = dma.vmem_to_hbm [thread:$0]  %s8200, 1024, %s8197, %s8183
        $region44: #{tpu_custom_call.1} parent=31 // pred_fallthru
          _
      $region32: #{tpu_custom_call.1} parent=5 // pred_fallthru
        _
      %p8203 = scmp.le.s32.totalorder 2, %s15
      // Predicated region
      $region45: #{tpu_custom_call.1} parent=5 // pred_check
        %p8204 = pneg %p8203
      $region46: #{tpu_custom_call.1} parent=5 // pred_check_branch
        %8206 = sbr.rel (%p8204) target = $region48
      $region47: #{tpu_custom_call.1} parent=5 // pred_region
        %s8207 = ssub.s32 %s15, 2
        // Predicated region
        $region49: #{tpu_custom_call.1} parent=47 // pred_check
          %p8208 = pneg %p126
        $region50: #{tpu_custom_call.1} parent=47 // pred_check_branch
          %8210 = sbr.rel (%p8208) target = $region52
        $region51: #{tpu_custom_call.1} parent=47 // pred_region
          %s8211 = sand.u32 %s111, 1
          %s8212 = scalar_lea.sflag [#allocation5], %s8211
          %s8213 = sand.u32 %s111, 1
          %s8214 = smul.addr %s8213, 64
          %s8215 = scalar_lea.vmem [#allocation6], %s8214
          %8216 = dma.done %s8212, 1024
        $region52: #{tpu_custom_call.1} parent=47 // pred_fallthru
          _
      $region48: #{tpu_custom_call.1} parent=5 // pred_fallthru
        _
    $region6: #{tpu_custom_call.1} parent=1 // loop_footer
      %s19 = sadd.s32 1, %s15
    $region7: #{tpu_custom_call.1} parent=1 // loop_footer_branch
      %14 = sbr.rel target = $region3
    $region8: #{tpu_custom_call.1} parent=1 // loop_exit
      _
    %8217 = vsyncpa [#allocation4], 1
    %s8218 = scalar_lea.sflag [#allocation4], 1
    %8219 = vsyncpa %s8218, 1
    %8220 = vsyncpa [#allocation5], 1
    %s8221 = scalar_lea.sflag [#allocation5], 1
    %8222 = vsyncpa %s8221, 1

</llo_original>
